<compile_context>
chip_gen: v5e
topology: v5e:2x2
jax: 0.10.0
libtpu: 0.0.40
codegen_flags: <defaults>
</compile_context>

<pallas_src>
import functools

import jax
import jax.numpy as jnp
from jax.experimental import pallas as pl
from jax.experimental.pallas import tpu as pltpu

_VMEM_LIMIT = 32 * 1024 * 1024   # blocks are small; safe on v5e/v6e/v7x
_FC3_PAD = 128                   # pad fc3's N=10 up to a full lane tile


def _round_up(x, m):
    return -(-x // m) * m


def _pad_geo(h, w):
    """Zero-padded, flattened geometry for an (h, w) image with a 1-px halo.
    lpad includes a small trailing halo so every shifted 3x3 tap read of the
    computed rows stays in bounds (the halo is written as zeros)."""
    hp, wp = h + 2, w + 2
    lpad = hp * wp + wp + 8
    return hp, wp, lpad


def _pick_bblk(b):
    """Images per conv grid step: big enough to amortize grid-step overhead
    and fill the MXU, small enough to keep >= 2 grid steps (v7x megacore)."""
    for cand in (16, 8, 4, 2, 1):
        if b % cand == 0 and (b // cand >= 2 or b < 2):
            return cand
    return 1


# ----------------------------- Pallas kernels ------------------------------ #

def _pool_bias_relu_store(acc_ref, b_ref, o_ref, *, row_pitch, h_out, w_out,
                          out_wp):
    """2x2/stride-2 max-pool of the conv accumulator, then bias + ReLU
    (monotonic, so they commute with max), then store.

    acc_ref : (Bblk, rows, Cout) f32; acc[:, h*row_pitch + w, :] is the conv
              output at (h, w) (columns >= the true image width are garbage
              that the pool never reads).
    If out_wp is set the pooled rows are written into the NEXT stage's
    zero-padded flattened layout (interior of an (h_out+2, out_wp) image);
    the whole output block is zeroed first so halo/border stay zero.
    """
    bias = b_ref[...]                                   # (1, Cout)
    if out_wp is not None:
        o_ref[...] = jnp.zeros(o_ref.shape, o_ref.dtype)
    for io in range(h_out):
        r0 = 2 * io * row_pitch
        a = acc_ref[:, pl.ds(r0, w_out, 2), :]
        b = acc_ref[:, pl.ds(r0 + 1, w_out, 2), :]
        c = acc_ref[:, pl.ds(r0 + row_pitch, w_out, 2), :]
        d = acc_ref[:, pl.ds(r0 + row_pitch + 1, w_out, 2), :]
        m = jnp.maximum(jnp.maximum(a, b), jnp.maximum(c, d))
        row = jnp.maximum(m + bias, 0.0).astype(o_ref.dtype)
        if out_wp is not None:
            o_ref[:, pl.ds((io + 1) * out_wp + 1, w_out), :] = row
        else:
            o_ref[:, pl.ds(io * w_out, w_out), :] = row


def _conv1_kernel(x_ref, w_ref, b_ref, o_ref, acc_ref, *, bblk, out_wp):
    """conv1 (1->32) as one im2col matmul + bias + ReLU + 2x2 pool.

    x_ref  : (Bblk, 784, 9)  bf16 patches (kh*3 + kw taps)
    w_ref  : (9, 32) bf16, b_ref: (1, 32) f32
    acc_ref: (Bblk, 784, 32) f32 scratch (written once)
    o_ref  : (Bblk, Lpad2, 32) -- conv2's padded flattened layout
    """
    x = x_ref[...].reshape(bblk * 784, 9)
    acc = jnp.dot(x, w_ref[...], preferred_element_type=jnp.float32)
    acc_ref[...] = acc.reshape(bblk, 784, 32)
    _pool_bias_relu_store(acc_ref, b_ref, o_ref, row_pitch=28, h_out=14,
                          w_out=14, out_wp=out_wp)


def _conv_mid_kernel(x_ref, w_ref, b_ref, o_ref, acc_ref, *, bblk, cin, cout,
                     wp, rows, h_out, w_out, out_wp):
    """3x3 same-conv (kw taps merged into K) + bias + ReLU + 2x2 pool.

    x_ref  : (Bblk, Lpad_in, Cin) bf16, zero-padded flattened input
    w_ref  : (3, 3*Cin, Cout) bf16 -- per-kh tap, kw folded into K
    b_ref  : (1, Cout) f32
    acc_ref: (Bblk, rows, Cout) f32 scratch (written once)
    o_ref  : next stage's padded layout, or (Bblk, h_out*w_out, Cout)
    """
    acc = None
    for kh in range(3):
        # Merge the three kw-shifted slabs into one K=3*Cin contraction.
        slab = jnp.concatenate(
            [x_ref[:, pl.ds(kh * wp + kw, rows), :] for kw in range(3)],
            axis=-1)                                     # (Bblk, rows, 3*Cin)
        slab = slab.reshape(bblk * rows, 3 * cin)
        part = jnp.dot(slab, w_ref[kh], preferred_element_type=jnp.float32)
        acc = part if acc is None else acc + part
    acc_ref[...] = acc.reshape(bblk, rows, cout)         # single scratch write
    _pool_bias_relu_store(acc_ref, b_ref, o_ref, row_pitch=wp, h_out=h_out,
                          w_out=w_out, out_wp=out_wp)


def _fc_head_kernel(x_ref, w1_ref, b1_ref, w2_ref, b2_ref, w3_ref, b3_ref,
                    o_ref):
    """Fused fc1(+ReLU) -> fc2(+ReLU) -> fc3 for one tile of rows."""
    h = jnp.dot(x_ref[...], w1_ref[...], preferred_element_type=jnp.float32)
    h = jnp.maximum(h + b1_ref[...], 0.0)
    h = jnp.dot(h.astype(w2_ref.dtype), w2_ref[...],
                preferred_element_type=jnp.float32)
    h = jnp.maximum(h + b2_ref[...], 0.0)
    h = jnp.dot(h.astype(w3_ref.dtype), w3_ref[...],
                preferred_element_type=jnp.float32)
    o_ref[...] = (h + b3_ref[...]).astype(o_ref.dtype)


# ------------------------------ stage wrappers ------------------------------ #

def _conv1_im2col(x_nchw):
    """(B,1,28,28) f32 -> 3x3 'same' patches (B, 784, 9) bf16 (tiny XLA op)."""
    b = x_nchw.shape[0]
    assert x_nchw.shape[1:] == (1, 28, 28)
    img = x_nchw.reshape(b, 28, 28)
    xp = jnp.pad(img, ((0, 0), (1, 1), (1, 1)))
    cols = [xp[:, kh:kh + 28, kw:kw + 28] for kh in range(3) for kw in range(3)]
    return jnp.stack(cols, axis=-1).reshape(b, 784, 9).astype(jnp.bfloat16)


def _conv1_stage(patches, w, b, bblk):
    B = patches.shape[0]
    _, wp2, lpad2 = _pad_geo(14, 14)
    kernel = functools.partial(_conv1_kernel, bblk=bblk, out_wp=wp2)
    return pl.pallas_call(
        kernel,
        out_shape=jax.ShapeDtypeStruct((B, lpad2, 32), jnp.bfloat16),
        grid_spec=pltpu.PrefetchScalarGridSpec(
            num_scalar_prefetch=0,
            grid=(B // bblk,),
            in_specs=[
                pl.BlockSpec((bblk, 784, 9), lambda i: (i, 0, 0)),
                pl.BlockSpec((9, 32), lambda i: (0, 0)),
                pl.BlockSpec((1, 32), lambda i: (0, 0)),
            ],
            out_specs=pl.BlockSpec((bblk, lpad2, 32), lambda i: (i, 0, 0)),
            scratch_shapes=[pltpu.VMEM((bblk, 784, 32), jnp.float32)],
        ),
        compiler_params=pltpu.CompilerParams(
            dimension_semantics=("parallel",),
            vmem_limit_bytes=_VMEM_LIMIT,
        ),
    )(patches, w, b)


def _conv_mid_stage(x_padflat, w3, bias, *, h_in, cin, cout, bblk, pad_next):
    """Conv(3x3,pad=1)+ReLU+MaxPool on a zero-padded flattened activation."""
    B = x_padflat.shape[0]
    _, wp, lpad = _pad_geo(h_in, h_in)
    assert x_padflat.shape == (B, lpad, cin), x_padflat.shape
    h_out = h_in // 2
    rows = _round_up(2 * h_out * wp, 8)          # only rows the pool consumes
    if pad_next:
        _, owp, olpad = _pad_geo(h_out, h_out)
        out_len, out_wp = olpad, owp
    else:
        out_len, out_wp = h_out * h_out, None
    kernel = functools.partial(
        _conv_mid_kernel, bblk=bblk, cin=cin, cout=cout, wp=wp, rows=rows,
        h_out=h_out, w_out=h_out, out_wp=out_wp)
    return pl.pallas_call(
        kernel,
        out_shape=jax.ShapeDtypeStruct((B, out_len, cout), jnp.bfloat16),
        grid_spec=pltpu.PrefetchScalarGridSpec(
            num_scalar_prefetch=0,
            grid=(B // bblk,),
            in_specs=[
                pl.BlockSpec((bblk, lpad, cin), lambda i: (i, 0, 0)),
                pl.BlockSpec((3, 3 * cin, cout), lambda i: (0, 0, 0)),
                pl.BlockSpec((1, cout), lambda i: (0, 0)),
            ],
            out_specs=pl.BlockSpec((bblk, out_len, cout), lambda i: (i, 0, 0)),
            scratch_shapes=[pltpu.VMEM((bblk, rows, cout), jnp.float32)],
        ),
        compiler_params=pltpu.CompilerParams(
            dimension_semantics=("parallel",),
            vmem_limit_bytes=_VMEM_LIMIT,
        ),
    )(x_padflat, w3, bias)


def fc_head(x, prep):
    """Fused fc1->fc2->fc3 on (B, 1152) activations; returns (B, 10) f32."""
    B, K = x.shape
    x = x.astype(jnp.bfloat16)
    if B > 1024:
        tm = 1024
    elif B >= 16:
        tm = _round_up(_round_up(B, 8) // 2, 8)   # keep >= 2 grid steps (v7x)
    else:
        tm = max(8, _round_up(B, 8))
    m_pad = _round_up(B, tm)
    if m_pad != B:
        x = jnp.pad(x, ((0, m_pad - B), (0, 0)))

    out = pl.pallas_call(
        _fc_head_kernel,
        out_shape=jax.ShapeDtypeStruct((m_pad, _FC3_PAD), jnp.float32),
        grid_spec=pltpu.PrefetchScalarGridSpec(
            num_scalar_prefetch=0,
            grid=(m_pad // tm,),
            in_specs=[
                pl.BlockSpec((tm, K), lambda i: (i, 0)),
                pl.BlockSpec(prep["fc1_w"].shape, lambda i: (0, 0)),
                pl.BlockSpec(prep["fc1_b"].shape, lambda i: (0, 0)),
                pl.BlockSpec(prep["fc2_w"].shape, lambda i: (0, 0)),
                pl.BlockSpec(prep["fc2_b"].shape, lambda i: (0, 0)),
                pl.BlockSpec(prep["fc3_w"].shape, lambda i: (0, 0)),
                pl.BlockSpec(prep["fc3_b"].shape, lambda i: (0, 0)),
            ],
            out_specs=pl.BlockSpec((tm, _FC3_PAD), lambda i: (i, 0)),
        ),
        compiler_params=pltpu.CompilerParams(
            dimension_semantics=("parallel",),
            vmem_limit_bytes=_VMEM_LIMIT,
        ),
    )(x, prep["fc1_w"], prep["fc1_b"], prep["fc2_w"], prep["fc2_b"],
      prep["fc3_w"], prep["fc3_b"])
    return out[:B, :10]


# ------------------------------ model -------------------------------------- #

def init_params(key):
    """PyTorch-style uniform init, PyTorch tensor layouts."""
    def uinit(k, shape, fan_in):
        bound = 1.0 / float(fan_in) ** 0.5
        return jax.random.uniform(k, shape, jnp.float32, -bound, bound)

    ks = jax.random.split(key, 12)
    return {
        "conv1_w": uinit(ks[0], (32, 1, 3, 3), 1 * 9),
        "conv1_b": uinit(ks[1], (32,), 1 * 9),
        "conv2_w": uinit(ks[2], (64, 32, 3, 3), 32 * 9),
        "conv2_b": uinit(ks[3], (64,), 32 * 9),
        "conv3_w": uinit(ks[4], (128, 64, 3, 3), 64 * 9),
        "conv3_b": uinit(ks[5], (128,), 64 * 9),
        "fc1_w": uinit(ks[6], (256, 128 * 3 * 3), 128 * 3 * 3),
        "fc1_b": uinit(ks[7], (256,), 128 * 3 * 3),
        "fc2_w": uinit(ks[8], (128, 256), 256),
        "fc2_b": uinit(ks[9], (128,), 256),
        "fc3_w": uinit(ks[10], (10, 128), 128),
        "fc3_b": uinit(ks[11], (10,), 128),
    }


def prepare_params(p):
    """One-time layout/dtype prep: conv taps reshaped for the merged-K matmuls,
    pre-transposed (K, N) fc weights (K permuted to the channel-minor flatten
    order), bf16 casts, fc3 N padded to a full lane tile."""
    prep = {}
    # conv1: (32,1,3,3) -> (9, 32), tap index = kh*3 + kw.
    prep["conv1_w"] = (jnp.transpose(p["conv1_w"], (2, 3, 1, 0))
                       .reshape(9, 32).astype(jnp.bfloat16))
    prep["conv1_b"] = p["conv1_b"].reshape(1, 32).astype(jnp.float32)
    # conv2/conv3: (Cout,Cin,3,3) -> (3, 3*Cin, Cout); K index = kw*Cin + c.
    for name, cin, cout in (("conv2", 32, 64), ("conv3", 64, 128)):
        w = jnp.transpose(p[name + "_w"], (2, 3, 1, 0))          # (3,3,Cin,Cout)
        prep[name + "_w"] = w.reshape(3, 3 * cin, cout).astype(jnp.bfloat16)
        prep[name + "_b"] = p[name + "_b"].reshape(1, cout).astype(jnp.float32)
    # fc1: PyTorch flattens NCHW as (c,h,w); our features flatten as (h,w,c).
    w1 = (p["fc1_w"].reshape(256, 128, 3, 3).transpose(0, 2, 3, 1)
          .reshape(256, 1152).T)                                  # (1152, 256)
    prep["fc1_w"] = w1.astype(jnp.bfloat16)
    prep["fc1_b"] = p["fc1_b"].reshape(1, 256).astype(jnp.float32)
    prep["fc2_w"] = p["fc2_w"].T.astype(jnp.bfloat16)             # (256, 128)
    prep["fc2_b"] = p["fc2_b"].reshape(1, 128).astype(jnp.float32)
    w3 = jnp.zeros((128, _FC3_PAD), jnp.float32).at[:, :10].set(p["fc3_w"].T)
    prep["fc3_w"] = w3.astype(jnp.bfloat16)                       # zero-padded cols
    prep["fc3_b"] = jnp.zeros((1, _FC3_PAD), jnp.float32).at[0, :10].set(
        p["fc3_b"])
    return prep


def lenet_complex_forward(x_nchw, prep):
    B = x_nchw.shape[0]
    bblk = _pick_bblk(B)
    patches = _conv1_im2col(x_nchw)                                # (B,784,9)
    x = _conv1_stage(patches, prep["conv1_w"], prep["conv1_b"], bblk)  # (B,280,32)
    x = _conv_mid_stage(x, prep["conv2_w"], prep["conv2_b"],
                        h_in=14, cin=32, cout=64, bblk=bblk,
                        pad_next=True)                             # (B,98,64)
    x = _conv_mid_stage(x, prep["conv3_w"], prep["conv3_b"],
                        h_in=7, cin=64, cout=128, bblk=bblk,
                        pad_next=False)                            # (B,9,128)
    feats = x.reshape(B, 9 * 128)      # channel-minor flatten (fc1_w permuted)
    return fc_head(feats, prep)                                    # (B, 10)


# --------------------------- pure-jnp reference ----------------------------- #

def reference_forward(x_nchw, params):
    """f32 reference with PyTorch semantics (for self-checking)."""
    def conv_relu(x, w, b):
        B, H, W, Cin = x.shape
        Cout = w.shape[0]
        xp = jnp.pad(x, ((0, 0), (1, 1), (1, 1), (0, 0)))
        patches = jnp.concatenate(
            [xp[:, i:i + H, j:j + W, :] for i in range(3) for j in range(3)],
            axis=-1)
        wm = jnp.transpose(w, (2, 3, 1, 0)).reshape(9 * Cin, Cout)
        y = patches.reshape(B * H * W, 9 * Cin) @ wm + b
        return jnp.maximum(y, 0.0).reshape(B, H, W, Cout)

    def pool(x):
        B, H, W, C = x.shape
        Ho, Wo = H // 2, W // 2
        xc = x[:, :2 * Ho, :2 * Wo, :]
        corners = [xc[:, i::2, j::2, :] for i in range(2) for j in range(2)]
        return jnp.max(jnp.stack(corners), axis=0)

    x = jnp.transpose(x_nchw, (0, 2, 3, 1))
    x = pool(conv_relu(x, params["conv1_w"], params["conv1_b"]))
    x = pool(conv_relu(x, params["conv2_w"], params["conv2_b"]))
    x = pool(conv_relu(x, params["conv3_w"], params["conv3_b"]))
    B = x.shape[0]
    x = jnp.transpose(x, (0, 3, 1, 2)).reshape(B, 128 * 3 * 3)     # NCHW flatten
    x = jnp.maximum(x @ params["fc1_w"].T + params["fc1_b"], 0.0)
    x = jnp.maximum(x @ params["fc2_w"].T + params["fc2_b"], 0.0)
    return x @ params["fc3_w"].T + params["fc3_b"]


if __name__ == "__main__":
    key = jax.random.PRNGKey(0)
    pkey, xkey = jax.random.split(key)
    params = init_params(pkey)
    prep = prepare_params(params)
    # fc1 = Linear(128*3*3, 256) implies 28x28 input (28 -> 14 -> 7 -> 3).
    x = jax.random.normal(xkey, (2, 1, 28, 28), dtype=jnp.float32)

    fwd = jax.jit(lenet_complex_forward)
    out = fwd(x, prep)
    jax.block_until_ready(out)

    assert out.shape == (2, 10), out.shape
    assert bool(jnp.all(jnp.isfinite(out)))

    # Self-check against a pure-jnp f32 reference (bf16-activation tolerance).
    ref = jax.jit(reference_forward)(x, params)
    err = float(jnp.max(jnp.abs(out - ref)))
    tol = 1e-1 + 5e-2 * float(jnp.max(jnp.abs(ref)))
    assert err <= tol, (err, tol)
    print("KERNEL_OK")
</pallas_src>

<mosaic_0001>
module attributes {stable_mosaic.version = 11 : i64} {
  func.func @_conv_mid_kernel(%arg0: i32, %arg1: memref<1x98x64xbf16, #tpu.memory_space<vmem>>, %arg2: memref<3x192x128xbf16, #tpu.memory_space<vmem>>, %arg3: memref<1x128xf32, #tpu.memory_space<vmem>>, %arg4: memref<1x9x128xbf16, #tpu.memory_space<vmem>>, %arg5: memref<1x56x128xf32, #tpu.memory_space<vmem>>) attributes {dimension_semantics = [#tpu.dimension_semantics<parallel>], iteration_bounds = array<i64: 2>, scalar_prefetch = 0 : i64, scratch_operands = 1 : i64, tpu.core_type = #tpu.core_type<tc>, window_params = [{transform_indices = @transform_0, window_bounds = array<i64: 1, 98, 64>}, {pipeline_mode = #tpu.pipeline_mode<synchronous>, transform_indices = @transform_1, window_bounds = array<i64: 3, 192, 128>}, {pipeline_mode = #tpu.pipeline_mode<synchronous>, transform_indices = @transform_2, window_bounds = array<i64: 1, 128>}, {transform_indices = @transform_3, window_bounds = array<i64: 1, 9, 128>}]} {
    %c0 = arith.constant 0 : index
    %c0_0 = arith.constant 0 : index
    %c0_1 = arith.constant 0 : index
    %0 = vector.load %arg1[%c0, %c0_0, %c0_1] : memref<1x98x64xbf16, #tpu.memory_space<vmem>>, vector<1x56x64xbf16>
    %c0_2 = arith.constant 0 : index
    %c1 = arith.constant 1 : index
    %c0_3 = arith.constant 0 : index
    %1 = vector.load %arg1[%c0_2, %c1, %c0_3] : memref<1x98x64xbf16, #tpu.memory_space<vmem>>, vector<1x56x64xbf16>
    %c0_4 = arith.constant 0 : index
    %c2 = arith.constant 2 : index
    %c0_5 = arith.constant 0 : index
    %2 = vector.load %arg1[%c0_4, %c2, %c0_5] : memref<1x98x64xbf16, #tpu.memory_space<vmem>>, vector<1x56x64xbf16>
    %3 = tpu.concatenate %0, %1, %2 in 2 : vector<1x56x64xbf16>, vector<1x56x64xbf16>, vector<1x56x64xbf16> -> vector<1x56x192xbf16>
    %4 = vector.shape_cast %3 : vector<1x56x192xbf16> to vector<56x192xbf16>
    %c0_6 = arith.constant 0 : index
    %c0_7 = arith.constant 0 : index
    %c0_8 = arith.constant 0 : index
    %5 = vector.load %arg2[%c0_6, %c0_7, %c0_8] : memref<3x192x128xbf16, #tpu.memory_space<vmem>>, vector<1x192x128xbf16>
    %6 = vector.shape_cast %5 : vector<1x192x128xbf16> to vector<192x128xbf16>
    %cst = arith.constant dense<0.000000e+00> : vector<56x128xf32>
    %7 = tpu.matmul %4, %6, %cst {dimension_numbers = #tpu.dot_dimension_numbers<[1], [0], [0], [1], [0, 0, 1, 1], [], []>} : vector<56x192xbf16>, vector<192x128xbf16>, vector<56x128xf32> -> vector<56x128xf32>
    %c0_9 = arith.constant 0 : index
    %c9 = arith.constant 9 : index
    %c0_10 = arith.constant 0 : index
    %8 = vector.load %arg1[%c0_9, %c9, %c0_10] : memref<1x98x64xbf16, #tpu.memory_space<vmem>>, vector<1x56x64xbf16>
    %c0_11 = arith.constant 0 : index
    %c10 = arith.constant 10 : index
    %c0_12 = arith.constant 0 : index
    %9 = vector.load %arg1[%c0_11, %c10, %c0_12] : memref<1x98x64xbf16, #tpu.memory_space<vmem>>, vector<1x56x64xbf16>
    %c0_13 = arith.constant 0 : index
    %c11 = arith.constant 11 : index
    %c0_14 = arith.constant 0 : index
    %10 = vector.load %arg1[%c0_13, %c11, %c0_14] : memref<1x98x64xbf16, #tpu.memory_space<vmem>>, vector<1x56x64xbf16>
    %11 = tpu.concatenate %8, %9, %10 in 2 : vector<1x56x64xbf16>, vector<1x56x64xbf16>, vector<1x56x64xbf16> -> vector<1x56x192xbf16>
    %12 = vector.shape_cast %11 : vector<1x56x192xbf16> to vector<56x192xbf16>
    %c1_15 = arith.constant 1 : index
    %c0_16 = arith.constant 0 : index
    %c0_17 = arith.constant 0 : index
    %13 = vector.load %arg2[%c1_15, %c0_16, %c0_17] : memref<3x192x128xbf16, #tpu.memory_space<vmem>>, vector<1x192x128xbf16>
    %14 = vector.shape_cast %13 : vector<1x192x128xbf16> to vector<192x128xbf16>
    %cst_18 = arith.constant dense<0.000000e+00> : vector<56x128xf32>
    %15 = tpu.matmul %12, %14, %cst_18 {dimension_numbers = #tpu.dot_dimension_numbers<[1], [0], [0], [1], [0, 0, 1, 1], [], []>} : vector<56x192xbf16>, vector<192x128xbf16>, vector<56x128xf32> -> vector<56x128xf32>
    %16 = arith.addf %7, %15 : vector<56x128xf32>
    %c0_19 = arith.constant 0 : index
    %c18 = arith.constant 18 : index
    %c0_20 = arith.constant 0 : index
    %17 = vector.load %arg1[%c0_19, %c18, %c0_20] : memref<1x98x64xbf16, #tpu.memory_space<vmem>>, vector<1x56x64xbf16>
    %c0_21 = arith.constant 0 : index
    %c19 = arith.constant 19 : index
    %c0_22 = arith.constant 0 : index
    %18 = vector.load %arg1[%c0_21, %c19, %c0_22] : memref<1x98x64xbf16, #tpu.memory_space<vmem>>, vector<1x56x64xbf16>
    %c0_23 = arith.constant 0 : index
    %c20 = arith.constant 20 : index
    %c0_24 = arith.constant 0 : index
    %19 = vector.load %arg1[%c0_23, %c20, %c0_24] : memref<1x98x64xbf16, #tpu.memory_space<vmem>>, vector<1x56x64xbf16>
    %20 = tpu.concatenate %17, %18, %19 in 2 : vector<1x56x64xbf16>, vector<1x56x64xbf16>, vector<1x56x64xbf16> -> vector<1x56x192xbf16>
    %21 = vector.shape_cast %20 : vector<1x56x192xbf16> to vector<56x192xbf16>
    %c2_25 = arith.constant 2 : index
    %c0_26 = arith.constant 0 : index
    %c0_27 = arith.constant 0 : index
    %22 = vector.load %arg2[%c2_25, %c0_26, %c0_27] : memref<3x192x128xbf16, #tpu.memory_space<vmem>>, vector<1x192x128xbf16>
    %23 = vector.shape_cast %22 : vector<1x192x128xbf16> to vector<192x128xbf16>
    %cst_28 = arith.constant dense<0.000000e+00> : vector<56x128xf32>
    %24 = tpu.matmul %21, %23, %cst_28 {dimension_numbers = #tpu.dot_dimension_numbers<[1], [0], [0], [1], [0, 0, 1, 1], [], []>} : vector<56x192xbf16>, vector<192x128xbf16>, vector<56x128xf32> -> vector<56x128xf32>
    %25 = arith.addf %16, %24 : vector<56x128xf32>
    %26 = vector.shape_cast %25 : vector<56x128xf32> to vector<1x56x128xf32>
    %c0_29 = arith.constant 0 : index
    %c0_30 = arith.constant 0 : index
    %c0_31 = arith.constant 0 : index
    %27 = vector.load %arg5[%c0_29, %c0_30, %c0_31] : memref<1x56x128xf32, #tpu.memory_space<vmem>>, vector<1x56x128xf32>
    tpu.vector_store %arg5[%c0_29, %c0_30, %c0_31], %26 {strides = array<i32>} : memref<1x56x128xf32, #tpu.memory_space<vmem>>, vector<1x56x128xf32>,
    %c0_32 = arith.constant 0 : index
    %c0_33 = arith.constant 0 : index
    %28 = vector.load %arg3[%c0_32, %c0_33] : memref<1x128xf32, #tpu.memory_space<vmem>>, vector<1x128xf32>
    %c0_34 = arith.constant 0 : index
    %c0_35 = arith.constant 0 : index
    %c0_36 = arith.constant 0 : index
    %29 = tpu.strided_load %arg5[%c0_34, %c0_35, %c0_36] {strides = array<i32: 1, 2, 1>} : memref<1x56x128xf32, #tpu.memory_space<vmem>>, vector<1x3x128xf32>
    %c0_37 = arith.constant 0 : index
    %c1_38 = arith.constant 1 : index
    %c0_39 = arith.constant 0 : index
    %30 = tpu.strided_load %arg5[%c0_37, %c1_38, %c0_39] {strides = array<i32: 1, 2, 1>} : memref<1x56x128xf32, #tpu.memory_space<vmem>>, vector<1x3x128xf32>
    %c0_40 = arith.constant 0 : index
    %c9_41 = arith.constant 9 : index
    %c0_42 = arith.constant 0 : index
    %31 = tpu.strided_load %arg5[%c0_40, %c9_41, %c0_42] {strides = array<i32: 1, 2, 1>} : memref<1x56x128xf32, #tpu.memory_space<vmem>>, vector<1x3x128xf32>
    %c0_43 = arith.constant 0 : index
    %c10_44 = arith.constant 10 : index
    %c0_45 = arith.constant 0 : index
    %32 = tpu.strided_load %arg5[%c0_43, %c10_44, %c0_45] {strides = array<i32: 1, 2, 1>} : memref<1x56x128xf32, #tpu.memory_space<vmem>>, vector<1x3x128xf32>
    %33 = arith.maximumf %29, %30 : vector<1x3x128xf32>
    %34 = arith.maximumf %31, %32 : vector<1x3x128xf32>
    %35 = arith.maximumf %33, %34 : vector<1x3x128xf32>
    %36 = vector.shape_cast %28 : vector<1x128xf32> to vector<1x1x128xf32>
    %37 = vector.broadcast %36 : vector<1x1x128xf32> to vector<1x3x128xf32>
    %38 = arith.addf %35, %37 : vector<1x3x128xf32>
    %cst_46 = arith.constant 0.000000e+00 : f32
    %39 = vector.broadcast %cst_46 : f32 to vector<1x3x128xf32>
    %40 = arith.maximumf %38, %39 : vector<1x3x128xf32>
    %41 = arith.truncf %40 : vector<1x3x128xf32> to vector<1x3x128xbf16>
    %c0_47 = arith.constant 0 : index
    %c0_48 = arith.constant 0 : index
    %c0_49 = arith.constant 0 : index
    %42 = vector.load %arg4[%c0_47, %c0_48, %c0_49] : memref<1x9x128xbf16, #tpu.memory_space<vmem>>, vector<1x3x128xbf16>
    tpu.vector_store %arg4[%c0_47, %c0_48, %c0_49], %41 {strides = array<i32>} : memref<1x9x128xbf16, #tpu.memory_space<vmem>>, vector<1x3x128xbf16>,
    %c0_50 = arith.constant 0 : index
    %c18_51 = arith.constant 18 : index
    %c0_52 = arith.constant 0 : index
    %43 = tpu.strided_load %arg5[%c0_50, %c18_51, %c0_52] {strides = array<i32: 1, 2, 1>} : memref<1x56x128xf32, #tpu.memory_space<vmem>>, vector<1x3x128xf32>
    %c0_53 = arith.constant 0 : index
    %c19_54 = arith.constant 19 : index
    %c0_55 = arith.constant 0 : index
    %44 = tpu.strided_load %arg5[%c0_53, %c19_54, %c0_55] {strides = array<i32: 1, 2, 1>} : memref<1x56x128xf32, #tpu.memory_space<vmem>>, vector<1x3x128xf32>
    %c0_56 = arith.constant 0 : index
    %c27 = arith.constant 27 : index
    %c0_57 = arith.constant 0 : index
    %45 = tpu.strided_load %arg5[%c0_56, %c27, %c0_57] {strides = array<i32: 1, 2, 1>} : memref<1x56x128xf32, #tpu.memory_space<vmem>>, vector<1x3x128xf32>
    %c0_58 = arith.constant 0 : index
    %c28 = arith.constant 28 : index
    %c0_59 = arith.constant 0 : index
    %46 = tpu.strided_load %arg5[%c0_58, %c28, %c0_59] {strides = array<i32: 1, 2, 1>} : memref<1x56x128xf32, #tpu.memory_space<vmem>>, vector<1x3x128xf32>
    %47 = arith.maximumf %43, %44 : vector<1x3x128xf32>
    %48 = arith.maximumf %45, %46 : vector<1x3x128xf32>
    %49 = arith.maximumf %47, %48 : vector<1x3x128xf32>
    %50 = vector.shape_cast %28 : vector<1x128xf32> to vector<1x1x128xf32>
    %51 = vector.broadcast %50 : vector<1x1x128xf32> to vector<1x3x128xf32>
    %52 = arith.addf %49, %51 : vector<1x3x128xf32>
    %cst_60 = arith.constant 0.000000e+00 : f32
    %53 = vector.broadcast %cst_60 : f32 to vector<1x3x128xf32>
    %54 = arith.maximumf %52, %53 : vector<1x3x128xf32>
    %55 = arith.truncf %54 : vector<1x3x128xf32> to vector<1x3x128xbf16>
    %c0_61 = arith.constant 0 : index
    %c3 = arith.constant 3 : index
    %c0_62 = arith.constant 0 : index
    %56 = vector.load %arg4[%c0_61, %c3, %c0_62] : memref<1x9x128xbf16, #tpu.memory_space<vmem>>, vector<1x3x128xbf16>
    tpu.vector_store %arg4[%c0_61, %c3, %c0_62], %55 {strides = array<i32>} : memref<1x9x128xbf16, #tpu.memory_space<vmem>>, vector<1x3x128xbf16>,
    %c0_63 = arith.constant 0 : index
    %c36 = arith.constant 36 : index
    %c0_64 = arith.constant 0 : index
    %57 = tpu.strided_load %arg5[%c0_63, %c36, %c0_64] {strides = array<i32: 1, 2, 1>} : memref<1x56x128xf32, #tpu.memory_space<vmem>>, vector<1x3x128xf32>
    %c0_65 = arith.constant 0 : index
    %c37 = arith.constant 37 : index
    %c0_66 = arith.constant 0 : index
    %58 = tpu.strided_load %arg5[%c0_65, %c37, %c0_66] {strides = array<i32: 1, 2, 1>} : memref<1x56x128xf32, #tpu.memory_space<vmem>>, vector<1x3x128xf32>
    %c0_67 = arith.constant 0 : index
    %c45 = arith.constant 45 : index
    %c0_68 = arith.constant 0 : index
    %59 = tpu.strided_load %arg5[%c0_67, %c45, %c0_68] {strides = array<i32: 1, 2, 1>} : memref<1x56x128xf32, #tpu.memory_space<vmem>>, vector<1x3x128xf32>
    %c0_69 = arith.constant 0 : index
    %c46 = arith.constant 46 : index
    %c0_70 = arith.constant 0 : index
    %60 = tpu.strided_load %arg5[%c0_69, %c46, %c0_70] {strides = array<i32: 1, 2, 1>} : memref<1x56x128xf32, #tpu.memory_space<vmem>>, vector<1x3x128xf32>
    %61 = arith.maximumf %57, %58 : vector<1x3x128xf32>
    %62 = arith.maximumf %59, %60 : vector<1x3x128xf32>
    %63 = arith.maximumf %61, %62 : vector<1x3x128xf32>
    %64 = vector.shape_cast %28 : vector<1x128xf32> to vector<1x1x128xf32>
    %65 = vector.broadcast %64 : vector<1x1x128xf32> to vector<1x3x128xf32>
    %66 = arith.addf %63, %65 : vector<1x3x128xf32>
    %cst_71 = arith.constant 0.000000e+00 : f32
    %67 = vector.broadcast %cst_71 : f32 to vector<1x3x128xf32>
    %68 = arith.maximumf %66, %67 : vector<1x3x128xf32>
    %69 = arith.truncf %68 : vector<1x3x128xf32> to vector<1x3x128xbf16>
    %c0_72 = arith.constant 0 : index
    %c6 = arith.constant 6 : index
    %c0_73 = arith.constant 0 : index
    %70 = vector.load %arg4[%c0_72, %c6, %c0_73] : memref<1x9x128xbf16, #tpu.memory_space<vmem>>, vector<1x3x128xbf16>
    tpu.vector_store %arg4[%c0_72, %c6, %c0_73], %69 {strides = array<i32>} : memref<1x9x128xbf16, #tpu.memory_space<vmem>>, vector<1x3x128xbf16>,
    return
  }
  func.func @transform_0(%arg0: i32) -> (i32, i32, i32) {
    %c0_i32 = arith.constant 0 : i32
    %c0_i32_0 = arith.constant 0 : i32
    %c0_i32_1 = arith.constant 0 : i32
    return %arg0, %c0_i32, %c0_i32_0 : i32, i32, i32
  }
  func.func @transform_1(%arg0: i32) -> (i32, i32, i32) {
    %c0_i32 = arith.constant 0 : i32
    %c0_i32_0 = arith.constant 0 : i32
    %c0_i32_1 = arith.constant 0 : i32
    %c0_i32_2 = arith.constant 0 : i32
    return %c0_i32, %c0_i32_0, %c0_i32_1 : i32, i32, i32
  }
  func.func @transform_2(%arg0: i32) -> (i32, i32) {
    %c0_i32 = arith.constant 0 : i32
    %c0_i32_0 = arith.constant 0 : i32
    %c0_i32_1 = arith.constant 0 : i32
    return %c0_i32, %c0_i32_0 : i32, i32
  }
  func.func @transform_3(%arg0: i32) -> (i32, i32, i32) {
    %c0_i32 = arith.constant 0 : i32
    %c0_i32_0 = arith.constant 0 : i32
    %c0_i32_1 = arith.constant 0 : i32
    return %arg0, %c0_i32, %c0_i32_0 : i32, i32, i32
  }
}

module attributes {stable_mosaic.version = 11 : i64} {
  func.func @_conv1_kernel(%arg0: i32, %arg1: memref<1x784x9xbf16, #tpu.memory_space<vmem>>, %arg2: memref<9x32xbf16, #tpu.memory_space<vmem>>, %arg3: memref<1x32xf32, #tpu.memory_space<vmem>>, %arg4: memref<1x280x32xbf16, #tpu.memory_space<vmem>>, %arg5: memref<1x784x32xf32, #tpu.memory_space<vmem>>) attributes {dimension_semantics = [#tpu.dimension_semantics<parallel>], iteration_bounds = array<i64: 2>, scalar_prefetch = 0 : i64, scratch_operands = 1 : i64, tpu.core_type = #tpu.core_type<tc>, window_params = [{transform_indices = @transform_0, window_bounds = array<i64: 1, 784, 9>}, {pipeline_mode = #tpu.pipeline_mode<synchronous>, transform_indices = @transform_1, window_bounds = array<i64: 9, 32>}, {pipeline_mode = #tpu.pipeline_mode<synchronous>, transform_indices = @transform_2, window_bounds = array<i64: 1, 32>}, {transform_indices = @transform_3, window_bounds = array<i64: 1, 280, 32>}]} {
    %c0 = arith.constant 0 : index
    %c0_0 = arith.constant 0 : index
    %c0_1 = arith.constant 0 : index
    %0 = vector.load %arg1[%c0, %c0_0, %c0_1] : memref<1x784x9xbf16, #tpu.memory_space<vmem>>, vector<1x784x9xbf16>
    %1 = vector.shape_cast %0 : vector<1x784x9xbf16> to vector<784x9xbf16>
    %c0_2 = arith.constant 0 : index
    %c0_3 = arith.constant 0 : index
    %2 = vector.load %arg2[%c0_2, %c0_3] : memref<9x32xbf16, #tpu.memory_space<vmem>>, vector<9x32xbf16>
    %cst = arith.constant dense<0.000000e+00> : vector<784x32xf32>
    %3 = tpu.matmul %1, %2, %cst {dimension_numbers = #tpu.dot_dimension_numbers<[1], [0], [0], [1], [0, 0, 1, 1], [], []>} : vector<784x9xbf16>, vector<9x32xbf16>, vector<784x32xf32> -> vector<784x32xf32>
    %4 = vector.shape_cast %3 : vector<784x32xf32> to vector<1x784x32xf32>
    %c0_4 = arith.constant 0 : index
    %c0_5 = arith.constant 0 : index
    %c0_6 = arith.constant 0 : index
    %5 = vector.load %arg5[%c0_4, %c0_5, %c0_6] : memref<1x784x32xf32, #tpu.memory_space<vmem>>, vector<1x784x32xf32>
    tpu.vector_store %arg5[%c0_4, %c0_5, %c0_6], %4 {strides = array<i32>} : memref<1x784x32xf32, #tpu.memory_space<vmem>>, vector<1x784x32xf32>,
    %c0_7 = arith.constant 0 : index
    %c0_8 = arith.constant 0 : index
    %6 = vector.load %arg3[%c0_7, %c0_8] : memref<1x32xf32, #tpu.memory_space<vmem>>, vector<1x32xf32>
    %cst_9 = arith.constant 0.000000e+00 : bf16
    %7 = vector.broadcast %cst_9 : bf16 to vector<1x280x32xbf16>
    %c0_10 = arith.constant 0 : index
    %c0_11 = arith.constant 0 : index
    %c0_12 = arith.constant 0 : index
    %8 = vector.load %arg4[%c0_10, %c0_11, %c0_12] : memref<1x280x32xbf16, #tpu.memory_space<vmem>>, vector<1x280x32xbf16>
    tpu.vector_store %arg4[%c0_10, %c0_11, %c0_12], %7 {strides = array<i32>} : memref<1x280x32xbf16, #tpu.memory_space<vmem>>, vector<1x280x32xbf16>,
    %c0_13 = arith.constant 0 : index
    %c0_14 = arith.constant 0 : index
    %c0_15 = arith.constant 0 : index
    %9 = tpu.strided_load %arg5[%c0_13, %c0_14, %c0_15] {strides = array<i32: 1, 2, 1>} : memref<1x784x32xf32, #tpu.memory_space<vmem>>, vector<1x14x32xf32>
    %c0_16 = arith.constant 0 : index
    %c1 = arith.constant 1 : index
    %c0_17 = arith.constant 0 : index
    %10 = tpu.strided_load %arg5[%c0_16, %c1, %c0_17] {strides = array<i32: 1, 2, 1>} : memref<1x784x32xf32, #tpu.memory_space<vmem>>, vector<1x14x32xf32>
    %c0_18 = arith.constant 0 : index
    %c28 = arith.constant 28 : index
    %c0_19 = arith.constant 0 : index
    %11 = tpu.strided_load %arg5[%c0_18, %c28, %c0_19] {strides = array<i32: 1, 2, 1>} : memref<1x784x32xf32, #tpu.memory_space<vmem>>, vector<1x14x32xf32>
    %c0_20 = arith.constant 0 : index
    %c29 = arith.constant 29 : index
    %c0_21 = arith.constant 0 : index
    %12 = tpu.strided_load %arg5[%c0_20, %c29, %c0_21] {strides = array<i32: 1, 2, 1>} : memref<1x784x32xf32, #tpu.memory_space<vmem>>, vector<1x14x32xf32>
    %13 = arith.maximumf %9, %10 : vector<1x14x32xf32>
    %14 = arith.maximumf %11, %12 : vector<1x14x32xf32>
    %15 = arith.maximumf %13, %14 : vector<1x14x32xf32>
    %16 = vector.shape_cast %6 : vector<1x32xf32> to vector<1x1x32xf32>
    %17 = vector.broadcast %16 : vector<1x1x32xf32> to vector<1x14x32xf32>
    %18 = arith.addf %15, %17 : vector<1x14x32xf32>
    %cst_22 = arith.constant 0.000000e+00 : f32
    %19 = vector.broadcast %cst_22 : f32 to vector<1x14x32xf32>
    %20 = arith.maximumf %18, %19 : vector<1x14x32xf32>
    %21 = arith.truncf %20 : vector<1x14x32xf32> to vector<1x14x32xbf16>
    %c0_23 = arith.constant 0 : index
    %c17 = arith.constant 17 : index
    %c0_24 = arith.constant 0 : index
    %22 = vector.load %arg4[%c0_23, %c17, %c0_24] : memref<1x280x32xbf16, #tpu.memory_space<vmem>>, vector<1x14x32xbf16>
    tpu.vector_store %arg4[%c0_23, %c17, %c0_24], %21 {strides = array<i32>} : memref<1x280x32xbf16, #tpu.memory_space<vmem>>, vector<1x14x32xbf16>,
    %c0_25 = arith.constant 0 : index
    %c56 = arith.constant 56 : index
    %c0_26 = arith.constant 0 : index
    %23 = tpu.strided_load %arg5[%c0_25, %c56, %c0_26] {strides = array<i32: 1, 2, 1>} : memref<1x784x32xf32, #tpu.memory_space<vmem>>, vector<1x14x32xf32>
    %c0_27 = arith.constant 0 : index
    %c57 = arith.constant 57 : index
    %c0_28 = arith.constant 0 : index
    %24 = tpu.strided_load %arg5[%c0_27, %c57, %c0_28] {strides = array<i32: 1, 2, 1>} : memref<1x784x32xf32, #tpu.memory_space<vmem>>, vector<1x14x32xf32>
    %c0_29 = arith.constant 0 : index
    %c84 = arith.constant 84 : index
    %c0_30 = arith.constant 0 : index
    %25 = tpu.strided_load %arg5[%c0_29, %c84, %c0_30] {strides = array<i32: 1, 2, 1>} : memref<1x784x32xf32, #tpu.memory_space<vmem>>, vector<1x14x32xf32>
    %c0_31 = arith.constant 0 : index
    %c85 = arith.constant 85 : index
    %c0_32 = arith.constant 0 : index
    %26 = tpu.strided_load %arg5[%c0_31, %c85, %c0_32] {strides = array<i32: 1, 2, 1>} : memref<1x784x32xf32, #tpu.memory_space<vmem>>, vector<1x14x32xf32>
    %27 = arith.maximumf %23, %24 : vector<1x14x32xf32>
    %28 = arith.maximumf %25, %26 : vector<1x14x32xf32>
    %29 = arith.maximumf %27, %28 : vector<1x14x32xf32>
    %30 = vector.shape_cast %6 : vector<1x32xf32> to vector<1x1x32xf32>
    %31 = vector.broadcast %30 : vector<1x1x32xf32> to vector<1x14x32xf32>
    %32 = arith.addf %29, %31 : vector<1x14x32xf32>
    %cst_33 = arith.constant 0.000000e+00 : f32
    %33 = vector.broadcast %cst_33 : f32 to vector<1x14x32xf32>
    %34 = arith.maximumf %32, %33 : vector<1x14x32xf32>
    %35 = arith.truncf %34 : vector<1x14x32xf32> to vector<1x14x32xbf16>
    %c0_34 = arith.constant 0 : index
    %c33 = arith.constant 33 : index
    %c0_35 = arith.constant 0 : index
    %36 = vector.load %arg4[%c0_34, %c33, %c0_35] : memref<1x280x32xbf16, #tpu.memory_space<vmem>>, vector<1x14x32xbf16>
    tpu.vector_store %arg4[%c0_34, %c33, %c0_35], %35 {strides = array<i32>} : memref<1x280x32xbf16, #tpu.memory_space<vmem>>, vector<1x14x32xbf16>,
    %c0_36 = arith.constant 0 : index
    %c112 = arith.constant 112 : index
    %c0_37 = arith.constant 0 : index
    %37 = tpu.strided_load %arg5[%c0_36, %c112, %c0_37] {strides = array<i32: 1, 2, 1>} : memref<1x784x32xf32, #tpu.memory_space<vmem>>, vector<1x14x32xf32>
    %c0_38 = arith.constant 0 : index
    %c113 = arith.constant 113 : index
    %c0_39 = arith.constant 0 : index
    %38 = tpu.strided_load %arg5[%c0_38, %c113, %c0_39] {strides = array<i32: 1, 2, 1>} : memref<1x784x32xf32, #tpu.memory_space<vmem>>, vector<1x14x32xf32>
    %c0_40 = arith.constant 0 : index
    %c140 = arith.constant 140 : index
    %c0_41 = arith.constant 0 : index
    %39 = tpu.strided_load %arg5[%c0_40, %c140, %c0_41] {strides = array<i32: 1, 2, 1>} : memref<1x784x32xf32, #tpu.memory_space<vmem>>, vector<1x14x32xf32>
    %c0_42 = arith.constant 0 : index
    %c141 = arith.constant 141 : index
    %c0_43 = arith.constant 0 : index
    %40 = tpu.strided_load %arg5[%c0_42, %c141, %c0_43] {strides = array<i32: 1, 2, 1>} : memref<1x784x32xf32, #tpu.memory_space<vmem>>, vector<1x14x32xf32>
    %41 = arith.maximumf %37, %38 : vector<1x14x32xf32>
    %42 = arith.maximumf %39, %40 : vector<1x14x32xf32>
    %43 = arith.maximumf %41, %42 : vector<1x14x32xf32>
    %44 = vector.shape_cast %6 : vector<1x32xf32> to vector<1x1x32xf32>
    %45 = vector.broadcast %44 : vector<1x1x32xf32> to vector<1x14x32xf32>
    %46 = arith.addf %43, %45 : vector<1x14x32xf32>
    %cst_44 = arith.constant 0.000000e+00 : f32
    %47 = vector.broadcast %cst_44 : f32 to vector<1x14x32xf32>
    %48 = arith.maximumf %46, %47 : vector<1x14x32xf32>
    %49 = arith.truncf %48 : vector<1x14x32xf32> to vector<1x14x32xbf16>
    %c0_45 = arith.constant 0 : index
    %c49 = arith.constant 49 : index
    %c0_46 = arith.constant 0 : index
    %50 = vector.load %arg4[%c0_45, %c49, %c0_46] : memref<1x280x32xbf16, #tpu.memory_space<vmem>>, vector<1x14x32xbf16>
    tpu.vector_store %arg4[%c0_45, %c49, %c0_46], %49 {strides = array<i32>} : memref<1x280x32xbf16, #tpu.memory_space<vmem>>, vector<1x14x32xbf16>,
    %c0_47 = arith.constant 0 : index
    %c168 = arith.constant 168 : index
    %c0_48 = arith.constant 0 : index
    %51 = tpu.strided_load %arg5[%c0_47, %c168, %c0_48] {strides = array<i32: 1, 2, 1>} : memref<1x784x32xf32, #tpu.memory_space<vmem>>, vector<1x14x32xf32>
    %c0_49 = arith.constant 0 : index
    %c169 = arith.constant 169 : index
    %c0_50 = arith.constant 0 : index
    %52 = tpu.strided_load %arg5[%c0_49, %c169, %c0_50] {strides = array<i32: 1, 2, 1>} : memref<1x784x32xf32, #tpu.memory_space<vmem>>, vector<1x14x32xf32>
    %c0_51 = arith.constant 0 : index
    %c196 = arith.constant 196 : index
    %c0_52 = arith.constant 0 : index
    %53 = tpu.strided_load %arg5[%c0_51, %c196, %c0_52] {strides = array<i32: 1, 2, 1>} : memref<1x784x32xf32, #tpu.memory_space<vmem>>, vector<1x14x32xf32>
    %c0_53 = arith.constant 0 : index
    %c197 = arith.constant 197 : index
    %c0_54 = arith.constant 0 : index
    %54 = tpu.strided_load %arg5[%c0_53, %c197, %c0_54] {strides = array<i32: 1, 2, 1>} : memref<1x784x32xf32, #tpu.memory_space<vmem>>, vector<1x14x32xf32>
    %55 = arith.maximumf %51, %52 : vector<1x14x32xf32>
    %56 = arith.maximumf %53, %54 : vector<1x14x32xf32>
    %57 = arith.maximumf %55, %56 : vector<1x14x32xf32>
    %58 = vector.shape_cast %6 : vector<1x32xf32> to vector<1x1x32xf32>
    %59 = vector.broadcast %58 : vector<1x1x32xf32> to vector<1x14x32xf32>
    %60 = arith.addf %57, %59 : vector<1x14x32xf32>
    %cst_55 = arith.constant 0.000000e+00 : f32
    %61 = vector.broadcast %cst_55 : f32 to vector<1x14x32xf32>
    %62 = arith.maximumf %60, %61 : vector<1x14x32xf32>
    %63 = arith.truncf %62 : vector<1x14x32xf32> to vector<1x14x32xbf16>
    %c0_56 = arith.constant 0 : index
    %c65 = arith.constant 65 : index
    %c0_57 = arith.constant 0 : index
    %64 = vector.load %arg4[%c0_56, %c65, %c0_57] : memref<1x280x32xbf16, #tpu.memory_space<vmem>>, vector<1x14x32xbf16>
    tpu.vector_store %arg4[%c0_56, %c65, %c0_57], %63 {strides = array<i32>} : memref<1x280x32xbf16, #tpu.memory_space<vmem>>, vector<1x14x32xbf16>,
    %c0_58 = arith.constant 0 : index
    %c224 = arith.constant 224 : index
    %c0_59 = arith.constant 0 : index
    %65 = tpu.strided_load %arg5[%c0_58, %c224, %c0_59] {strides = array<i32: 1, 2, 1>} : memref<1x784x32xf32, #tpu.memory_space<vmem>>, vector<1x14x32xf32>
    %c0_60 = arith.constant 0 : index
    %c225 = arith.constant 225 : index
    %c0_61 = arith.constant 0 : index
    %66 = tpu.strided_load %arg5[%c0_60, %c225, %c0_61] {strides = array<i32: 1, 2, 1>} : memref<1x784x32xf32, #tpu.memory_space<vmem>>, vector<1x14x32xf32>
    %c0_62 = arith.constant 0 : index
    %c252 = arith.constant 252 : index
    %c0_63 = arith.constant 0 : index
    %67 = tpu.strided_load %arg5[%c0_62, %c252, %c0_63] {strides = array<i32: 1, 2, 1>} : memref<1x784x32xf32, #tpu.memory_space<vmem>>, vector<1x14x32xf32>
    %c0_64 = arith.constant 0 : index
    %c253 = arith.constant 253 : index
    %c0_65 = arith.constant 0 : index
    %68 = tpu.strided_load %arg5[%c0_64, %c253, %c0_65] {strides = array<i32: 1, 2, 1>} : memref<1x784x32xf32, #tpu.memory_space<vmem>>, vector<1x14x32xf32>
    %69 = arith.maximumf %65, %66 : vector<1x14x32xf32>
    %70 = arith.maximumf %67, %68 : vector<1x14x32xf32>
    %71 = arith.maximumf %69, %70 : vector<1x14x32xf32>
    %72 = vector.shape_cast %6 : vector<1x32xf32> to vector<1x1x32xf32>
    %73 = vector.broadcast %72 : vector<1x1x32xf32> to vector<1x14x32xf32>
    %74 = arith.addf %71, %73 : vector<1x14x32xf32>
    %cst_66 = arith.constant 0.000000e+00 : f32
    %75 = vector.broadcast %cst_66 : f32 to vector<1x14x32xf32>
    %76 = arith.maximumf %74, %75 : vector<1x14x32xf32>
    %77 = arith.truncf %76 : vector<1x14x32xf32> to vector<1x14x32xbf16>
    %c0_67 = arith.constant 0 : index
    %c81 = arith.constant 81 : index
    %c0_68 = arith.constant 0 : index
    %78 = vector.load %arg4[%c0_67, %c81, %c0_68] : memref<1x280x32xbf16, #tpu.memory_space<vmem>>, vector<1x14x32xbf16>
    tpu.vector_store %arg4[%c0_67, %c81, %c0_68], %77 {strides = array<i32>} : memref<1x280x32xbf16, #tpu.memory_space<vmem>>, vector<1x14x32xbf16>,
    %c0_69 = arith.constant 0 : index
    %c280 = arith.constant 280 : index
    %c0_70 = arith.constant 0 : index
    %79 = tpu.strided_load %arg5[%c0_69, %c280, %c0_70] {strides = array<i32: 1, 2, 1>} : memref<1x784x32xf32, #tpu.memory_space<vmem>>, vector<1x14x32xf32>
    %c0_71 = arith.constant 0 : index
    %c281 = arith.constant 281 : index
    %c0_72 = arith.constant 0 : index
    %80 = tpu.strided_load %arg5[%c0_71, %c281, %c0_72] {strides = array<i32: 1, 2, 1>} : memref<1x784x32xf32, #tpu.memory_space<vmem>>, vector<1x14x32xf32>
    %c0_73 = arith.constant 0 : index
    %c308 = arith.constant 308 : index
    %c0_74 = arith.constant 0 : index
    %81 = tpu.strided_load %arg5[%c0_73, %c308, %c0_74] {strides = array<i32: 1, 2, 1>} : memref<1x784x32xf32, #tpu.memory_space<vmem>>, vector<1x14x32xf32>
    %c0_75 = arith.constant 0 : index
    %c309 = arith.constant 309 : index
    %c0_76 = arith.constant 0 : index
    %82 = tpu.strided_load %arg5[%c0_75, %c309, %c0_76] {strides = array<i32: 1, 2, 1>} : memref<1x784x32xf32, #tpu.memory_space<vmem>>, vector<1x14x32xf32>
    %83 = arith.maximumf %79, %80 : vector<1x14x32xf32>
    %84 = arith.maximumf %81, %82 : vector<1x14x32xf32>
    %85 = arith.maximumf %83, %84 : vector<1x14x32xf32>
    %86 = vector.shape_cast %6 : vector<1x32xf32> to vector<1x1x32xf32>
    %87 = vector.broadcast %86 : vector<1x1x32xf32> to vector<1x14x32xf32>
    %88 = arith.addf %85, %87 : vector<1x14x32xf32>
    %cst_77 = arith.constant 0.000000e+00 : f32
    %89 = vector.broadcast %cst_77 : f32 to vector<1x14x32xf32>
    %90 = arith.maximumf %88, %89 : vector<1x14x32xf32>
    %91 = arith.truncf %90 : vector<1x14x32xf32> to vector<1x14x32xbf16>
    %c0_78 = arith.constant 0 : index
    %c97 = arith.constant 97 : index
    %c0_79 = arith.constant 0 : index
    %92 = vector.load %arg4[%c0_78, %c97, %c0_79] : memref<1x280x32xbf16, #tpu.memory_space<vmem>>, vector<1x14x32xbf16>
    tpu.vector_store %arg4[%c0_78, %c97, %c0_79], %91 {strides = array<i32>} : memref<1x280x32xbf16, #tpu.memory_space<vmem>>, vector<1x14x32xbf16>,
    %c0_80 = arith.constant 0 : index
    %c336 = arith.constant 336 : index
    %c0_81 = arith.constant 0 : index
    %93 = tpu.strided_load %arg5[%c0_80, %c336, %c0_81] {strides = array<i32: 1, 2, 1>} : memref<1x784x32xf32, #tpu.memory_space<vmem>>, vector<1x14x32xf32>
    %c0_82 = arith.constant 0 : index
    %c337 = arith.constant 337 : index
    %c0_83 = arith.constant 0 : index
    %94 = tpu.strided_load %arg5[%c0_82, %c337, %c0_83] {strides = array<i32: 1, 2, 1>} : memref<1x784x32xf32, #tpu.memory_space<vmem>>, vector<1x14x32xf32>
    %c0_84 = arith.constant 0 : index
    %c364 = arith.constant 364 : index
    %c0_85 = arith.constant 0 : index
    %95 = tpu.strided_load %arg5[%c0_84, %c364, %c0_85] {strides = array<i32: 1, 2, 1>} : memref<1x784x32xf32, #tpu.memory_space<vmem>>, vector<1x14x32xf32>
    %c0_86 = arith.constant 0 : index
    %c365 = arith.constant 365 : index
    %c0_87 = arith.constant 0 : index
    %96 = tpu.strided_load %arg5[%c0_86, %c365, %c0_87] {strides = array<i32: 1, 2, 1>} : memref<1x784x32xf32, #tpu.memory_space<vmem>>, vector<1x14x32xf32>
    %97 = arith.maximumf %93, %94 : vector<1x14x32xf32>
    %98 = arith.maximumf %95, %96 : vector<1x14x32xf32>
    %99 = arith.maximumf %97, %98 : vector<1x14x32xf32>
    %100 = vector.shape_cast %6 : vector<1x32xf32> to vector<1x1x32xf32>
    %101 = vector.broadcast %100 : vector<1x1x32xf32> to vector<1x14x32xf32>
    %102 = arith.addf %99, %101 : vector<1x14x32xf32>
    %cst_88 = arith.constant 0.000000e+00 : f32
    %103 = vector.broadcast %cst_88 : f32 to vector<1x14x32xf32>
    %104 = arith.maximumf %102, %103 : vector<1x14x32xf32>
    %105 = arith.truncf %104 : vector<1x14x32xf32> to vector<1x14x32xbf16>
    %c0_89 = arith.constant 0 : index
    %c113_90 = arith.constant 113 : index
    %c0_91 = arith.constant 0 : index
    %106 = vector.load %arg4[%c0_89, %c113_90, %c0_91] : memref<1x280x32xbf16, #tpu.memory_space<vmem>>, vector<1x14x32xbf16>
    tpu.vector_store %arg4[%c0_89, %c113_90, %c0_91], %105 {strides = array<i32>} : memref<1x280x32xbf16, #tpu.memory_space<vmem>>, vector<1x14x32xbf16>,
    %c0_92 = arith.constant 0 : index
    %c392 = arith.constant 392 : index
    %c0_93 = arith.constant 0 : index
    %107 = tpu.strided_load %arg5[%c0_92, %c392, %c0_93] {strides = array<i32: 1, 2, 1>} : memref<1x784x32xf32, #tpu.memory_space<vmem>>, vector<1x14x32xf32>
    %c0_94 = arith.constant 0 : index
    %c393 = arith.constant 393 : index
    %c0_95 = arith.constant 0 : index
    %108 = tpu.strided_load %arg5[%c0_94, %c393, %c0_95] {strides = array<i32: 1, 2, 1>} : memref<1x784x32xf32, #tpu.memory_space<vmem>>, vector<1x14x32xf32>
    %c0_96 = arith.constant 0 : index
    %c420 = arith.constant 420 : index
    %c0_97 = arith.constant 0 : index
    %109 = tpu.strided_load %arg5[%c0_96, %c420, %c0_97] {strides = array<i32: 1, 2, 1>} : memref<1x784x32xf32, #tpu.memory_space<vmem>>, vector<1x14x32xf32>
    %c0_98 = arith.constant 0 : index
    %c421 = arith.constant 421 : index
    %c0_99 = arith.constant 0 : index
    %110 = tpu.strided_load %arg5[%c0_98, %c421, %c0_99] {strides = array<i32: 1, 2, 1>} : memref<1x784x32xf32, #tpu.memory_space<vmem>>, vector<1x14x32xf32>
    %111 = arith.maximumf %107, %108 : vector<1x14x32xf32>
    %112 = arith.maximumf %109, %110 : vector<1x14x32xf32>
    %113 = arith.maximumf %111, %112 : vector<1x14x32xf32>
    %114 = vector.shape_cast %6 : vector<1x32xf32> to vector<1x1x32xf32>
    %115 = vector.broadcast %114 : vector<1x1x32xf32> to vector<1x14x32xf32>
    %116 = arith.addf %113, %115 : vector<1x14x32xf32>
    %cst_100 = arith.constant 0.000000e+00 : f32
    %117 = vector.broadcast %cst_100 : f32 to vector<1x14x32xf32>
    %118 = arith.maximumf %116, %117 : vector<1x14x32xf32>
    %119 = arith.truncf %118 : vector<1x14x32xf32> to vector<1x14x32xbf16>
    %c0_101 = arith.constant 0 : index
    %c129 = arith.constant 129 : index
    %c0_102 = arith.constant 0 : index
    %120 = vector.load %arg4[%c0_101, %c129, %c0_102] : memref<1x280x32xbf16, #tpu.memory_space<vmem>>, vector<1x14x32xbf16>
    tpu.vector_store %arg4[%c0_101, %c129, %c0_102], %119 {strides = array<i32>} : memref<1x280x32xbf16, #tpu.memory_space<vmem>>, vector<1x14x32xbf16>,
    %c0_103 = arith.constant 0 : index
    %c448 = arith.constant 448 : index
    %c0_104 = arith.constant 0 : index
    %121 = tpu.strided_load %arg5[%c0_103, %c448, %c0_104] {strides = array<i32: 1, 2, 1>} : memref<1x784x32xf32, #tpu.memory_space<vmem>>, vector<1x14x32xf32>
    %c0_105 = arith.constant 0 : index
    %c449 = arith.constant 449 : index
    %c0_106 = arith.constant 0 : index
    %122 = tpu.strided_load %arg5[%c0_105, %c449, %c0_106] {strides = array<i32: 1, 2, 1>} : memref<1x784x32xf32, #tpu.memory_space<vmem>>, vector<1x14x32xf32>
    %c0_107 = arith.constant 0 : index
    %c476 = arith.constant 476 : index
    %c0_108 = arith.constant 0 : index
    %123 = tpu.strided_load %arg5[%c0_107, %c476, %c0_108] {strides = array<i32: 1, 2, 1>} : memref<1x784x32xf32, #tpu.memory_space<vmem>>, vector<1x14x32xf32>
    %c0_109 = arith.constant 0 : index
    %c477 = arith.constant 477 : index
    %c0_110 = arith.constant 0 : index
    %124 = tpu.strided_load %arg5[%c0_109, %c477, %c0_110] {strides = array<i32: 1, 2, 1>} : memref<1x784x32xf32, #tpu.memory_space<vmem>>, vector<1x14x32xf32>
    %125 = arith.maximumf %121, %122 : vector<1x14x32xf32>
    %126 = arith.maximumf %123, %124 : vector<1x14x32xf32>
    %127 = arith.maximumf %125, %126 : vector<1x14x32xf32>
    %128 = vector.shape_cast %6 : vector<1x32xf32> to vector<1x1x32xf32>
    %129 = vector.broadcast %128 : vector<1x1x32xf32> to vector<1x14x32xf32>
    %130 = arith.addf %127, %129 : vector<1x14x32xf32>
    %cst_111 = arith.constant 0.000000e+00 : f32
    %131 = vector.broadcast %cst_111 : f32 to vector<1x14x32xf32>
    %132 = arith.maximumf %130, %131 : vector<1x14x32xf32>
    %133 = arith.truncf %132 : vector<1x14x32xf32> to vector<1x14x32xbf16>
    %c0_112 = arith.constant 0 : index
    %c145 = arith.constant 145 : index
    %c0_113 = arith.constant 0 : index
    %134 = vector.load %arg4[%c0_112, %c145, %c0_113] : memref<1x280x32xbf16, #tpu.memory_space<vmem>>, vector<1x14x32xbf16>
    tpu.vector_store %arg4[%c0_112, %c145, %c0_113], %133 {strides = array<i32>} : memref<1x280x32xbf16, #tpu.memory_space<vmem>>, vector<1x14x32xbf16>,
    %c0_114 = arith.constant 0 : index
    %c504 = arith.constant 504 : index
    %c0_115 = arith.constant 0 : index
    %135 = tpu.strided_load %arg5[%c0_114, %c504, %c0_115] {strides = array<i32: 1, 2, 1>} : memref<1x784x32xf32, #tpu.memory_space<vmem>>, vector<1x14x32xf32>
    %c0_116 = arith.constant 0 : index
    %c505 = arith.constant 505 : index
    %c0_117 = arith.constant 0 : index
    %136 = tpu.strided_load %arg5[%c0_116, %c505, %c0_117] {strides = array<i32: 1, 2, 1>} : memref<1x784x32xf32, #tpu.memory_space<vmem>>, vector<1x14x32xf32>
    %c0_118 = arith.constant 0 : index
    %c532 = arith.constant 532 : index
    %c0_119 = arith.constant 0 : index
    %137 = tpu.strided_load %arg5[%c0_118, %c532, %c0_119] {strides = array<i32: 1, 2, 1>} : memref<1x784x32xf32, #tpu.memory_space<vmem>>, vector<1x14x32xf32>
    %c0_120 = arith.constant 0 : index
    %c533 = arith.constant 533 : index
    %c0_121 = arith.constant 0 : index
    %138 = tpu.strided_load %arg5[%c0_120, %c533, %c0_121] {strides = array<i32: 1, 2, 1>} : memref<1x784x32xf32, #tpu.memory_space<vmem>>, vector<1x14x32xf32>
    %139 = arith.maximumf %135, %136 : vector<1x14x32xf32>
    %140 = arith.maximumf %137, %138 : vector<1x14x32xf32>
    %141 = arith.maximumf %139, %140 : vector<1x14x32xf32>
    %142 = vector.shape_cast %6 : vector<1x32xf32> to vector<1x1x32xf32>
    %143 = vector.broadcast %142 : vector<1x1x32xf32> to vector<1x14x32xf32>
    %144 = arith.addf %141, %143 : vector<1x14x32xf32>
    %cst_122 = arith.constant 0.000000e+00 : f32
    %145 = vector.broadcast %cst_122 : f32 to vector<1x14x32xf32>
    %146 = arith.maximumf %144, %145 : vector<1x14x32xf32>
    %147 = arith.truncf %146 : vector<1x14x32xf32> to vector<1x14x32xbf16>
    %c0_123 = arith.constant 0 : index
    %c161 = arith.constant 161 : index
    %c0_124 = arith.constant 0 : index
    %148 = vector.load %arg4[%c0_123, %c161, %c0_124] : memref<1x280x32xbf16, #tpu.memory_space<vmem>>, vector<1x14x32xbf16>
    tpu.vector_store %arg4[%c0_123, %c161, %c0_124], %147 {strides = array<i32>} : memref<1x280x32xbf16, #tpu.memory_space<vmem>>, vector<1x14x32xbf16>,
    %c0_125 = arith.constant 0 : index
    %c560 = arith.constant 560 : index
    %c0_126 = arith.constant 0 : index
    %149 = tpu.strided_load %arg5[%c0_125, %c560, %c0_126] {strides = array<i32: 1, 2, 1>} : memref<1x784x32xf32, #tpu.memory_space<vmem>>, vector<1x14x32xf32>
    %c0_127 = arith.constant 0 : index
    %c561 = arith.constant 561 : index
    %c0_128 = arith.constant 0 : index
    %150 = tpu.strided_load %arg5[%c0_127, %c561, %c0_128] {strides = array<i32: 1, 2, 1>} : memref<1x784x32xf32, #tpu.memory_space<vmem>>, vector<1x14x32xf32>
    %c0_129 = arith.constant 0 : index
    %c588 = arith.constant 588 : index
    %c0_130 = arith.constant 0 : index
    %151 = tpu.strided_load %arg5[%c0_129, %c588, %c0_130] {strides = array<i32: 1, 2, 1>} : memref<1x784x32xf32, #tpu.memory_space<vmem>>, vector<1x14x32xf32>
    %c0_131 = arith.constant 0 : index
    %c589 = arith.constant 589 : index
    %c0_132 = arith.constant 0 : index
    %152 = tpu.strided_load %arg5[%c0_131, %c589, %c0_132] {strides = array<i32: 1, 2, 1>} : memref<1x784x32xf32, #tpu.memory_space<vmem>>, vector<1x14x32xf32>
    %153 = arith.maximumf %149, %150 : vector<1x14x32xf32>
    %154 = arith.maximumf %151, %152 : vector<1x14x32xf32>
    %155 = arith.maximumf %153, %154 : vector<1x14x32xf32>
    %156 = vector.shape_cast %6 : vector<1x32xf32> to vector<1x1x32xf32>
    %157 = vector.broadcast %156 : vector<1x1x32xf32> to vector<1x14x32xf32>
    %158 = arith.addf %155, %157 : vector<1x14x32xf32>
    %cst_133 = arith.constant 0.000000e+00 : f32
    %159 = vector.broadcast %cst_133 : f32 to vector<1x14x32xf32>
    %160 = arith.maximumf %158, %159 : vector<1x14x32xf32>
    %161 = arith.truncf %160 : vector<1x14x32xf32> to vector<1x14x32xbf16>
    %c0_134 = arith.constant 0 : index
    %c177 = arith.constant 177 : index
    %c0_135 = arith.constant 0 : index
    %162 = vector.load %arg4[%c0_134, %c177, %c0_135] : memref<1x280x32xbf16, #tpu.memory_space<vmem>>, vector<1x14x32xbf16>
    tpu.vector_store %arg4[%c0_134, %c177, %c0_135], %161 {strides = array<i32>} : memref<1x280x32xbf16, #tpu.memory_space<vmem>>, vector<1x14x32xbf16>,
    %c0_136 = arith.constant 0 : index
    %c616 = arith.constant 616 : index
    %c0_137 = arith.constant 0 : index
    %163 = tpu.strided_load %arg5[%c0_136, %c616, %c0_137] {strides = array<i32: 1, 2, 1>} : memref<1x784x32xf32, #tpu.memory_space<vmem>>, vector<1x14x32xf32>
    %c0_138 = arith.constant 0 : index
    %c617 = arith.constant 617 : index
    %c0_139 = arith.constant 0 : index
    %164 = tpu.strided_load %arg5[%c0_138, %c617, %c0_139] {strides = array<i32: 1, 2, 1>} : memref<1x784x32xf32, #tpu.memory_space<vmem>>, vector<1x14x32xf32>
    %c0_140 = arith.constant 0 : index
    %c644 = arith.constant 644 : index
    %c0_141 = arith.constant 0 : index
    %165 = tpu.strided_load %arg5[%c0_140, %c644, %c0_141] {strides = array<i32: 1, 2, 1>} : memref<1x784x32xf32, #tpu.memory_space<vmem>>, vector<1x14x32xf32>
    %c0_142 = arith.constant 0 : index
    %c645 = arith.constant 645 : index
    %c0_143 = arith.constant 0 : index
    %166 = tpu.strided_load %arg5[%c0_142, %c645, %c0_143] {strides = array<i32: 1, 2, 1>} : memref<1x784x32xf32, #tpu.memory_space<vmem>>, vector<1x14x32xf32>
    %167 = arith.maximumf %163, %164 : vector<1x14x32xf32>
    %168 = arith.maximumf %165, %166 : vector<1x14x32xf32>
    %169 = arith.maximumf %167, %168 : vector<1x14x32xf32>
    %170 = vector.shape_cast %6 : vector<1x32xf32> to vector<1x1x32xf32>
    %171 = vector.broadcast %170 : vector<1x1x32xf32> to vector<1x14x32xf32>
    %172 = arith.addf %169, %171 : vector<1x14x32xf32>
    %cst_144 = arith.constant 0.000000e+00 : f32
    %173 = vector.broadcast %cst_144 : f32 to vector<1x14x32xf32>
    %174 = arith.maximumf %172, %173 : vector<1x14x32xf32>
    %175 = arith.truncf %174 : vector<1x14x32xf32> to vector<1x14x32xbf16>
    %c0_145 = arith.constant 0 : index
    %c193 = arith.constant 193 : index
    %c0_146 = arith.constant 0 : index
    %176 = vector.load %arg4[%c0_145, %c193, %c0_146] : memref<1x280x32xbf16, #tpu.memory_space<vmem>>, vector<1x14x32xbf16>
    tpu.vector_store %arg4[%c0_145, %c193, %c0_146], %175 {strides = array<i32>} : memref<1x280x32xbf16, #tpu.memory_space<vmem>>, vector<1x14x32xbf16>,
    %c0_147 = arith.constant 0 : index
    %c672 = arith.constant 672 : index
    %c0_148 = arith.constant 0 : index
    %177 = tpu.strided_load %arg5[%c0_147, %c672, %c0_148] {strides = array<i32: 1, 2, 1>} : memref<1x784x32xf32, #tpu.memory_space<vmem>>, vector<1x14x32xf32>
    %c0_149 = arith.constant 0 : index
    %c673 = arith.constant 673 : index
    %c0_150 = arith.constant 0 : index
    %178 = tpu.strided_load %arg5[%c0_149, %c673, %c0_150] {strides = array<i32: 1, 2, 1>} : memref<1x784x32xf32, #tpu.memory_space<vmem>>, vector<1x14x32xf32>
    %c0_151 = arith.constant 0 : index
    %c700 = arith.constant 700 : index
    %c0_152 = arith.constant 0 : index
    %179 = tpu.strided_load %arg5[%c0_151, %c700, %c0_152] {strides = array<i32: 1, 2, 1>} : memref<1x784x32xf32, #tpu.memory_space<vmem>>, vector<1x14x32xf32>
    %c0_153 = arith.constant 0 : index
    %c701 = arith.constant 701 : index
    %c0_154 = arith.constant 0 : index
    %180 = tpu.strided_load %arg5[%c0_153, %c701, %c0_154] {strides = array<i32: 1, 2, 1>} : memref<1x784x32xf32, #tpu.memory_space<vmem>>, vector<1x14x32xf32>
    %181 = arith.maximumf %177, %178 : vector<1x14x32xf32>
    %182 = arith.maximumf %179, %180 : vector<1x14x32xf32>
    %183 = arith.maximumf %181, %182 : vector<1x14x32xf32>
    %184 = vector.shape_cast %6 : vector<1x32xf32> to vector<1x1x32xf32>
    %185 = vector.broadcast %184 : vector<1x1x32xf32> to vector<1x14x32xf32>
    %186 = arith.addf %183, %185 : vector<1x14x32xf32>
    %cst_155 = arith.constant 0.000000e+00 : f32
    %187 = vector.broadcast %cst_155 : f32 to vector<1x14x32xf32>
    %188 = arith.maximumf %186, %187 : vector<1x14x32xf32>
    %189 = arith.truncf %188 : vector<1x14x32xf32> to vector<1x14x32xbf16>
    %c0_156 = arith.constant 0 : index
    %c209 = arith.constant 209 : index
    %c0_157 = arith.constant 0 : index
    %190 = vector.load %arg4[%c0_156, %c209, %c0_157] : memref<1x280x32xbf16, #tpu.memory_space<vmem>>, vector<1x14x32xbf16>
    tpu.vector_store %arg4[%c0_156, %c209, %c0_157], %189 {strides = array<i32>} : memref<1x280x32xbf16, #tpu.memory_space<vmem>>, vector<1x14x32xbf16>,
    %c0_158 = arith.constant 0 : index
    %c728 = arith.constant 728 : index
    %c0_159 = arith.constant 0 : index
    %191 = tpu.strided_load %arg5[%c0_158, %c728, %c0_159] {strides = array<i32: 1, 2, 1>} : memref<1x784x32xf32, #tpu.memory_space<vmem>>, vector<1x14x32xf32>
    %c0_160 = arith.constant 0 : index
    %c729 = arith.constant 729 : index
    %c0_161 = arith.constant 0 : index
    %192 = tpu.strided_load %arg5[%c0_160, %c729, %c0_161] {strides = array<i32: 1, 2, 1>} : memref<1x784x32xf32, #tpu.memory_space<vmem>>, vector<1x14x32xf32>
    %c0_162 = arith.constant 0 : index
    %c756 = arith.constant 756 : index
    %c0_163 = arith.constant 0 : index
    %193 = tpu.strided_load %arg5[%c0_162, %c756, %c0_163] {strides = array<i32: 1, 2, 1>} : memref<1x784x32xf32, #tpu.memory_space<vmem>>, vector<1x14x32xf32>
    %c0_164 = arith.constant 0 : index
    %c757 = arith.constant 757 : index
    %c0_165 = arith.constant 0 : index
    %194 = tpu.strided_load %arg5[%c0_164, %c757, %c0_165] {strides = array<i32: 1, 2, 1>} : memref<1x784x32xf32, #tpu.memory_space<vmem>>, vector<1x14x32xf32>
    %195 = arith.maximumf %191, %192 : vector<1x14x32xf32>
    %196 = arith.maximumf %193, %194 : vector<1x14x32xf32>
    %197 = arith.maximumf %195, %196 : vector<1x14x32xf32>
    %198 = vector.shape_cast %6 : vector<1x32xf32> to vector<1x1x32xf32>
    %199 = vector.broadcast %198 : vector<1x1x32xf32> to vector<1x14x32xf32>
    %200 = arith.addf %197, %199 : vector<1x14x32xf32>
    %cst_166 = arith.constant 0.000000e+00 : f32
    %201 = vector.broadcast %cst_166 : f32 to vector<1x14x32xf32>
    %202 = arith.maximumf %200, %201 : vector<1x14x32xf32>
    %203 = arith.truncf %202 : vector<1x14x32xf32> to vector<1x14x32xbf16>
    %c0_167 = arith.constant 0 : index
    %c225_168 = arith.constant 225 : index
    %c0_169 = arith.constant 0 : index
    %204 = vector.load %arg4[%c0_167, %c225_168, %c0_169] : memref<1x280x32xbf16, #tpu.memory_space<vmem>>, vector<1x14x32xbf16>
    tpu.vector_store %arg4[%c0_167, %c225_168, %c0_169], %203 {strides = array<i32>} : memref<1x280x32xbf16, #tpu.memory_space<vmem>>, vector<1x14x32xbf16>,
    return
  }
  func.func @transform_0(%arg0: i32) -> (i32, i32, i32) {
    %c0_i32 = arith.constant 0 : i32
    %c0_i32_0 = arith.constant 0 : i32
    %c0_i32_1 = arith.constant 0 : i32
    return %arg0, %c0_i32, %c0_i32_0 : i32, i32, i32
  }
  func.func @transform_1(%arg0: i32) -> (i32, i32) {
    %c0_i32 = arith.constant 0 : i32
    %c0_i32_0 = arith.constant 0 : i32
    %c0_i32_1 = arith.constant 0 : i32
    return %c0_i32, %c0_i32_0 : i32, i32
  }
  func.func @transform_2(%arg0: i32) -> (i32, i32) {
    %c0_i32 = arith.constant 0 : i32
    %c0_i32_0 = arith.constant 0 : i32
    %c0_i32_1 = arith.constant 0 : i32
    return %c0_i32, %c0_i32_0 : i32, i32
  }
  func.func @transform_3(%arg0: i32) -> (i32, i32, i32) {
    %c0_i32 = arith.constant 0 : i32
    %c0_i32_0 = arith.constant 0 : i32
    %c0_i32_1 = arith.constant 0 : i32
    return %arg0, %c0_i32, %c0_i32_0 : i32, i32, i32
  }
}

module attributes {stable_mosaic.version = 11 : i64} {
  func.func @_conv_mid_kernel(%arg0: i32, %arg1: memref<1x280x32xbf16, #tpu.memory_space<vmem>>, %arg2: memref<3x96x64xbf16, #tpu.memory_space<vmem>>, %arg3: memref<1x64xf32, #tpu.memory_space<vmem>>, %arg4: memref<1x98x64xbf16, #tpu.memory_space<vmem>>, %arg5: memref<1x224x64xf32, #tpu.memory_space<vmem>>) attributes {dimension_semantics = [#tpu.dimension_semantics<parallel>], iteration_bounds = array<i64: 2>, scalar_prefetch = 0 : i64, scratch_operands = 1 : i64, tpu.core_type = #tpu.core_type<tc>, window_params = [{transform_indices = @transform_0, window_bounds = array<i64: 1, 280, 32>}, {pipeline_mode = #tpu.pipeline_mode<synchronous>, transform_indices = @transform_1, window_bounds = array<i64: 3, 96, 64>}, {pipeline_mode = #tpu.pipeline_mode<synchronous>, transform_indices = @transform_2, window_bounds = array<i64: 1, 64>}, {transform_indices = @transform_3, window_bounds = array<i64: 1, 98, 64>}]} {
    %c0 = arith.constant 0 : index
    %c0_0 = arith.constant 0 : index
    %c0_1 = arith.constant 0 : index
    %0 = vector.load %arg1[%c0, %c0_0, %c0_1] : memref<1x280x32xbf16, #tpu.memory_space<vmem>>, vector<1x224x32xbf16>
    %c0_2 = arith.constant 0 : index
    %c1 = arith.constant 1 : index
    %c0_3 = arith.constant 0 : index
    %1 = vector.load %arg1[%c0_2, %c1, %c0_3] : memref<1x280x32xbf16, #tpu.memory_space<vmem>>, vector<1x224x32xbf16>
    %c0_4 = arith.constant 0 : index
    %c2 = arith.constant 2 : index
    %c0_5 = arith.constant 0 : index
    %2 = vector.load %arg1[%c0_4, %c2, %c0_5] : memref<1x280x32xbf16, #tpu.memory_space<vmem>>, vector<1x224x32xbf16>
    %3 = tpu.concatenate %0, %1, %2 in 2 : vector<1x224x32xbf16>, vector<1x224x32xbf16>, vector<1x224x32xbf16> -> vector<1x224x96xbf16>
    %4 = vector.shape_cast %3 : vector<1x224x96xbf16> to vector<224x96xbf16>
    %c0_6 = arith.constant 0 : index
    %c0_7 = arith.constant 0 : index
    %c0_8 = arith.constant 0 : index
    %5 = vector.load %arg2[%c0_6, %c0_7, %c0_8] : memref<3x96x64xbf16, #tpu.memory_space<vmem>>, vector<1x96x64xbf16>
    %6 = vector.shape_cast %5 : vector<1x96x64xbf16> to vector<96x64xbf16>
    %cst = arith.constant dense<0.000000e+00> : vector<224x64xf32>
    %7 = tpu.matmul %4, %6, %cst {dimension_numbers = #tpu.dot_dimension_numbers<[1], [0], [0], [1], [0, 0, 1, 1], [], []>} : vector<224x96xbf16>, vector<96x64xbf16>, vector<224x64xf32> -> vector<224x64xf32>
    %c0_9 = arith.constant 0 : index
    %c16 = arith.constant 16 : index
    %c0_10 = arith.constant 0 : index
    %8 = vector.load %arg1[%c0_9, %c16, %c0_10] : memref<1x280x32xbf16, #tpu.memory_space<vmem>>, vector<1x224x32xbf16>
    %c0_11 = arith.constant 0 : index
    %c17 = arith.constant 17 : index
    %c0_12 = arith.constant 0 : index
    %9 = vector.load %arg1[%c0_11, %c17, %c0_12] : memref<1x280x32xbf16, #tpu.memory_space<vmem>>, vector<1x224x32xbf16>
    %c0_13 = arith.constant 0 : index
    %c18 = arith.constant 18 : index
    %c0_14 = arith.constant 0 : index
    %10 = vector.load %arg1[%c0_13, %c18, %c0_14] : memref<1x280x32xbf16, #tpu.memory_space<vmem>>, vector<1x224x32xbf16>
    %11 = tpu.concatenate %8, %9, %10 in 2 : vector<1x224x32xbf16>, vector<1x224x32xbf16>, vector<1x224x32xbf16> -> vector<1x224x96xbf16>
    %12 = vector.shape_cast %11 : vector<1x224x96xbf16> to vector<224x96xbf16>
    %c1_15 = arith.constant 1 : index
    %c0_16 = arith.constant 0 : index
    %c0_17 = arith.constant 0 : index
    %13 = vector.load %arg2[%c1_15, %c0_16, %c0_17] : memref<3x96x64xbf16, #tpu.memory_space<vmem>>, vector<1x96x64xbf16>
    %14 = vector.shape_cast %13 : vector<1x96x64xbf16> to vector<96x64xbf16>
    %cst_18 = arith.constant dense<0.000000e+00> : vector<224x64xf32>
    %15 = tpu.matmul %12, %14, %cst_18 {dimension_numbers = #tpu.dot_dimension_numbers<[1], [0], [0], [1], [0, 0, 1, 1], [], []>} : vector<224x96xbf16>, vector<96x64xbf16>, vector<224x64xf32> -> vector<224x64xf32>
    %16 = arith.addf %7, %15 : vector<224x64xf32>
    %c0_19 = arith.constant 0 : index
    %c32 = arith.constant 32 : index
    %c0_20 = arith.constant 0 : index
    %17 = vector.load %arg1[%c0_19, %c32, %c0_20] : memref<1x280x32xbf16, #tpu.memory_space<vmem>>, vector<1x224x32xbf16>
    %c0_21 = arith.constant 0 : index
    %c33 = arith.constant 33 : index
    %c0_22 = arith.constant 0 : index
    %18 = vector.load %arg1[%c0_21, %c33, %c0_22] : memref<1x280x32xbf16, #tpu.memory_space<vmem>>, vector<1x224x32xbf16>
    %c0_23 = arith.constant 0 : index
    %c34 = arith.constant 34 : index
    %c0_24 = arith.constant 0 : index
    %19 = vector.load %arg1[%c0_23, %c34, %c0_24] : memref<1x280x32xbf16, #tpu.memory_space<vmem>>, vector<1x224x32xbf16>
    %20 = tpu.concatenate %17, %18, %19 in 2 : vector<1x224x32xbf16>, vector<1x224x32xbf16>, vector<1x224x32xbf16> -> vector<1x224x96xbf16>
    %21 = vector.shape_cast %20 : vector<1x224x96xbf16> to vector<224x96xbf16>
    %c2_25 = arith.constant 2 : index
    %c0_26 = arith.constant 0 : index
    %c0_27 = arith.constant 0 : index
    %22 = vector.load %arg2[%c2_25, %c0_26, %c0_27] : memref<3x96x64xbf16, #tpu.memory_space<vmem>>, vector<1x96x64xbf16>
    %23 = vector.shape_cast %22 : vector<1x96x64xbf16> to vector<96x64xbf16>
    %cst_28 = arith.constant dense<0.000000e+00> : vector<224x64xf32>
    %24 = tpu.matmul %21, %23, %cst_28 {dimension_numbers = #tpu.dot_dimension_numbers<[1], [0], [0], [1], [0, 0, 1, 1], [], []>} : vector<224x96xbf16>, vector<96x64xbf16>, vector<224x64xf32> -> vector<224x64xf32>
    %25 = arith.addf %16, %24 : vector<224x64xf32>
    %26 = vector.shape_cast %25 : vector<224x64xf32> to vector<1x224x64xf32>
    %c0_29 = arith.constant 0 : index
    %c0_30 = arith.constant 0 : index
    %c0_31 = arith.constant 0 : index
    %27 = vector.load %arg5[%c0_29, %c0_30, %c0_31] : memref<1x224x64xf32, #tpu.memory_space<vmem>>, vector<1x224x64xf32>
    tpu.vector_store %arg5[%c0_29, %c0_30, %c0_31], %26 {strides = array<i32>} : memref<1x224x64xf32, #tpu.memory_space<vmem>>, vector<1x224x64xf32>,
    %c0_32 = arith.constant 0 : index
    %c0_33 = arith.constant 0 : index
    %28 = vector.load %arg3[%c0_32, %c0_33] : memref<1x64xf32, #tpu.memory_space<vmem>>, vector<1x64xf32>
    %cst_34 = arith.constant 0.000000e+00 : bf16
    %29 = vector.broadcast %cst_34 : bf16 to vector<1x98x64xbf16>
    %c0_35 = arith.constant 0 : index
    %c0_36 = arith.constant 0 : index
    %c0_37 = arith.constant 0 : index
    %30 = vector.load %arg4[%c0_35, %c0_36, %c0_37] : memref<1x98x64xbf16, #tpu.memory_space<vmem>>, vector<1x98x64xbf16>
    tpu.vector_store %arg4[%c0_35, %c0_36, %c0_37], %29 {strides = array<i32>} : memref<1x98x64xbf16, #tpu.memory_space<vmem>>, vector<1x98x64xbf16>,
    %c0_38 = arith.constant 0 : index
    %c0_39 = arith.constant 0 : index
    %c0_40 = arith.constant 0 : index
    %31 = tpu.strided_load %arg5[%c0_38, %c0_39, %c0_40] {strides = array<i32: 1, 2, 1>} : memref<1x224x64xf32, #tpu.memory_space<vmem>>, vector<1x7x64xf32>
    %c0_41 = arith.constant 0 : index
    %c1_42 = arith.constant 1 : index
    %c0_43 = arith.constant 0 : index
    %32 = tpu.strided_load %arg5[%c0_41, %c1_42, %c0_43] {strides = array<i32: 1, 2, 1>} : memref<1x224x64xf32, #tpu.memory_space<vmem>>, vector<1x7x64xf32>
    %c0_44 = arith.constant 0 : index
    %c16_45 = arith.constant 16 : index
    %c0_46 = arith.constant 0 : index
    %33 = tpu.strided_load %arg5[%c0_44, %c16_45, %c0_46] {strides = array<i32: 1, 2, 1>} : memref<1x224x64xf32, #tpu.memory_space<vmem>>, vector<1x7x64xf32>
    %c0_47 = arith.constant 0 : index
    %c17_48 = arith.constant 17 : index
    %c0_49 = arith.constant 0 : index
    %34 = tpu.strided_load %arg5[%c0_47, %c17_48, %c0_49] {strides = array<i32: 1, 2, 1>} : memref<1x224x64xf32, #tpu.memory_space<vmem>>, vector<1x7x64xf32>
    %35 = arith.maximumf %31, %32 : vector<1x7x64xf32>
    %36 = arith.maximumf %33, %34 : vector<1x7x64xf32>
    %37 = arith.maximumf %35, %36 : vector<1x7x64xf32>
    %38 = vector.shape_cast %28 : vector<1x64xf32> to vector<1x1x64xf32>
    %39 = vector.broadcast %38 : vector<1x1x64xf32> to vector<1x7x64xf32>
    %40 = arith.addf %37, %39 : vector<1x7x64xf32>
    %cst_50 = arith.constant 0.000000e+00 : f32
    %41 = vector.broadcast %cst_50 : f32 to vector<1x7x64xf32>
    %42 = arith.maximumf %40, %41 : vector<1x7x64xf32>
    %43 = arith.truncf %42 : vector<1x7x64xf32> to vector<1x7x64xbf16>
    %c0_51 = arith.constant 0 : index
    %c10 = arith.constant 10 : index
    %c0_52 = arith.constant 0 : index
    %44 = vector.load %arg4[%c0_51, %c10, %c0_52] : memref<1x98x64xbf16, #tpu.memory_space<vmem>>, vector<1x7x64xbf16>
    tpu.vector_store %arg4[%c0_51, %c10, %c0_52], %43 {strides = array<i32>} : memref<1x98x64xbf16, #tpu.memory_space<vmem>>, vector<1x7x64xbf16>,
    %c0_53 = arith.constant 0 : index
    %c32_54 = arith.constant 32 : index
    %c0_55 = arith.constant 0 : index
    %45 = tpu.strided_load %arg5[%c0_53, %c32_54, %c0_55] {strides = array<i32: 1, 2, 1>} : memref<1x224x64xf32, #tpu.memory_space<vmem>>, vector<1x7x64xf32>
    %c0_56 = arith.constant 0 : index
    %c33_57 = arith.constant 33 : index
    %c0_58 = arith.constant 0 : index
    %46 = tpu.strided_load %arg5[%c0_56, %c33_57, %c0_58] {strides = array<i32: 1, 2, 1>} : memref<1x224x64xf32, #tpu.memory_space<vmem>>, vector<1x7x64xf32>
    %c0_59 = arith.constant 0 : index
    %c48 = arith.constant 48 : index
    %c0_60 = arith.constant 0 : index
    %47 = tpu.strided_load %arg5[%c0_59, %c48, %c0_60] {strides = array<i32: 1, 2, 1>} : memref<1x224x64xf32, #tpu.memory_space<vmem>>, vector<1x7x64xf32>
    %c0_61 = arith.constant 0 : index
    %c49 = arith.constant 49 : index
    %c0_62 = arith.constant 0 : index
    %48 = tpu.strided_load %arg5[%c0_61, %c49, %c0_62] {strides = array<i32: 1, 2, 1>} : memref<1x224x64xf32, #tpu.memory_space<vmem>>, vector<1x7x64xf32>
    %49 = arith.maximumf %45, %46 : vector<1x7x64xf32>
    %50 = arith.maximumf %47, %48 : vector<1x7x64xf32>
    %51 = arith.maximumf %49, %50 : vector<1x7x64xf32>
    %52 = vector.shape_cast %28 : vector<1x64xf32> to vector<1x1x64xf32>
    %53 = vector.broadcast %52 : vector<1x1x64xf32> to vector<1x7x64xf32>
    %54 = arith.addf %51, %53 : vector<1x7x64xf32>
    %cst_63 = arith.constant 0.000000e+00 : f32
    %55 = vector.broadcast %cst_63 : f32 to vector<1x7x64xf32>
    %56 = arith.maximumf %54, %55 : vector<1x7x64xf32>
    %57 = arith.truncf %56 : vector<1x7x64xf32> to vector<1x7x64xbf16>
    %c0_64 = arith.constant 0 : index
    %c19 = arith.constant 19 : index
    %c0_65 = arith.constant 0 : index
    %58 = vector.load %arg4[%c0_64, %c19, %c0_65] : memref<1x98x64xbf16, #tpu.memory_space<vmem>>, vector<1x7x64xbf16>
    tpu.vector_store %arg4[%c0_64, %c19, %c0_65], %57 {strides = array<i32>} : memref<1x98x64xbf16, #tpu.memory_space<vmem>>, vector<1x7x64xbf16>,
    %c0_66 = arith.constant 0 : index
    %c64 = arith.constant 64 : index
    %c0_67 = arith.constant 0 : index
    %59 = tpu.strided_load %arg5[%c0_66, %c64, %c0_67] {strides = array<i32: 1, 2, 1>} : memref<1x224x64xf32, #tpu.memory_space<vmem>>, vector<1x7x64xf32>
    %c0_68 = arith.constant 0 : index
    %c65 = arith.constant 65 : index
    %c0_69 = arith.constant 0 : index
    %60 = tpu.strided_load %arg5[%c0_68, %c65, %c0_69] {strides = array<i32: 1, 2, 1>} : memref<1x224x64xf32, #tpu.memory_space<vmem>>, vector<1x7x64xf32>
    %c0_70 = arith.constant 0 : index
    %c80 = arith.constant 80 : index
    %c0_71 = arith.constant 0 : index
    %61 = tpu.strided_load %arg5[%c0_70, %c80, %c0_71] {strides = array<i32: 1, 2, 1>} : memref<1x224x64xf32, #tpu.memory_space<vmem>>, vector<1x7x64xf32>
    %c0_72 = arith.constant 0 : index
    %c81 = arith.constant 81 : index
    %c0_73 = arith.constant 0 : index
    %62 = tpu.strided_load %arg5[%c0_72, %c81, %c0_73] {strides = array<i32: 1, 2, 1>} : memref<1x224x64xf32, #tpu.memory_space<vmem>>, vector<1x7x64xf32>
    %63 = arith.maximumf %59, %60 : vector<1x7x64xf32>
    %64 = arith.maximumf %61, %62 : vector<1x7x64xf32>
    %65 = arith.maximumf %63, %64 : vector<1x7x64xf32>
    %66 = vector.shape_cast %28 : vector<1x64xf32> to vector<1x1x64xf32>
    %67 = vector.broadcast %66 : vector<1x1x64xf32> to vector<1x7x64xf32>
    %68 = arith.addf %65, %67 : vector<1x7x64xf32>
    %cst_74 = arith.constant 0.000000e+00 : f32
    %69 = vector.broadcast %cst_74 : f32 to vector<1x7x64xf32>
    %70 = arith.maximumf %68, %69 : vector<1x7x64xf32>
    %71 = arith.truncf %70 : vector<1x7x64xf32> to vector<1x7x64xbf16>
    %c0_75 = arith.constant 0 : index
    %c28 = arith.constant 28 : index
    %c0_76 = arith.constant 0 : index
    %72 = vector.load %arg4[%c0_75, %c28, %c0_76] : memref<1x98x64xbf16, #tpu.memory_space<vmem>>, vector<1x7x64xbf16>
    tpu.vector_store %arg4[%c0_75, %c28, %c0_76], %71 {strides = array<i32>} : memref<1x98x64xbf16, #tpu.memory_space<vmem>>, vector<1x7x64xbf16>,
    %c0_77 = arith.constant 0 : index
    %c96 = arith.constant 96 : index
    %c0_78 = arith.constant 0 : index
    %73 = tpu.strided_load %arg5[%c0_77, %c96, %c0_78] {strides = array<i32: 1, 2, 1>} : memref<1x224x64xf32, #tpu.memory_space<vmem>>, vector<1x7x64xf32>
    %c0_79 = arith.constant 0 : index
    %c97 = arith.constant 97 : index
    %c0_80 = arith.constant 0 : index
    %74 = tpu.strided_load %arg5[%c0_79, %c97, %c0_80] {strides = array<i32: 1, 2, 1>} : memref<1x224x64xf32, #tpu.memory_space<vmem>>, vector<1x7x64xf32>
    %c0_81 = arith.constant 0 : index
    %c112 = arith.constant 112 : index
    %c0_82 = arith.constant 0 : index
    %75 = tpu.strided_load %arg5[%c0_81, %c112, %c0_82] {strides = array<i32: 1, 2, 1>} : memref<1x224x64xf32, #tpu.memory_space<vmem>>, vector<1x7x64xf32>
    %c0_83 = arith.constant 0 : index
    %c113 = arith.constant 113 : index
    %c0_84 = arith.constant 0 : index
    %76 = tpu.strided_load %arg5[%c0_83, %c113, %c0_84] {strides = array<i32: 1, 2, 1>} : memref<1x224x64xf32, #tpu.memory_space<vmem>>, vector<1x7x64xf32>
    %77 = arith.maximumf %73, %74 : vector<1x7x64xf32>
    %78 = arith.maximumf %75, %76 : vector<1x7x64xf32>
    %79 = arith.maximumf %77, %78 : vector<1x7x64xf32>
    %80 = vector.shape_cast %28 : vector<1x64xf32> to vector<1x1x64xf32>
    %81 = vector.broadcast %80 : vector<1x1x64xf32> to vector<1x7x64xf32>
    %82 = arith.addf %79, %81 : vector<1x7x64xf32>
    %cst_85 = arith.constant 0.000000e+00 : f32
    %83 = vector.broadcast %cst_85 : f32 to vector<1x7x64xf32>
    %84 = arith.maximumf %82, %83 : vector<1x7x64xf32>
    %85 = arith.truncf %84 : vector<1x7x64xf32> to vector<1x7x64xbf16>
    %c0_86 = arith.constant 0 : index
    %c37 = arith.constant 37 : index
    %c0_87 = arith.constant 0 : index
    %86 = vector.load %arg4[%c0_86, %c37, %c0_87] : memref<1x98x64xbf16, #tpu.memory_space<vmem>>, vector<1x7x64xbf16>
    tpu.vector_store %arg4[%c0_86, %c37, %c0_87], %85 {strides = array<i32>} : memref<1x98x64xbf16, #tpu.memory_space<vmem>>, vector<1x7x64xbf16>,
    %c0_88 = arith.constant 0 : index
    %c128 = arith.constant 128 : index
    %c0_89 = arith.constant 0 : index
    %87 = tpu.strided_load %arg5[%c0_88, %c128, %c0_89] {strides = array<i32: 1, 2, 1>} : memref<1x224x64xf32, #tpu.memory_space<vmem>>, vector<1x7x64xf32>
    %c0_90 = arith.constant 0 : index
    %c129 = arith.constant 129 : index
    %c0_91 = arith.constant 0 : index
    %88 = tpu.strided_load %arg5[%c0_90, %c129, %c0_91] {strides = array<i32: 1, 2, 1>} : memref<1x224x64xf32, #tpu.memory_space<vmem>>, vector<1x7x64xf32>
    %c0_92 = arith.constant 0 : index
    %c144 = arith.constant 144 : index
    %c0_93 = arith.constant 0 : index
    %89 = tpu.strided_load %arg5[%c0_92, %c144, %c0_93] {strides = array<i32: 1, 2, 1>} : memref<1x224x64xf32, #tpu.memory_space<vmem>>, vector<1x7x64xf32>
    %c0_94 = arith.constant 0 : index
    %c145 = arith.constant 145 : index
    %c0_95 = arith.constant 0 : index
    %90 = tpu.strided_load %arg5[%c0_94, %c145, %c0_95] {strides = array<i32: 1, 2, 1>} : memref<1x224x64xf32, #tpu.memory_space<vmem>>, vector<1x7x64xf32>
    %91 = arith.maximumf %87, %88 : vector<1x7x64xf32>
    %92 = arith.maximumf %89, %90 : vector<1x7x64xf32>
    %93 = arith.maximumf %91, %92 : vector<1x7x64xf32>
    %94 = vector.shape_cast %28 : vector<1x64xf32> to vector<1x1x64xf32>
    %95 = vector.broadcast %94 : vector<1x1x64xf32> to vector<1x7x64xf32>
    %96 = arith.addf %93, %95 : vector<1x7x64xf32>
    %cst_96 = arith.constant 0.000000e+00 : f32
    %97 = vector.broadcast %cst_96 : f32 to vector<1x7x64xf32>
    %98 = arith.maximumf %96, %97 : vector<1x7x64xf32>
    %99 = arith.truncf %98 : vector<1x7x64xf32> to vector<1x7x64xbf16>
    %c0_97 = arith.constant 0 : index
    %c46 = arith.constant 46 : index
    %c0_98 = arith.constant 0 : index
    %100 = vector.load %arg4[%c0_97, %c46, %c0_98] : memref<1x98x64xbf16, #tpu.memory_space<vmem>>, vector<1x7x64xbf16>
    tpu.vector_store %arg4[%c0_97, %c46, %c0_98], %99 {strides = array<i32>} : memref<1x98x64xbf16, #tpu.memory_space<vmem>>, vector<1x7x64xbf16>,
    %c0_99 = arith.constant 0 : index
    %c160 = arith.constant 160 : index
    %c0_100 = arith.constant 0 : index
    %101 = tpu.strided_load %arg5[%c0_99, %c160, %c0_100] {strides = array<i32: 1, 2, 1>} : memref<1x224x64xf32, #tpu.memory_space<vmem>>, vector<1x7x64xf32>
    %c0_101 = arith.constant 0 : index
    %c161 = arith.constant 161 : index
    %c0_102 = arith.constant 0 : index
    %102 = tpu.strided_load %arg5[%c0_101, %c161, %c0_102] {strides = array<i32: 1, 2, 1>} : memref<1x224x64xf32, #tpu.memory_space<vmem>>, vector<1x7x64xf32>
    %c0_103 = arith.constant 0 : index
    %c176 = arith.constant 176 : index
    %c0_104 = arith.constant 0 : index
    %103 = tpu.strided_load %arg5[%c0_103, %c176, %c0_104] {strides = array<i32: 1, 2, 1>} : memref<1x224x64xf32, #tpu.memory_space<vmem>>, vector<1x7x64xf32>
    %c0_105 = arith.constant 0 : index
    %c177 = arith.constant 177 : index
    %c0_106 = arith.constant 0 : index
    %104 = tpu.strided_load %arg5[%c0_105, %c177, %c0_106] {strides = array<i32: 1, 2, 1>} : memref<1x224x64xf32, #tpu.memory_space<vmem>>, vector<1x7x64xf32>
    %105 = arith.maximumf %101, %102 : vector<1x7x64xf32>
    %106 = arith.maximumf %103, %104 : vector<1x7x64xf32>
    %107 = arith.maximumf %105, %106 : vector<1x7x64xf32>
    %108 = vector.shape_cast %28 : vector<1x64xf32> to vector<1x1x64xf32>
    %109 = vector.broadcast %108 : vector<1x1x64xf32> to vector<1x7x64xf32>
    %110 = arith.addf %107, %109 : vector<1x7x64xf32>
    %cst_107 = arith.constant 0.000000e+00 : f32
    %111 = vector.broadcast %cst_107 : f32 to vector<1x7x64xf32>
    %112 = arith.maximumf %110, %111 : vector<1x7x64xf32>
    %113 = arith.truncf %112 : vector<1x7x64xf32> to vector<1x7x64xbf16>
    %c0_108 = arith.constant 0 : index
    %c55 = arith.constant 55 : index
    %c0_109 = arith.constant 0 : index
    %114 = vector.load %arg4[%c0_108, %c55, %c0_109] : memref<1x98x64xbf16, #tpu.memory_space<vmem>>, vector<1x7x64xbf16>
    tpu.vector_store %arg4[%c0_108, %c55, %c0_109], %113 {strides = array<i32>} : memref<1x98x64xbf16, #tpu.memory_space<vmem>>, vector<1x7x64xbf16>,
    %c0_110 = arith.constant 0 : index
    %c192 = arith.constant 192 : index
    %c0_111 = arith.constant 0 : index
    %115 = tpu.strided_load %arg5[%c0_110, %c192, %c0_111] {strides = array<i32: 1, 2, 1>} : memref<1x224x64xf32, #tpu.memory_space<vmem>>, vector<1x7x64xf32>
    %c0_112 = arith.constant 0 : index
    %c193 = arith.constant 193 : index
    %c0_113 = arith.constant 0 : index
    %116 = tpu.strided_load %arg5[%c0_112, %c193, %c0_113] {strides = array<i32: 1, 2, 1>} : memref<1x224x64xf32, #tpu.memory_space<vmem>>, vector<1x7x64xf32>
    %c0_114 = arith.constant 0 : index
    %c208 = arith.constant 208 : index
    %c0_115 = arith.constant 0 : index
    %117 = tpu.strided_load %arg5[%c0_114, %c208, %c0_115] {strides = array<i32: 1, 2, 1>} : memref<1x224x64xf32, #tpu.memory_space<vmem>>, vector<1x7x64xf32>
    %c0_116 = arith.constant 0 : index
    %c209 = arith.constant 209 : index
    %c0_117 = arith.constant 0 : index
    %118 = tpu.strided_load %arg5[%c0_116, %c209, %c0_117] {strides = array<i32: 1, 2, 1>} : memref<1x224x64xf32, #tpu.memory_space<vmem>>, vector<1x7x64xf32>
    %119 = arith.maximumf %115, %116 : vector<1x7x64xf32>
    %120 = arith.maximumf %117, %118 : vector<1x7x64xf32>
    %121 = arith.maximumf %119, %120 : vector<1x7x64xf32>
    %122 = vector.shape_cast %28 : vector<1x64xf32> to vector<1x1x64xf32>
    %123 = vector.broadcast %122 : vector<1x1x64xf32> to vector<1x7x64xf32>
    %124 = arith.addf %121, %123 : vector<1x7x64xf32>
    %cst_118 = arith.constant 0.000000e+00 : f32
    %125 = vector.broadcast %cst_118 : f32 to vector<1x7x64xf32>
    %126 = arith.maximumf %124, %125 : vector<1x7x64xf32>
    %127 = arith.truncf %126 : vector<1x7x64xf32> to vector<1x7x64xbf16>
    %c0_119 = arith.constant 0 : index
    %c64_120 = arith.constant 64 : index
    %c0_121 = arith.constant 0 : index
    %128 = vector.load %arg4[%c0_119, %c64_120, %c0_121] : memref<1x98x64xbf16, #tpu.memory_space<vmem>>, vector<1x7x64xbf16>
    tpu.vector_store %arg4[%c0_119, %c64_120, %c0_121], %127 {strides = array<i32>} : memref<1x98x64xbf16, #tpu.memory_space<vmem>>, vector<1x7x64xbf16>,
    return
  }
  func.func @transform_0(%arg0: i32) -> (i32, i32, i32) {
    %c0_i32 = arith.constant 0 : i32
    %c0_i32_0 = arith.constant 0 : i32
    %c0_i32_1 = arith.constant 0 : i32
    return %arg0, %c0_i32, %c0_i32_0 : i32, i32, i32
  }
  func.func @transform_1(%arg0: i32) -> (i32, i32, i32) {
    %c0_i32 = arith.constant 0 : i32
    %c0_i32_0 = arith.constant 0 : i32
    %c0_i32_1 = arith.constant 0 : i32
    %c0_i32_2 = arith.constant 0 : i32
    return %c0_i32, %c0_i32_0, %c0_i32_1 : i32, i32, i32
  }
  func.func @transform_2(%arg0: i32) -> (i32, i32) {
    %c0_i32 = arith.constant 0 : i32
    %c0_i32_0 = arith.constant 0 : i32
    %c0_i32_1 = arith.constant 0 : i32
    return %c0_i32, %c0_i32_0 : i32, i32
  }
  func.func @transform_3(%arg0: i32) -> (i32, i32, i32) {
    %c0_i32 = arith.constant 0 : i32
    %c0_i32_0 = arith.constant 0 : i32
    %c0_i32_1 = arith.constant 0 : i32
    return %arg0, %c0_i32, %c0_i32_0 : i32, i32, i32
  }
}

module attributes {stable_mosaic.version = 11 : i64} {
  func.func @_fc_head_kernel(%arg0: i32, %arg1: memref<8x1152xbf16, #tpu.memory_space<vmem>>, %arg2: memref<1152x256xbf16, #tpu.memory_space<vmem>>, %arg3: memref<1x256xf32, #tpu.memory_space<vmem>>, %arg4: memref<256x128xbf16, #tpu.memory_space<vmem>>, %arg5: memref<1x128xf32, #tpu.memory_space<vmem>>, %arg6: memref<128x128xbf16, #tpu.memory_space<vmem>>, %arg7: memref<1x128xf32, #tpu.memory_space<vmem>>, %arg8: memref<8x128xf32, #tpu.memory_space<vmem>>) attributes {dimension_semantics = [#tpu.dimension_semantics<parallel>], iteration_bounds = array<i64: 1>, scalar_prefetch = 0 : i64, scratch_operands = 0 : i64, tpu.core_type = #tpu.core_type<tc>, window_params = [{transform_indices = @transform_0, window_bounds = array<i64: 8, 1152>}, {pipeline_mode = #tpu.pipeline_mode<synchronous>, transform_indices = @transform_1, window_bounds = array<i64: 1152, 256>}, {pipeline_mode = #tpu.pipeline_mode<synchronous>, transform_indices = @transform_2, window_bounds = array<i64: 1, 256>}, {pipeline_mode = #tpu.pipeline_mode<synchronous>, transform_indices = @transform_3, window_bounds = array<i64: 256, 128>}, {pipeline_mode = #tpu.pipeline_mode<synchronous>, transform_indices = @transform_4, window_bounds = array<i64: 1, 128>}, {pipeline_mode = #tpu.pipeline_mode<synchronous>, transform_indices = @transform_5, window_bounds = array<i64: 128, 128>}, {pipeline_mode = #tpu.pipeline_mode<synchronous>, transform_indices = @transform_6, window_bounds = array<i64: 1, 128>}, {transform_indices = @transform_7, window_bounds = array<i64: 8, 128>}]} {
    %c0 = arith.constant 0 : index
    %c0_0 = arith.constant 0 : index
    %0 = vector.load %arg1[%c0, %c0_0] : memref<8x1152xbf16, #tpu.memory_space<vmem>>, vector<8x1152xbf16>
    %c0_1 = arith.constant 0 : index
    %c0_2 = arith.constant 0 : index
    %1 = vector.load %arg2[%c0_1, %c0_2] : memref<1152x256xbf16, #tpu.memory_space<vmem>>, vector<1152x256xbf16>
    %cst = arith.constant dense<0.000000e+00> : vector<8x256xf32>
    %2 = tpu.matmul %0, %1, %cst {dimension_numbers = #tpu.dot_dimension_numbers<[1], [0], [0], [1], [0, 0, 1, 1], [], []>} : vector<8x1152xbf16>, vector<1152x256xbf16>, vector<8x256xf32> -> vector<8x256xf32>
    %c0_3 = arith.constant 0 : index
    %c0_4 = arith.constant 0 : index
    %3 = vector.load %arg3[%c0_3, %c0_4] : memref<1x256xf32, #tpu.memory_space<vmem>>, vector<1x256xf32>
    %4 = vector.broadcast %3 : vector<1x256xf32> to vector<8x256xf32>
    %5 = arith.addf %2, %4 : vector<8x256xf32>
    %cst_5 = arith.constant 0.000000e+00 : f32
    %6 = vector.broadcast %cst_5 : f32 to vector<8x256xf32>
    %7 = arith.maximumf %5, %6 : vector<8x256xf32>
    %8 = arith.truncf %7 : vector<8x256xf32> to vector<8x256xbf16>
    %c0_6 = arith.constant 0 : index
    %c0_7 = arith.constant 0 : index
    %9 = vector.load %arg4[%c0_6, %c0_7] : memref<256x128xbf16, #tpu.memory_space<vmem>>, vector<256x128xbf16>
    %cst_8 = arith.constant dense<0.000000e+00> : vector<8x128xf32>
    %10 = tpu.matmul %8, %9, %cst_8 {dimension_numbers = #tpu.dot_dimension_numbers<[1], [0], [0], [1], [0, 0, 1, 1], [], []>} : vector<8x256xbf16>, vector<256x128xbf16>, vector<8x128xf32> -> vector<8x128xf32>
    %c0_9 = arith.constant 0 : index
    %c0_10 = arith.constant 0 : index
    %11 = vector.load %arg5[%c0_9, %c0_10] : memref<1x128xf32, #tpu.memory_space<vmem>>, vector<1x128xf32>
    %12 = vector.broadcast %11 : vector<1x128xf32> to vector<8x128xf32>
    %13 = arith.addf %10, %12 : vector<8x128xf32>
    %cst_11 = arith.constant 0.000000e+00 : f32
    %14 = vector.broadcast %cst_11 : f32 to vector<8x128xf32>
    %15 = arith.maximumf %13, %14 : vector<8x128xf32>
    %16 = arith.truncf %15 : vector<8x128xf32> to vector<8x128xbf16>
    %c0_12 = arith.constant 0 : index
    %c0_13 = arith.constant 0 : index
    %17 = vector.load %arg6[%c0_12, %c0_13] : memref<128x128xbf16, #tpu.memory_space<vmem>>, vector<128x128xbf16>
    %cst_14 = arith.constant dense<0.000000e+00> : vector<8x128xf32>
    %18 = tpu.matmul %16, %17, %cst_14 {dimension_numbers = #tpu.dot_dimension_numbers<[1], [0], [0], [1], [0, 0, 1, 1], [], []>} : vector<8x128xbf16>, vector<128x128xbf16>, vector<8x128xf32> -> vector<8x128xf32>
    %c0_15 = arith.constant 0 : index
    %c0_16 = arith.constant 0 : index
    %19 = vector.load %arg7[%c0_15, %c0_16] : memref<1x128xf32, #tpu.memory_space<vmem>>, vector<1x128xf32>
    %20 = vector.broadcast %19 : vector<1x128xf32> to vector<8x128xf32>
    %21 = arith.addf %18, %20 : vector<8x128xf32>
    %c0_17 = arith.constant 0 : index
    %c0_18 = arith.constant 0 : index
    %22 = vector.load %arg8[%c0_17, %c0_18] : memref<8x128xf32, #tpu.memory_space<vmem>>, vector<8x128xf32>
    tpu.vector_store %arg8[%c0_17, %c0_18], %21 {strides = array<i32>} : memref<8x128xf32, #tpu.memory_space<vmem>>, vector<8x128xf32>,
    return
  }
  func.func @transform_0(%arg0: i32) -> (i32, i32) {
    %c0_i32 = arith.constant 0 : i32
    %c0_i32_0 = arith.constant 0 : i32
    return %arg0, %c0_i32 : i32, i32
  }
  func.func @transform_1(%arg0: i32) -> (i32, i32) {
    %c0_i32 = arith.constant 0 : i32
    %c0_i32_0 = arith.constant 0 : i32
    %c0_i32_1 = arith.constant 0 : i32
    return %c0_i32, %c0_i32_0 : i32, i32
  }
  func.func @transform_2(%arg0: i32) -> (i32, i32) {
    %c0_i32 = arith.constant 0 : i32
    %c0_i32_0 = arith.constant 0 : i32
    %c0_i32_1 = arith.constant 0 : i32
    return %c0_i32, %c0_i32_0 : i32, i32
  }
  func.func @transform_3(%arg0: i32) -> (i32, i32) {
    %c0_i32 = arith.constant 0 : i32
    %c0_i32_0 = arith.constant 0 : i32
    %c0_i32_1 = arith.constant 0 : i32
    return %c0_i32, %c0_i32_0 : i32, i32
  }
  func.func @transform_4(%arg0: i32) -> (i32, i32) {
    %c0_i32 = arith.constant 0 : i32
    %c0_i32_0 = arith.constant 0 : i32
    %c0_i32_1 = arith.constant 0 : i32
    return %c0_i32, %c0_i32_0 : i32, i32
  }
  func.func @transform_5(%arg0: i32) -> (i32, i32) {
    %c0_i32 = arith.constant 0 : i32
    %c0_i32_0 = arith.constant 0 : i32
    %c0_i32_1 = arith.constant 0 : i32
    return %c0_i32, %c0_i32_0 : i32, i32
  }
  func.func @transform_6(%arg0: i32) -> (i32, i32) {
    %c0_i32 = arith.constant 0 : i32
    %c0_i32_0 = arith.constant 0 : i32
    %c0_i32_1 = arith.constant 0 : i32
    return %c0_i32, %c0_i32_0 : i32, i32
  }
  func.func @transform_7(%arg0: i32) -> (i32, i32) {
    %c0_i32 = arith.constant 0 : i32
    %c0_i32_0 = arith.constant 0 : i32
    return %arg0, %c0_i32 : i32, i32
  }
}

</mosaic_0001>

<llo_original>
// kernel: lenet_complex_forward.6
$region0: #{lenet_complex_forward.6}
  #allocation0 [shape = 'u32[]', space=smem, size = 0x4, offset = 0x4, fixed_abs, tag = 'smem constant byte address 0x4 - core index']
  #allocation1 [shape = 'u32[72,128]{1,0:T(1,128)}', space=vmem, size = 0x9000, scoped, tag = 'internal scratch']
  #allocation2 [shape = 'f32[1,56,128]{2,1,0:T(8,128)}', space=vmem, size = 0x7000, scoped, tag = 'scratch operand']
  %s0 = inlined_call_operand.vmem [shape: bf16[2,98,64], index: 0, kind: input, shape index: {}]
  %s1 = inlined_call_operand.vmem [shape: bf16[3,192,128], index: 1, kind: input, shape index: {}]
  %s2 = inlined_call_operand.vmem [shape: f32[1,128], index: 2, kind: input, shape index: {}]
  %s3 = inlined_call_operand.vmem [shape: bf16[2,9,128], index: 3, kind: output, shape index: {}]
  %s4 = sld [smem:[#allocation0]]
  $region45: #{lenet_complex_forward.6} parent=0
    _
  %s6 = ssub.s32 1, %s4
  %s7 = scalar_select 0, %s6, %s4
  loop: start=0, step=1, limit=4
  $region2: #{lenet_complex_forward.6} parent=0 // loop_pre_header
    _
  $region3: #{lenet_complex_forward.6} parent=0 // loop_header
    %s9 = sphi 0, %s13
    %p10 = scmp.ge.s32.totalorder %s9, 4
    %s19 = sphi 0, %s21
    %s22 = sphi 0, %s19
    %s23 = sphi 0, %s22
    %s39 = sphi 0, %s23
    %s43 = sphi 0, %s43
    %s45 = sphi 0, %s43
    %s46 = sphi 0, %s45
    %s60 = sphi 0, %s46
    %s64 = sphi 0, %s64
    %s66 = sphi 0, %s64
    %s67 = sphi 0, %s66
    %s81 = sphi 0, %s67
    %s87 = sphi 0, %s89
    %s90 = sphi 0, %s87
    %s91 = sphi 0, %s90
    %s107 = sphi 0, %s91
  $region4: #{lenet_complex_forward.6} parent=0 // loop_header_branch
    %12 = sbr.rel (%p10) target = $region8
  $region5: #{lenet_complex_forward.6} parent=0 // loop_body
    %s14 = ssub.s32 %s9, 1
    %s15 = ssub.s32 %s9, 2
    %s16 = sadd.s32 %s9, 1
    %s17 = ssub.s32 %s9, %s16
    %p18 = scmp.eq.s32.totalorder %s17, 0
    %s20 = sadd.s32 %s19, 1
    %s21 = scalar_select %p18, %s19, %s20
    %p24 = pneg %p18
    %p25 = scmp.eq.s32.totalorder %s9, 1
    %p26 = por %p24, %p25
    %p27 = scmp.ne.s32.totalorder %s19, %s22
    %p28 = scmp.eq.s32.totalorder %s9, 0
    %p29 = por %p27, %p28
    %p30 = scmp.ne.s32.totalorder %s19, %s22
    %p31 = scmp.eq.s32.totalorder %s14, 1
    %p32 = por %p30, %p31
    %p33 = scmp.ne.s32.totalorder %s22, %s23
    %p34 = scmp.eq.s32.totalorder %s14, 0
    %p35 = por %p33, %p34
    %p36 = scmp.ne.s32.totalorder %s22, %s23
    %p37 = scmp.eq.s32.totalorder %s15, 1
    %p38 = por %p36, %p37
    %p40 = scmp.ne.s32.totalorder %s23, %s39
    %p41 = scmp.eq.s32.totalorder %s15, 0
    %p42 = por %p40, %p41
    %s44 = sadd.s32 %s43, 1
    %p47 = scmp.eq.s32.totalorder %s9, 1
    %p48 = scmp.ne.s32.totalorder %s43, %s45
    %p49 = scmp.eq.s32.totalorder %s9, 0
    %p50 = por %p48, %p49
    %p51 = scmp.ne.s32.totalorder %s43, %s45
    %p52 = scmp.eq.s32.totalorder %s14, 1
    %p53 = por %p51, %p52
    %p54 = scmp.ne.s32.totalorder %s45, %s46
    %p55 = scmp.eq.s32.totalorder %s14, 0
    %p56 = por %p54, %p55
    %p57 = scmp.ne.s32.totalorder %s45, %s46
    %p58 = scmp.eq.s32.totalorder %s15, 1
    %p59 = por %p57, %p58
    %p61 = scmp.ne.s32.totalorder %s46, %s60
    %p62 = scmp.eq.s32.totalorder %s15, 0
    %p63 = por %p61, %p62
    %s65 = sadd.s32 %s64, 1
    %p68 = scmp.eq.s32.totalorder %s9, 1
    %p69 = scmp.ne.s32.totalorder %s64, %s66
    %p70 = scmp.eq.s32.totalorder %s9, 0
    %p71 = por %p69, %p70
    %p72 = scmp.ne.s32.totalorder %s64, %s66
    %p73 = scmp.eq.s32.totalorder %s14, 1
    %p74 = por %p72, %p73
    %p75 = scmp.ne.s32.totalorder %s66, %s67
    %p76 = scmp.eq.s32.totalorder %s14, 0
    %p77 = por %p75, %p76
    %p78 = scmp.ne.s32.totalorder %s66, %s67
    %p79 = scmp.eq.s32.totalorder %s15, 1
    %p80 = por %p78, %p79
    %p82 = scmp.ne.s32.totalorder %s67, %s81
    %p83 = scmp.eq.s32.totalorder %s15, 0
    %p84 = por %p82, %p83
    %s85 = ssub.s32 %s9, %s16
    %p86 = scmp.eq.s32.totalorder %s85, 0
    %s88 = sadd.s32 %s87, 1
    %s89 = scalar_select %p86, %s87, %s88
    %p92 = pneg %p86
    %p93 = scmp.eq.s32.totalorder %s9, 1
    %p94 = por %p92, %p93
    %p95 = scmp.ne.s32.totalorder %s87, %s90
    %p96 = scmp.eq.s32.totalorder %s9, 0
    %p97 = por %p95, %p96
    %p98 = scmp.ne.s32.totalorder %s87, %s90
    %p99 = scmp.eq.s32.totalorder %s14, 1
    %p100 = por %p98, %p99
    %p101 = scmp.ne.s32.totalorder %s90, %s91
    %p102 = scmp.eq.s32.totalorder %s14, 0
    %p103 = por %p101, %p102
    %p104 = scmp.ne.s32.totalorder %s90, %s91
    %p105 = scmp.eq.s32.totalorder %s15, 1
    %p106 = por %p104, %p105
    %p108 = scmp.ne.s32.totalorder %s91, %s107
    %p109 = scmp.eq.s32.totalorder %s15, 0
    %p110 = por %p108, %p109
    %p111 = scmp.le.s32.totalorder 1, %s9
    %p112 = scmp.lt.s32.totalorder %s9, 3
    %p113 = pnand %p111, %p112
    %p114 = pneg %p113
    // Predicated region
    $region9: #{lenet_complex_forward.6} parent=5 // pred_check
      _
    $region10: #{lenet_complex_forward.6} parent=5 // pred_check_branch
      %116 = sbr.rel (%p113) target = $region12
    $region11: #{lenet_complex_forward.6} parent=5 // pred_region
      %s117 = ssub.s32 %s9, 1
      // Predicated region
      $region13: #{lenet_complex_forward.6} parent=11 // pred_check
        %p118 = pneg %p56
      $region14: #{lenet_complex_forward.6} parent=11 // pred_check_branch
        %120 = sbr.rel (%p118) target = $region16
      $region15: #{lenet_complex_forward.6} parent=11 // pred_region
        _
      $region16: #{lenet_complex_forward.6} parent=11 // pred_fallthru
        _
      // Predicated region
      $region17: #{lenet_complex_forward.6} parent=11 // pred_check
        %p121 = pneg %p77
      $region18: #{lenet_complex_forward.6} parent=11 // pred_check_branch
        %123 = sbr.rel (%p121) target = $region20
      $region19: #{lenet_complex_forward.6} parent=11 // pred_region
        _
      $region20: #{lenet_complex_forward.6} parent=11 // pred_fallthru
        _
    $region12: #{lenet_complex_forward.6} parent=5 // pred_fallthru
      _
    %p124 = scmp.lt.s32.totalorder %s9, 2
    // Predicated region
    $region21: #{lenet_complex_forward.6} parent=5 // pred_check
      %p125 = pneg %p124
    $region22: #{lenet_complex_forward.6} parent=5 // pred_check_branch
      %127 = sbr.rel (%p125) target = $region24
    $region23: #{lenet_complex_forward.6} parent=5 // pred_region
      // Predicated region
      $region25: #{lenet_complex_forward.6} parent=23 // pred_check
        %p128 = pneg %p29
      $region26: #{lenet_complex_forward.6} parent=23 // pred_check_branch
        %130 = sbr.rel (%p128) target = $region28
      $region27: #{lenet_complex_forward.6} parent=23 // pred_region
        %p131 = scmp.lt.s32.totalorder %s9, 1
        %s132 = scalar_select %p131, %s9, 1
        %s133 = smul.addr %s132, 13
        %s134 = smul.addr %s133, 4
        %s135 = scalar_lea.vmem %s0, %s134
      $region28: #{lenet_complex_forward.6} parent=23 // pred_fallthru
        _
    $region24: #{lenet_complex_forward.6} parent=5 // pred_fallthru
      _
    %p136 = scmp.le.s32.totalorder 1, %s9
    %p137 = scmp.lt.s32.totalorder %s9, 3
    %p138 = pnand %p136, %p137
    %p139 = pneg %p138
    // Predicated region
    $region29: #{lenet_complex_forward.6} parent=5 // pred_check
      _
    $region30: #{lenet_complex_forward.6} parent=5 // pred_check_branch
      %141 = sbr.rel (%p138) target = $region32
    $region31: #{lenet_complex_forward.6} parent=5 // pred_region
      %s142 = ssub.s32 %s9, 1
      %p143 = scmp.lt.s32.totalorder %s14, 1
      %s144 = scalar_select %p143, %s14, 1
      %s145 = smul.addr %s144, 13
      %s146 = smul.addr %s145, 4
      %s147 = scalar_lea.vmem %s0, %s146
      %p148 = pneg %p35
      %p149 = pneg %p32
      %p150 = pneg %p56
      %p151 = pneg %p53
      %p152 = pneg %p77
      %p153 = pneg %p74
      %p154 = pneg %p103
      %p155 = pneg %p100
      %p156 = scmp.lt.s32.totalorder %s14, 1
      %s157 = scalar_select %p156, %s14, 1
      %s158 = smul.addr %s157, 2
      %s159 = smul.addr %s158, 4
      %s160 = scalar_lea.vmem %s3, %s159
      %p161 = scmp.lt.s32.totalorder %s14, 1
      %s162 = scalar_select %p161, %s14, 1
      %s163 = smul.addr %s162, 13
      %s164 = smul.addr %s163, 4
      %s165 = scalar_lea.vmem %s0, %s164
      %p166 = scmp.lt.s32.totalorder %s14, 1
      %s167 = scalar_select %p166, %s14, 1
      %s168 = smul.addr %s167, 2
      %s169 = smul.addr %s168, 4
      %s170 = scalar_lea.vmem %s3, %s169
      %v172 = vld [vmem:[%s165] sm:$0xf]
      %v173 = vld [vmem:[%s165 + $0x4] sm:$0xf]
      %v174 = vld [vmem:[%s165 + $0x8] sm:$0xf]
      %v175 = vld [vmem:[%s165 + $0xc] sm:$0xf]
      %v176 = vld [vmem:[%s165 + $0x10] sm:$0xf]
      %v177 = vld [vmem:[%s165 + $0x14] sm:$0xf]
      %v178 = vld [vmem:[%s165 + $0x18] sm:$0xf]
      %v179 = vld [vmem:[%s165 + $0x1c] sm:$0x1]
      %v180 = vld [vmem:[%s165] sm:$0xe]
      %v188 = vunpack.c.l.b16 %v172
      %v189 = vunpack.c.l.b16 %v173
      %v190 = vunpack.c.l.b16 %v174
      %v191 = vunpack.c.l.b16 %v175
      %v192 = vunpack.c.l.b16 %v176
      %v193 = vunpack.c.l.b16 %v177
      %v194 = vunpack.c.l.b16 %v178
      %v195 = vpack.c.b16 %v189, %v188
      %v196 = vpack.c.b16 %v191, %v190
      %v197 = vpack.c.b16 %v193, %v192
      %v198 = vpack.c.b16 %v194, %v194
      %v200 = vunpack.c.l.b16 %v179
      %v201 = vpack.c.b16 %v200, %v194
      %vm202 = vsmask.f32 7424
      %v204 = vshrl.u32 %v195, 16
      %v206 = vshll.u32 %v195, 16
      %v208 = vrot.slane %v206, 1
      %v209 = vor.u32 %v204, %v208
      %v211 = vshll.u32 %v196, 16
      %v213 = vrot.slane %v211, 1
      %v214 = vsel %vm202, %v209, %v213
      %v215 = vshrl.u32 %v196, 16
      %v217 = vor.u32 %v215, %v213
      %v219 = vshll.u32 %v197, 16
      %v221 = vrot.slane %v219, 1
      %v222 = vsel %vm202, %v217, %v221
      %v223 = vshrl.u32 %v197, 16
      %v225 = vor.u32 %v223, %v221
      %v227 = vshll.u32 %v201, 16
      %v229 = vrot.slane %v227, 1
      %v230 = vsel %vm202, %v225, %v229
      %v231 = vshrl.u32 %v201, 16
      %v233 = vor.u32 %v231, %v229
      %234 = vrot.lane.b32.xlu0 %v214, 64
      %v235 = vpop.permute.xlu0 %234
      %236 = vrot.lane.b32.xlu0 %v222, 64
      %v237 = vpop.permute.xlu0 %236
      %238 = vrot.lane.b32.xlu0 %v230, 64
      %v239 = vpop.permute.xlu0 %238
      %240 = vrot.lane.b32.xlu0 %v233, 64
      %v241 = vpop.permute.xlu0 %240
      %v243 = vunpack.c.l.b16 %v180
      %v244 = vpack.c.b16 %v189, %v243
      %vm245 = vcmask 1046528
      %v246 = vrot.slane %v244, 1
      %v247 = vrot.slane %v196, 1
      %v248 = vsel %vm245, %v246, %v247
      %v249 = vrot.slane %v197, 1
      %v250 = vsel %vm245, %v247, %v249
      %v251 = vrot.slane %v201, 1
      %v252 = vsel %vm245, %v249, %v251
      %vm253 = vcmask 523264
      %v255 = vsel %vm253, %v195, %v235
      %v258 = vsel %vm253, %v196, %v237
      %v261 = vsel %vm253, %v197, %v239
      %v265 = vsel %vm253, %v198, %v241
      %v267 = vld [vmem:[%s1] sm:$0xf]
      %v268 = vld [vmem:[%s1 + $0x4] sm:$0xf]
      %v269 = vld [vmem:[%s1 + $0x8] sm:$0xf]
      %v270 = vld [vmem:[%s1 + $0xc] sm:$0xf]
      %v271 = vld [vmem:[%s1 + $0x10] sm:$0xf]
      %v272 = vld [vmem:[%s1 + $0x14] sm:$0xf]
      %v273 = vld [vmem:[%s1 + $0x18] sm:$0xf]
      %v274 = vld [vmem:[%s1 + $0x1c] sm:$0xf]
      %v275 = vld [vmem:[%s1 + $0x20] sm:$0xf]
      %v276 = vld [vmem:[%s1 + $0x24] sm:$0xf]
      %v277 = vld [vmem:[%s1 + $0x28] sm:$0xf]
      %v278 = vld [vmem:[%s1 + $0x2c] sm:$0xf]
      %v279 = vld [vmem:[%s1 + $0x30] sm:$0xf]
      %v280 = vld [vmem:[%s1 + $0x34] sm:$0xf]
      %v281 = vld [vmem:[%s1 + $0x38] sm:$0xf]
      %v282 = vld [vmem:[%s1 + $0x3c] sm:$0xf]
      %v283 = vld [vmem:[%s1 + $0x40] sm:$0xf]
      %v284 = vld [vmem:[%s1 + $0x44] sm:$0xf]
      %v285 = vld [vmem:[%s1 + $0x48] sm:$0xf]
      %v286 = vld [vmem:[%s1 + $0x4c] sm:$0xf]
      %v287 = vld [vmem:[%s1 + $0x50] sm:$0xf]
      %v288 = vld [vmem:[%s1 + $0x54] sm:$0xf]
      %v289 = vld [vmem:[%s1 + $0x58] sm:$0xf]
      %v290 = vld [vmem:[%s1 + $0x5c] sm:$0xf]
      %v291 = vld [vmem:[%s165 + $0x1c] sm:$0xf]
      %v292 = vld [vmem:[%s165 + $0x20] sm:$0x1]
      %v293 = vld [vmem:[%s165 + $0x4] sm:$0xe]
      %v294 = vld [vmem:[%s165 + $0x20] sm:$0x3]
      %v297 = vunpack.c.l.b16 %v291
      %v298 = vunpack.c.l.b16 %v292
      %v299 = vpack.c.b16 %v190, %v189
      %v300 = vpack.c.b16 %v192, %v191
      %v301 = vpack.c.b16 %v194, %v193
      %v302 = vpack.c.b16 %v298, %v297
      %v304 = vunpack.c.l.b16 %v293
      %v305 = vpack.c.b16 %v190, %v304
      %v307 = vshrl.u32 %v305, 16
      %v309 = vshll.u32 %v305, 16
      %v311 = vrot.slane %v309, 1
      %v312 = vor.u32 %v307, %v311
      %v314 = vshll.u32 %v300, 16
      %v316 = vrot.slane %v314, 1
      %v317 = vsel %vm202, %v312, %v316
      %v318 = vshrl.u32 %v300, 16
      %v320 = vor.u32 %v318, %v316
      %v322 = vshll.u32 %v301, 16
      %v324 = vrot.slane %v322, 1
      %v325 = vsel %vm202, %v320, %v324
      %v326 = vshrl.u32 %v301, 16
      %v328 = vor.u32 %v326, %v324
      %v330 = vshll.u32 %v302, 16
      %v332 = vrot.slane %v330, 1
      %v333 = vsel %vm202, %v328, %v332
      %v334 = vshrl.u32 %v302, 16
      %v336 = vor.u32 %v334, %v332
      %337 = vrot.lane.b32.xlu0 %v317, 64
      %v338 = vpop.permute.xlu0 %337
      %339 = vrot.lane.b32.xlu0 %v325, 64
      %v340 = vpop.permute.xlu0 %339
      %341 = vrot.lane.b32.xlu0 %v333, 64
      %v342 = vpop.permute.xlu0 %341
      %343 = vrot.lane.b32.xlu0 %v336, 64
      %v344 = vpop.permute.xlu0 %343
      %v346 = vunpack.c.l.b16 %v294
      %v347 = vpack.c.b16 %v346, %v297
      %v348 = vrot.slane %v305, 1
      %v349 = vrot.slane %v300, 1
      %v350 = vsel %vm245, %v348, %v349
      %v351 = vrot.slane %v301, 1
      %v352 = vsel %vm245, %v349, %v351
      %v353 = vrot.slane %v347, 1
      %v354 = vsel %vm245, %v351, %v353
      %v357 = vsel %vm253, %v299, %v338
      %v359 = vsel %vm253, %v300, %v340
      %v361 = vsel %vm253, %v301, %v342
      %v363 = vsel %vm253, %v302, %v344
      %s364 = scalar_lea.vmem %s1, 96
      %v365 = vld [vmem:[%s364] sm:$0xf]
      %v366 = vld [vmem:[%s364 + $0x4] sm:$0xf]
      %v367 = vld [vmem:[%s364 + $0x8] sm:$0xf]
      %v368 = vld [vmem:[%s364 + $0xc] sm:$0xf]
      %v369 = vld [vmem:[%s364 + $0x10] sm:$0xf]
      %v370 = vld [vmem:[%s364 + $0x14] sm:$0xf]
      %v371 = vld [vmem:[%s364 + $0x18] sm:$0xf]
      %v372 = vld [vmem:[%s364 + $0x1c] sm:$0xf]
      %v373 = vld [vmem:[%s364 + $0x20] sm:$0xf]
      %v374 = vld [vmem:[%s364 + $0x24] sm:$0xf]
      %v375 = vld [vmem:[%s364 + $0x28] sm:$0xf]
      %v376 = vld [vmem:[%s364 + $0x2c] sm:$0xf]
      %v377 = vld [vmem:[%s364 + $0x30] sm:$0xf]
      %v378 = vld [vmem:[%s364 + $0x34] sm:$0xf]
      %v379 = vld [vmem:[%s364 + $0x38] sm:$0xf]
      %v380 = vld [vmem:[%s364 + $0x3c] sm:$0xf]
      %v381 = vld [vmem:[%s364 + $0x40] sm:$0xf]
      %v382 = vld [vmem:[%s364 + $0x44] sm:$0xf]
      %v383 = vld [vmem:[%s364 + $0x48] sm:$0xf]
      %v384 = vld [vmem:[%s364 + $0x4c] sm:$0xf]
      %v385 = vld [vmem:[%s364 + $0x50] sm:$0xf]
      %v386 = vld [vmem:[%s364 + $0x54] sm:$0xf]
      %v387 = vld [vmem:[%s364 + $0x58] sm:$0xf]
      %v388 = vld [vmem:[%s364 + $0x5c] sm:$0xf]
      %v389 = vshrl.u32 %v357, 16
      %v391 = vshll.u32 %v357, 16
      %v393 = vrot.slane %v391, 1
      %v394 = vor.u32 %v389, %v393
      %v395 = vshll.u32 %v359, 16
      %v397 = vrot.slane %v395, 1
      %v398 = vsel %vm202, %v394, %v397
      %v400 = vshrl.u32 %v350, 16
      %v402 = vshll.u32 %v350, 16
      %v404 = vrot.slane %v402, 1
      %v405 = vor.u32 %v400, %v404
      %v407 = vshll.u32 %v352, 16
      %v409 = vrot.slane %v407, 1
      %v410 = vsel %vm202, %v405, %v409
      %v411 = vshrl.u32 %v359, 16
      %v413 = vor.u32 %v411, %v397
      %v414 = vshll.u32 %v361, 16
      %v416 = vrot.slane %v414, 1
      %v417 = vsel %vm202, %v413, %v416
      %v418 = vshrl.u32 %v352, 16
      %v420 = vor.u32 %v418, %v409
      %v422 = vshll.u32 %v354, 16
      %v424 = vrot.slane %v422, 1
      %v425 = vsel %vm202, %v420, %v424
      %v426 = vshrl.u32 %v361, 16
      %v428 = vor.u32 %v426, %v416
      %v429 = vshll.u32 %v363, 16
      %v431 = vrot.slane %v429, 1
      %v432 = vsel %vm202, %v428, %v431
      %v433 = vshrl.u32 %v354, 16
      %v435 = vor.u32 %v433, %v424
      %v437 = vshll.u32 %v353, 16
      %v439 = vrot.slane %v437, 1
      %v440 = vsel %vm202, %v435, %v439
      %v441 = vshrl.u32 %v363, 16
      %v443 = vor.u32 %v441, %v431
      %v444 = vshrl.u32 %v353, 16
      %v446 = vor.u32 %v444, %v439
      %v475 = vunpack.c.l.b16 %v365
      %v476 = vunpack.c.l.b16 %v366
      %v477 = vunpack.c.l.b16 %v367
      %v478 = vunpack.c.l.b16 %v368
      %v479 = vunpack.c.l.b16 %v369
      %v480 = vunpack.c.l.b16 %v370
      %v481 = vunpack.c.l.b16 %v371
      %v482 = vunpack.c.l.b16 %v372
      %v483 = vunpack.c.l.b16 %v373
      %v484 = vunpack.c.l.b16 %v374
      %v485 = vunpack.c.l.b16 %v375
      %v486 = vunpack.c.l.b16 %v376
      %v487 = vunpack.c.l.b16 %v377
      %v488 = vunpack.c.l.b16 %v378
      %v489 = vunpack.c.l.b16 %v379
      %v490 = vunpack.c.l.b16 %v380
      %v491 = vunpack.c.l.b16 %v381
      %v492 = vunpack.c.l.b16 %v382
      %v493 = vunpack.c.l.b16 %v383
      %v494 = vunpack.c.l.b16 %v384
      %v495 = vunpack.c.l.b16 %v385
      %v496 = vunpack.c.l.b16 %v386
      %v497 = vunpack.c.l.b16 %v387
      %v498 = vunpack.c.l.b16 %v388
      %v499 = vpack.c.b16 %v476, %v475
      %v500 = vpack.c.b16 %v478, %v477
      %v501 = vpack.c.b16 %v480, %v479
      %v502 = vpack.c.b16 %v482, %v481
      %v503 = vpack.c.b16 %v484, %v483
      %v504 = vpack.c.b16 %v486, %v485
      %v505 = vpack.c.b16 %v488, %v487
      %v506 = vpack.c.b16 %v490, %v489
      %v507 = vpack.c.b16 %v492, %v491
      %v508 = vpack.c.b16 %v494, %v493
      %v509 = vpack.c.b16 %v496, %v495
      %v510 = vpack.c.b16 %v498, %v497
      %v524 = vsel %vm253, %v410, 0
      %v527 = vsel %vm253, %v425, 0
      %v530 = vsel %vm253, %v440, 0
      %v533 = vsel %vm253, %v446, 0
      %535 = vmatpush.bf16.msra.mxu0 %v506
      %536 = vmatpush.bf16.msra.mxu0 %v505
      %537 = vmatpush.bf16.msra.mxu0 %v504
      %538 = vmatpush.bf16.msra.mxu0 %v503
      %539 = vmatpush.bf16.msra.mxu0 %v502
      %540 = vmatpush.bf16.msra.mxu0 %v501
      %541 = vmatpush.bf16.msra.mxu0 %v500
      %542 = vmatpush.bf16.msra.mxu0 %v499
      %543 = vmatmul.bf16.gmra.mxu0 %v398
      %v544 = vpop.f32.mrf.mxu0
      %v545 = vadd.f32 0.0, %v544
      %v546 = vpop.f32.mrf.mxu0
      %v547 = vadd.f32 0.0, %v546
      %548 = vmatmul.bf16.gmra.mxu0 %v417
      %v549 = vpop.f32.mrf.mxu0
      %v550 = vadd.f32 0.0, %v549
      %v551 = vpop.f32.mrf.mxu0
      %v552 = vadd.f32 0.0, %v551
      %553 = vmatmul.bf16.gmra.mxu0 %v432
      %v554 = vpop.f32.mrf.mxu0
      %v555 = vadd.f32 0.0, %v554
      %v556 = vpop.f32.mrf.mxu0
      %v557 = vadd.f32 0.0, %v556
      %558 = vmatmul.bf16.gmra.mxu0 %v443
      %v559 = vpop.f32.mrf.mxu0
      %v560 = vadd.f32 0.0, %v559
      %v561 = vpop.f32.mrf.mxu0
      %562 = vdwg.mxu0
      %563 = vmatpush.bf16.msra.mxu0 0
      %564 = vmatpush.bf16.msra.mxu0 0
      %565 = vmatpush.bf16.msra.mxu0 0
      %566 = vmatpush.bf16.msra.mxu0 0
      %567 = vmatpush.bf16.msra.mxu0 %v510
      %568 = vmatpush.bf16.msra.mxu0 %v509
      %569 = vmatpush.bf16.msra.mxu0 %v508
      %570 = vmatpush.bf16.msra.mxu0 %v507
      %571 = vmatmul.bf16.gmra.mxu0 %v524
      %v572 = vpop.f32.mrf.mxu0
      %v573 = vadd.f32 %v545, %v572
      %v574 = vpop.f32.mrf.mxu0
      %v575 = vadd.f32 %v547, %v574
      %576 = vmatmul.bf16.gmra.mxu0 %v527
      %v577 = vpop.f32.mrf.mxu0
      %v578 = vadd.f32 %v550, %v577
      %v579 = vpop.f32.mrf.mxu0
      %v580 = vadd.f32 %v552, %v579
      %581 = vmatmul.bf16.gmra.mxu0 %v530
      %v582 = vpop.f32.mrf.mxu0
      %v583 = vadd.f32 %v555, %v582
      %v584 = vpop.f32.mrf.mxu0
      %v585 = vadd.f32 %v557, %v584
      %586 = vmatmul.bf16.gmra.mxu0 %v533
      %v587 = vpop.f32.mrf.mxu0
      %v588 = vadd.f32 %v560, %v587
      %v589 = vpop.f32.mrf.mxu0
      %590 = vdwg.mxu0
      %v615 = vunpack.c.l.b16 %v267
      %v616 = vunpack.c.l.b16 %v268
      %v617 = vunpack.c.l.b16 %v269
      %v618 = vunpack.c.l.b16 %v270
      %v619 = vunpack.c.l.b16 %v271
      %v620 = vunpack.c.l.b16 %v272
      %v621 = vunpack.c.l.b16 %v273
      %v622 = vunpack.c.l.b16 %v274
      %v623 = vunpack.c.l.b16 %v275
      %v624 = vunpack.c.l.b16 %v276
      %v625 = vunpack.c.l.b16 %v277
      %v626 = vunpack.c.l.b16 %v278
      %v627 = vunpack.c.l.b16 %v279
      %v628 = vunpack.c.l.b16 %v280
      %v629 = vunpack.c.l.b16 %v281
      %v630 = vunpack.c.l.b16 %v282
      %v631 = vunpack.c.l.b16 %v283
      %v632 = vunpack.c.l.b16 %v284
      %v633 = vunpack.c.l.b16 %v285
      %v634 = vunpack.c.l.b16 %v286
      %v635 = vunpack.c.l.b16 %v287
      %v636 = vunpack.c.l.b16 %v288
      %v637 = vunpack.c.l.b16 %v289
      %v638 = vunpack.c.l.b16 %v290
      %v639 = vpack.c.b16 %v616, %v615
      %v640 = vpack.c.b16 %v618, %v617
      %v641 = vpack.c.b16 %v620, %v619
      %v642 = vpack.c.b16 %v622, %v621
      %v643 = vpack.c.b16 %v624, %v623
      %v644 = vpack.c.b16 %v626, %v625
      %v645 = vpack.c.b16 %v628, %v627
      %v646 = vpack.c.b16 %v630, %v629
      %v647 = vpack.c.b16 %v632, %v631
      %v648 = vpack.c.b16 %v634, %v633
      %v649 = vpack.c.b16 %v636, %v635
      %v650 = vpack.c.b16 %v638, %v637
      %v664 = vsel %vm253, %v248, 0
      %v667 = vsel %vm253, %v250, 0
      %v670 = vsel %vm253, %v252, 0
      %v673 = vsel %vm253, %v251, 0
      %675 = vmatpush.bf16.msra.mxu0 %v646
      %676 = vmatpush.bf16.msra.mxu0 %v645
      %677 = vmatpush.bf16.msra.mxu0 %v644
      %678 = vmatpush.bf16.msra.mxu0 %v643
      %679 = vmatpush.bf16.msra.mxu0 %v642
      %680 = vmatpush.bf16.msra.mxu0 %v641
      %681 = vmatpush.bf16.msra.mxu0 %v640
      %682 = vmatpush.bf16.msra.mxu0 %v639
      %683 = vmatmul.bf16.gmra.mxu0 %v255
      %v684 = vpop.f32.mrf.mxu0
      %v685 = vadd.f32 %v573, %v684
      %v686 = vpop.f32.mrf.mxu0
      %v687 = vadd.f32 %v575, %v686
      %688 = vmatmul.bf16.gmra.mxu0 %v258
      %v689 = vpop.f32.mrf.mxu0
      %v690 = vadd.f32 %v578, %v689
      %v691 = vpop.f32.mrf.mxu0
      %v692 = vadd.f32 %v580, %v691
      %693 = vmatmul.bf16.gmra.mxu0 %v261
      %v694 = vpop.f32.mrf.mxu0
      %v695 = vadd.f32 %v583, %v694
      %v696 = vpop.f32.mrf.mxu0
      %v697 = vadd.f32 %v585, %v696
      %698 = vmatmul.bf16.gmra.mxu0 %v265
      %v699 = vpop.f32.mrf.mxu0
      %v700 = vadd.f32 %v588, %v699
      %v701 = vpop.f32.mrf.mxu0
      %702 = vdwg.mxu0
      %703 = vmatpush.bf16.msra.mxu0 0
      %704 = vmatpush.bf16.msra.mxu0 0
      %705 = vmatpush.bf16.msra.mxu0 0
      %706 = vmatpush.bf16.msra.mxu0 0
      %707 = vmatpush.bf16.msra.mxu0 %v650
      %708 = vmatpush.bf16.msra.mxu0 %v649
      %709 = vmatpush.bf16.msra.mxu0 %v648
      %710 = vmatpush.bf16.msra.mxu0 %v647
      %711 = vmatmul.bf16.gmra.mxu0 %v664
      %v712 = vpop.f32.mrf.mxu0
      %v713 = vadd.f32 %v685, %v712
      %v714 = vpop.f32.mrf.mxu0
      %v715 = vadd.f32 %v687, %v714
      %716 = vmatmul.bf16.gmra.mxu0 %v667
      %v717 = vpop.f32.mrf.mxu0
      %v718 = vadd.f32 %v690, %v717
      %v719 = vpop.f32.mrf.mxu0
      %v720 = vadd.f32 %v692, %v719
      %721 = vmatmul.bf16.gmra.mxu0 %v670
      %v722 = vpop.f32.mrf.mxu0
      %v723 = vadd.f32 %v695, %v722
      %v724 = vpop.f32.mrf.mxu0
      %v725 = vadd.f32 %v697, %v724
      %726 = vmatmul.bf16.gmra.mxu0 %v673
      %v727 = vpop.f32.mrf.mxu0
      %v728 = vadd.f32 %v700, %v727
      %v729 = vpop.f32.mrf.mxu0
      %730 = vdwg.mxu0
      %v731 = vld [vmem:[%s165 + $0x8] sm:$0xe]
      %v732 = vld [vmem:[%s165 + $0xc] sm:$0xf]
      %v733 = vld [vmem:[%s165 + $0x10] sm:$0xf]
      %v734 = vld [vmem:[%s165 + $0x14] sm:$0xf]
      %v735 = vld [vmem:[%s165 + $0x18] sm:$0xf]
      %v736 = vld [vmem:[%s165 + $0x1c] sm:$0xf]
      %v737 = vld [vmem:[%s165 + $0x20] sm:$0xf]
      %v738 = vld [vmem:[%s165 + $0x24] sm:$0x1]
      %v739 = vld [vmem:[%s165 + $0x24] sm:$0x3]
      %v740 = vld [vmem:[%s165 + $0x8] sm:$0xc]
      %v749 = vunpack.c.l.b16 %v731
      %v750 = vunpack.c.l.b16 %v732
      %v751 = vunpack.c.l.b16 %v733
      %v752 = vunpack.c.l.b16 %v734
      %v753 = vunpack.c.l.b16 %v735
      %v754 = vunpack.c.l.b16 %v736
      %v755 = vunpack.c.l.b16 %v737
      %v756 = vunpack.c.l.b16 %v738
      %v757 = vpack.c.b16 %v750, %v749
      %v758 = vpack.c.b16 %v752, %v751
      %v759 = vpack.c.b16 %v754, %v753
      %v760 = vpack.c.b16 %v756, %v755
      %v762 = vunpack.c.l.b16 %v739
      %v763 = vpack.c.b16 %v762, %v755
      %v765 = vshrl.u32 %v757, 16
      %v767 = vshll.u32 %v757, 16
      %v769 = vrot.slane %v767, 1
      %v770 = vor.u32 %v765, %v769
      %v772 = vshll.u32 %v758, 16
      %v774 = vrot.slane %v772, 1
      %v775 = vsel %vm202, %v770, %v774
      %v776 = vshrl.u32 %v758, 16
      %v778 = vor.u32 %v776, %v774
      %v780 = vshll.u32 %v759, 16
      %v782 = vrot.slane %v780, 1
      %v783 = vsel %vm202, %v778, %v782
      %v784 = vshrl.u32 %v759, 16
      %v786 = vor.u32 %v784, %v782
      %v788 = vshll.u32 %v763, 16
      %v790 = vrot.slane %v788, 1
      %v791 = vsel %vm202, %v786, %v790
      %v792 = vshrl.u32 %v763, 16
      %v794 = vor.u32 %v792, %v790
      %795 = vrot.lane.b32.xlu0 %v775, 64
      %v796 = vpop.permute.xlu0 %795
      %797 = vrot.lane.b32.xlu0 %v783, 64
      %v798 = vpop.permute.xlu0 %797
      %799 = vrot.lane.b32.xlu0 %v791, 64
      %v800 = vpop.permute.xlu0 %799
      %801 = vrot.lane.b32.xlu0 %v794, 64
      %v802 = vpop.permute.xlu0 %801
      %v804 = vunpack.c.l.b16 %v740
      %v805 = vpack.c.b16 %v750, %v804
      %v806 = vrot.slane %v805, 1
      %v807 = vrot.slane %v758, 1
      %v808 = vsel %vm245, %v806, %v807
      %v809 = vrot.slane %v759, 1
      %v810 = vsel %vm245, %v807, %v809
      %v811 = vrot.slane %v763, 1
      %v812 = vsel %vm245, %v809, %v811
      %v814 = vsel %vm253, %v757, %v796
      %v816 = vsel %vm253, %v758, %v798
      %v818 = vsel %vm253, %v759, %v800
      %v821 = vsel %vm253, %v760, %v802
      %s822 = scalar_lea.vmem %s1, 192
      %v823 = vld [vmem:[%s822] sm:$0xf]
      %v824 = vld [vmem:[%s822 + $0x4] sm:$0xf]
      %v825 = vld [vmem:[%s822 + $0x8] sm:$0xf]
      %v826 = vld [vmem:[%s822 + $0xc] sm:$0xf]
      %v827 = vld [vmem:[%s822 + $0x10] sm:$0xf]
      %v828 = vld [vmem:[%s822 + $0x14] sm:$0xf]
      %v829 = vld [vmem:[%s822 + $0x18] sm:$0xf]
      %v830 = vld [vmem:[%s822 + $0x1c] sm:$0xf]
      %v831 = vld [vmem:[%s822 + $0x20] sm:$0xf]
      %v832 = vld [vmem:[%s822 + $0x24] sm:$0xf]
      %v833 = vld [vmem:[%s822 + $0x28] sm:$0xf]
      %v834 = vld [vmem:[%s822 + $0x2c] sm:$0xf]
      %v835 = vld [vmem:[%s822 + $0x30] sm:$0xf]
      %v836 = vld [vmem:[%s822 + $0x34] sm:$0xf]
      %v837 = vld [vmem:[%s822 + $0x38] sm:$0xf]
      %v838 = vld [vmem:[%s822 + $0x3c] sm:$0xf]
      %v839 = vld [vmem:[%s822 + $0x40] sm:$0xf]
      %v840 = vld [vmem:[%s822 + $0x44] sm:$0xf]
      %v841 = vld [vmem:[%s822 + $0x48] sm:$0xf]
      %v842 = vld [vmem:[%s822 + $0x4c] sm:$0xf]
      %v843 = vld [vmem:[%s822 + $0x50] sm:$0xf]
      %v844 = vld [vmem:[%s822 + $0x54] sm:$0xf]
      %v845 = vld [vmem:[%s822 + $0x58] sm:$0xf]
      %v846 = vld [vmem:[%s822 + $0x5c] sm:$0xf]
      %v851 = vrot.slane %v814, 1
      %v852 = vrot.slane %v816, 1
      %v853 = vsel %vm245, %v851, %v852
      %v854 = vrot.slane %v808, 1
      %v855 = vrot.slane %v810, 1
      %v856 = vsel %vm245, %v854, %v855
      %v857 = vrot.slane %v818, 1
      %v858 = vsel %vm245, %v852, %v857
      %v859 = vrot.slane %v812, 1
      %v860 = vsel %vm245, %v855, %v859
      %v861 = vrot.slane %v821, 1
      %v862 = vsel %vm245, %v857, %v861
      %v863 = vrot.slane %v811, 1
      %v864 = vsel %vm245, %v859, %v863
      %v893 = vunpack.c.l.b16 %v823
      %v894 = vunpack.c.l.b16 %v824
      %v895 = vunpack.c.l.b16 %v825
      %v896 = vunpack.c.l.b16 %v826
      %v897 = vunpack.c.l.b16 %v827
      %v898 = vunpack.c.l.b16 %v828
      %v899 = vunpack.c.l.b16 %v829
      %v900 = vunpack.c.l.b16 %v830
      %v901 = vunpack.c.l.b16 %v831
      %v902 = vunpack.c.l.b16 %v832
      %v903 = vunpack.c.l.b16 %v833
      %v904 = vunpack.c.l.b16 %v834
      %v905 = vunpack.c.l.b16 %v835
      %v906 = vunpack.c.l.b16 %v836
      %v907 = vunpack.c.l.b16 %v837
      %v908 = vunpack.c.l.b16 %v838
      %v909 = vunpack.c.l.b16 %v839
      %v910 = vunpack.c.l.b16 %v840
      %v911 = vunpack.c.l.b16 %v841
      %v912 = vunpack.c.l.b16 %v842
      %v913 = vunpack.c.l.b16 %v843
      %v914 = vunpack.c.l.b16 %v844
      %v915 = vunpack.c.l.b16 %v845
      %v916 = vunpack.c.l.b16 %v846
      %v917 = vpack.c.b16 %v894, %v893
      %v918 = vpack.c.b16 %v896, %v895
      %v919 = vpack.c.b16 %v898, %v897
      %v920 = vpack.c.b16 %v900, %v899
      %v921 = vpack.c.b16 %v902, %v901
      %v922 = vpack.c.b16 %v904, %v903
      %v923 = vpack.c.b16 %v906, %v905
      %v924 = vpack.c.b16 %v908, %v907
      %v925 = vpack.c.b16 %v910, %v909
      %v926 = vpack.c.b16 %v912, %v911
      %v927 = vpack.c.b16 %v914, %v913
      %v928 = vpack.c.b16 %v916, %v915
      %v942 = vsel %vm253, %v856, 0
      %v945 = vsel %vm253, %v860, 0
      %v948 = vsel %vm253, %v864, 0
      %v951 = vsel %vm253, %v863, 0
      %953 = vmatpush.bf16.msra.mxu0 %v924
      %954 = vmatpush.bf16.msra.mxu0 %v923
      %955 = vmatpush.bf16.msra.mxu0 %v922
      %956 = vmatpush.bf16.msra.mxu0 %v921
      %957 = vmatpush.bf16.msra.mxu0 %v920
      %958 = vmatpush.bf16.msra.mxu0 %v919
      %959 = vmatpush.bf16.msra.mxu0 %v918
      %960 = vmatpush.bf16.msra.mxu0 %v917
      %961 = vmatmul.bf16.gmra.mxu0 %v853
      %v962 = vpop.f32.mrf.mxu0
      %v963 = vadd.f32 0.0, %v962
      %v964 = vpop.f32.mrf.mxu0
      %v965 = vadd.f32 0.0, %v964
      %966 = vmatmul.bf16.gmra.mxu0 %v858
      %v967 = vpop.f32.mrf.mxu0
      %v968 = vadd.f32 0.0, %v967
      %v969 = vpop.f32.mrf.mxu0
      %v970 = vadd.f32 0.0, %v969
      %971 = vmatmul.bf16.gmra.mxu0 %v862
      %v972 = vpop.f32.mrf.mxu0
      %v973 = vadd.f32 0.0, %v972
      %v974 = vpop.f32.mrf.mxu0
      %v975 = vadd.f32 0.0, %v974
      %976 = vmatmul.bf16.gmra.mxu0 %v861
      %v977 = vpop.f32.mrf.mxu0
      %v978 = vadd.f32 0.0, %v977
      %v979 = vpop.f32.mrf.mxu0
      %980 = vdwg.mxu0
      %981 = vmatpush.bf16.msra.mxu0 0
      %982 = vmatpush.bf16.msra.mxu0 0
      %983 = vmatpush.bf16.msra.mxu0 0
      %984 = vmatpush.bf16.msra.mxu0 0
      %985 = vmatpush.bf16.msra.mxu0 %v928
      %986 = vmatpush.bf16.msra.mxu0 %v927
      %987 = vmatpush.bf16.msra.mxu0 %v926
      %988 = vmatpush.bf16.msra.mxu0 %v925
      %989 = vmatmul.bf16.gmra.mxu0 %v942
      %v990 = vpop.f32.mrf.mxu0
      %v991 = vadd.f32 %v963, %v990
      %v992 = vpop.f32.mrf.mxu0
      %v993 = vadd.f32 %v965, %v992
      %994 = vmatmul.bf16.gmra.mxu0 %v945
      %v995 = vpop.f32.mrf.mxu0
      %v996 = vadd.f32 %v968, %v995
      %v997 = vpop.f32.mrf.mxu0
      %v998 = vadd.f32 %v970, %v997
      %999 = vmatmul.bf16.gmra.mxu0 %v948
      %v1000 = vpop.f32.mrf.mxu0
      %v1001 = vadd.f32 %v973, %v1000
      %v1002 = vpop.f32.mrf.mxu0
      %v1003 = vadd.f32 %v975, %v1002
      %1004 = vmatmul.bf16.gmra.mxu0 %v951
      %v1005 = vpop.f32.mrf.mxu0
      %v1006 = vadd.f32 %v978, %v1005
      %v1007 = vpop.f32.mrf.mxu0
      %1008 = vdwg.mxu0
      %v1009 = vadd.f32 %v713, %v991
      %v1010 = vadd.f32 %v715, %v993
      %v1011 = vadd.f32 %v718, %v996
      %v1012 = vadd.f32 %v720, %v998
      %v1013 = vadd.f32 %v723, %v1001
      %v1014 = vadd.f32 %v725, %v1003
      %v1015 = vadd.f32 %v728, %v1006
      %1016 = vst [vmem:[#allocation2] sm:$0xff] %v1009
      %1017 = vst [vmem:[#allocation2 + $0x8] sm:$0xff] %v1010
      %1018 = vst [vmem:[#allocation2 + $0x10] sm:$0xff] %v1011
      %1019 = vst [vmem:[#allocation2 + $0x18] sm:$0xff] %v1012
      %1020 = vst [vmem:[#allocation2 + $0x20] sm:$0xff] %v1013
      %1021 = vst [vmem:[#allocation2 + $0x28] sm:$0xff] %v1014
      %1022 = vst [vmem:[#allocation2 + $0x30] sm:$0xff] %v1015
      %v1023 = vld [vmem:[%s2] sm:$0x1]
      %v1024 = vld [vmem:[#allocation2] ss:$2 sm:$0x7]
      %s1025 = scalar_lea.vmem [#allocation2], 1
      %v1026 = vld [vmem:[%s1025] ss:$2 sm:$0x7]
      %s1027 = scalar_lea.vmem [#allocation2], 9
      %v1028 = vld [vmem:[%s1027] ss:$2 sm:$0x7]
      %s1029 = scalar_lea.vmem [#allocation2], 10
      %v1030 = vld [vmem:[%s1029] ss:$2 sm:$0x7]
      %v1031 = vmax.f32 %v1024, %v1026
      %v1032 = vmax.f32 %v1028, %v1030
      %v1033 = vmax.f32 %v1031, %v1032
      %v1035 = vperm.slane %v1023, 0
      %v1037 = vadd.f32 %v1033, %v1035
      %v1038 = vmax.f32 %v1037, 0.0
      %v1039 = vpack.c.bf16 %v1038, %v1038
      %vm1040 = vcmask 1041408
      %vm1041 = vsmask.f32 1280
      %vm1042 = vmand %vm1040, %vm1041
      %v1043 = vld [vmem:[%s170] sm:$0x3]
      %v1044 = vsel %vm1042, %v1039, %v1043
      %1045 = vst [vmem:[%s170] sm:$0x3] %v1044
      %s1046 = scalar_lea.vmem [#allocation2], 18
      %v1047 = vld [vmem:[%s1046] ss:$2 sm:$0x7]
      %s1048 = scalar_lea.vmem [#allocation2], 19
      %v1049 = vld [vmem:[%s1048] ss:$2 sm:$0x7]
      %s1050 = scalar_lea.vmem [#allocation2], 27
      %v1051 = vld [vmem:[%s1050] ss:$2 sm:$0x7]
      %s1052 = scalar_lea.vmem [#allocation2], 28
      %v1053 = vld [vmem:[%s1052] ss:$2 sm:$0x7]
      %v1054 = vmax.f32 %v1047, %v1049
      %v1055 = vmax.f32 %v1051, %v1053
      %v1056 = vmax.f32 %v1054, %v1055
      %v1057 = vadd.f32 %v1056, %v1035
      %v1058 = vmax.f32 %v1057, 0.0
      %v1059 = vpack.c.bf16 %v1058, %v1058
      %v1061 = vshrl.u32 %v1059, 16
      %v1063 = vrot.slane %v1061, 6
      %v1064 = vshll.u32 %v1059, 16
      %v1066 = vrot.slane %v1064, 7
      %v1067 = vor.u32 %v1063, %v1066
      %vm1069 = vcmask 1042433
      %vm1070 = vsmask.f32 7942
      %vm1071 = vmand %vm1069, %vm1070
      %v1072 = vld [vmem:[%s170] sm:$0x6]
      %v1073 = vsel %vm1071, %v1067, %v1072
      %1074 = vst [vmem:[%s170] sm:$0x6] %v1073
      %s1075 = scalar_lea.vmem [#allocation2], 36
      %v1076 = vld [vmem:[%s1075] ss:$2 sm:$0x7]
      %s1077 = scalar_lea.vmem [#allocation2], 37
      %v1078 = vld [vmem:[%s1077] ss:$2 sm:$0x7]
      %s1079 = scalar_lea.vmem [#allocation2], 45
      %v1080 = vld [vmem:[%s1079] ss:$2 sm:$0x7]
      %s1081 = scalar_lea.vmem [#allocation2], 46
      %v1082 = vld [vmem:[%s1081] ss:$2 sm:$0x7]
      %v1083 = vmax.f32 %v1076, %v1078
      %v1084 = vmax.f32 %v1080, %v1082
      %v1085 = vmax.f32 %v1083, %v1084
      %v1086 = vadd.f32 %v1085, %v1035
      %v1087 = vmax.f32 %v1086, 0.0
      %v1088 = vpack.c.bf16 %v1087, %v1087
      %v1090 = vrot.slane %v1088, 5
      %v1091 = vrot.slane %v1090, 4
      %1094 = vst [vmem:[%s170] sm:$0x8] %v1090
      %vm1095 = vcmask 1040384
      %vm1096 = vsmask.f32 256
      %vm1097 = vmand %vm1095, %vm1096
      %v1098 = vld [vmem:[%s170 + $0x4] sm:$0x1]
      %v1099 = vsel %vm1097, %v1091, %v1098
      %1100 = vst [vmem:[%s170 + $0x4] sm:$0x1] %v1099
      %p1101 = scmp.lt.s32.totalorder %s14, 1
      %s1102 = scalar_select %p1101, %s14, 1
      %s1103 = smul.addr %s1102, 2
      %s1104 = smul.addr %s1103, 4
      %s1105 = scalar_lea.vmem %s3, %s1104
      // Predicated region
      $region33: #{lenet_complex_forward.6} parent=31 // pred_check
        %p1106 = pneg %p100
      $region34: #{lenet_complex_forward.6} parent=31 // pred_check_branch
        %1108 = sbr.rel (%p1106) target = $region36
      $region35: #{lenet_complex_forward.6} parent=31 // pred_region
        _
      $region36: #{lenet_complex_forward.6} parent=31 // pred_fallthru
        _
    $region32: #{lenet_complex_forward.6} parent=5 // pred_fallthru
      _
    %p1109 = scmp.le.s32.totalorder 2, %s9
    // Predicated region
    $region37: #{lenet_complex_forward.6} parent=5 // pred_check
      %p1110 = pneg %p1109
    $region38: #{lenet_complex_forward.6} parent=5 // pred_check_branch
      %1112 = sbr.rel (%p1110) target = $region40
    $region39: #{lenet_complex_forward.6} parent=5 // pred_region
      %s1113 = ssub.s32 %s9, 2
      // Predicated region
      $region41: #{lenet_complex_forward.6} parent=39 // pred_check
        %p1114 = pneg %p106
      $region42: #{lenet_complex_forward.6} parent=39 // pred_check_branch
        %1116 = sbr.rel (%p1114) target = $region44
      $region43: #{lenet_complex_forward.6} parent=39 // pred_region
        %p1117 = scmp.lt.s32.totalorder %s15, 1
        %s1118 = scalar_select %p1117, %s15, 1
        %s1119 = smul.addr %s1118, 2
        %s1120 = smul.addr %s1119, 4
        %s1121 = scalar_lea.vmem %s3, %s1120
      $region44: #{lenet_complex_forward.6} parent=39 // pred_fallthru
        _
    $region40: #{lenet_complex_forward.6} parent=5 // pred_fallthru
      _
  $region6: #{lenet_complex_forward.6} parent=0 // loop_footer
    %s13 = sadd.s32 1, %s9
  $region7: #{lenet_complex_forward.6} parent=0 // loop_footer_branch
    %8 = sbr.rel target = $region3
  $region8: #{lenet_complex_forward.6} parent=0 // loop_exit
    _

// kernel: lenet_complex_forward.4
$region0: #{lenet_complex_forward.4}
  #allocation0 [shape = 'u32[]', space=smem, size = 0x4, offset = 0x4, fixed_abs, tag = 'smem constant byte address 0x4 - core index']
  #allocation1 [shape = 'u32[72,128]{1,0:T(1,128)}', space=vmem, size = 0x9000, scoped, tag = 'internal scratch']
  #allocation2 [shape = 'f32[1,784,32]{2,1,0:T(8,128)}', space=vmem, size = 0x62000, scoped, tag = 'scratch operand']
  %s0 = inlined_call_operand.vmem [shape: bf16[2,784,9], index: 0, kind: input, shape index: {}]
  %s1 = inlined_call_operand.vmem [shape: bf16[9,32], index: 1, kind: input, shape index: {}]
  %s2 = inlined_call_operand.vmem [shape: f32[1,32], index: 2, kind: input, shape index: {}]
  %s3 = inlined_call_operand.vmem [shape: bf16[2,280,32], index: 3, kind: output, shape index: {}]
  %s4 = sld [smem:[#allocation0]]
  $region45: #{lenet_complex_forward.4} parent=0
    _
  %s6 = ssub.s32 1, %s4
  %s7 = scalar_select 0, %s6, %s4
  loop: start=0, step=1, limit=4
  $region2: #{lenet_complex_forward.4} parent=0 // loop_pre_header
    _
  $region3: #{lenet_complex_forward.4} parent=0 // loop_header
    %s9 = sphi 0, %s13
    %p10 = scmp.ge.s32.totalorder %s9, 4
    %s19 = sphi 0, %s21
    %s22 = sphi 0, %s19
    %s23 = sphi 0, %s22
    %s39 = sphi 0, %s23
    %s43 = sphi 0, %s43
    %s45 = sphi 0, %s43
    %s46 = sphi 0, %s45
    %s60 = sphi 0, %s46
    %s64 = sphi 0, %s64
    %s66 = sphi 0, %s64
    %s67 = sphi 0, %s66
    %s81 = sphi 0, %s67
    %s87 = sphi 0, %s89
    %s90 = sphi 0, %s87
    %s91 = sphi 0, %s90
    %s107 = sphi 0, %s91
  $region4: #{lenet_complex_forward.4} parent=0 // loop_header_branch
    %12 = sbr.rel (%p10) target = $region8
  $region5: #{lenet_complex_forward.4} parent=0 // loop_body
    %s14 = ssub.s32 %s9, 1
    %s15 = ssub.s32 %s9, 2
    %s16 = sadd.s32 %s9, 1
    %s17 = ssub.s32 %s9, %s16
    %p18 = scmp.eq.s32.totalorder %s17, 0
    %s20 = sadd.s32 %s19, 1
    %s21 = scalar_select %p18, %s19, %s20
    %p24 = pneg %p18
    %p25 = scmp.eq.s32.totalorder %s9, 1
    %p26 = por %p24, %p25
    %p27 = scmp.ne.s32.totalorder %s19, %s22
    %p28 = scmp.eq.s32.totalorder %s9, 0
    %p29 = por %p27, %p28
    %p30 = scmp.ne.s32.totalorder %s19, %s22
    %p31 = scmp.eq.s32.totalorder %s14, 1
    %p32 = por %p30, %p31
    %p33 = scmp.ne.s32.totalorder %s22, %s23
    %p34 = scmp.eq.s32.totalorder %s14, 0
    %p35 = por %p33, %p34
    %p36 = scmp.ne.s32.totalorder %s22, %s23
    %p37 = scmp.eq.s32.totalorder %s15, 1
    %p38 = por %p36, %p37
    %p40 = scmp.ne.s32.totalorder %s23, %s39
    %p41 = scmp.eq.s32.totalorder %s15, 0
    %p42 = por %p40, %p41
    %s44 = sadd.s32 %s43, 1
    %p47 = scmp.eq.s32.totalorder %s9, 1
    %p48 = scmp.ne.s32.totalorder %s43, %s45
    %p49 = scmp.eq.s32.totalorder %s9, 0
    %p50 = por %p48, %p49
    %p51 = scmp.ne.s32.totalorder %s43, %s45
    %p52 = scmp.eq.s32.totalorder %s14, 1
    %p53 = por %p51, %p52
    %p54 = scmp.ne.s32.totalorder %s45, %s46
    %p55 = scmp.eq.s32.totalorder %s14, 0
    %p56 = por %p54, %p55
    %p57 = scmp.ne.s32.totalorder %s45, %s46
    %p58 = scmp.eq.s32.totalorder %s15, 1
    %p59 = por %p57, %p58
    %p61 = scmp.ne.s32.totalorder %s46, %s60
    %p62 = scmp.eq.s32.totalorder %s15, 0
    %p63 = por %p61, %p62
    %s65 = sadd.s32 %s64, 1
    %p68 = scmp.eq.s32.totalorder %s9, 1
    %p69 = scmp.ne.s32.totalorder %s64, %s66
    %p70 = scmp.eq.s32.totalorder %s9, 0
    %p71 = por %p69, %p70
    %p72 = scmp.ne.s32.totalorder %s64, %s66
    %p73 = scmp.eq.s32.totalorder %s14, 1
    %p74 = por %p72, %p73
    %p75 = scmp.ne.s32.totalorder %s66, %s67
    %p76 = scmp.eq.s32.totalorder %s14, 0
    %p77 = por %p75, %p76
    %p78 = scmp.ne.s32.totalorder %s66, %s67
    %p79 = scmp.eq.s32.totalorder %s15, 1
    %p80 = por %p78, %p79
    %p82 = scmp.ne.s32.totalorder %s67, %s81
    %p83 = scmp.eq.s32.totalorder %s15, 0
    %p84 = por %p82, %p83
    %s85 = ssub.s32 %s9, %s16
    %p86 = scmp.eq.s32.totalorder %s85, 0
    %s88 = sadd.s32 %s87, 1
    %s89 = scalar_select %p86, %s87, %s88
    %p92 = pneg %p86
    %p93 = scmp.eq.s32.totalorder %s9, 1
    %p94 = por %p92, %p93
    %p95 = scmp.ne.s32.totalorder %s87, %s90
    %p96 = scmp.eq.s32.totalorder %s9, 0
    %p97 = por %p95, %p96
    %p98 = scmp.ne.s32.totalorder %s87, %s90
    %p99 = scmp.eq.s32.totalorder %s14, 1
    %p100 = por %p98, %p99
    %p101 = scmp.ne.s32.totalorder %s90, %s91
    %p102 = scmp.eq.s32.totalorder %s14, 0
    %p103 = por %p101, %p102
    %p104 = scmp.ne.s32.totalorder %s90, %s91
    %p105 = scmp.eq.s32.totalorder %s15, 1
    %p106 = por %p104, %p105
    %p108 = scmp.ne.s32.totalorder %s91, %s107
    %p109 = scmp.eq.s32.totalorder %s15, 0
    %p110 = por %p108, %p109
    %p111 = scmp.le.s32.totalorder 1, %s9
    %p112 = scmp.lt.s32.totalorder %s9, 3
    %p113 = pnand %p111, %p112
    %p114 = pneg %p113
    // Predicated region
    $region9: #{lenet_complex_forward.4} parent=5 // pred_check
      _
    $region10: #{lenet_complex_forward.4} parent=5 // pred_check_branch
      %116 = sbr.rel (%p113) target = $region12
    $region11: #{lenet_complex_forward.4} parent=5 // pred_region
      %s117 = ssub.s32 %s9, 1
      // Predicated region
      $region13: #{lenet_complex_forward.4} parent=11 // pred_check
        %p118 = pneg %p56
      $region14: #{lenet_complex_forward.4} parent=11 // pred_check_branch
        %120 = sbr.rel (%p118) target = $region16
      $region15: #{lenet_complex_forward.4} parent=11 // pred_region
        _
      $region16: #{lenet_complex_forward.4} parent=11 // pred_fallthru
        _
      // Predicated region
      $region17: #{lenet_complex_forward.4} parent=11 // pred_check
        %p121 = pneg %p77
      $region18: #{lenet_complex_forward.4} parent=11 // pred_check_branch
        %123 = sbr.rel (%p121) target = $region20
      $region19: #{lenet_complex_forward.4} parent=11 // pred_region
        _
      $region20: #{lenet_complex_forward.4} parent=11 // pred_fallthru
        _
    $region12: #{lenet_complex_forward.4} parent=5 // pred_fallthru
      _
    %p124 = scmp.lt.s32.totalorder %s9, 2
    // Predicated region
    $region21: #{lenet_complex_forward.4} parent=5 // pred_check
      %p125 = pneg %p124
    $region22: #{lenet_complex_forward.4} parent=5 // pred_check_branch
      %127 = sbr.rel (%p125) target = $region24
    $region23: #{lenet_complex_forward.4} parent=5 // pred_region
      // Predicated region
      $region25: #{lenet_complex_forward.4} parent=23 // pred_check
        %p128 = pneg %p29
      $region26: #{lenet_complex_forward.4} parent=23 // pred_check_branch
        %130 = sbr.rel (%p128) target = $region28
      $region27: #{lenet_complex_forward.4} parent=23 // pred_region
        %p131 = scmp.lt.s32.totalorder %s9, 1
        %s132 = scalar_select %p131, %s9, 1
        %s133 = smul.addr %s132, 98
        %s134 = smul.addr %s133, 4
        %s135 = scalar_lea.vmem %s0, %s134
      $region28: #{lenet_complex_forward.4} parent=23 // pred_fallthru
        _
    $region24: #{lenet_complex_forward.4} parent=5 // pred_fallthru
      _
    %p136 = scmp.le.s32.totalorder 1, %s9
    %p137 = scmp.lt.s32.totalorder %s9, 3
    %p138 = pnand %p136, %p137
    %p139 = pneg %p138
    // Predicated region
    $region29: #{lenet_complex_forward.4} parent=5 // pred_check
      _
    $region30: #{lenet_complex_forward.4} parent=5 // pred_check_branch
      %141 = sbr.rel (%p138) target = $region32
    $region31: #{lenet_complex_forward.4} parent=5 // pred_region
      %s142 = ssub.s32 %s9, 1
      %p143 = scmp.lt.s32.totalorder %s14, 1
      %s144 = scalar_select %p143, %s14, 1
      %s145 = smul.addr %s144, 98
      %s146 = smul.addr %s145, 4
      %s147 = scalar_lea.vmem %s0, %s146
      %p148 = pneg %p35
      %p149 = pneg %p32
      %p150 = pneg %p56
      %p151 = pneg %p53
      %p152 = pneg %p77
      %p153 = pneg %p74
      %p154 = pneg %p103
      %p155 = pneg %p100
      %p156 = scmp.lt.s32.totalorder %s14, 1
      %s157 = scalar_select %p156, %s14, 1
      %s158 = smul.addr %s157, 35
      %s159 = smul.addr %s158, 4
      %s160 = scalar_lea.vmem %s3, %s159
      %p161 = scmp.lt.s32.totalorder %s14, 1
      %s162 = scalar_select %p161, %s14, 1
      %s163 = smul.addr %s162, 98
      %s164 = smul.addr %s163, 4
      %s165 = scalar_lea.vmem %s0, %s164
      %p166 = scmp.lt.s32.totalorder %s14, 1
      %s167 = scalar_select %p166, %s14, 1
      %s168 = smul.addr %s167, 35
      %s169 = smul.addr %s168, 4
      %s170 = scalar_lea.vmem %s3, %s169
      %v172 = vld [vmem:[%s165] sm:$0xf]
      %v173 = vld [vmem:[%s165 + $0x4] sm:$0xf]
      %v174 = vld [vmem:[%s165 + $0x8] sm:$0xf]
      %v175 = vld [vmem:[%s165 + $0xc] sm:$0xf]
      %v176 = vld [vmem:[%s165 + $0x10] sm:$0xf]
      %v177 = vld [vmem:[%s165 + $0x14] sm:$0xf]
      %v178 = vld [vmem:[%s165 + $0x18] sm:$0xf]
      %v179 = vld [vmem:[%s165 + $0x1c] sm:$0xf]
      %v180 = vld [vmem:[%s165 + $0x20] sm:$0xf]
      %v181 = vld [vmem:[%s165 + $0x24] sm:$0xf]
      %v182 = vld [vmem:[%s165 + $0x28] sm:$0xf]
      %v183 = vld [vmem:[%s165 + $0x2c] sm:$0xf]
      %v184 = vld [vmem:[%s165 + $0x30] sm:$0xf]
      %v185 = vld [vmem:[%s165 + $0x34] sm:$0xf]
      %v186 = vld [vmem:[%s165 + $0x38] sm:$0xf]
      %v187 = vld [vmem:[%s165 + $0x3c] sm:$0xf]
      %v188 = vld [vmem:[%s165 + $0x40] sm:$0xf]
      %v189 = vld [vmem:[%s165 + $0x44] sm:$0xf]
      %v190 = vld [vmem:[%s165 + $0x48] sm:$0xf]
      %v191 = vld [vmem:[%s165 + $0x4c] sm:$0xf]
      %v192 = vld [vmem:[%s165 + $0x50] sm:$0xf]
      %v193 = vld [vmem:[%s165 + $0x54] sm:$0xf]
      %v194 = vld [vmem:[%s165 + $0x58] sm:$0xf]
      %v195 = vld [vmem:[%s165 + $0x5c] sm:$0xf]
      %v196 = vld [vmem:[%s165 + $0x60] sm:$0xf]
      %v197 = vld [vmem:[%s165 + $0x64] sm:$0xf]
      %v198 = vld [vmem:[%s165 + $0x68] sm:$0xf]
      %v199 = vld [vmem:[%s165 + $0x6c] sm:$0xf]
      %v200 = vld [vmem:[%s165 + $0x70] sm:$0xf]
      %v201 = vld [vmem:[%s165 + $0x74] sm:$0xf]
      %v202 = vld [vmem:[%s165 + $0x78] sm:$0xf]
      %v203 = vld [vmem:[%s165 + $0x7c] sm:$0xf]
      %v204 = vld [vmem:[%s165 + $0x80] sm:$0xf]
      %v205 = vld [vmem:[%s165 + $0x84] sm:$0xf]
      %v206 = vld [vmem:[%s165 + $0x88] sm:$0xf]
      %v207 = vld [vmem:[%s165 + $0x8c] sm:$0xf]
      %v208 = vld [vmem:[%s165 + $0x90] sm:$0xf]
      %v209 = vld [vmem:[%s165 + $0x94] sm:$0xf]
      %v210 = vld [vmem:[%s165 + $0x98] sm:$0xf]
      %v211 = vld [vmem:[%s165 + $0x9c] sm:$0xf]
      %v212 = vld [vmem:[%s165 + $0xa0] sm:$0xf]
      %v213 = vld [vmem:[%s165 + $0xa4] sm:$0xf]
      %v214 = vld [vmem:[%s165 + $0xa8] sm:$0xf]
      %v215 = vld [vmem:[%s165 + $0xac] sm:$0xf]
      %v216 = vld [vmem:[%s165 + $0xb0] sm:$0xf]
      %v217 = vld [vmem:[%s165 + $0xb4] sm:$0xf]
      %v218 = vld [vmem:[%s165 + $0xb8] sm:$0xf]
      %v219 = vld [vmem:[%s165 + $0xbc] sm:$0xf]
      %v220 = vld [vmem:[%s165 + $0xc0] sm:$0xf]
      %v221 = vld [vmem:[%s165 + $0xc4] sm:$0xf]
      %v222 = vld [vmem:[%s165 + $0xc8] sm:$0xf]
      %v223 = vld [vmem:[%s165 + $0xcc] sm:$0xf]
      %v224 = vld [vmem:[%s165 + $0xd0] sm:$0xf]
      %v225 = vld [vmem:[%s165 + $0xd4] sm:$0xf]
      %v226 = vld [vmem:[%s165 + $0xd8] sm:$0xf]
      %v227 = vld [vmem:[%s165 + $0xdc] sm:$0xf]
      %v228 = vld [vmem:[%s165 + $0xe0] sm:$0xf]
      %v229 = vld [vmem:[%s165 + $0xe4] sm:$0xf]
      %v230 = vld [vmem:[%s165 + $0xe8] sm:$0xf]
      %v231 = vld [vmem:[%s165 + $0xec] sm:$0xf]
      %v232 = vld [vmem:[%s165 + $0xf0] sm:$0xf]
      %v233 = vld [vmem:[%s165 + $0xf4] sm:$0xf]
      %v234 = vld [vmem:[%s165 + $0xf8] sm:$0xf]
      %v235 = vld [vmem:[%s165 + $0xfc] sm:$0xf]
      %v236 = vld [vmem:[%s165 + $0x100] sm:$0xf]
      %v237 = vld [vmem:[%s165 + $0x104] sm:$0xf]
      %v238 = vld [vmem:[%s165 + $0x108] sm:$0xf]
      %v239 = vld [vmem:[%s165 + $0x10c] sm:$0xf]
      %v240 = vld [vmem:[%s165 + $0x110] sm:$0xf]
      %v241 = vld [vmem:[%s165 + $0x114] sm:$0xf]
      %v242 = vld [vmem:[%s165 + $0x118] sm:$0xf]
      %v243 = vld [vmem:[%s165 + $0x11c] sm:$0xf]
      %v244 = vld [vmem:[%s165 + $0x120] sm:$0xf]
      %v245 = vld [vmem:[%s165 + $0x124] sm:$0xf]
      %v246 = vld [vmem:[%s165 + $0x128] sm:$0xf]
      %v247 = vld [vmem:[%s165 + $0x12c] sm:$0xf]
      %v248 = vld [vmem:[%s165 + $0x130] sm:$0xf]
      %v249 = vld [vmem:[%s165 + $0x134] sm:$0xf]
      %v250 = vld [vmem:[%s165 + $0x138] sm:$0xf]
      %v251 = vld [vmem:[%s165 + $0x13c] sm:$0xf]
      %v252 = vld [vmem:[%s165 + $0x140] sm:$0xf]
      %v253 = vld [vmem:[%s165 + $0x144] sm:$0xf]
      %v254 = vld [vmem:[%s165 + $0x148] sm:$0xf]
      %v255 = vld [vmem:[%s165 + $0x14c] sm:$0xf]
      %v256 = vld [vmem:[%s165 + $0x150] sm:$0xf]
      %v257 = vld [vmem:[%s165 + $0x154] sm:$0xf]
      %v258 = vld [vmem:[%s165 + $0x158] sm:$0xf]
      %v259 = vld [vmem:[%s165 + $0x15c] sm:$0xf]
      %v260 = vld [vmem:[%s165 + $0x160] sm:$0xf]
      %v261 = vld [vmem:[%s165 + $0x164] sm:$0xf]
      %v262 = vld [vmem:[%s165 + $0x168] sm:$0xf]
      %v263 = vld [vmem:[%s165 + $0x16c] sm:$0xf]
      %v264 = vld [vmem:[%s165 + $0x170] sm:$0xf]
      %v265 = vld [vmem:[%s165 + $0x174] sm:$0xf]
      %v266 = vld [vmem:[%s165 + $0x178] sm:$0xf]
      %v267 = vld [vmem:[%s165 + $0x17c] sm:$0xf]
      %v268 = vld [vmem:[%s165 + $0x180] sm:$0xf]
      %v269 = vld [vmem:[%s165 + $0x184] sm:$0xf]
      %v270 = vld [vmem:[%s1] sm:$0xf]
      %v271 = vld [vmem:[%s1 + $0x4] sm:$0x1]
      %v370 = vunpack.c.l.b16 %v172
      %v371 = vunpack.c.l.b16 %v173
      %v372 = vunpack.c.l.b16 %v174
      %v373 = vunpack.c.l.b16 %v175
      %v374 = vunpack.c.l.b16 %v176
      %v375 = vunpack.c.l.b16 %v177
      %v376 = vunpack.c.l.b16 %v178
      %v377 = vunpack.c.l.b16 %v179
      %v378 = vunpack.c.l.b16 %v180
      %v379 = vunpack.c.l.b16 %v181
      %v380 = vunpack.c.l.b16 %v182
      %v381 = vunpack.c.l.b16 %v183
      %v382 = vunpack.c.l.b16 %v184
      %v383 = vunpack.c.l.b16 %v185
      %v384 = vunpack.c.l.b16 %v186
      %v385 = vunpack.c.l.b16 %v187
      %v386 = vunpack.c.l.b16 %v188
      %v387 = vunpack.c.l.b16 %v189
      %v388 = vunpack.c.l.b16 %v190
      %v389 = vunpack.c.l.b16 %v191
      %v390 = vunpack.c.l.b16 %v192
      %v391 = vunpack.c.l.b16 %v193
      %v392 = vunpack.c.l.b16 %v194
      %v393 = vunpack.c.l.b16 %v195
      %v394 = vunpack.c.l.b16 %v196
      %v395 = vunpack.c.l.b16 %v197
      %v396 = vunpack.c.l.b16 %v198
      %v397 = vunpack.c.l.b16 %v199
      %v398 = vunpack.c.l.b16 %v200
      %v399 = vunpack.c.l.b16 %v201
      %v400 = vunpack.c.l.b16 %v202
      %v401 = vunpack.c.l.b16 %v203
      %v402 = vunpack.c.l.b16 %v204
      %v403 = vunpack.c.l.b16 %v205
      %v404 = vunpack.c.l.b16 %v206
      %v405 = vunpack.c.l.b16 %v207
      %v406 = vunpack.c.l.b16 %v208
      %v407 = vunpack.c.l.b16 %v209
      %v408 = vunpack.c.l.b16 %v210
      %v409 = vunpack.c.l.b16 %v211
      %v410 = vunpack.c.l.b16 %v212
      %v411 = vunpack.c.l.b16 %v213
      %v412 = vunpack.c.l.b16 %v214
      %v413 = vunpack.c.l.b16 %v215
      %v414 = vunpack.c.l.b16 %v216
      %v415 = vunpack.c.l.b16 %v217
      %v416 = vunpack.c.l.b16 %v218
      %v417 = vunpack.c.l.b16 %v219
      %v418 = vunpack.c.l.b16 %v220
      %v419 = vunpack.c.l.b16 %v221
      %v420 = vunpack.c.l.b16 %v222
      %v421 = vunpack.c.l.b16 %v223
      %v422 = vunpack.c.l.b16 %v224
      %v423 = vunpack.c.l.b16 %v225
      %v424 = vunpack.c.l.b16 %v226
      %v425 = vunpack.c.l.b16 %v227
      %v426 = vunpack.c.l.b16 %v228
      %v427 = vunpack.c.l.b16 %v229
      %v428 = vunpack.c.l.b16 %v230
      %v429 = vunpack.c.l.b16 %v231
      %v430 = vunpack.c.l.b16 %v232
      %v431 = vunpack.c.l.b16 %v233
      %v432 = vunpack.c.l.b16 %v234
      %v433 = vunpack.c.l.b16 %v235
      %v434 = vunpack.c.l.b16 %v236
      %v435 = vunpack.c.l.b16 %v237
      %v436 = vunpack.c.l.b16 %v238
      %v437 = vunpack.c.l.b16 %v239
      %v438 = vunpack.c.l.b16 %v240
      %v439 = vunpack.c.l.b16 %v241
      %v440 = vunpack.c.l.b16 %v242
      %v441 = vunpack.c.l.b16 %v243
      %v442 = vunpack.c.l.b16 %v244
      %v443 = vunpack.c.l.b16 %v245
      %v444 = vunpack.c.l.b16 %v246
      %v445 = vunpack.c.l.b16 %v247
      %v446 = vunpack.c.l.b16 %v248
      %v447 = vunpack.c.l.b16 %v249
      %v448 = vunpack.c.l.b16 %v250
      %v449 = vunpack.c.l.b16 %v251
      %v450 = vunpack.c.l.b16 %v252
      %v451 = vunpack.c.l.b16 %v253
      %v452 = vunpack.c.l.b16 %v254
      %v453 = vunpack.c.l.b16 %v255
      %v454 = vunpack.c.l.b16 %v256
      %v455 = vunpack.c.l.b16 %v257
      %v456 = vunpack.c.l.b16 %v258
      %v457 = vunpack.c.l.b16 %v259
      %v458 = vunpack.c.l.b16 %v260
      %v459 = vunpack.c.l.b16 %v261
      %v460 = vunpack.c.l.b16 %v262
      %v461 = vunpack.c.l.b16 %v263
      %v462 = vunpack.c.l.b16 %v264
      %v463 = vunpack.c.l.b16 %v265
      %v464 = vunpack.c.l.b16 %v266
      %v465 = vunpack.c.l.b16 %v267
      %v466 = vunpack.c.l.b16 %v268
      %v467 = vunpack.c.l.b16 %v269
      %v468 = vpack.c.b16 %v371, %v370
      %v469 = vpack.c.b16 %v373, %v372
      %v470 = vpack.c.b16 %v375, %v374
      %v471 = vpack.c.b16 %v377, %v376
      %v472 = vpack.c.b16 %v379, %v378
      %v473 = vpack.c.b16 %v381, %v380
      %v474 = vpack.c.b16 %v383, %v382
      %v475 = vpack.c.b16 %v385, %v384
      %v476 = vpack.c.b16 %v387, %v386
      %v477 = vpack.c.b16 %v389, %v388
      %v478 = vpack.c.b16 %v391, %v390
      %v479 = vpack.c.b16 %v393, %v392
      %v480 = vpack.c.b16 %v395, %v394
      %v481 = vpack.c.b16 %v397, %v396
      %v482 = vpack.c.b16 %v399, %v398
      %v483 = vpack.c.b16 %v401, %v400
      %v484 = vpack.c.b16 %v403, %v402
      %v485 = vpack.c.b16 %v405, %v404
      %v486 = vpack.c.b16 %v407, %v406
      %v487 = vpack.c.b16 %v409, %v408
      %v488 = vpack.c.b16 %v411, %v410
      %v489 = vpack.c.b16 %v413, %v412
      %v490 = vpack.c.b16 %v415, %v414
      %v491 = vpack.c.b16 %v417, %v416
      %v492 = vpack.c.b16 %v419, %v418
      %v493 = vpack.c.b16 %v421, %v420
      %v494 = vpack.c.b16 %v423, %v422
      %v495 = vpack.c.b16 %v425, %v424
      %v496 = vpack.c.b16 %v427, %v426
      %v497 = vpack.c.b16 %v429, %v428
      %v498 = vpack.c.b16 %v431, %v430
      %v499 = vpack.c.b16 %v433, %v432
      %v500 = vpack.c.b16 %v435, %v434
      %v501 = vpack.c.b16 %v437, %v436
      %v502 = vpack.c.b16 %v439, %v438
      %v503 = vpack.c.b16 %v441, %v440
      %v504 = vpack.c.b16 %v443, %v442
      %v505 = vpack.c.b16 %v445, %v444
      %v506 = vpack.c.b16 %v447, %v446
      %v507 = vpack.c.b16 %v449, %v448
      %v508 = vpack.c.b16 %v451, %v450
      %v509 = vpack.c.b16 %v453, %v452
      %v510 = vpack.c.b16 %v455, %v454
      %v511 = vpack.c.b16 %v457, %v456
      %v512 = vpack.c.b16 %v459, %v458
      %v513 = vpack.c.b16 %v461, %v460
      %v514 = vpack.c.b16 %v463, %v462
      %v515 = vpack.c.b16 %v465, %v464
      %v516 = vpack.c.b16 %v467, %v466
      %v519 = vunpack.c.l.b16 %v270
      %v520 = vunpack.c.l.b16 %v271
      %v521 = vpack.c.b16 %v520, %v519
      %vm522 = vcmask 72704
      %v524 = vsel %vm522, %v468, 0
      %v527 = vsel %vm522, %v469, 0
      %v530 = vsel %vm522, %v470, 0
      %v533 = vsel %vm522, %v471, 0
      %v536 = vsel %vm522, %v472, 0
      %v539 = vsel %vm522, %v473, 0
      %v542 = vsel %vm522, %v474, 0
      %v545 = vsel %vm522, %v475, 0
      %v548 = vsel %vm522, %v476, 0
      %v551 = vsel %vm522, %v477, 0
      %v554 = vsel %vm522, %v478, 0
      %v557 = vsel %vm522, %v479, 0
      %v560 = vsel %vm522, %v480, 0
      %v563 = vsel %vm522, %v481, 0
      %v566 = vsel %vm522, %v482, 0
      %v569 = vsel %vm522, %v483, 0
      %v572 = vsel %vm522, %v484, 0
      %v575 = vsel %vm522, %v485, 0
      %v578 = vsel %vm522, %v486, 0
      %v581 = vsel %vm522, %v487, 0
      %v584 = vsel %vm522, %v488, 0
      %v587 = vsel %vm522, %v489, 0
      %v590 = vsel %vm522, %v490, 0
      %v593 = vsel %vm522, %v491, 0
      %v596 = vsel %vm522, %v492, 0
      %v599 = vsel %vm522, %v493, 0
      %v602 = vsel %vm522, %v494, 0
      %v605 = vsel %vm522, %v495, 0
      %v608 = vsel %vm522, %v496, 0
      %v611 = vsel %vm522, %v497, 0
      %v614 = vsel %vm522, %v498, 0
      %v617 = vsel %vm522, %v499, 0
      %v620 = vsel %vm522, %v500, 0
      %v623 = vsel %vm522, %v501, 0
      %v626 = vsel %vm522, %v502, 0
      %v629 = vsel %vm522, %v503, 0
      %v632 = vsel %vm522, %v504, 0
      %v635 = vsel %vm522, %v505, 0
      %v638 = vsel %vm522, %v506, 0
      %v641 = vsel %vm522, %v507, 0
      %v644 = vsel %vm522, %v508, 0
      %v647 = vsel %vm522, %v509, 0
      %v650 = vsel %vm522, %v510, 0
      %v653 = vsel %vm522, %v511, 0
      %v656 = vsel %vm522, %v512, 0
      %v659 = vsel %vm522, %v513, 0
      %v662 = vsel %vm522, %v514, 0
      %v665 = vsel %vm522, %v515, 0
      %v668 = vsel %vm522, %v516, 0
      %vm670 = vcmask 1043456
      %vm671 = vcmask 1044480
      %v672 = vsel %vm670, 4294967295, 65535
      %v673 = vsel %vm671, %v672, 0
      %v675 = vand.u32 %v521, %v673
      %677 = vmatpush.bf16.msra.mxu0 0
      %678 = vmatpush.bf16.msra.mxu0 0
      %679 = vmatpush.bf16.msra.mxu0 0
      %680 = vmatpush.bf16.msra.mxu0 0
      %681 = vmatpush.bf16.msra.mxu0 0
      %682 = vmatpush.bf16.msra.mxu0 0
      %683 = vmatpush.bf16.msra.mxu0 0
      %684 = vmatpush.bf16.msra.mxu0 %v675
      %685 = vmatmul.bf16.gmra.mxu0 %v524
      %v686 = vpop.f32.mrf.mxu0
      %v687 = vadd.f32 0.0, %v686
      %v688 = vpop.f32.mrf.mxu0
      %v689 = vadd.f32 0.0, %v688
      %690 = vmatmul.bf16.gmra.mxu0 %v527
      %v691 = vpop.f32.mrf.mxu0
      %v692 = vadd.f32 0.0, %v691
      %v693 = vpop.f32.mrf.mxu0
      %v694 = vadd.f32 0.0, %v693
      %695 = vmatmul.bf16.gmra.mxu0 %v530
      %v696 = vpop.f32.mrf.mxu0
      %v697 = vadd.f32 0.0, %v696
      %v698 = vpop.f32.mrf.mxu0
      %v699 = vadd.f32 0.0, %v698
      %700 = vmatmul.bf16.gmra.mxu0 %v533
      %v701 = vpop.f32.mrf.mxu0
      %v702 = vadd.f32 0.0, %v701
      %v703 = vpop.f32.mrf.mxu0
      %v704 = vadd.f32 0.0, %v703
      %705 = vmatmul.bf16.gmra.mxu0 %v536
      %v706 = vpop.f32.mrf.mxu0
      %v707 = vadd.f32 0.0, %v706
      %v708 = vpop.f32.mrf.mxu0
      %v709 = vadd.f32 0.0, %v708
      %710 = vmatmul.bf16.gmra.mxu0 %v539
      %v711 = vpop.f32.mrf.mxu0
      %v712 = vadd.f32 0.0, %v711
      %v713 = vpop.f32.mrf.mxu0
      %v714 = vadd.f32 0.0, %v713
      %715 = vmatmul.bf16.gmra.mxu0 %v542
      %v716 = vpop.f32.mrf.mxu0
      %v717 = vadd.f32 0.0, %v716
      %v718 = vpop.f32.mrf.mxu0
      %v719 = vadd.f32 0.0, %v718
      %720 = vmatmul.bf16.gmra.mxu0 %v545
      %v721 = vpop.f32.mrf.mxu0
      %v722 = vadd.f32 0.0, %v721
      %v723 = vpop.f32.mrf.mxu0
      %v724 = vadd.f32 0.0, %v723
      %725 = vmatmul.bf16.gmra.mxu0 %v548
      %v726 = vpop.f32.mrf.mxu0
      %v727 = vadd.f32 0.0, %v726
      %v728 = vpop.f32.mrf.mxu0
      %v729 = vadd.f32 0.0, %v728
      %730 = vmatmul.bf16.gmra.mxu0 %v551
      %v731 = vpop.f32.mrf.mxu0
      %v732 = vadd.f32 0.0, %v731
      %v733 = vpop.f32.mrf.mxu0
      %v734 = vadd.f32 0.0, %v733
      %735 = vmatmul.bf16.gmra.mxu0 %v554
      %v736 = vpop.f32.mrf.mxu0
      %v737 = vadd.f32 0.0, %v736
      %v738 = vpop.f32.mrf.mxu0
      %v739 = vadd.f32 0.0, %v738
      %740 = vmatmul.bf16.gmra.mxu0 %v557
      %v741 = vpop.f32.mrf.mxu0
      %v742 = vadd.f32 0.0, %v741
      %v743 = vpop.f32.mrf.mxu0
      %v744 = vadd.f32 0.0, %v743
      %745 = vmatmul.bf16.gmra.mxu0 %v560
      %v746 = vpop.f32.mrf.mxu0
      %v747 = vadd.f32 0.0, %v746
      %v748 = vpop.f32.mrf.mxu0
      %v749 = vadd.f32 0.0, %v748
      %750 = vmatmul.bf16.gmra.mxu0 %v563
      %v751 = vpop.f32.mrf.mxu0
      %v752 = vadd.f32 0.0, %v751
      %v753 = vpop.f32.mrf.mxu0
      %v754 = vadd.f32 0.0, %v753
      %755 = vmatmul.bf16.gmra.mxu0 %v566
      %v756 = vpop.f32.mrf.mxu0
      %v757 = vadd.f32 0.0, %v756
      %v758 = vpop.f32.mrf.mxu0
      %v759 = vadd.f32 0.0, %v758
      %760 = vmatmul.bf16.gmra.mxu0 %v569
      %v761 = vpop.f32.mrf.mxu0
      %v762 = vadd.f32 0.0, %v761
      %v763 = vpop.f32.mrf.mxu0
      %v764 = vadd.f32 0.0, %v763
      %765 = vmatmul.bf16.gmra.mxu0 %v572
      %v766 = vpop.f32.mrf.mxu0
      %v767 = vadd.f32 0.0, %v766
      %v768 = vpop.f32.mrf.mxu0
      %v769 = vadd.f32 0.0, %v768
      %770 = vmatmul.bf16.gmra.mxu0 %v575
      %v771 = vpop.f32.mrf.mxu0
      %v772 = vadd.f32 0.0, %v771
      %v773 = vpop.f32.mrf.mxu0
      %v774 = vadd.f32 0.0, %v773
      %775 = vmatmul.bf16.gmra.mxu0 %v578
      %v776 = vpop.f32.mrf.mxu0
      %v777 = vadd.f32 0.0, %v776
      %v778 = vpop.f32.mrf.mxu0
      %v779 = vadd.f32 0.0, %v778
      %780 = vmatmul.bf16.gmra.mxu0 %v581
      %v781 = vpop.f32.mrf.mxu0
      %v782 = vadd.f32 0.0, %v781
      %v783 = vpop.f32.mrf.mxu0
      %v784 = vadd.f32 0.0, %v783
      %785 = vmatmul.bf16.gmra.mxu0 %v584
      %v786 = vpop.f32.mrf.mxu0
      %v787 = vadd.f32 0.0, %v786
      %v788 = vpop.f32.mrf.mxu0
      %v789 = vadd.f32 0.0, %v788
      %790 = vmatmul.bf16.gmra.mxu0 %v587
      %v791 = vpop.f32.mrf.mxu0
      %v792 = vadd.f32 0.0, %v791
      %v793 = vpop.f32.mrf.mxu0
      %v794 = vadd.f32 0.0, %v793
      %795 = vmatmul.bf16.gmra.mxu0 %v590
      %v796 = vpop.f32.mrf.mxu0
      %v797 = vadd.f32 0.0, %v796
      %v798 = vpop.f32.mrf.mxu0
      %v799 = vadd.f32 0.0, %v798
      %800 = vmatmul.bf16.gmra.mxu0 %v593
      %v801 = vpop.f32.mrf.mxu0
      %v802 = vadd.f32 0.0, %v801
      %v803 = vpop.f32.mrf.mxu0
      %v804 = vadd.f32 0.0, %v803
      %805 = vmatmul.bf16.gmra.mxu0 %v596
      %v806 = vpop.f32.mrf.mxu0
      %v807 = vadd.f32 0.0, %v806
      %v808 = vpop.f32.mrf.mxu0
      %v809 = vadd.f32 0.0, %v808
      %810 = vmatmul.bf16.gmra.mxu0 %v599
      %v811 = vpop.f32.mrf.mxu0
      %v812 = vadd.f32 0.0, %v811
      %v813 = vpop.f32.mrf.mxu0
      %v814 = vadd.f32 0.0, %v813
      %815 = vmatmul.bf16.gmra.mxu0 %v602
      %v816 = vpop.f32.mrf.mxu0
      %v817 = vadd.f32 0.0, %v816
      %v818 = vpop.f32.mrf.mxu0
      %v819 = vadd.f32 0.0, %v818
      %820 = vmatmul.bf16.gmra.mxu0 %v605
      %v821 = vpop.f32.mrf.mxu0
      %v822 = vadd.f32 0.0, %v821
      %v823 = vpop.f32.mrf.mxu0
      %v824 = vadd.f32 0.0, %v823
      %825 = vmatmul.bf16.gmra.mxu0 %v608
      %v826 = vpop.f32.mrf.mxu0
      %v827 = vadd.f32 0.0, %v826
      %v828 = vpop.f32.mrf.mxu0
      %v829 = vadd.f32 0.0, %v828
      %830 = vmatmul.bf16.gmra.mxu0 %v611
      %v831 = vpop.f32.mrf.mxu0
      %v832 = vadd.f32 0.0, %v831
      %v833 = vpop.f32.mrf.mxu0
      %v834 = vadd.f32 0.0, %v833
      %835 = vmatmul.bf16.gmra.mxu0 %v614
      %v836 = vpop.f32.mrf.mxu0
      %v837 = vadd.f32 0.0, %v836
      %v838 = vpop.f32.mrf.mxu0
      %v839 = vadd.f32 0.0, %v838
      %840 = vmatmul.bf16.gmra.mxu0 %v617
      %v841 = vpop.f32.mrf.mxu0
      %v842 = vadd.f32 0.0, %v841
      %v843 = vpop.f32.mrf.mxu0
      %v844 = vadd.f32 0.0, %v843
      %845 = vmatmul.bf16.gmra.mxu0 %v620
      %v846 = vpop.f32.mrf.mxu0
      %v847 = vadd.f32 0.0, %v846
      %v848 = vpop.f32.mrf.mxu0
      %v849 = vadd.f32 0.0, %v848
      %850 = vmatmul.bf16.gmra.mxu0 %v623
      %v851 = vpop.f32.mrf.mxu0
      %v852 = vadd.f32 0.0, %v851
      %v853 = vpop.f32.mrf.mxu0
      %v854 = vadd.f32 0.0, %v853
      %855 = vmatmul.bf16.gmra.mxu0 %v626
      %v856 = vpop.f32.mrf.mxu0
      %v857 = vadd.f32 0.0, %v856
      %v858 = vpop.f32.mrf.mxu0
      %v859 = vadd.f32 0.0, %v858
      %860 = vmatmul.bf16.gmra.mxu0 %v629
      %v861 = vpop.f32.mrf.mxu0
      %v862 = vadd.f32 0.0, %v861
      %v863 = vpop.f32.mrf.mxu0
      %v864 = vadd.f32 0.0, %v863
      %865 = vmatmul.bf16.gmra.mxu0 %v632
      %v866 = vpop.f32.mrf.mxu0
      %v867 = vadd.f32 0.0, %v866
      %v868 = vpop.f32.mrf.mxu0
      %v869 = vadd.f32 0.0, %v868
      %870 = vmatmul.bf16.gmra.mxu0 %v635
      %v871 = vpop.f32.mrf.mxu0
      %v872 = vadd.f32 0.0, %v871
      %v873 = vpop.f32.mrf.mxu0
      %v874 = vadd.f32 0.0, %v873
      %875 = vmatmul.bf16.gmra.mxu0 %v638
      %v876 = vpop.f32.mrf.mxu0
      %v877 = vadd.f32 0.0, %v876
      %v878 = vpop.f32.mrf.mxu0
      %v879 = vadd.f32 0.0, %v878
      %880 = vmatmul.bf16.gmra.mxu0 %v641
      %v881 = vpop.f32.mrf.mxu0
      %v882 = vadd.f32 0.0, %v881
      %v883 = vpop.f32.mrf.mxu0
      %v884 = vadd.f32 0.0, %v883
      %885 = vmatmul.bf16.gmra.mxu0 %v644
      %v886 = vpop.f32.mrf.mxu0
      %v887 = vadd.f32 0.0, %v886
      %v888 = vpop.f32.mrf.mxu0
      %v889 = vadd.f32 0.0, %v888
      %890 = vmatmul.bf16.gmra.mxu0 %v647
      %v891 = vpop.f32.mrf.mxu0
      %v892 = vadd.f32 0.0, %v891
      %v893 = vpop.f32.mrf.mxu0
      %v894 = vadd.f32 0.0, %v893
      %895 = vmatmul.bf16.gmra.mxu0 %v650
      %v896 = vpop.f32.mrf.mxu0
      %v897 = vadd.f32 0.0, %v896
      %v898 = vpop.f32.mrf.mxu0
      %v899 = vadd.f32 0.0, %v898
      %900 = vmatmul.bf16.gmra.mxu0 %v653
      %v901 = vpop.f32.mrf.mxu0
      %v902 = vadd.f32 0.0, %v901
      %v903 = vpop.f32.mrf.mxu0
      %v904 = vadd.f32 0.0, %v903
      %905 = vmatmul.bf16.gmra.mxu0 %v656
      %v906 = vpop.f32.mrf.mxu0
      %v907 = vadd.f32 0.0, %v906
      %v908 = vpop.f32.mrf.mxu0
      %v909 = vadd.f32 0.0, %v908
      %910 = vmatmul.bf16.gmra.mxu0 %v659
      %v911 = vpop.f32.mrf.mxu0
      %v912 = vadd.f32 0.0, %v911
      %v913 = vpop.f32.mrf.mxu0
      %v914 = vadd.f32 0.0, %v913
      %915 = vmatmul.bf16.gmra.mxu0 %v662
      %v916 = vpop.f32.mrf.mxu0
      %v917 = vadd.f32 0.0, %v916
      %v918 = vpop.f32.mrf.mxu0
      %v919 = vadd.f32 0.0, %v918
      %920 = vmatmul.bf16.gmra.mxu0 %v665
      %v921 = vpop.f32.mrf.mxu0
      %v922 = vadd.f32 0.0, %v921
      %v923 = vpop.f32.mrf.mxu0
      %v924 = vadd.f32 0.0, %v923
      %925 = vmatmul.bf16.gmra.mxu0 %v668
      %v926 = vpop.f32.mrf.mxu0
      %v927 = vadd.f32 0.0, %v926
      %v928 = vpop.f32.mrf.mxu0
      %v929 = vadd.f32 0.0, %v928
      %930 = vdwg.mxu0
      %vm931 = vcmask 261120
      %932 = vst.msk [vmem:[#allocation2] sm:$0xff] %vm931, %v687
      %933 = vst.msk [vmem:[#allocation2 + $0x8] sm:$0xff] %vm931, %v689
      %934 = vst.msk [vmem:[#allocation2 + $0x10] sm:$0xff] %vm931, %v692
      %935 = vst.msk [vmem:[#allocation2 + $0x18] sm:$0xff] %vm931, %v694
      %936 = vst.msk [vmem:[#allocation2 + $0x20] sm:$0xff] %vm931, %v697
      %937 = vst.msk [vmem:[#allocation2 + $0x28] sm:$0xff] %vm931, %v699
      %938 = vst.msk [vmem:[#allocation2 + $0x30] sm:$0xff] %vm931, %v702
      %939 = vst.msk [vmem:[#allocation2 + $0x38] sm:$0xff] %vm931, %v704
      %940 = vst.msk [vmem:[#allocation2 + $0x40] sm:$0xff] %vm931, %v707
      %941 = vst.msk [vmem:[#allocation2 + $0x48] sm:$0xff] %vm931, %v709
      %942 = vst.msk [vmem:[#allocation2 + $0x50] sm:$0xff] %vm931, %v712
      %943 = vst.msk [vmem:[#allocation2 + $0x58] sm:$0xff] %vm931, %v714
      %944 = vst.msk [vmem:[#allocation2 + $0x60] sm:$0xff] %vm931, %v717
      %945 = vst.msk [vmem:[#allocation2 + $0x68] sm:$0xff] %vm931, %v719
      %946 = vst.msk [vmem:[#allocation2 + $0x70] sm:$0xff] %vm931, %v722
      %947 = vst.msk [vmem:[#allocation2 + $0x78] sm:$0xff] %vm931, %v724
      %948 = vst.msk [vmem:[#allocation2 + $0x80] sm:$0xff] %vm931, %v727
      %949 = vst.msk [vmem:[#allocation2 + $0x88] sm:$0xff] %vm931, %v729
      %950 = vst.msk [vmem:[#allocation2 + $0x90] sm:$0xff] %vm931, %v732
      %951 = vst.msk [vmem:[#allocation2 + $0x98] sm:$0xff] %vm931, %v734
      %952 = vst.msk [vmem:[#allocation2 + $0xa0] sm:$0xff] %vm931, %v737
      %953 = vst.msk [vmem:[#allocation2 + $0xa8] sm:$0xff] %vm931, %v739
      %954 = vst.msk [vmem:[#allocation2 + $0xb0] sm:$0xff] %vm931, %v742
      %955 = vst.msk [vmem:[#allocation2 + $0xb8] sm:$0xff] %vm931, %v744
      %956 = vst.msk [vmem:[#allocation2 + $0xc0] sm:$0xff] %vm931, %v747
      %957 = vst.msk [vmem:[#allocation2 + $0xc8] sm:$0xff] %vm931, %v749
      %958 = vst.msk [vmem:[#allocation2 + $0xd0] sm:$0xff] %vm931, %v752
      %959 = vst.msk [vmem:[#allocation2 + $0xd8] sm:$0xff] %vm931, %v754
      %960 = vst.msk [vmem:[#allocation2 + $0xe0] sm:$0xff] %vm931, %v757
      %961 = vst.msk [vmem:[#allocation2 + $0xe8] sm:$0xff] %vm931, %v759
      %962 = vst.msk [vmem:[#allocation2 + $0xf0] sm:$0xff] %vm931, %v762
      %963 = vst.msk [vmem:[#allocation2 + $0xf8] sm:$0xff] %vm931, %v764
      %964 = vst.msk [vmem:[#allocation2 + $0x100] sm:$0xff] %vm931, %v767
      %965 = vst.msk [vmem:[#allocation2 + $0x108] sm:$0xff] %vm931, %v769
      %966 = vst.msk [vmem:[#allocation2 + $0x110] sm:$0xff] %vm931, %v772
      %967 = vst.msk [vmem:[#allocation2 + $0x118] sm:$0xff] %vm931, %v774
      %968 = vst.msk [vmem:[#allocation2 + $0x120] sm:$0xff] %vm931, %v777
      %969 = vst.msk [vmem:[#allocation2 + $0x128] sm:$0xff] %vm931, %v779
      %970 = vst.msk [vmem:[#allocation2 + $0x130] sm:$0xff] %vm931, %v782
      %971 = vst.msk [vmem:[#allocation2 + $0x138] sm:$0xff] %vm931, %v784
      %972 = vst.msk [vmem:[#allocation2 + $0x140] sm:$0xff] %vm931, %v787
      %973 = vst.msk [vmem:[#allocation2 + $0x148] sm:$0xff] %vm931, %v789
      %974 = vst.msk [vmem:[#allocation2 + $0x150] sm:$0xff] %vm931, %v792
      %975 = vst.msk [vmem:[#allocation2 + $0x158] sm:$0xff] %vm931, %v794
      %976 = vst.msk [vmem:[#allocation2 + $0x160] sm:$0xff] %vm931, %v797
      %977 = vst.msk [vmem:[#allocation2 + $0x168] sm:$0xff] %vm931, %v799
      %978 = vst.msk [vmem:[#allocation2 + $0x170] sm:$0xff] %vm931, %v802
      %979 = vst.msk [vmem:[#allocation2 + $0x178] sm:$0xff] %vm931, %v804
      %980 = vst.msk [vmem:[#allocation2 + $0x180] sm:$0xff] %vm931, %v807
      %981 = vst.msk [vmem:[#allocation2 + $0x188] sm:$0xff] %vm931, %v809
      %982 = vst.msk [vmem:[#allocation2 + $0x190] sm:$0xff] %vm931, %v812
      %983 = vst.msk [vmem:[#allocation2 + $0x198] sm:$0xff] %vm931, %v814
      %984 = vst.msk [vmem:[#allocation2 + $0x1a0] sm:$0xff] %vm931, %v817
      %985 = vst.msk [vmem:[#allocation2 + $0x1a8] sm:$0xff] %vm931, %v819
      %986 = vst.msk [vmem:[#allocation2 + $0x1b0] sm:$0xff] %vm931, %v822
      %987 = vst.msk [vmem:[#allocation2 + $0x1b8] sm:$0xff] %vm931, %v824
      %988 = vst.msk [vmem:[#allocation2 + $0x1c0] sm:$0xff] %vm931, %v827
      %989 = vst.msk [vmem:[#allocation2 + $0x1c8] sm:$0xff] %vm931, %v829
      %990 = vst.msk [vmem:[#allocation2 + $0x1d0] sm:$0xff] %vm931, %v832
      %991 = vst.msk [vmem:[#allocation2 + $0x1d8] sm:$0xff] %vm931, %v834
      %992 = vst.msk [vmem:[#allocation2 + $0x1e0] sm:$0xff] %vm931, %v837
      %993 = vst.msk [vmem:[#allocation2 + $0x1e8] sm:$0xff] %vm931, %v839
      %994 = vst.msk [vmem:[#allocation2 + $0x1f0] sm:$0xff] %vm931, %v842
      %995 = vst.msk [vmem:[#allocation2 + $0x1f8] sm:$0xff] %vm931, %v844
      %996 = vst.msk [vmem:[#allocation2 + $0x200] sm:$0xff] %vm931, %v847
      %997 = vst.msk [vmem:[#allocation2 + $0x208] sm:$0xff] %vm931, %v849
      %998 = vst.msk [vmem:[#allocation2 + $0x210] sm:$0xff] %vm931, %v852
      %999 = vst.msk [vmem:[#allocation2 + $0x218] sm:$0xff] %vm931, %v854
      %1000 = vst.msk [vmem:[#allocation2 + $0x220] sm:$0xff] %vm931, %v857
      %1001 = vst.msk [vmem:[#allocation2 + $0x228] sm:$0xff] %vm931, %v859
      %1002 = vst.msk [vmem:[#allocation2 + $0x230] sm:$0xff] %vm931, %v862
      %1003 = vst.msk [vmem:[#allocation2 + $0x238] sm:$0xff] %vm931, %v864
      %1004 = vst.msk [vmem:[#allocation2 + $0x240] sm:$0xff] %vm931, %v867
      %1005 = vst.msk [vmem:[#allocation2 + $0x248] sm:$0xff] %vm931, %v869
      %1006 = vst.msk [vmem:[#allocation2 + $0x250] sm:$0xff] %vm931, %v872
      %1007 = vst.msk [vmem:[#allocation2 + $0x258] sm:$0xff] %vm931, %v874
      %1008 = vst.msk [vmem:[#allocation2 + $0x260] sm:$0xff] %vm931, %v877
      %1009 = vst.msk [vmem:[#allocation2 + $0x268] sm:$0xff] %vm931, %v879
      %1010 = vst.msk [vmem:[#allocation2 + $0x270] sm:$0xff] %vm931, %v882
      %1011 = vst.msk [vmem:[#allocation2 + $0x278] sm:$0xff] %vm931, %v884
      %1012 = vst.msk [vmem:[#allocation2 + $0x280] sm:$0xff] %vm931, %v887
      %1013 = vst.msk [vmem:[#allocation2 + $0x288] sm:$0xff] %vm931, %v889
      %1014 = vst.msk [vmem:[#allocation2 + $0x290] sm:$0xff] %vm931, %v892
      %1015 = vst.msk [vmem:[#allocation2 + $0x298] sm:$0xff] %vm931, %v894
      %1016 = vst.msk [vmem:[#allocation2 + $0x2a0] sm:$0xff] %vm931, %v897
      %1017 = vst.msk [vmem:[#allocation2 + $0x2a8] sm:$0xff] %vm931, %v899
      %1018 = vst.msk [vmem:[#allocation2 + $0x2b0] sm:$0xff] %vm931, %v902
      %1019 = vst.msk [vmem:[#allocation2 + $0x2b8] sm:$0xff] %vm931, %v904
      %1020 = vst.msk [vmem:[#allocation2 + $0x2c0] sm:$0xff] %vm931, %v907
      %1021 = vst.msk [vmem:[#allocation2 + $0x2c8] sm:$0xff] %vm931, %v909
      %1022 = vst.msk [vmem:[#allocation2 + $0x2d0] sm:$0xff] %vm931, %v912
      %1023 = vst.msk [vmem:[#allocation2 + $0x2d8] sm:$0xff] %vm931, %v914
      %1024 = vst.msk [vmem:[#allocation2 + $0x2e0] sm:$0xff] %vm931, %v917
      %1025 = vst.msk [vmem:[#allocation2 + $0x2e8] sm:$0xff] %vm931, %v919
      %1026 = vst.msk [vmem:[#allocation2 + $0x2f0] sm:$0xff] %vm931, %v922
      %1027 = vst.msk [vmem:[#allocation2 + $0x2f8] sm:$0xff] %vm931, %v924
      %1028 = vst.msk [vmem:[#allocation2 + $0x300] sm:$0xff] %vm931, %v927
      %1029 = vst.msk [vmem:[#allocation2 + $0x308] sm:$0xff] %vm931, %v929
      %v1030 = vld [vmem:[%s2] sm:$0x1]
      %vm1031 = vcmask 257024
      %1032 = vst.msk [vmem:[%s170] sm:$0xf] %vm1031, 0
      %1033 = vst.msk [vmem:[%s170 + $0x4] sm:$0xf] %vm1031, 0
      %1034 = vst.msk [vmem:[%s170 + $0x8] sm:$0xf] %vm1031, 0
      %1035 = vst.msk [vmem:[%s170 + $0xc] sm:$0xf] %vm1031, 0
      %1036 = vst.msk [vmem:[%s170 + $0x10] sm:$0xf] %vm1031, 0
      %1037 = vst.msk [vmem:[%s170 + $0x14] sm:$0xf] %vm1031, 0
      %1038 = vst.msk [vmem:[%s170 + $0x18] sm:$0xf] %vm1031, 0
      %1039 = vst.msk [vmem:[%s170 + $0x1c] sm:$0xf] %vm1031, 0
      %1040 = vst.msk [vmem:[%s170 + $0x20] sm:$0xf] %vm1031, 0
      %1041 = vst.msk [vmem:[%s170 + $0x24] sm:$0xf] %vm1031, 0
      %1042 = vst.msk [vmem:[%s170 + $0x28] sm:$0xf] %vm1031, 0
      %1043 = vst.msk [vmem:[%s170 + $0x2c] sm:$0xf] %vm1031, 0
      %1044 = vst.msk [vmem:[%s170 + $0x30] sm:$0xf] %vm1031, 0
      %1045 = vst.msk [vmem:[%s170 + $0x34] sm:$0xf] %vm1031, 0
      %1046 = vst.msk [vmem:[%s170 + $0x38] sm:$0xf] %vm1031, 0
      %1047 = vst.msk [vmem:[%s170 + $0x3c] sm:$0xf] %vm1031, 0
      %1048 = vst.msk [vmem:[%s170 + $0x40] sm:$0xf] %vm1031, 0
      %1049 = vst.msk [vmem:[%s170 + $0x44] sm:$0xf] %vm1031, 0
      %1050 = vst.msk [vmem:[%s170 + $0x48] sm:$0xf] %vm1031, 0
      %1051 = vst.msk [vmem:[%s170 + $0x4c] sm:$0xf] %vm1031, 0
      %1052 = vst.msk [vmem:[%s170 + $0x50] sm:$0xf] %vm1031, 0
      %1053 = vst.msk [vmem:[%s170 + $0x54] sm:$0xf] %vm1031, 0
      %1054 = vst.msk [vmem:[%s170 + $0x58] sm:$0xf] %vm1031, 0
      %1055 = vst.msk [vmem:[%s170 + $0x5c] sm:$0xf] %vm1031, 0
      %1056 = vst.msk [vmem:[%s170 + $0x60] sm:$0xf] %vm1031, 0
      %1057 = vst.msk [vmem:[%s170 + $0x64] sm:$0xf] %vm1031, 0
      %1058 = vst.msk [vmem:[%s170 + $0x68] sm:$0xf] %vm1031, 0
      %1059 = vst.msk [vmem:[%s170 + $0x6c] sm:$0xf] %vm1031, 0
      %1060 = vst.msk [vmem:[%s170 + $0x70] sm:$0xf] %vm1031, 0
      %1061 = vst.msk [vmem:[%s170 + $0x74] sm:$0xf] %vm1031, 0
      %1062 = vst.msk [vmem:[%s170 + $0x78] sm:$0xf] %vm1031, 0
      %1063 = vst.msk [vmem:[%s170 + $0x7c] sm:$0xf] %vm1031, 0
      %1064 = vst.msk [vmem:[%s170 + $0x80] sm:$0xf] %vm1031, 0
      %1065 = vst.msk [vmem:[%s170 + $0x84] sm:$0xf] %vm1031, 0
      %1066 = vst.msk [vmem:[%s170 + $0x88] sm:$0xf] %vm1031, 0
      %v1067 = vld [vmem:[#allocation2] ss:$2 sm:$0xff]
      %s1068 = scalar_lea.vmem [#allocation2], 16
      %v1069 = vld [vmem:[%s1068] ss:$2 sm:$0x3f]
      %s1070 = scalar_lea.vmem [#allocation2], 1
      %v1071 = vld [vmem:[%s1070] ss:$2 sm:$0xff]
      %s1072 = scalar_lea.vmem [#allocation2], 17
      %v1073 = vld [vmem:[%s1072] ss:$2 sm:$0x3f]
      %s1074 = scalar_lea.vmem [#allocation2], 28
      %v1075 = vld [vmem:[%s1074] ss:$2 sm:$0xff]
      %s1076 = scalar_lea.vmem [#allocation2], 44
      %v1077 = vld [vmem:[%s1076] ss:$2 sm:$0x3f]
      %s1078 = scalar_lea.vmem [#allocation2], 29
      %v1079 = vld [vmem:[%s1078] ss:$2 sm:$0xff]
      %s1080 = scalar_lea.vmem [#allocation2], 45
      %v1081 = vld [vmem:[%s1080] ss:$2 sm:$0x3f]
      %v1082 = vmax.f32 %v1067, %v1071
      %v1083 = vmax.f32 %v1069, %v1073
      %v1084 = vmax.f32 %v1075, %v1079
      %v1085 = vmax.f32 %v1077, %v1081
      %v1086 = vmax.f32 %v1082, %v1084
      %v1087 = vmax.f32 %v1083, %v1085
      %v1089 = vperm.slane %v1030, 0
      %v1091 = vadd.f32 %v1086, %v1089
      %v1092 = vadd.f32 %v1087, %v1089
      %v1093 = vmax.f32 %v1091, 0.0
      %v1094 = vmax.f32 %v1092, 0.0
      %v1095 = vpack.c.bf16 %v1093, %v1093
      %v1096 = vpack.c.bf16 %v1094, %v1094
      %vm1097 = vsmask.f32 256
      %vm1098 = vsmask.f32 4368
      %vm1099 = vmor %vm1097, %vm1098
      %v1101 = vshrl.u32 %v1095, 16
      %v1103 = vrot.slane %v1101, 7
      %v1104 = vshll.u32 %v1095, 16
      %v1106 = vor.u32 %v1103, %v1104
      %v1107 = vrot.slane %v1103, 4
      %v1109 = vshrl.u32 %v1096, 16
      %v1111 = vrot.slane %v1109, 7
      %v1112 = vshll.u32 %v1096, 16
      %v1114 = vor.u32 %v1111, %v1112
      %v1115 = vsel %vm1099, %v1107, %v1114
      %vm1118 = vcmask 257024
      %vm1119 = vsmask.f32 7938
      %vm1120 = vmand %vm1118, %vm1119
      %v1121 = vld [vmem:[%s170 + $0x8] sm:$0xf]
      %v1122 = vsel %vm1120, %v1106, %v1121
      %1123 = vst [vmem:[%s170 + $0x8] sm:$0xf] %v1122
      %vm1124 = vsmask.f32 3328
      %vm1125 = vmand %vm1118, %vm1124
      %v1126 = vld [vmem:[%s170 + $0xc] sm:$0xf]
      %v1127 = vsel %vm1125, %v1115, %v1126
      %1128 = vst [vmem:[%s170 + $0xc] sm:$0xf] %v1127
      %s1129 = scalar_lea.vmem [#allocation2], 56
      %v1130 = vld [vmem:[%s1129] ss:$2 sm:$0xff]
      %s1131 = scalar_lea.vmem [#allocation2], 72
      %v1132 = vld [vmem:[%s1131] ss:$2 sm:$0x3f]
      %s1133 = scalar_lea.vmem [#allocation2], 57
      %v1134 = vld [vmem:[%s1133] ss:$2 sm:$0xff]
      %s1135 = scalar_lea.vmem [#allocation2], 73
      %v1136 = vld [vmem:[%s1135] ss:$2 sm:$0x3f]
      %s1137 = scalar_lea.vmem [#allocation2], 84
      %v1138 = vld [vmem:[%s1137] ss:$2 sm:$0xff]
      %s1139 = scalar_lea.vmem [#allocation2], 100
      %v1140 = vld [vmem:[%s1139] ss:$2 sm:$0x3f]
      %s1141 = scalar_lea.vmem [#allocation2], 85
      %v1142 = vld [vmem:[%s1141] ss:$2 sm:$0xff]
      %s1143 = scalar_lea.vmem [#allocation2], 101
      %v1144 = vld [vmem:[%s1143] ss:$2 sm:$0x3f]
      %v1145 = vmax.f32 %v1130, %v1134
      %v1146 = vmax.f32 %v1132, %v1136
      %v1147 = vmax.f32 %v1138, %v1142
      %v1148 = vmax.f32 %v1140, %v1144
      %v1149 = vmax.f32 %v1145, %v1147
      %v1150 = vmax.f32 %v1146, %v1148
      %v1151 = vadd.f32 %v1149, %v1089
      %v1152 = vadd.f32 %v1150, %v1089
      %v1153 = vmax.f32 %v1151, 0.0
      %v1154 = vmax.f32 %v1152, 0.0
      %v1155 = vpack.c.bf16 %v1153, %v1153
      %v1156 = vpack.c.bf16 %v1154, %v1154
      %v1158 = vshrl.u32 %v1155, 16
      %v1160 = vrot.slane %v1158, 7
      %v1161 = vshll.u32 %v1155, 16
      %v1163 = vor.u32 %v1160, %v1161
      %v1164 = vrot.slane %v1160, 4
      %v1166 = vshrl.u32 %v1156, 16
      %v1168 = vrot.slane %v1166, 7
      %v1169 = vshll.u32 %v1156, 16
      %v1171 = vor.u32 %v1168, %v1169
      %v1172 = vsel %vm1099, %v1164, %v1171
      %v1175 = vld [vmem:[%s170 + $0x10] sm:$0xf]
      %v1176 = vsel %vm1120, %v1163, %v1175
      %1177 = vst [vmem:[%s170 + $0x10] sm:$0xf] %v1176
      %v1178 = vld [vmem:[%s170 + $0x14] sm:$0xf]
      %v1179 = vsel %vm1125, %v1172, %v1178
      %1180 = vst [vmem:[%s170 + $0x14] sm:$0xf] %v1179
      %s1181 = scalar_lea.vmem [#allocation2], 112
      %v1182 = vld [vmem:[%s1181] ss:$2 sm:$0xff]
      %s1183 = scalar_lea.vmem [#allocation2], 128
      %v1184 = vld [vmem:[%s1183] ss:$2 sm:$0x3f]
      %s1185 = scalar_lea.vmem [#allocation2], 113
      %v1186 = vld [vmem:[%s1185] ss:$2 sm:$0xff]
      %s1187 = scalar_lea.vmem [#allocation2], 129
      %v1188 = vld [vmem:[%s1187] ss:$2 sm:$0x3f]
      %s1189 = scalar_lea.vmem [#allocation2], 140
      %v1190 = vld [vmem:[%s1189] ss:$2 sm:$0xff]
      %s1191 = scalar_lea.vmem [#allocation2], 156
      %v1192 = vld [vmem:[%s1191] ss:$2 sm:$0x3f]
      %s1193 = scalar_lea.vmem [#allocation2], 141
      %v1194 = vld [vmem:[%s1193] ss:$2 sm:$0xff]
      %s1195 = scalar_lea.vmem [#allocation2], 157
      %v1196 = vld [vmem:[%s1195] ss:$2 sm:$0x3f]
      %v1197 = vmax.f32 %v1182, %v1186
      %v1198 = vmax.f32 %v1184, %v1188
      %v1199 = vmax.f32 %v1190, %v1194
      %v1200 = vmax.f32 %v1192, %v1196
      %v1201 = vmax.f32 %v1197, %v1199
      %v1202 = vmax.f32 %v1198, %v1200
      %v1203 = vadd.f32 %v1201, %v1089
      %v1204 = vadd.f32 %v1202, %v1089
      %v1205 = vmax.f32 %v1203, 0.0
      %v1206 = vmax.f32 %v1204, 0.0
      %v1207 = vpack.c.bf16 %v1205, %v1205
      %v1208 = vpack.c.bf16 %v1206, %v1206
      %v1210 = vshrl.u32 %v1207, 16
      %v1212 = vrot.slane %v1210, 7
      %v1213 = vshll.u32 %v1207, 16
      %v1215 = vor.u32 %v1212, %v1213
      %v1216 = vrot.slane %v1212, 4
      %v1218 = vshrl.u32 %v1208, 16
      %v1220 = vrot.slane %v1218, 7
      %v1221 = vshll.u32 %v1208, 16
      %v1223 = vor.u32 %v1220, %v1221
      %v1224 = vsel %vm1099, %v1216, %v1223
      %v1227 = vld [vmem:[%s170 + $0x18] sm:$0xf]
      %v1228 = vsel %vm1120, %v1215, %v1227
      %1229 = vst [vmem:[%s170 + $0x18] sm:$0xf] %v1228
      %v1230 = vld [vmem:[%s170 + $0x1c] sm:$0xf]
      %v1231 = vsel %vm1125, %v1224, %v1230
      %1232 = vst [vmem:[%s170 + $0x1c] sm:$0xf] %v1231
      %s1233 = scalar_lea.vmem [#allocation2], 168
      %v1234 = vld [vmem:[%s1233] ss:$2 sm:$0xff]
      %s1235 = scalar_lea.vmem [#allocation2], 184
      %v1236 = vld [vmem:[%s1235] ss:$2 sm:$0x3f]
      %s1237 = scalar_lea.vmem [#allocation2], 169
      %v1238 = vld [vmem:[%s1237] ss:$2 sm:$0xff]
      %s1239 = scalar_lea.vmem [#allocation2], 185
      %v1240 = vld [vmem:[%s1239] ss:$2 sm:$0x3f]
      %s1241 = scalar_lea.vmem [#allocation2], 196
      %v1242 = vld [vmem:[%s1241] ss:$2 sm:$0xff]
      %s1243 = scalar_lea.vmem [#allocation2], 212
      %v1244 = vld [vmem:[%s1243] ss:$2 sm:$0x3f]
      %s1245 = scalar_lea.vmem [#allocation2], 197
      %v1246 = vld [vmem:[%s1245] ss:$2 sm:$0xff]
      %s1247 = scalar_lea.vmem [#allocation2], 213
      %v1248 = vld [vmem:[%s1247] ss:$2 sm:$0x3f]
      %v1249 = vmax.f32 %v1234, %v1238
      %v1250 = vmax.f32 %v1236, %v1240
      %v1251 = vmax.f32 %v1242, %v1246
      %v1252 = vmax.f32 %v1244, %v1248
      %v1253 = vmax.f32 %v1249, %v1251
      %v1254 = vmax.f32 %v1250, %v1252
      %v1255 = vadd.f32 %v1253, %v1089
      %v1256 = vadd.f32 %v1254, %v1089
      %v1257 = vmax.f32 %v1255, 0.0
      %v1258 = vmax.f32 %v1256, 0.0
      %v1259 = vpack.c.bf16 %v1257, %v1257
      %v1260 = vpack.c.bf16 %v1258, %v1258
      %v1262 = vshrl.u32 %v1259, 16
      %v1264 = vrot.slane %v1262, 7
      %v1265 = vshll.u32 %v1259, 16
      %v1267 = vor.u32 %v1264, %v1265
      %v1268 = vrot.slane %v1264, 4
      %v1270 = vshrl.u32 %v1260, 16
      %v1272 = vrot.slane %v1270, 7
      %v1273 = vshll.u32 %v1260, 16
      %v1275 = vor.u32 %v1272, %v1273
      %v1276 = vsel %vm1099, %v1268, %v1275
      %v1279 = vld [vmem:[%s170 + $0x20] sm:$0xf]
      %v1280 = vsel %vm1120, %v1267, %v1279
      %1281 = vst [vmem:[%s170 + $0x20] sm:$0xf] %v1280
      %v1282 = vld [vmem:[%s170 + $0x24] sm:$0xf]
      %v1283 = vsel %vm1125, %v1276, %v1282
      %1284 = vst [vmem:[%s170 + $0x24] sm:$0xf] %v1283
      %s1285 = scalar_lea.vmem [#allocation2], 224
      %v1286 = vld [vmem:[%s1285] ss:$2 sm:$0xff]
      %s1287 = scalar_lea.vmem [#allocation2], 240
      %v1288 = vld [vmem:[%s1287] ss:$2 sm:$0x3f]
      %s1289 = scalar_lea.vmem [#allocation2], 225
      %v1290 = vld [vmem:[%s1289] ss:$2 sm:$0xff]
      %s1291 = scalar_lea.vmem [#allocation2], 241
      %v1292 = vld [vmem:[%s1291] ss:$2 sm:$0x3f]
      %s1293 = scalar_lea.vmem [#allocation2], 252
      %v1294 = vld [vmem:[%s1293] ss:$2 sm:$0xff]
      %s1295 = scalar_lea.vmem [#allocation2], 268
      %v1296 = vld [vmem:[%s1295] ss:$2 sm:$0x3f]
      %s1297 = scalar_lea.vmem [#allocation2], 253
      %v1298 = vld [vmem:[%s1297] ss:$2 sm:$0xff]
      %s1299 = scalar_lea.vmem [#allocation2], 269
      %v1300 = vld [vmem:[%s1299] ss:$2 sm:$0x3f]
      %v1301 = vmax.f32 %v1286, %v1290
      %v1302 = vmax.f32 %v1288, %v1292
      %v1303 = vmax.f32 %v1294, %v1298
      %v1304 = vmax.f32 %v1296, %v1300
      %v1305 = vmax.f32 %v1301, %v1303
      %v1306 = vmax.f32 %v1302, %v1304
      %v1307 = vadd.f32 %v1305, %v1089
      %v1308 = vadd.f32 %v1306, %v1089
      %v1309 = vmax.f32 %v1307, 0.0
      %v1310 = vmax.f32 %v1308, 0.0
      %v1311 = vpack.c.bf16 %v1309, %v1309
      %v1312 = vpack.c.bf16 %v1310, %v1310
      %v1314 = vshrl.u32 %v1311, 16
      %v1316 = vrot.slane %v1314, 7
      %v1317 = vshll.u32 %v1311, 16
      %v1319 = vor.u32 %v1316, %v1317
      %v1320 = vrot.slane %v1316, 4
      %v1322 = vshrl.u32 %v1312, 16
      %v1324 = vrot.slane %v1322, 7
      %v1325 = vshll.u32 %v1312, 16
      %v1327 = vor.u32 %v1324, %v1325
      %v1328 = vsel %vm1099, %v1320, %v1327
      %v1331 = vld [vmem:[%s170 + $0x28] sm:$0xf]
      %v1332 = vsel %vm1120, %v1319, %v1331
      %1333 = vst [vmem:[%s170 + $0x28] sm:$0xf] %v1332
      %v1334 = vld [vmem:[%s170 + $0x2c] sm:$0xf]
      %v1335 = vsel %vm1125, %v1328, %v1334
      %1336 = vst [vmem:[%s170 + $0x2c] sm:$0xf] %v1335
      %s1337 = scalar_lea.vmem [#allocation2], 280
      %v1338 = vld [vmem:[%s1337] ss:$2 sm:$0xff]
      %s1339 = scalar_lea.vmem [#allocation2], 296
      %v1340 = vld [vmem:[%s1339] ss:$2 sm:$0x3f]
      %s1341 = scalar_lea.vmem [#allocation2], 281
      %v1342 = vld [vmem:[%s1341] ss:$2 sm:$0xff]
      %s1343 = scalar_lea.vmem [#allocation2], 297
      %v1344 = vld [vmem:[%s1343] ss:$2 sm:$0x3f]
      %s1345 = scalar_lea.vmem [#allocation2], 308
      %v1346 = vld [vmem:[%s1345] ss:$2 sm:$0xff]
      %s1347 = scalar_lea.vmem [#allocation2], 324
      %v1348 = vld [vmem:[%s1347] ss:$2 sm:$0x3f]
      %s1349 = scalar_lea.vmem [#allocation2], 309
      %v1350 = vld [vmem:[%s1349] ss:$2 sm:$0xff]
      %s1351 = scalar_lea.vmem [#allocation2], 325
      %v1352 = vld [vmem:[%s1351] ss:$2 sm:$0x3f]
      %v1353 = vmax.f32 %v1338, %v1342
      %v1354 = vmax.f32 %v1340, %v1344
      %v1355 = vmax.f32 %v1346, %v1350
      %v1356 = vmax.f32 %v1348, %v1352
      %v1357 = vmax.f32 %v1353, %v1355
      %v1358 = vmax.f32 %v1354, %v1356
      %v1359 = vadd.f32 %v1357, %v1089
      %v1360 = vadd.f32 %v1358, %v1089
      %v1361 = vmax.f32 %v1359, 0.0
      %v1362 = vmax.f32 %v1360, 0.0
      %v1363 = vpack.c.bf16 %v1361, %v1361
      %v1364 = vpack.c.bf16 %v1362, %v1362
      %v1366 = vshrl.u32 %v1363, 16
      %v1368 = vrot.slane %v1366, 7
      %v1369 = vshll.u32 %v1363, 16
      %v1371 = vor.u32 %v1368, %v1369
      %v1372 = vrot.slane %v1368, 4
      %v1374 = vshrl.u32 %v1364, 16
      %v1376 = vrot.slane %v1374, 7
      %v1377 = vshll.u32 %v1364, 16
      %v1379 = vor.u32 %v1376, %v1377
      %v1380 = vsel %vm1099, %v1372, %v1379
      %v1383 = vld [vmem:[%s170 + $0x30] sm:$0xf]
      %v1384 = vsel %vm1120, %v1371, %v1383
      %1385 = vst [vmem:[%s170 + $0x30] sm:$0xf] %v1384
      %v1386 = vld [vmem:[%s170 + $0x34] sm:$0xf]
      %v1387 = vsel %vm1125, %v1380, %v1386
      %1388 = vst [vmem:[%s170 + $0x34] sm:$0xf] %v1387
      %s1389 = scalar_lea.vmem [#allocation2], 336
      %v1390 = vld [vmem:[%s1389] ss:$2 sm:$0xff]
      %s1391 = scalar_lea.vmem [#allocation2], 352
      %v1392 = vld [vmem:[%s1391] ss:$2 sm:$0x3f]
      %s1393 = scalar_lea.vmem [#allocation2], 337
      %v1394 = vld [vmem:[%s1393] ss:$2 sm:$0xff]
      %s1395 = scalar_lea.vmem [#allocation2], 353
      %v1396 = vld [vmem:[%s1395] ss:$2 sm:$0x3f]
      %s1397 = scalar_lea.vmem [#allocation2], 364
      %v1398 = vld [vmem:[%s1397] ss:$2 sm:$0xff]
      %s1399 = scalar_lea.vmem [#allocation2], 380
      %v1400 = vld [vmem:[%s1399] ss:$2 sm:$0x3f]
      %s1401 = scalar_lea.vmem [#allocation2], 365
      %v1402 = vld [vmem:[%s1401] ss:$2 sm:$0xff]
      %s1403 = scalar_lea.vmem [#allocation2], 381
      %v1404 = vld [vmem:[%s1403] ss:$2 sm:$0x3f]
      %v1405 = vmax.f32 %v1390, %v1394
      %v1406 = vmax.f32 %v1392, %v1396
      %v1407 = vmax.f32 %v1398, %v1402
      %v1408 = vmax.f32 %v1400, %v1404
      %v1409 = vmax.f32 %v1405, %v1407
      %v1410 = vmax.f32 %v1406, %v1408
      %v1411 = vadd.f32 %v1409, %v1089
      %v1412 = vadd.f32 %v1410, %v1089
      %v1413 = vmax.f32 %v1411, 0.0
      %v1414 = vmax.f32 %v1412, 0.0
      %v1415 = vpack.c.bf16 %v1413, %v1413
      %v1416 = vpack.c.bf16 %v1414, %v1414
      %v1418 = vshrl.u32 %v1415, 16
      %v1420 = vrot.slane %v1418, 7
      %v1421 = vshll.u32 %v1415, 16
      %v1423 = vor.u32 %v1420, %v1421
      %v1424 = vrot.slane %v1420, 4
      %v1426 = vshrl.u32 %v1416, 16
      %v1428 = vrot.slane %v1426, 7
      %v1429 = vshll.u32 %v1416, 16
      %v1431 = vor.u32 %v1428, %v1429
      %v1432 = vsel %vm1099, %v1424, %v1431
      %v1435 = vld [vmem:[%s170 + $0x38] sm:$0xf]
      %v1436 = vsel %vm1120, %v1423, %v1435
      %1437 = vst [vmem:[%s170 + $0x38] sm:$0xf] %v1436
      %v1438 = vld [vmem:[%s170 + $0x3c] sm:$0xf]
      %v1439 = vsel %vm1125, %v1432, %v1438
      %1440 = vst [vmem:[%s170 + $0x3c] sm:$0xf] %v1439
      %s1441 = scalar_lea.vmem [#allocation2], 392
      %v1442 = vld [vmem:[%s1441] ss:$2 sm:$0xff]
      %s1443 = scalar_lea.vmem [#allocation2], 408
      %v1444 = vld [vmem:[%s1443] ss:$2 sm:$0x3f]
      %s1445 = scalar_lea.vmem [#allocation2], 393
      %v1446 = vld [vmem:[%s1445] ss:$2 sm:$0xff]
      %s1447 = scalar_lea.vmem [#allocation2], 409
      %v1448 = vld [vmem:[%s1447] ss:$2 sm:$0x3f]
      %s1449 = scalar_lea.vmem [#allocation2], 420
      %v1450 = vld [vmem:[%s1449] ss:$2 sm:$0xff]
      %s1451 = scalar_lea.vmem [#allocation2], 436
      %v1452 = vld [vmem:[%s1451] ss:$2 sm:$0x3f]
      %s1453 = scalar_lea.vmem [#allocation2], 421
      %v1454 = vld [vmem:[%s1453] ss:$2 sm:$0xff]
      %s1455 = scalar_lea.vmem [#allocation2], 437
      %v1456 = vld [vmem:[%s1455] ss:$2 sm:$0x3f]
      %v1457 = vmax.f32 %v1442, %v1446
      %v1458 = vmax.f32 %v1444, %v1448
      %v1459 = vmax.f32 %v1450, %v1454
      %v1460 = vmax.f32 %v1452, %v1456
      %v1461 = vmax.f32 %v1457, %v1459
      %v1462 = vmax.f32 %v1458, %v1460
      %v1463 = vadd.f32 %v1461, %v1089
      %v1464 = vadd.f32 %v1462, %v1089
      %v1465 = vmax.f32 %v1463, 0.0
      %v1466 = vmax.f32 %v1464, 0.0
      %v1467 = vpack.c.bf16 %v1465, %v1465
      %v1468 = vpack.c.bf16 %v1466, %v1466
      %v1470 = vshrl.u32 %v1467, 16
      %v1472 = vrot.slane %v1470, 7
      %v1473 = vshll.u32 %v1467, 16
      %v1475 = vor.u32 %v1472, %v1473
      %v1476 = vrot.slane %v1472, 4
      %v1478 = vshrl.u32 %v1468, 16
      %v1480 = vrot.slane %v1478, 7
      %v1481 = vshll.u32 %v1468, 16
      %v1483 = vor.u32 %v1480, %v1481
      %v1484 = vsel %vm1099, %v1476, %v1483
      %v1487 = vld [vmem:[%s170 + $0x40] sm:$0xf]
      %v1488 = vsel %vm1120, %v1475, %v1487
      %1489 = vst [vmem:[%s170 + $0x40] sm:$0xf] %v1488
      %v1490 = vld [vmem:[%s170 + $0x44] sm:$0xf]
      %v1491 = vsel %vm1125, %v1484, %v1490
      %1492 = vst [vmem:[%s170 + $0x44] sm:$0xf] %v1491
      %s1493 = scalar_lea.vmem [#allocation2], 448
      %v1494 = vld [vmem:[%s1493] ss:$2 sm:$0xff]
      %s1495 = scalar_lea.vmem [#allocation2], 464
      %v1496 = vld [vmem:[%s1495] ss:$2 sm:$0x3f]
      %s1497 = scalar_lea.vmem [#allocation2], 449
      %v1498 = vld [vmem:[%s1497] ss:$2 sm:$0xff]
      %s1499 = scalar_lea.vmem [#allocation2], 465
      %v1500 = vld [vmem:[%s1499] ss:$2 sm:$0x3f]
      %s1501 = scalar_lea.vmem [#allocation2], 476
      %v1502 = vld [vmem:[%s1501] ss:$2 sm:$0xff]
      %s1503 = scalar_lea.vmem [#allocation2], 492
      %v1504 = vld [vmem:[%s1503] ss:$2 sm:$0x3f]
      %s1505 = scalar_lea.vmem [#allocation2], 477
      %v1506 = vld [vmem:[%s1505] ss:$2 sm:$0xff]
      %s1507 = scalar_lea.vmem [#allocation2], 493
      %v1508 = vld [vmem:[%s1507] ss:$2 sm:$0x3f]
      %v1509 = vmax.f32 %v1494, %v1498
      %v1510 = vmax.f32 %v1496, %v1500
      %v1511 = vmax.f32 %v1502, %v1506
      %v1512 = vmax.f32 %v1504, %v1508
      %v1513 = vmax.f32 %v1509, %v1511
      %v1514 = vmax.f32 %v1510, %v1512
      %v1515 = vadd.f32 %v1513, %v1089
      %v1516 = vadd.f32 %v1514, %v1089
      %v1517 = vmax.f32 %v1515, 0.0
      %v1518 = vmax.f32 %v1516, 0.0
      %v1519 = vpack.c.bf16 %v1517, %v1517
      %v1520 = vpack.c.bf16 %v1518, %v1518
      %v1522 = vshrl.u32 %v1519, 16
      %v1524 = vrot.slane %v1522, 7
      %v1525 = vshll.u32 %v1519, 16
      %v1527 = vor.u32 %v1524, %v1525
      %v1528 = vrot.slane %v1524, 4
      %v1530 = vshrl.u32 %v1520, 16
      %v1532 = vrot.slane %v1530, 7
      %v1533 = vshll.u32 %v1520, 16
      %v1535 = vor.u32 %v1532, %v1533
      %v1536 = vsel %vm1099, %v1528, %v1535
      %v1539 = vld [vmem:[%s170 + $0x48] sm:$0xf]
      %v1540 = vsel %vm1120, %v1527, %v1539
      %1541 = vst [vmem:[%s170 + $0x48] sm:$0xf] %v1540
      %v1542 = vld [vmem:[%s170 + $0x4c] sm:$0xf]
      %v1543 = vsel %vm1125, %v1536, %v1542
      %1544 = vst [vmem:[%s170 + $0x4c] sm:$0xf] %v1543
      %s1545 = scalar_lea.vmem [#allocation2], 504
      %v1546 = vld [vmem:[%s1545] ss:$2 sm:$0xff]
      %s1547 = scalar_lea.vmem [#allocation2], 520
      %v1548 = vld [vmem:[%s1547] ss:$2 sm:$0x3f]
      %s1549 = scalar_lea.vmem [#allocation2], 505
      %v1550 = vld [vmem:[%s1549] ss:$2 sm:$0xff]
      %s1551 = scalar_lea.vmem [#allocation2], 521
      %v1552 = vld [vmem:[%s1551] ss:$2 sm:$0x3f]
      %s1553 = scalar_lea.vmem [#allocation2], 532
      %v1554 = vld [vmem:[%s1553] ss:$2 sm:$0xff]
      %s1555 = scalar_lea.vmem [#allocation2], 548
      %v1556 = vld [vmem:[%s1555] ss:$2 sm:$0x3f]
      %s1557 = scalar_lea.vmem [#allocation2], 533
      %v1558 = vld [vmem:[%s1557] ss:$2 sm:$0xff]
      %s1559 = scalar_lea.vmem [#allocation2], 549
      %v1560 = vld [vmem:[%s1559] ss:$2 sm:$0x3f]
      %v1561 = vmax.f32 %v1546, %v1550
      %v1562 = vmax.f32 %v1548, %v1552
      %v1563 = vmax.f32 %v1554, %v1558
      %v1564 = vmax.f32 %v1556, %v1560
      %v1565 = vmax.f32 %v1561, %v1563
      %v1566 = vmax.f32 %v1562, %v1564
      %v1567 = vadd.f32 %v1565, %v1089
      %v1568 = vadd.f32 %v1566, %v1089
      %v1569 = vmax.f32 %v1567, 0.0
      %v1570 = vmax.f32 %v1568, 0.0
      %v1571 = vpack.c.bf16 %v1569, %v1569
      %v1572 = vpack.c.bf16 %v1570, %v1570
      %v1574 = vshrl.u32 %v1571, 16
      %v1576 = vrot.slane %v1574, 7
      %v1577 = vshll.u32 %v1571, 16
      %v1579 = vor.u32 %v1576, %v1577
      %v1580 = vrot.slane %v1576, 4
      %v1582 = vshrl.u32 %v1572, 16
      %v1584 = vrot.slane %v1582, 7
      %v1585 = vshll.u32 %v1572, 16
      %v1587 = vor.u32 %v1584, %v1585
      %v1588 = vsel %vm1099, %v1580, %v1587
      %v1591 = vld [vmem:[%s170 + $0x50] sm:$0xf]
      %v1592 = vsel %vm1120, %v1579, %v1591
      %1593 = vst [vmem:[%s170 + $0x50] sm:$0xf] %v1592
      %v1594 = vld [vmem:[%s170 + $0x54] sm:$0xf]
      %v1595 = vsel %vm1125, %v1588, %v1594
      %1596 = vst [vmem:[%s170 + $0x54] sm:$0xf] %v1595
      %s1597 = scalar_lea.vmem [#allocation2], 560
      %v1598 = vld [vmem:[%s1597] ss:$2 sm:$0xff]
      %s1599 = scalar_lea.vmem [#allocation2], 576
      %v1600 = vld [vmem:[%s1599] ss:$2 sm:$0x3f]
      %s1601 = scalar_lea.vmem [#allocation2], 561
      %v1602 = vld [vmem:[%s1601] ss:$2 sm:$0xff]
      %s1603 = scalar_lea.vmem [#allocation2], 577
      %v1604 = vld [vmem:[%s1603] ss:$2 sm:$0x3f]
      %s1605 = scalar_lea.vmem [#allocation2], 588
      %v1606 = vld [vmem:[%s1605] ss:$2 sm:$0xff]
      %s1607 = scalar_lea.vmem [#allocation2], 604
      %v1608 = vld [vmem:[%s1607] ss:$2 sm:$0x3f]
      %s1609 = scalar_lea.vmem [#allocation2], 589
      %v1610 = vld [vmem:[%s1609] ss:$2 sm:$0xff]
      %s1611 = scalar_lea.vmem [#allocation2], 605
      %v1612 = vld [vmem:[%s1611] ss:$2 sm:$0x3f]
      %v1613 = vmax.f32 %v1598, %v1602
      %v1614 = vmax.f32 %v1600, %v1604
      %v1615 = vmax.f32 %v1606, %v1610
      %v1616 = vmax.f32 %v1608, %v1612
      %v1617 = vmax.f32 %v1613, %v1615
      %v1618 = vmax.f32 %v1614, %v1616
      %v1619 = vadd.f32 %v1617, %v1089
      %v1620 = vadd.f32 %v1618, %v1089
      %v1621 = vmax.f32 %v1619, 0.0
      %v1622 = vmax.f32 %v1620, 0.0
      %v1623 = vpack.c.bf16 %v1621, %v1621
      %v1624 = vpack.c.bf16 %v1622, %v1622
      %v1626 = vshrl.u32 %v1623, 16
      %v1628 = vrot.slane %v1626, 7
      %v1629 = vshll.u32 %v1623, 16
      %v1631 = vor.u32 %v1628, %v1629
      %v1632 = vrot.slane %v1628, 4
      %v1634 = vshrl.u32 %v1624, 16
      %v1636 = vrot.slane %v1634, 7
      %v1637 = vshll.u32 %v1624, 16
      %v1639 = vor.u32 %v1636, %v1637
      %v1640 = vsel %vm1099, %v1632, %v1639
      %v1643 = vld [vmem:[%s170 + $0x58] sm:$0xf]
      %v1644 = vsel %vm1120, %v1631, %v1643
      %1645 = vst [vmem:[%s170 + $0x58] sm:$0xf] %v1644
      %v1646 = vld [vmem:[%s170 + $0x5c] sm:$0xf]
      %v1647 = vsel %vm1125, %v1640, %v1646
      %1648 = vst [vmem:[%s170 + $0x5c] sm:$0xf] %v1647
      %s1649 = scalar_lea.vmem [#allocation2], 616
      %v1650 = vld [vmem:[%s1649] ss:$2 sm:$0xff]
      %s1651 = scalar_lea.vmem [#allocation2], 632
      %v1652 = vld [vmem:[%s1651] ss:$2 sm:$0x3f]
      %s1653 = scalar_lea.vmem [#allocation2], 617
      %v1654 = vld [vmem:[%s1653] ss:$2 sm:$0xff]
      %s1655 = scalar_lea.vmem [#allocation2], 633
      %v1656 = vld [vmem:[%s1655] ss:$2 sm:$0x3f]
      %s1657 = scalar_lea.vmem [#allocation2], 644
      %v1658 = vld [vmem:[%s1657] ss:$2 sm:$0xff]
      %s1659 = scalar_lea.vmem [#allocation2], 660
      %v1660 = vld [vmem:[%s1659] ss:$2 sm:$0x3f]
      %s1661 = scalar_lea.vmem [#allocation2], 645
      %v1662 = vld [vmem:[%s1661] ss:$2 sm:$0xff]
      %s1663 = scalar_lea.vmem [#allocation2], 661
      %v1664 = vld [vmem:[%s1663] ss:$2 sm:$0x3f]
      %v1665 = vmax.f32 %v1650, %v1654
      %v1666 = vmax.f32 %v1652, %v1656
      %v1667 = vmax.f32 %v1658, %v1662
      %v1668 = vmax.f32 %v1660, %v1664
      %v1669 = vmax.f32 %v1665, %v1667
      %v1670 = vmax.f32 %v1666, %v1668
      %v1671 = vadd.f32 %v1669, %v1089
      %v1672 = vadd.f32 %v1670, %v1089
      %v1673 = vmax.f32 %v1671, 0.0
      %v1674 = vmax.f32 %v1672, 0.0
      %v1675 = vpack.c.bf16 %v1673, %v1673
      %v1676 = vpack.c.bf16 %v1674, %v1674
      %v1678 = vshrl.u32 %v1675, 16
      %v1680 = vrot.slane %v1678, 7
      %v1681 = vshll.u32 %v1675, 16
      %v1683 = vor.u32 %v1680, %v1681
      %v1684 = vrot.slane %v1680, 4
      %v1686 = vshrl.u32 %v1676, 16
      %v1688 = vrot.slane %v1686, 7
      %v1689 = vshll.u32 %v1676, 16
      %v1691 = vor.u32 %v1688, %v1689
      %v1692 = vsel %vm1099, %v1684, %v1691
      %v1695 = vld [vmem:[%s170 + $0x60] sm:$0xf]
      %v1696 = vsel %vm1120, %v1683, %v1695
      %1697 = vst [vmem:[%s170 + $0x60] sm:$0xf] %v1696
      %v1698 = vld [vmem:[%s170 + $0x64] sm:$0xf]
      %v1699 = vsel %vm1125, %v1692, %v1698
      %1700 = vst [vmem:[%s170 + $0x64] sm:$0xf] %v1699
      %s1701 = scalar_lea.vmem [#allocation2], 672
      %v1702 = vld [vmem:[%s1701] ss:$2 sm:$0xff]
      %s1703 = scalar_lea.vmem [#allocation2], 688
      %v1704 = vld [vmem:[%s1703] ss:$2 sm:$0x3f]
      %s1705 = scalar_lea.vmem [#allocation2], 673
      %v1706 = vld [vmem:[%s1705] ss:$2 sm:$0xff]
      %s1707 = scalar_lea.vmem [#allocation2], 689
      %v1708 = vld [vmem:[%s1707] ss:$2 sm:$0x3f]
      %s1709 = scalar_lea.vmem [#allocation2], 700
      %v1710 = vld [vmem:[%s1709] ss:$2 sm:$0xff]
      %s1711 = scalar_lea.vmem [#allocation2], 716
      %v1712 = vld [vmem:[%s1711] ss:$2 sm:$0x3f]
      %s1713 = scalar_lea.vmem [#allocation2], 701
      %v1714 = vld [vmem:[%s1713] ss:$2 sm:$0xff]
      %s1715 = scalar_lea.vmem [#allocation2], 717
      %v1716 = vld [vmem:[%s1715] ss:$2 sm:$0x3f]
      %v1717 = vmax.f32 %v1702, %v1706
      %v1718 = vmax.f32 %v1704, %v1708
      %v1719 = vmax.f32 %v1710, %v1714
      %v1720 = vmax.f32 %v1712, %v1716
      %v1721 = vmax.f32 %v1717, %v1719
      %v1722 = vmax.f32 %v1718, %v1720
      %v1723 = vadd.f32 %v1721, %v1089
      %v1724 = vadd.f32 %v1722, %v1089
      %v1725 = vmax.f32 %v1723, 0.0
      %v1726 = vmax.f32 %v1724, 0.0
      %v1727 = vpack.c.bf16 %v1725, %v1725
      %v1728 = vpack.c.bf16 %v1726, %v1726
      %v1730 = vshrl.u32 %v1727, 16
      %v1732 = vrot.slane %v1730, 7
      %v1733 = vshll.u32 %v1727, 16
      %v1735 = vor.u32 %v1732, %v1733
      %v1736 = vrot.slane %v1732, 4
      %v1738 = vshrl.u32 %v1728, 16
      %v1740 = vrot.slane %v1738, 7
      %v1741 = vshll.u32 %v1728, 16
      %v1743 = vor.u32 %v1740, %v1741
      %v1744 = vsel %vm1099, %v1736, %v1743
      %v1747 = vld [vmem:[%s170 + $0x68] sm:$0xf]
      %v1748 = vsel %vm1120, %v1735, %v1747
      %1749 = vst [vmem:[%s170 + $0x68] sm:$0xf] %v1748
      %v1750 = vld [vmem:[%s170 + $0x6c] sm:$0xf]
      %v1751 = vsel %vm1125, %v1744, %v1750
      %1752 = vst [vmem:[%s170 + $0x6c] sm:$0xf] %v1751
      %s1753 = scalar_lea.vmem [#allocation2], 728
      %v1754 = vld [vmem:[%s1753] ss:$2 sm:$0xff]
      %s1755 = scalar_lea.vmem [#allocation2], 744
      %v1756 = vld [vmem:[%s1755] ss:$2 sm:$0x3f]
      %s1757 = scalar_lea.vmem [#allocation2], 729
      %v1758 = vld [vmem:[%s1757] ss:$2 sm:$0xff]
      %s1759 = scalar_lea.vmem [#allocation2], 745
      %v1760 = vld [vmem:[%s1759] ss:$2 sm:$0x3f]
      %s1761 = scalar_lea.vmem [#allocation2], 756
      %v1762 = vld [vmem:[%s1761] ss:$2 sm:$0xff]
      %s1763 = scalar_lea.vmem [#allocation2], 772
      %v1764 = vld [vmem:[%s1763] ss:$2 sm:$0x3f]
      %s1765 = scalar_lea.vmem [#allocation2], 757
      %v1766 = vld [vmem:[%s1765] ss:$2 sm:$0xff]
      %s1767 = scalar_lea.vmem [#allocation2], 773
      %v1768 = vld [vmem:[%s1767] ss:$2 sm:$0x3f]
      %v1769 = vmax.f32 %v1754, %v1758
      %v1770 = vmax.f32 %v1756, %v1760
      %v1771 = vmax.f32 %v1762, %v1766
      %v1772 = vmax.f32 %v1764, %v1768
      %v1773 = vmax.f32 %v1769, %v1771
      %v1774 = vmax.f32 %v1770, %v1772
      %v1775 = vadd.f32 %v1773, %v1089
      %v1776 = vadd.f32 %v1774, %v1089
      %v1777 = vmax.f32 %v1775, 0.0
      %v1778 = vmax.f32 %v1776, 0.0
      %v1779 = vpack.c.bf16 %v1777, %v1777
      %v1780 = vpack.c.bf16 %v1778, %v1778
      %v1782 = vshrl.u32 %v1779, 16
      %v1784 = vrot.slane %v1782, 7
      %v1785 = vshll.u32 %v1779, 16
      %v1787 = vor.u32 %v1784, %v1785
      %v1788 = vrot.slane %v1784, 4
      %v1790 = vshrl.u32 %v1780, 16
      %v1792 = vrot.slane %v1790, 7
      %v1793 = vshll.u32 %v1780, 16
      %v1795 = vor.u32 %v1792, %v1793
      %v1796 = vsel %vm1099, %v1788, %v1795
      %v1799 = vld [vmem:[%s170 + $0x70] sm:$0xf]
      %v1800 = vsel %vm1120, %v1787, %v1799
      %1801 = vst [vmem:[%s170 + $0x70] sm:$0xf] %v1800
      %v1802 = vld [vmem:[%s170 + $0x74] sm:$0xf]
      %v1803 = vsel %vm1125, %v1796, %v1802
      %1804 = vst [vmem:[%s170 + $0x74] sm:$0xf] %v1803
      %p1805 = scmp.lt.s32.totalorder %s14, 1
      %s1806 = scalar_select %p1805, %s14, 1
      %s1807 = smul.addr %s1806, 35
      %s1808 = smul.addr %s1807, 4
      %s1809 = scalar_lea.vmem %s3, %s1808
      // Predicated region
      $region33: #{lenet_complex_forward.4} parent=31 // pred_check
        %p1810 = pneg %p100
      $region34: #{lenet_complex_forward.4} parent=31 // pred_check_branch
        %1812 = sbr.rel (%p1810) target = $region36
      $region35: #{lenet_complex_forward.4} parent=31 // pred_region
        _
      $region36: #{lenet_complex_forward.4} parent=31 // pred_fallthru
        _
    $region32: #{lenet_complex_forward.4} parent=5 // pred_fallthru
      _
    %p1813 = scmp.le.s32.totalorder 2, %s9
    // Predicated region
    $region37: #{lenet_complex_forward.4} parent=5 // pred_check
      %p1814 = pneg %p1813
    $region38: #{lenet_complex_forward.4} parent=5 // pred_check_branch
      %1816 = sbr.rel (%p1814) target = $region40
    $region39: #{lenet_complex_forward.4} parent=5 // pred_region
      %s1817 = ssub.s32 %s9, 2
      // Predicated region
      $region41: #{lenet_complex_forward.4} parent=39 // pred_check
        %p1818 = pneg %p106
      $region42: #{lenet_complex_forward.4} parent=39 // pred_check_branch
        %1820 = sbr.rel (%p1818) target = $region44
      $region43: #{lenet_complex_forward.4} parent=39 // pred_region
        %p1821 = scmp.lt.s32.totalorder %s15, 1
        %s1822 = scalar_select %p1821, %s15, 1
        %s1823 = smul.addr %s1822, 35
        %s1824 = smul.addr %s1823, 4
        %s1825 = scalar_lea.vmem %s3, %s1824
      $region44: #{lenet_complex_forward.4} parent=39 // pred_fallthru
        _
    $region40: #{lenet_complex_forward.4} parent=5 // pred_fallthru
      _
  $region6: #{lenet_complex_forward.4} parent=0 // loop_footer
    %s13 = sadd.s32 1, %s9
  $region7: #{lenet_complex_forward.4} parent=0 // loop_footer_branch
    %8 = sbr.rel target = $region3
  $region8: #{lenet_complex_forward.4} parent=0 // loop_exit
    _

// kernel: lenet_complex_forward.5
$region0: #{lenet_complex_forward.5}
  #allocation0 [shape = 'u32[]', space=smem, size = 0x4, offset = 0x4, fixed_abs, tag = 'smem constant byte address 0x4 - core index']
  #allocation1 [shape = 'u32[72,128]{1,0:T(1,128)}', space=vmem, size = 0x9000, scoped, tag = 'internal scratch']
  #allocation2 [shape = 'f32[1,224,64]{2,1,0:T(8,128)}', space=vmem, size = 0x1c000, scoped, tag = 'scratch operand']
  %s0 = inlined_call_operand.vmem [shape: bf16[2,280,32], index: 0, kind: input, shape index: {}]
  %s1 = inlined_call_operand.vmem [shape: bf16[3,96,64], index: 1, kind: input, shape index: {}]
  %s2 = inlined_call_operand.vmem [shape: f32[1,64], index: 2, kind: input, shape index: {}]
  %s3 = inlined_call_operand.vmem [shape: bf16[2,98,64], index: 3, kind: output, shape index: {}]
  %s4 = sld [smem:[#allocation0]]
  $region45: #{lenet_complex_forward.5} parent=0
    _
  %s6 = ssub.s32 1, %s4
  %s7 = scalar_select 0, %s6, %s4
  loop: start=0, step=1, limit=4
  $region2: #{lenet_complex_forward.5} parent=0 // loop_pre_header
    _
  $region3: #{lenet_complex_forward.5} parent=0 // loop_header
    %s9 = sphi 0, %s13
    %p10 = scmp.ge.s32.totalorder %s9, 4
    %s19 = sphi 0, %s21
    %s22 = sphi 0, %s19
    %s23 = sphi 0, %s22
    %s39 = sphi 0, %s23
    %s43 = sphi 0, %s43
    %s45 = sphi 0, %s43
    %s46 = sphi 0, %s45
    %s60 = sphi 0, %s46
    %s64 = sphi 0, %s64
    %s66 = sphi 0, %s64
    %s67 = sphi 0, %s66
    %s81 = sphi 0, %s67
    %s87 = sphi 0, %s89
    %s90 = sphi 0, %s87
    %s91 = sphi 0, %s90
    %s107 = sphi 0, %s91
  $region4: #{lenet_complex_forward.5} parent=0 // loop_header_branch
    %12 = sbr.rel (%p10) target = $region8
  $region5: #{lenet_complex_forward.5} parent=0 // loop_body
    %s14 = ssub.s32 %s9, 1
    %s15 = ssub.s32 %s9, 2
    %s16 = sadd.s32 %s9, 1
    %s17 = ssub.s32 %s9, %s16
    %p18 = scmp.eq.s32.totalorder %s17, 0
    %s20 = sadd.s32 %s19, 1
    %s21 = scalar_select %p18, %s19, %s20
    %p24 = pneg %p18
    %p25 = scmp.eq.s32.totalorder %s9, 1
    %p26 = por %p24, %p25
    %p27 = scmp.ne.s32.totalorder %s19, %s22
    %p28 = scmp.eq.s32.totalorder %s9, 0
    %p29 = por %p27, %p28
    %p30 = scmp.ne.s32.totalorder %s19, %s22
    %p31 = scmp.eq.s32.totalorder %s14, 1
    %p32 = por %p30, %p31
    %p33 = scmp.ne.s32.totalorder %s22, %s23
    %p34 = scmp.eq.s32.totalorder %s14, 0
    %p35 = por %p33, %p34
    %p36 = scmp.ne.s32.totalorder %s22, %s23
    %p37 = scmp.eq.s32.totalorder %s15, 1
    %p38 = por %p36, %p37
    %p40 = scmp.ne.s32.totalorder %s23, %s39
    %p41 = scmp.eq.s32.totalorder %s15, 0
    %p42 = por %p40, %p41
    %s44 = sadd.s32 %s43, 1
    %p47 = scmp.eq.s32.totalorder %s9, 1
    %p48 = scmp.ne.s32.totalorder %s43, %s45
    %p49 = scmp.eq.s32.totalorder %s9, 0
    %p50 = por %p48, %p49
    %p51 = scmp.ne.s32.totalorder %s43, %s45
    %p52 = scmp.eq.s32.totalorder %s14, 1
    %p53 = por %p51, %p52
    %p54 = scmp.ne.s32.totalorder %s45, %s46
    %p55 = scmp.eq.s32.totalorder %s14, 0
    %p56 = por %p54, %p55
    %p57 = scmp.ne.s32.totalorder %s45, %s46
    %p58 = scmp.eq.s32.totalorder %s15, 1
    %p59 = por %p57, %p58
    %p61 = scmp.ne.s32.totalorder %s46, %s60
    %p62 = scmp.eq.s32.totalorder %s15, 0
    %p63 = por %p61, %p62
    %s65 = sadd.s32 %s64, 1
    %p68 = scmp.eq.s32.totalorder %s9, 1
    %p69 = scmp.ne.s32.totalorder %s64, %s66
    %p70 = scmp.eq.s32.totalorder %s9, 0
    %p71 = por %p69, %p70
    %p72 = scmp.ne.s32.totalorder %s64, %s66
    %p73 = scmp.eq.s32.totalorder %s14, 1
    %p74 = por %p72, %p73
    %p75 = scmp.ne.s32.totalorder %s66, %s67
    %p76 = scmp.eq.s32.totalorder %s14, 0
    %p77 = por %p75, %p76
    %p78 = scmp.ne.s32.totalorder %s66, %s67
    %p79 = scmp.eq.s32.totalorder %s15, 1
    %p80 = por %p78, %p79
    %p82 = scmp.ne.s32.totalorder %s67, %s81
    %p83 = scmp.eq.s32.totalorder %s15, 0
    %p84 = por %p82, %p83
    %s85 = ssub.s32 %s9, %s16
    %p86 = scmp.eq.s32.totalorder %s85, 0
    %s88 = sadd.s32 %s87, 1
    %s89 = scalar_select %p86, %s87, %s88
    %p92 = pneg %p86
    %p93 = scmp.eq.s32.totalorder %s9, 1
    %p94 = por %p92, %p93
    %p95 = scmp.ne.s32.totalorder %s87, %s90
    %p96 = scmp.eq.s32.totalorder %s9, 0
    %p97 = por %p95, %p96
    %p98 = scmp.ne.s32.totalorder %s87, %s90
    %p99 = scmp.eq.s32.totalorder %s14, 1
    %p100 = por %p98, %p99
    %p101 = scmp.ne.s32.totalorder %s90, %s91
    %p102 = scmp.eq.s32.totalorder %s14, 0
    %p103 = por %p101, %p102
    %p104 = scmp.ne.s32.totalorder %s90, %s91
    %p105 = scmp.eq.s32.totalorder %s15, 1
    %p106 = por %p104, %p105
    %p108 = scmp.ne.s32.totalorder %s91, %s107
    %p109 = scmp.eq.s32.totalorder %s15, 0
    %p110 = por %p108, %p109
    %p111 = scmp.le.s32.totalorder 1, %s9
    %p112 = scmp.lt.s32.totalorder %s9, 3
    %p113 = pnand %p111, %p112
    %p114 = pneg %p113
    // Predicated region
    $region9: #{lenet_complex_forward.5} parent=5 // pred_check
      _
    $region10: #{lenet_complex_forward.5} parent=5 // pred_check_branch
      %116 = sbr.rel (%p113) target = $region12
    $region11: #{lenet_complex_forward.5} parent=5 // pred_region
      %s117 = ssub.s32 %s9, 1
      // Predicated region
      $region13: #{lenet_complex_forward.5} parent=11 // pred_check
        %p118 = pneg %p56
      $region14: #{lenet_complex_forward.5} parent=11 // pred_check_branch
        %120 = sbr.rel (%p118) target = $region16
      $region15: #{lenet_complex_forward.5} parent=11 // pred_region
        _
      $region16: #{lenet_complex_forward.5} parent=11 // pred_fallthru
        _
      // Predicated region
      $region17: #{lenet_complex_forward.5} parent=11 // pred_check
        %p121 = pneg %p77
      $region18: #{lenet_complex_forward.5} parent=11 // pred_check_branch
        %123 = sbr.rel (%p121) target = $region20
      $region19: #{lenet_complex_forward.5} parent=11 // pred_region
        _
      $region20: #{lenet_complex_forward.5} parent=11 // pred_fallthru
        _
    $region12: #{lenet_complex_forward.5} parent=5 // pred_fallthru
      _
    %p124 = scmp.lt.s32.totalorder %s9, 2
    // Predicated region
    $region21: #{lenet_complex_forward.5} parent=5 // pred_check
      %p125 = pneg %p124
    $region22: #{lenet_complex_forward.5} parent=5 // pred_check_branch
      %127 = sbr.rel (%p125) target = $region24
    $region23: #{lenet_complex_forward.5} parent=5 // pred_region
      // Predicated region
      $region25: #{lenet_complex_forward.5} parent=23 // pred_check
        %p128 = pneg %p29
      $region26: #{lenet_complex_forward.5} parent=23 // pred_check_branch
        %130 = sbr.rel (%p128) target = $region28
      $region27: #{lenet_complex_forward.5} parent=23 // pred_region
        %p131 = scmp.lt.s32.totalorder %s9, 1
        %s132 = scalar_select %p131, %s9, 1
        %s133 = smul.addr %s132, 35
        %s134 = smul.addr %s133, 4
        %s135 = scalar_lea.vmem %s0, %s134
      $region28: #{lenet_complex_forward.5} parent=23 // pred_fallthru
        _
    $region24: #{lenet_complex_forward.5} parent=5 // pred_fallthru
      _
    %p136 = scmp.le.s32.totalorder 1, %s9
    %p137 = scmp.lt.s32.totalorder %s9, 3
    %p138 = pnand %p136, %p137
    %p139 = pneg %p138
    // Predicated region
    $region29: #{lenet_complex_forward.5} parent=5 // pred_check
      _
    $region30: #{lenet_complex_forward.5} parent=5 // pred_check_branch
      %141 = sbr.rel (%p138) target = $region32
    $region31: #{lenet_complex_forward.5} parent=5 // pred_region
      %s142 = ssub.s32 %s9, 1
      %p143 = scmp.lt.s32.totalorder %s14, 1
      %s144 = scalar_select %p143, %s14, 1
      %s145 = smul.addr %s144, 35
      %s146 = smul.addr %s145, 4
      %s147 = scalar_lea.vmem %s0, %s146
      %p148 = pneg %p35
      %p149 = pneg %p32
      %p150 = pneg %p56
      %p151 = pneg %p53
      %p152 = pneg %p77
      %p153 = pneg %p74
      %p154 = pneg %p103
      %p155 = pneg %p100
      %p156 = scmp.lt.s32.totalorder %s14, 1
      %s157 = scalar_select %p156, %s14, 1
      %s158 = smul.addr %s157, 13
      %s159 = smul.addr %s158, 4
      %s160 = scalar_lea.vmem %s3, %s159
      %p161 = scmp.lt.s32.totalorder %s14, 1
      %s162 = scalar_select %p161, %s14, 1
      %s163 = smul.addr %s162, 35
      %s164 = smul.addr %s163, 4
      %s165 = scalar_lea.vmem %s0, %s164
      %p166 = scmp.lt.s32.totalorder %s14, 1
      %s167 = scalar_select %p166, %s14, 1
      %s168 = smul.addr %s167, 13
      %s169 = smul.addr %s168, 4
      %s170 = scalar_lea.vmem %s3, %s169
      %v172 = vld [vmem:[%s165] sm:$0xf]
      %v173 = vld [vmem:[%s165 + $0x4] sm:$0xf]
      %v174 = vld [vmem:[%s165 + $0x8] sm:$0xf]
      %v175 = vld [vmem:[%s165 + $0xc] sm:$0xf]
      %v176 = vld [vmem:[%s165 + $0x10] sm:$0xf]
      %v177 = vld [vmem:[%s165 + $0x14] sm:$0xf]
      %v178 = vld [vmem:[%s165 + $0x18] sm:$0xf]
      %v179 = vld [vmem:[%s165 + $0x1c] sm:$0xf]
      %v180 = vld [vmem:[%s165 + $0x20] sm:$0xf]
      %v181 = vld [vmem:[%s165 + $0x24] sm:$0xf]
      %v182 = vld [vmem:[%s165 + $0x28] sm:$0xf]
      %v183 = vld [vmem:[%s165 + $0x2c] sm:$0xf]
      %v184 = vld [vmem:[%s165 + $0x30] sm:$0xf]
      %v185 = vld [vmem:[%s165 + $0x34] sm:$0xf]
      %v186 = vld [vmem:[%s165 + $0x38] sm:$0xf]
      %v187 = vld [vmem:[%s165 + $0x3c] sm:$0xf]
      %v188 = vld [vmem:[%s165 + $0x40] sm:$0xf]
      %v189 = vld [vmem:[%s165 + $0x44] sm:$0xf]
      %v190 = vld [vmem:[%s165 + $0x48] sm:$0xf]
      %v191 = vld [vmem:[%s165 + $0x4c] sm:$0xf]
      %v192 = vld [vmem:[%s165 + $0x50] sm:$0xf]
      %v193 = vld [vmem:[%s165 + $0x54] sm:$0xf]
      %v194 = vld [vmem:[%s165 + $0x58] sm:$0xf]
      %v195 = vld [vmem:[%s165 + $0x5c] sm:$0xf]
      %v196 = vld [vmem:[%s165 + $0x60] sm:$0xf]
      %v197 = vld [vmem:[%s165 + $0x64] sm:$0xf]
      %v198 = vld [vmem:[%s165 + $0x68] sm:$0xf]
      %v199 = vld [vmem:[%s165 + $0x6c] sm:$0xf]
      %v200 = vld [vmem:[%s165 + $0x70] sm:$0x1]
      %v201 = vld [vmem:[%s165] sm:$0xe]
      %v230 = vunpack.c.l.b16 %v172
      %v231 = vunpack.c.l.b16 %v173
      %v232 = vunpack.c.l.b16 %v174
      %v233 = vunpack.c.l.b16 %v175
      %v234 = vunpack.c.l.b16 %v176
      %v235 = vunpack.c.l.b16 %v177
      %v236 = vunpack.c.l.b16 %v178
      %v237 = vunpack.c.l.b16 %v179
      %v238 = vunpack.c.l.b16 %v180
      %v239 = vunpack.c.l.b16 %v181
      %v240 = vunpack.c.l.b16 %v182
      %v241 = vunpack.c.l.b16 %v183
      %v242 = vunpack.c.l.b16 %v184
      %v243 = vunpack.c.l.b16 %v185
      %v244 = vunpack.c.l.b16 %v186
      %v245 = vunpack.c.l.b16 %v187
      %v246 = vunpack.c.l.b16 %v188
      %v247 = vunpack.c.l.b16 %v189
      %v248 = vunpack.c.l.b16 %v190
      %v249 = vunpack.c.l.b16 %v191
      %v250 = vunpack.c.l.b16 %v192
      %v251 = vunpack.c.l.b16 %v193
      %v252 = vunpack.c.l.b16 %v194
      %v253 = vunpack.c.l.b16 %v195
      %v254 = vunpack.c.l.b16 %v196
      %v255 = vunpack.c.l.b16 %v197
      %v256 = vunpack.c.l.b16 %v198
      %v257 = vunpack.c.l.b16 %v199
      %v258 = vpack.c.b16 %v231, %v230
      %v259 = vpack.c.b16 %v233, %v232
      %v260 = vpack.c.b16 %v235, %v234
      %v261 = vpack.c.b16 %v237, %v236
      %v262 = vpack.c.b16 %v239, %v238
      %v263 = vpack.c.b16 %v241, %v240
      %v264 = vpack.c.b16 %v243, %v242
      %v265 = vpack.c.b16 %v245, %v244
      %v266 = vpack.c.b16 %v247, %v246
      %v267 = vpack.c.b16 %v249, %v248
      %v268 = vpack.c.b16 %v251, %v250
      %v269 = vpack.c.b16 %v253, %v252
      %v270 = vpack.c.b16 %v255, %v254
      %v271 = vpack.c.b16 %v257, %v256
      %v273 = vunpack.c.l.b16 %v200
      %v274 = vpack.c.b16 %v273, %v273
      %vm275 = vsmask.f32 7424
      %v277 = vshrl.u32 %v258, 16
      %v279 = vshll.u32 %v258, 16
      %v281 = vrot.slane %v279, 1
      %v282 = vor.u32 %v277, %v281
      %v284 = vshll.u32 %v259, 16
      %v286 = vrot.slane %v284, 1
      %v287 = vsel %vm275, %v282, %v286
      %v288 = vshrl.u32 %v259, 16
      %v290 = vor.u32 %v288, %v286
      %v292 = vshll.u32 %v260, 16
      %v294 = vrot.slane %v292, 1
      %v295 = vsel %vm275, %v290, %v294
      %v296 = vshrl.u32 %v260, 16
      %v298 = vor.u32 %v296, %v294
      %v300 = vshll.u32 %v261, 16
      %v302 = vrot.slane %v300, 1
      %v303 = vsel %vm275, %v298, %v302
      %v304 = vshrl.u32 %v261, 16
      %v306 = vor.u32 %v304, %v302
      %v308 = vshll.u32 %v262, 16
      %v310 = vrot.slane %v308, 1
      %v311 = vsel %vm275, %v306, %v310
      %v312 = vshrl.u32 %v262, 16
      %v314 = vor.u32 %v312, %v310
      %v316 = vshll.u32 %v263, 16
      %v318 = vrot.slane %v316, 1
      %v319 = vsel %vm275, %v314, %v318
      %v320 = vshrl.u32 %v263, 16
      %v322 = vor.u32 %v320, %v318
      %v324 = vshll.u32 %v264, 16
      %v326 = vrot.slane %v324, 1
      %v327 = vsel %vm275, %v322, %v326
      %v328 = vshrl.u32 %v264, 16
      %v330 = vor.u32 %v328, %v326
      %v332 = vshll.u32 %v265, 16
      %v334 = vrot.slane %v332, 1
      %v335 = vsel %vm275, %v330, %v334
      %v336 = vshrl.u32 %v265, 16
      %v338 = vor.u32 %v336, %v334
      %v340 = vshll.u32 %v266, 16
      %v342 = vrot.slane %v340, 1
      %v343 = vsel %vm275, %v338, %v342
      %v344 = vshrl.u32 %v266, 16
      %v346 = vor.u32 %v344, %v342
      %v348 = vshll.u32 %v267, 16
      %v350 = vrot.slane %v348, 1
      %v351 = vsel %vm275, %v346, %v350
      %v352 = vshrl.u32 %v267, 16
      %v354 = vor.u32 %v352, %v350
      %v356 = vshll.u32 %v268, 16
      %v358 = vrot.slane %v356, 1
      %v359 = vsel %vm275, %v354, %v358
      %v360 = vshrl.u32 %v268, 16
      %v362 = vor.u32 %v360, %v358
      %v364 = vshll.u32 %v269, 16
      %v366 = vrot.slane %v364, 1
      %v367 = vsel %vm275, %v362, %v366
      %v368 = vshrl.u32 %v269, 16
      %v370 = vor.u32 %v368, %v366
      %v372 = vshll.u32 %v270, 16
      %v374 = vrot.slane %v372, 1
      %v375 = vsel %vm275, %v370, %v374
      %v376 = vshrl.u32 %v270, 16
      %v378 = vor.u32 %v376, %v374
      %v380 = vshll.u32 %v271, 16
      %v382 = vrot.slane %v380, 1
      %v383 = vsel %vm275, %v378, %v382
      %v384 = vshrl.u32 %v271, 16
      %v386 = vor.u32 %v384, %v382
      %v388 = vshll.u32 %v274, 16
      %v390 = vrot.slane %v388, 1
      %v391 = vsel %vm275, %v386, %v390
      %392 = vrot.lane.b32.xlu0 %v287, 32
      %v393 = vpop.permute.xlu0 %392
      %394 = vrot.lane.b32.xlu0 %v295, 32
      %v395 = vpop.permute.xlu0 %394
      %396 = vrot.lane.b32.xlu0 %v303, 32
      %v397 = vpop.permute.xlu0 %396
      %398 = vrot.lane.b32.xlu0 %v311, 32
      %v399 = vpop.permute.xlu0 %398
      %400 = vrot.lane.b32.xlu0 %v319, 32
      %v401 = vpop.permute.xlu0 %400
      %402 = vrot.lane.b32.xlu0 %v327, 32
      %v403 = vpop.permute.xlu0 %402
      %404 = vrot.lane.b32.xlu0 %v335, 32
      %v405 = vpop.permute.xlu0 %404
      %406 = vrot.lane.b32.xlu0 %v343, 32
      %v407 = vpop.permute.xlu0 %406
      %408 = vrot.lane.b32.xlu0 %v351, 32
      %v409 = vpop.permute.xlu0 %408
      %410 = vrot.lane.b32.xlu0 %v359, 32
      %v411 = vpop.permute.xlu0 %410
      %412 = vrot.lane.b32.xlu0 %v367, 32
      %v413 = vpop.permute.xlu0 %412
      %414 = vrot.lane.b32.xlu0 %v375, 32
      %v415 = vpop.permute.xlu0 %414
      %416 = vrot.lane.b32.xlu0 %v383, 32
      %v417 = vpop.permute.xlu0 %416
      %418 = vrot.lane.b32.xlu0 %v391, 32
      %v419 = vpop.permute.xlu0 %418
      %v421 = vunpack.c.l.b16 %v201
      %v422 = vpack.c.b16 %v231, %v421
      %vm423 = vcmask 1046528
      %v424 = vrot.slane %v422, 1
      %v425 = vrot.slane %v259, 1
      %v426 = vsel %vm423, %v424, %v425
      %v427 = vrot.slane %v260, 1
      %v428 = vsel %vm423, %v425, %v427
      %v429 = vrot.slane %v261, 1
      %v430 = vsel %vm423, %v427, %v429
      %v431 = vrot.slane %v262, 1
      %v432 = vsel %vm423, %v429, %v431
      %v433 = vrot.slane %v263, 1
      %v434 = vsel %vm423, %v431, %v433
      %v435 = vrot.slane %v264, 1
      %v436 = vsel %vm423, %v433, %v435
      %v437 = vrot.slane %v265, 1
      %v438 = vsel %vm423, %v435, %v437
      %v439 = vrot.slane %v266, 1
      %v440 = vsel %vm423, %v437, %v439
      %v441 = vrot.slane %v267, 1
      %v442 = vsel %vm423, %v439, %v441
      %v443 = vrot.slane %v268, 1
      %v444 = vsel %vm423, %v441, %v443
      %v445 = vrot.slane %v269, 1
      %v446 = vsel %vm423, %v443, %v445
      %v447 = vrot.slane %v270, 1
      %v448 = vsel %vm423, %v445, %v447
      %v449 = vrot.slane %v271, 1
      %v450 = vsel %vm423, %v447, %v449
      %v451 = vrot.slane %v274, 1
      %v452 = vsel %vm423, %v449, %v451
      %453 = vrot.lane.b32.xlu0 %v426, 64
      %v454 = vpop.permute.xlu0 %453
      %455 = vrot.lane.b32.xlu0 %v428, 64
      %v456 = vpop.permute.xlu0 %455
      %457 = vrot.lane.b32.xlu0 %v430, 64
      %v458 = vpop.permute.xlu0 %457
      %459 = vrot.lane.b32.xlu0 %v432, 64
      %v460 = vpop.permute.xlu0 %459
      %461 = vrot.lane.b32.xlu0 %v434, 64
      %v462 = vpop.permute.xlu0 %461
      %463 = vrot.lane.b32.xlu0 %v436, 64
      %v464 = vpop.permute.xlu0 %463
      %465 = vrot.lane.b32.xlu0 %v438, 64
      %v466 = vpop.permute.xlu0 %465
      %467 = vrot.lane.b32.xlu0 %v440, 64
      %v468 = vpop.permute.xlu0 %467
      %469 = vrot.lane.b32.xlu0 %v442, 64
      %v470 = vpop.permute.xlu0 %469
      %471 = vrot.lane.b32.xlu0 %v444, 64
      %v472 = vpop.permute.xlu0 %471
      %473 = vrot.lane.b32.xlu0 %v446, 64
      %v474 = vpop.permute.xlu0 %473
      %475 = vrot.lane.b32.xlu0 %v448, 64
      %v476 = vpop.permute.xlu0 %475
      %477 = vrot.lane.b32.xlu0 %v450, 64
      %v478 = vpop.permute.xlu0 %477
      %479 = vrot.lane.b32.xlu0 %v452, 64
      %v480 = vpop.permute.xlu0 %479
      %vm481 = vcmask 261120
      %v483 = vsel %vm481, %v258, %v393
      %v485 = vsel %vm481, %v259, %v395
      %v487 = vsel %vm481, %v260, %v397
      %v489 = vsel %vm481, %v261, %v399
      %v491 = vsel %vm481, %v262, %v401
      %v493 = vsel %vm481, %v263, %v403
      %v495 = vsel %vm481, %v264, %v405
      %v497 = vsel %vm481, %v265, %v407
      %v499 = vsel %vm481, %v266, %v409
      %v501 = vsel %vm481, %v267, %v411
      %v503 = vsel %vm481, %v268, %v413
      %v505 = vsel %vm481, %v269, %v415
      %v507 = vsel %vm481, %v270, %v417
      %v509 = vsel %vm481, %v271, %v419
      %vm510 = vcmask 523264
      %v512 = vsel %vm510, %v483, %v454
      %v514 = vsel %vm510, %v485, %v456
      %v516 = vsel %vm510, %v487, %v458
      %v518 = vsel %vm510, %v489, %v460
      %v520 = vsel %vm510, %v491, %v462
      %v522 = vsel %vm510, %v493, %v464
      %v524 = vsel %vm510, %v495, %v466
      %v526 = vsel %vm510, %v497, %v468
      %v528 = vsel %vm510, %v499, %v470
      %v530 = vsel %vm510, %v501, %v472
      %v532 = vsel %vm510, %v503, %v474
      %v534 = vsel %vm510, %v505, %v476
      %v536 = vsel %vm510, %v507, %v478
      %v538 = vsel %vm510, %v509, %v480
      %v539 = vld [vmem:[%s1] sm:$0xf]
      %v540 = vld [vmem:[%s1 + $0x4] sm:$0xf]
      %v541 = vld [vmem:[%s1 + $0x8] sm:$0xf]
      %v542 = vld [vmem:[%s1 + $0xc] sm:$0xf]
      %v543 = vld [vmem:[%s1 + $0x10] sm:$0xf]
      %v544 = vld [vmem:[%s1 + $0x14] sm:$0xf]
      %v545 = vld [vmem:[%s1 + $0x18] sm:$0xf]
      %v546 = vld [vmem:[%s1 + $0x1c] sm:$0xf]
      %v547 = vld [vmem:[%s1 + $0x20] sm:$0xf]
      %v548 = vld [vmem:[%s1 + $0x24] sm:$0xf]
      %v549 = vld [vmem:[%s1 + $0x28] sm:$0xf]
      %v550 = vld [vmem:[%s1 + $0x2c] sm:$0xf]
      %v551 = vld [vmem:[%s165 + $0x70] sm:$0xf]
      %v552 = vld [vmem:[%s165 + $0x74] sm:$0xf]
      %v553 = vld [vmem:[%s165 + $0x78] sm:$0x1]
      %v554 = vld [vmem:[%s165 + $0x8] sm:$0xe]
      %v557 = vunpack.c.l.b16 %v551
      %v558 = vunpack.c.l.b16 %v552
      %v559 = vpack.c.b16 %v558, %v557
      %v561 = vunpack.c.l.b16 %v553
      %v562 = vpack.c.b16 %v561, %v561
      %v564 = vshll.u32 %v559, 16
      %v566 = vrot.slane %v564, 1
      %v567 = vsel %vm275, %v386, %v566
      %v568 = vshrl.u32 %v559, 16
      %v570 = vor.u32 %v568, %v566
      %v572 = vshll.u32 %v562, 16
      %v574 = vrot.slane %v572, 1
      %v575 = vsel %vm275, %v570, %v574
      %576 = vrot.lane.b32.xlu0 %v567, 32
      %v577 = vpop.permute.xlu0 %576
      %578 = vrot.lane.b32.xlu0 %v575, 32
      %v579 = vpop.permute.xlu0 %578
      %v581 = vunpack.c.l.b16 %v554
      %v582 = vpack.c.b16 %v233, %v581
      %v583 = vrot.slane %v582, 1
      %v584 = vsel %vm423, %v583, %v427
      %v585 = vrot.slane %v559, 1
      %v586 = vsel %vm423, %v449, %v585
      %v587 = vrot.slane %v562, 1
      %v588 = vsel %vm423, %v585, %v587
      %589 = vrot.lane.b32.xlu0 %v584, 64
      %v590 = vpop.permute.xlu0 %589
      %591 = vrot.lane.b32.xlu0 %v586, 64
      %v592 = vpop.permute.xlu0 %591
      %593 = vrot.lane.b32.xlu0 %v588, 64
      %v594 = vpop.permute.xlu0 %593
      %v596 = vsel %vm481, %v271, %v577
      %v598 = vsel %vm481, %v559, %v579
      %v600 = vsel %vm510, %v485, %v590
      %v602 = vsel %vm510, %v596, %v592
      %v604 = vsel %vm510, %v598, %v594
      %s605 = scalar_lea.vmem %s1, 48
      %v606 = vld [vmem:[%s605] sm:$0xf]
      %v607 = vld [vmem:[%s605 + $0x4] sm:$0xf]
      %v608 = vld [vmem:[%s605 + $0x8] sm:$0xf]
      %v609 = vld [vmem:[%s605 + $0xc] sm:$0xf]
      %v610 = vld [vmem:[%s605 + $0x10] sm:$0xf]
      %v611 = vld [vmem:[%s605 + $0x14] sm:$0xf]
      %v612 = vld [vmem:[%s605 + $0x18] sm:$0xf]
      %v613 = vld [vmem:[%s605 + $0x1c] sm:$0xf]
      %v614 = vld [vmem:[%s605 + $0x20] sm:$0xf]
      %v615 = vld [vmem:[%s605 + $0x24] sm:$0xf]
      %v616 = vld [vmem:[%s605 + $0x28] sm:$0xf]
      %v617 = vld [vmem:[%s605 + $0x2c] sm:$0xf]
      %v630 = vunpack.c.l.b16 %v606
      %v631 = vunpack.c.l.b16 %v607
      %v632 = vunpack.c.l.b16 %v608
      %v633 = vunpack.c.l.b16 %v609
      %v634 = vunpack.c.l.b16 %v610
      %v635 = vunpack.c.l.b16 %v611
      %v636 = vunpack.c.l.b16 %v612
      %v637 = vunpack.c.l.b16 %v613
      %v638 = vunpack.c.l.b16 %v614
      %v639 = vunpack.c.l.b16 %v615
      %v640 = vunpack.c.l.b16 %v616
      %v641 = vunpack.c.l.b16 %v617
      %v642 = vpack.c.b16 %v631, %v630
      %v643 = vpack.c.b16 %v633, %v632
      %v644 = vpack.c.b16 %v635, %v634
      %v645 = vpack.c.b16 %v637, %v636
      %v646 = vpack.c.b16 %v639, %v638
      %v647 = vpack.c.b16 %v641, %v640
      %vm654 = vcmask 785408
      %v655 = vsel %vm654, %v600, 0
      %v657 = vsel %vm654, %v516, 0
      %v659 = vsel %vm654, %v518, 0
      %v661 = vsel %vm654, %v520, 0
      %v663 = vsel %vm654, %v522, 0
      %v665 = vsel %vm654, %v524, 0
      %v667 = vsel %vm654, %v526, 0
      %v669 = vsel %vm654, %v528, 0
      %v671 = vsel %vm654, %v530, 0
      %v673 = vsel %vm654, %v532, 0
      %v675 = vsel %vm654, %v534, 0
      %v677 = vsel %vm654, %v536, 0
      %v679 = vsel %vm654, %v602, 0
      %v681 = vsel %vm654, %v604, 0
      %683 = vmatpush.bf16.msra.mxu0 0
      %684 = vmatpush.bf16.msra.mxu0 0
      %685 = vmatpush.bf16.msra.mxu0 %v647
      %686 = vmatpush.bf16.msra.mxu0 %v646
      %687 = vmatpush.bf16.msra.mxu0 %v645
      %688 = vmatpush.bf16.msra.mxu0 %v644
      %689 = vmatpush.bf16.msra.mxu0 %v643
      %690 = vmatpush.bf16.msra.mxu0 %v642
      %691 = vmatmul.bf16.gmra.mxu0 %v655
      %v692 = vpop.f32.mrf.mxu0
      %v693 = vadd.f32 0.0, %v692
      %v694 = vpop.f32.mrf.mxu0
      %v695 = vadd.f32 0.0, %v694
      %696 = vmatmul.bf16.gmra.mxu0 %v657
      %v697 = vpop.f32.mrf.mxu0
      %v698 = vadd.f32 0.0, %v697
      %v699 = vpop.f32.mrf.mxu0
      %v700 = vadd.f32 0.0, %v699
      %701 = vmatmul.bf16.gmra.mxu0 %v659
      %v702 = vpop.f32.mrf.mxu0
      %v703 = vadd.f32 0.0, %v702
      %v704 = vpop.f32.mrf.mxu0
      %v705 = vadd.f32 0.0, %v704
      %706 = vmatmul.bf16.gmra.mxu0 %v661
      %v707 = vpop.f32.mrf.mxu0
      %v708 = vadd.f32 0.0, %v707
      %v709 = vpop.f32.mrf.mxu0
      %v710 = vadd.f32 0.0, %v709
      %711 = vmatmul.bf16.gmra.mxu0 %v663
      %v712 = vpop.f32.mrf.mxu0
      %v713 = vadd.f32 0.0, %v712
      %v714 = vpop.f32.mrf.mxu0
      %v715 = vadd.f32 0.0, %v714
      %716 = vmatmul.bf16.gmra.mxu0 %v665
      %v717 = vpop.f32.mrf.mxu0
      %v718 = vadd.f32 0.0, %v717
      %v719 = vpop.f32.mrf.mxu0
      %v720 = vadd.f32 0.0, %v719
      %721 = vmatmul.bf16.gmra.mxu0 %v667
      %v722 = vpop.f32.mrf.mxu0
      %v723 = vadd.f32 0.0, %v722
      %v724 = vpop.f32.mrf.mxu0
      %v725 = vadd.f32 0.0, %v724
      %726 = vmatmul.bf16.gmra.mxu0 %v669
      %v727 = vpop.f32.mrf.mxu0
      %v728 = vadd.f32 0.0, %v727
      %v729 = vpop.f32.mrf.mxu0
      %v730 = vadd.f32 0.0, %v729
      %731 = vmatmul.bf16.gmra.mxu0 %v671
      %v732 = vpop.f32.mrf.mxu0
      %v733 = vadd.f32 0.0, %v732
      %v734 = vpop.f32.mrf.mxu0
      %v735 = vadd.f32 0.0, %v734
      %736 = vmatmul.bf16.gmra.mxu0 %v673
      %v737 = vpop.f32.mrf.mxu0
      %v738 = vadd.f32 0.0, %v737
      %v739 = vpop.f32.mrf.mxu0
      %v740 = vadd.f32 0.0, %v739
      %741 = vmatmul.bf16.gmra.mxu0 %v675
      %v742 = vpop.f32.mrf.mxu0
      %v743 = vadd.f32 0.0, %v742
      %v744 = vpop.f32.mrf.mxu0
      %v745 = vadd.f32 0.0, %v744
      %746 = vmatmul.bf16.gmra.mxu0 %v677
      %v747 = vpop.f32.mrf.mxu0
      %v748 = vadd.f32 0.0, %v747
      %v749 = vpop.f32.mrf.mxu0
      %v750 = vadd.f32 0.0, %v749
      %751 = vmatmul.bf16.gmra.mxu0 %v679
      %v752 = vpop.f32.mrf.mxu0
      %v753 = vadd.f32 0.0, %v752
      %v754 = vpop.f32.mrf.mxu0
      %v755 = vadd.f32 0.0, %v754
      %756 = vmatmul.bf16.gmra.mxu0 %v681
      %v757 = vpop.f32.mrf.mxu0
      %v758 = vadd.f32 0.0, %v757
      %v759 = vpop.f32.mrf.mxu0
      %v760 = vadd.f32 0.0, %v759
      %761 = vdwg.mxu0
      %v774 = vunpack.c.l.b16 %v539
      %v775 = vunpack.c.l.b16 %v540
      %v776 = vunpack.c.l.b16 %v541
      %v777 = vunpack.c.l.b16 %v542
      %v778 = vunpack.c.l.b16 %v543
      %v779 = vunpack.c.l.b16 %v544
      %v780 = vunpack.c.l.b16 %v545
      %v781 = vunpack.c.l.b16 %v546
      %v782 = vunpack.c.l.b16 %v547
      %v783 = vunpack.c.l.b16 %v548
      %v784 = vunpack.c.l.b16 %v549
      %v785 = vunpack.c.l.b16 %v550
      %v786 = vpack.c.b16 %v775, %v774
      %v787 = vpack.c.b16 %v777, %v776
      %v788 = vpack.c.b16 %v779, %v778
      %v789 = vpack.c.b16 %v781, %v780
      %v790 = vpack.c.b16 %v783, %v782
      %v791 = vpack.c.b16 %v785, %v784
      %v798 = vsel %vm654, %v512, 0
      %v800 = vsel %vm654, %v514, 0
      %v802 = vsel %vm654, %v538, 0
      %804 = vmatpush.bf16.msra.mxu0 0
      %805 = vmatpush.bf16.msra.mxu0 0
      %806 = vmatpush.bf16.msra.mxu0 %v791
      %807 = vmatpush.bf16.msra.mxu0 %v790
      %808 = vmatpush.bf16.msra.mxu0 %v789
      %809 = vmatpush.bf16.msra.mxu0 %v788
      %810 = vmatpush.bf16.msra.mxu0 %v787
      %811 = vmatpush.bf16.msra.mxu0 %v786
      %812 = vmatmul.bf16.gmra.mxu0 %v798
      %v813 = vpop.f32.mrf.mxu0
      %v814 = vadd.f32 %v693, %v813
      %v815 = vpop.f32.mrf.mxu0
      %v816 = vadd.f32 %v695, %v815
      %817 = vmatmul.bf16.gmra.mxu0 %v800
      %v818 = vpop.f32.mrf.mxu0
      %v819 = vadd.f32 %v698, %v818
      %v820 = vpop.f32.mrf.mxu0
      %v821 = vadd.f32 %v700, %v820
      %822 = vmatmul.bf16.gmra.mxu0 %v657
      %v823 = vpop.f32.mrf.mxu0
      %v824 = vadd.f32 %v703, %v823
      %v825 = vpop.f32.mrf.mxu0
      %v826 = vadd.f32 %v705, %v825
      %827 = vmatmul.bf16.gmra.mxu0 %v659
      %v828 = vpop.f32.mrf.mxu0
      %v829 = vadd.f32 %v708, %v828
      %v830 = vpop.f32.mrf.mxu0
      %v831 = vadd.f32 %v710, %v830
      %832 = vmatmul.bf16.gmra.mxu0 %v661
      %v833 = vpop.f32.mrf.mxu0
      %v834 = vadd.f32 %v713, %v833
      %v835 = vpop.f32.mrf.mxu0
      %v836 = vadd.f32 %v715, %v835
      %837 = vmatmul.bf16.gmra.mxu0 %v663
      %v838 = vpop.f32.mrf.mxu0
      %v839 = vadd.f32 %v718, %v838
      %v840 = vpop.f32.mrf.mxu0
      %v841 = vadd.f32 %v720, %v840
      %842 = vmatmul.bf16.gmra.mxu0 %v665
      %v843 = vpop.f32.mrf.mxu0
      %v844 = vadd.f32 %v723, %v843
      %v845 = vpop.f32.mrf.mxu0
      %v846 = vadd.f32 %v725, %v845
      %847 = vmatmul.bf16.gmra.mxu0 %v667
      %v848 = vpop.f32.mrf.mxu0
      %v849 = vadd.f32 %v728, %v848
      %v850 = vpop.f32.mrf.mxu0
      %v851 = vadd.f32 %v730, %v850
      %852 = vmatmul.bf16.gmra.mxu0 %v669
      %v853 = vpop.f32.mrf.mxu0
      %v854 = vadd.f32 %v733, %v853
      %v855 = vpop.f32.mrf.mxu0
      %v856 = vadd.f32 %v735, %v855
      %857 = vmatmul.bf16.gmra.mxu0 %v671
      %v858 = vpop.f32.mrf.mxu0
      %v859 = vadd.f32 %v738, %v858
      %v860 = vpop.f32.mrf.mxu0
      %v861 = vadd.f32 %v740, %v860
      %862 = vmatmul.bf16.gmra.mxu0 %v673
      %v863 = vpop.f32.mrf.mxu0
      %v864 = vadd.f32 %v743, %v863
      %v865 = vpop.f32.mrf.mxu0
      %v866 = vadd.f32 %v745, %v865
      %867 = vmatmul.bf16.gmra.mxu0 %v675
      %v868 = vpop.f32.mrf.mxu0
      %v869 = vadd.f32 %v748, %v868
      %v870 = vpop.f32.mrf.mxu0
      %v871 = vadd.f32 %v750, %v870
      %872 = vmatmul.bf16.gmra.mxu0 %v677
      %v873 = vpop.f32.mrf.mxu0
      %v874 = vadd.f32 %v753, %v873
      %v875 = vpop.f32.mrf.mxu0
      %v876 = vadd.f32 %v755, %v875
      %877 = vmatmul.bf16.gmra.mxu0 %v802
      %v878 = vpop.f32.mrf.mxu0
      %v879 = vadd.f32 %v758, %v878
      %v880 = vpop.f32.mrf.mxu0
      %v881 = vadd.f32 %v760, %v880
      %882 = vdwg.mxu0
      %v883 = vld [vmem:[%s165 + $0x10] sm:$0xf]
      %v884 = vld [vmem:[%s165 + $0x14] sm:$0xf]
      %v885 = vld [vmem:[%s165 + $0x18] sm:$0xf]
      %v886 = vld [vmem:[%s165 + $0x1c] sm:$0xf]
      %v887 = vld [vmem:[%s165 + $0x20] sm:$0xf]
      %v888 = vld [vmem:[%s165 + $0x24] sm:$0xf]
      %v889 = vld [vmem:[%s165 + $0x28] sm:$0xf]
      %v890 = vld [vmem:[%s165 + $0x2c] sm:$0xf]
      %v891 = vld [vmem:[%s165 + $0x30] sm:$0xf]
      %v892 = vld [vmem:[%s165 + $0x34] sm:$0xf]
      %v893 = vld [vmem:[%s165 + $0x38] sm:$0xf]
      %v894 = vld [vmem:[%s165 + $0x3c] sm:$0xf]
      %v895 = vld [vmem:[%s165 + $0x40] sm:$0xf]
      %v896 = vld [vmem:[%s165 + $0x44] sm:$0xf]
      %v897 = vld [vmem:[%s165 + $0x48] sm:$0xf]
      %v898 = vld [vmem:[%s165 + $0x4c] sm:$0xf]
      %v899 = vld [vmem:[%s165 + $0x50] sm:$0xf]
      %v900 = vld [vmem:[%s165 + $0x54] sm:$0xf]
      %v901 = vld [vmem:[%s165 + $0x58] sm:$0xf]
      %v902 = vld [vmem:[%s165 + $0x5c] sm:$0xf]
      %v903 = vld [vmem:[%s165 + $0x60] sm:$0xf]
      %v904 = vld [vmem:[%s165 + $0x64] sm:$0xf]
      %v905 = vld [vmem:[%s165 + $0x68] sm:$0xf]
      %v906 = vld [vmem:[%s165 + $0x6c] sm:$0xf]
      %v907 = vld [vmem:[%s165 + $0x70] sm:$0xf]
      %v908 = vld [vmem:[%s165 + $0x74] sm:$0xf]
      %v909 = vld [vmem:[%s165 + $0x78] sm:$0xf]
      %v910 = vld [vmem:[%s165 + $0x7c] sm:$0xf]
      %v911 = vld [vmem:[%s165 + $0x80] sm:$0x1]
      %v912 = vld [vmem:[%s165 + $0x10] sm:$0xe]
      %v941 = vunpack.c.l.b16 %v883
      %v942 = vunpack.c.l.b16 %v884
      %v943 = vunpack.c.l.b16 %v885
      %v944 = vunpack.c.l.b16 %v886
      %v945 = vunpack.c.l.b16 %v887
      %v946 = vunpack.c.l.b16 %v888
      %v947 = vunpack.c.l.b16 %v889
      %v948 = vunpack.c.l.b16 %v890
      %v949 = vunpack.c.l.b16 %v891
      %v950 = vunpack.c.l.b16 %v892
      %v951 = vunpack.c.l.b16 %v893
      %v952 = vunpack.c.l.b16 %v894
      %v953 = vunpack.c.l.b16 %v895
      %v954 = vunpack.c.l.b16 %v896
      %v955 = vunpack.c.l.b16 %v897
      %v956 = vunpack.c.l.b16 %v898
      %v957 = vunpack.c.l.b16 %v899
      %v958 = vunpack.c.l.b16 %v900
      %v959 = vunpack.c.l.b16 %v901
      %v960 = vunpack.c.l.b16 %v902
      %v961 = vunpack.c.l.b16 %v903
      %v962 = vunpack.c.l.b16 %v904
      %v963 = vunpack.c.l.b16 %v905
      %v964 = vunpack.c.l.b16 %v906
      %v965 = vunpack.c.l.b16 %v907
      %v966 = vunpack.c.l.b16 %v908
      %v967 = vunpack.c.l.b16 %v909
      %v968 = vunpack.c.l.b16 %v910
      %v969 = vpack.c.b16 %v942, %v941
      %v970 = vpack.c.b16 %v944, %v943
      %v971 = vpack.c.b16 %v946, %v945
      %v972 = vpack.c.b16 %v948, %v947
      %v973 = vpack.c.b16 %v950, %v949
      %v974 = vpack.c.b16 %v952, %v951
      %v975 = vpack.c.b16 %v954, %v953
      %v976 = vpack.c.b16 %v956, %v955
      %v977 = vpack.c.b16 %v958, %v957
      %v978 = vpack.c.b16 %v960, %v959
      %v979 = vpack.c.b16 %v962, %v961
      %v980 = vpack.c.b16 %v964, %v963
      %v981 = vpack.c.b16 %v966, %v965
      %v982 = vpack.c.b16 %v968, %v967
      %v984 = vunpack.c.l.b16 %v911
      %v985 = vpack.c.b16 %v984, %v984
      %v987 = vshrl.u32 %v969, 16
      %v989 = vshll.u32 %v969, 16
      %v991 = vrot.slane %v989, 1
      %v992 = vor.u32 %v987, %v991
      %v994 = vshll.u32 %v970, 16
      %v996 = vrot.slane %v994, 1
      %v997 = vsel %vm275, %v992, %v996
      %v998 = vshrl.u32 %v970, 16
      %v1000 = vor.u32 %v998, %v996
      %v1002 = vshll.u32 %v971, 16
      %v1004 = vrot.slane %v1002, 1
      %v1005 = vsel %vm275, %v1000, %v1004
      %v1006 = vshrl.u32 %v971, 16
      %v1008 = vor.u32 %v1006, %v1004
      %v1010 = vshll.u32 %v972, 16
      %v1012 = vrot.slane %v1010, 1
      %v1013 = vsel %vm275, %v1008, %v1012
      %v1014 = vshrl.u32 %v972, 16
      %v1016 = vor.u32 %v1014, %v1012
      %v1018 = vshll.u32 %v973, 16
      %v1020 = vrot.slane %v1018, 1
      %v1021 = vsel %vm275, %v1016, %v1020
      %v1022 = vshrl.u32 %v973, 16
      %v1024 = vor.u32 %v1022, %v1020
      %v1026 = vshll.u32 %v974, 16
      %v1028 = vrot.slane %v1026, 1
      %v1029 = vsel %vm275, %v1024, %v1028
      %v1030 = vshrl.u32 %v974, 16
      %v1032 = vor.u32 %v1030, %v1028
      %v1034 = vshll.u32 %v975, 16
      %v1036 = vrot.slane %v1034, 1
      %v1037 = vsel %vm275, %v1032, %v1036
      %v1038 = vshrl.u32 %v975, 16
      %v1040 = vor.u32 %v1038, %v1036
      %v1042 = vshll.u32 %v976, 16
      %v1044 = vrot.slane %v1042, 1
      %v1045 = vsel %vm275, %v1040, %v1044
      %v1046 = vshrl.u32 %v976, 16
      %v1048 = vor.u32 %v1046, %v1044
      %v1050 = vshll.u32 %v977, 16
      %v1052 = vrot.slane %v1050, 1
      %v1053 = vsel %vm275, %v1048, %v1052
      %v1054 = vshrl.u32 %v977, 16
      %v1056 = vor.u32 %v1054, %v1052
      %v1058 = vshll.u32 %v978, 16
      %v1060 = vrot.slane %v1058, 1
      %v1061 = vsel %vm275, %v1056, %v1060
      %v1062 = vshrl.u32 %v978, 16
      %v1064 = vor.u32 %v1062, %v1060
      %v1066 = vshll.u32 %v979, 16
      %v1068 = vrot.slane %v1066, 1
      %v1069 = vsel %vm275, %v1064, %v1068
      %v1070 = vshrl.u32 %v979, 16
      %v1072 = vor.u32 %v1070, %v1068
      %v1074 = vshll.u32 %v980, 16
      %v1076 = vrot.slane %v1074, 1
      %v1077 = vsel %vm275, %v1072, %v1076
      %v1078 = vshrl.u32 %v980, 16
      %v1080 = vor.u32 %v1078, %v1076
      %v1082 = vshll.u32 %v981, 16
      %v1084 = vrot.slane %v1082, 1
      %v1085 = vsel %vm275, %v1080, %v1084
      %v1086 = vshrl.u32 %v981, 16
      %v1088 = vor.u32 %v1086, %v1084
      %v1090 = vshll.u32 %v982, 16
      %v1092 = vrot.slane %v1090, 1
      %v1093 = vsel %vm275, %v1088, %v1092
      %v1094 = vshrl.u32 %v982, 16
      %v1096 = vor.u32 %v1094, %v1092
      %v1098 = vshll.u32 %v985, 16
      %v1100 = vrot.slane %v1098, 1
      %v1101 = vsel %vm275, %v1096, %v1100
      %1102 = vrot.lane.b32.xlu0 %v997, 32
      %v1103 = vpop.permute.xlu0 %1102
      %1104 = vrot.lane.b32.xlu0 %v1005, 32
      %v1105 = vpop.permute.xlu0 %1104
      %1106 = vrot.lane.b32.xlu0 %v1013, 32
      %v1107 = vpop.permute.xlu0 %1106
      %1108 = vrot.lane.b32.xlu0 %v1021, 32
      %v1109 = vpop.permute.xlu0 %1108
      %1110 = vrot.lane.b32.xlu0 %v1029, 32
      %v1111 = vpop.permute.xlu0 %1110
      %1112 = vrot.lane.b32.xlu0 %v1037, 32
      %v1113 = vpop.permute.xlu0 %1112
      %1114 = vrot.lane.b32.xlu0 %v1045, 32
      %v1115 = vpop.permute.xlu0 %1114
      %1116 = vrot.lane.b32.xlu0 %v1053, 32
      %v1117 = vpop.permute.xlu0 %1116
      %1118 = vrot.lane.b32.xlu0 %v1061, 32
      %v1119 = vpop.permute.xlu0 %1118
      %1120 = vrot.lane.b32.xlu0 %v1069, 32
      %v1121 = vpop.permute.xlu0 %1120
      %1122 = vrot.lane.b32.xlu0 %v1077, 32
      %v1123 = vpop.permute.xlu0 %1122
      %1124 = vrot.lane.b32.xlu0 %v1085, 32
      %v1125 = vpop.permute.xlu0 %1124
      %1126 = vrot.lane.b32.xlu0 %v1093, 32
      %v1127 = vpop.permute.xlu0 %1126
      %1128 = vrot.lane.b32.xlu0 %v1101, 32
      %v1129 = vpop.permute.xlu0 %1128
      %v1131 = vunpack.c.l.b16 %v912
      %v1132 = vpack.c.b16 %v942, %v1131
      %v1133 = vrot.slane %v1132, 1
      %v1134 = vrot.slane %v970, 1
      %v1135 = vsel %vm423, %v1133, %v1134
      %v1136 = vrot.slane %v971, 1
      %v1137 = vsel %vm423, %v1134, %v1136
      %v1138 = vrot.slane %v972, 1
      %v1139 = vsel %vm423, %v1136, %v1138
      %v1140 = vrot.slane %v973, 1
      %v1141 = vsel %vm423, %v1138, %v1140
      %v1142 = vrot.slane %v974, 1
      %v1143 = vsel %vm423, %v1140, %v1142
      %v1144 = vrot.slane %v975, 1
      %v1145 = vsel %vm423, %v1142, %v1144
      %v1146 = vrot.slane %v976, 1
      %v1147 = vsel %vm423, %v1144, %v1146
      %v1148 = vrot.slane %v977, 1
      %v1149 = vsel %vm423, %v1146, %v1148
      %v1150 = vrot.slane %v978, 1
      %v1151 = vsel %vm423, %v1148, %v1150
      %v1152 = vrot.slane %v979, 1
      %v1153 = vsel %vm423, %v1150, %v1152
      %v1154 = vrot.slane %v980, 1
      %v1155 = vsel %vm423, %v1152, %v1154
      %v1156 = vrot.slane %v981, 1
      %v1157 = vsel %vm423, %v1154, %v1156
      %v1158 = vrot.slane %v982, 1
      %v1159 = vsel %vm423, %v1156, %v1158
      %v1160 = vrot.slane %v985, 1
      %v1161 = vsel %vm423, %v1158, %v1160
      %1162 = vrot.lane.b32.xlu0 %v1135, 64
      %v1163 = vpop.permute.xlu0 %1162
      %1164 = vrot.lane.b32.xlu0 %v1137, 64
      %v1165 = vpop.permute.xlu0 %1164
      %1166 = vrot.lane.b32.xlu0 %v1139, 64
      %v1167 = vpop.permute.xlu0 %1166
      %1168 = vrot.lane.b32.xlu0 %v1141, 64
      %v1169 = vpop.permute.xlu0 %1168
      %1170 = vrot.lane.b32.xlu0 %v1143, 64
      %v1171 = vpop.permute.xlu0 %1170
      %1172 = vrot.lane.b32.xlu0 %v1145, 64
      %v1173 = vpop.permute.xlu0 %1172
      %1174 = vrot.lane.b32.xlu0 %v1147, 64
      %v1175 = vpop.permute.xlu0 %1174
      %1176 = vrot.lane.b32.xlu0 %v1149, 64
      %v1177 = vpop.permute.xlu0 %1176
      %1178 = vrot.lane.b32.xlu0 %v1151, 64
      %v1179 = vpop.permute.xlu0 %1178
      %1180 = vrot.lane.b32.xlu0 %v1153, 64
      %v1181 = vpop.permute.xlu0 %1180
      %1182 = vrot.lane.b32.xlu0 %v1155, 64
      %v1183 = vpop.permute.xlu0 %1182
      %1184 = vrot.lane.b32.xlu0 %v1157, 64
      %v1185 = vpop.permute.xlu0 %1184
      %1186 = vrot.lane.b32.xlu0 %v1159, 64
      %v1187 = vpop.permute.xlu0 %1186
      %1188 = vrot.lane.b32.xlu0 %v1161, 64
      %v1189 = vpop.permute.xlu0 %1188
      %v1191 = vsel %vm481, %v969, %v1103
      %v1193 = vsel %vm481, %v970, %v1105
      %v1195 = vsel %vm481, %v971, %v1107
      %v1197 = vsel %vm481, %v972, %v1109
      %v1199 = vsel %vm481, %v973, %v1111
      %v1201 = vsel %vm481, %v974, %v1113
      %v1203 = vsel %vm481, %v975, %v1115
      %v1205 = vsel %vm481, %v976, %v1117
      %v1207 = vsel %vm481, %v977, %v1119
      %v1209 = vsel %vm481, %v978, %v1121
      %v1211 = vsel %vm481, %v979, %v1123
      %v1213 = vsel %vm481, %v980, %v1125
      %v1215 = vsel %vm481, %v981, %v1127
      %v1217 = vsel %vm481, %v982, %v1129
      %v1219 = vsel %vm510, %v1191, %v1163
      %v1221 = vsel %vm510, %v1193, %v1165
      %v1223 = vsel %vm510, %v1195, %v1167
      %v1225 = vsel %vm510, %v1197, %v1169
      %v1227 = vsel %vm510, %v1199, %v1171
      %v1229 = vsel %vm510, %v1201, %v1173
      %v1231 = vsel %vm510, %v1203, %v1175
      %v1233 = vsel %vm510, %v1205, %v1177
      %v1235 = vsel %vm510, %v1207, %v1179
      %v1237 = vsel %vm510, %v1209, %v1181
      %v1239 = vsel %vm510, %v1211, %v1183
      %v1241 = vsel %vm510, %v1213, %v1185
      %v1243 = vsel %vm510, %v1215, %v1187
      %v1245 = vsel %vm510, %v1217, %v1189
      %s1246 = scalar_lea.vmem %s1, 96
      %v1247 = vld [vmem:[%s1246] sm:$0xf]
      %v1248 = vld [vmem:[%s1246 + $0x4] sm:$0xf]
      %v1249 = vld [vmem:[%s1246 + $0x8] sm:$0xf]
      %v1250 = vld [vmem:[%s1246 + $0xc] sm:$0xf]
      %v1251 = vld [vmem:[%s1246 + $0x10] sm:$0xf]
      %v1252 = vld [vmem:[%s1246 + $0x14] sm:$0xf]
      %v1253 = vld [vmem:[%s1246 + $0x18] sm:$0xf]
      %v1254 = vld [vmem:[%s1246 + $0x1c] sm:$0xf]
      %v1255 = vld [vmem:[%s1246 + $0x20] sm:$0xf]
      %v1256 = vld [vmem:[%s1246 + $0x24] sm:$0xf]
      %v1257 = vld [vmem:[%s1246 + $0x28] sm:$0xf]
      %v1258 = vld [vmem:[%s1246 + $0x2c] sm:$0xf]
      %v1271 = vunpack.c.l.b16 %v1247
      %v1272 = vunpack.c.l.b16 %v1248
      %v1273 = vunpack.c.l.b16 %v1249
      %v1274 = vunpack.c.l.b16 %v1250
      %v1275 = vunpack.c.l.b16 %v1251
      %v1276 = vunpack.c.l.b16 %v1252
      %v1277 = vunpack.c.l.b16 %v1253
      %v1278 = vunpack.c.l.b16 %v1254
      %v1279 = vunpack.c.l.b16 %v1255
      %v1280 = vunpack.c.l.b16 %v1256
      %v1281 = vunpack.c.l.b16 %v1257
      %v1282 = vunpack.c.l.b16 %v1258
      %v1283 = vpack.c.b16 %v1272, %v1271
      %v1284 = vpack.c.b16 %v1274, %v1273
      %v1285 = vpack.c.b16 %v1276, %v1275
      %v1286 = vpack.c.b16 %v1278, %v1277
      %v1287 = vpack.c.b16 %v1280, %v1279
      %v1288 = vpack.c.b16 %v1282, %v1281
      %v1295 = vsel %vm654, %v1219, 0
      %v1297 = vsel %vm654, %v1221, 0
      %v1299 = vsel %vm654, %v1223, 0
      %v1301 = vsel %vm654, %v1225, 0
      %v1303 = vsel %vm654, %v1227, 0
      %v1305 = vsel %vm654, %v1229, 0
      %v1307 = vsel %vm654, %v1231, 0
      %v1309 = vsel %vm654, %v1233, 0
      %v1311 = vsel %vm654, %v1235, 0
      %v1313 = vsel %vm654, %v1237, 0
      %v1315 = vsel %vm654, %v1239, 0
      %v1317 = vsel %vm654, %v1241, 0
      %v1319 = vsel %vm654, %v1243, 0
      %v1321 = vsel %vm654, %v1245, 0
      %1323 = vmatpush.bf16.msra.mxu0 0
      %1324 = vmatpush.bf16.msra.mxu0 0
      %1325 = vmatpush.bf16.msra.mxu0 %v1288
      %1326 = vmatpush.bf16.msra.mxu0 %v1287
      %1327 = vmatpush.bf16.msra.mxu0 %v1286
      %1328 = vmatpush.bf16.msra.mxu0 %v1285
      %1329 = vmatpush.bf16.msra.mxu0 %v1284
      %1330 = vmatpush.bf16.msra.mxu0 %v1283
      %1331 = vmatmul.bf16.gmra.mxu0 %v1295
      %v1332 = vpop.f32.mrf.mxu0
      %v1333 = vadd.f32 0.0, %v1332
      %v1334 = vpop.f32.mrf.mxu0
      %v1335 = vadd.f32 0.0, %v1334
      %1336 = vmatmul.bf16.gmra.mxu0 %v1297
      %v1337 = vpop.f32.mrf.mxu0
      %v1338 = vadd.f32 0.0, %v1337
      %v1339 = vpop.f32.mrf.mxu0
      %v1340 = vadd.f32 0.0, %v1339
      %1341 = vmatmul.bf16.gmra.mxu0 %v1299
      %v1342 = vpop.f32.mrf.mxu0
      %v1343 = vadd.f32 0.0, %v1342
      %v1344 = vpop.f32.mrf.mxu0
      %v1345 = vadd.f32 0.0, %v1344
      %1346 = vmatmul.bf16.gmra.mxu0 %v1301
      %v1347 = vpop.f32.mrf.mxu0
      %v1348 = vadd.f32 0.0, %v1347
      %v1349 = vpop.f32.mrf.mxu0
      %v1350 = vadd.f32 0.0, %v1349
      %1351 = vmatmul.bf16.gmra.mxu0 %v1303
      %v1352 = vpop.f32.mrf.mxu0
      %v1353 = vadd.f32 0.0, %v1352
      %v1354 = vpop.f32.mrf.mxu0
      %v1355 = vadd.f32 0.0, %v1354
      %1356 = vmatmul.bf16.gmra.mxu0 %v1305
      %v1357 = vpop.f32.mrf.mxu0
      %v1358 = vadd.f32 0.0, %v1357
      %v1359 = vpop.f32.mrf.mxu0
      %v1360 = vadd.f32 0.0, %v1359
      %1361 = vmatmul.bf16.gmra.mxu0 %v1307
      %v1362 = vpop.f32.mrf.mxu0
      %v1363 = vadd.f32 0.0, %v1362
      %v1364 = vpop.f32.mrf.mxu0
      %v1365 = vadd.f32 0.0, %v1364
      %1366 = vmatmul.bf16.gmra.mxu0 %v1309
      %v1367 = vpop.f32.mrf.mxu0
      %v1368 = vadd.f32 0.0, %v1367
      %v1369 = vpop.f32.mrf.mxu0
      %v1370 = vadd.f32 0.0, %v1369
      %1371 = vmatmul.bf16.gmra.mxu0 %v1311
      %v1372 = vpop.f32.mrf.mxu0
      %v1373 = vadd.f32 0.0, %v1372
      %v1374 = vpop.f32.mrf.mxu0
      %v1375 = vadd.f32 0.0, %v1374
      %1376 = vmatmul.bf16.gmra.mxu0 %v1313
      %v1377 = vpop.f32.mrf.mxu0
      %v1378 = vadd.f32 0.0, %v1377
      %v1379 = vpop.f32.mrf.mxu0
      %v1380 = vadd.f32 0.0, %v1379
      %1381 = vmatmul.bf16.gmra.mxu0 %v1315
      %v1382 = vpop.f32.mrf.mxu0
      %v1383 = vadd.f32 0.0, %v1382
      %v1384 = vpop.f32.mrf.mxu0
      %v1385 = vadd.f32 0.0, %v1384
      %1386 = vmatmul.bf16.gmra.mxu0 %v1317
      %v1387 = vpop.f32.mrf.mxu0
      %v1388 = vadd.f32 0.0, %v1387
      %v1389 = vpop.f32.mrf.mxu0
      %v1390 = vadd.f32 0.0, %v1389
      %1391 = vmatmul.bf16.gmra.mxu0 %v1319
      %v1392 = vpop.f32.mrf.mxu0
      %v1393 = vadd.f32 0.0, %v1392
      %v1394 = vpop.f32.mrf.mxu0
      %v1395 = vadd.f32 0.0, %v1394
      %1396 = vmatmul.bf16.gmra.mxu0 %v1321
      %v1397 = vpop.f32.mrf.mxu0
      %v1398 = vadd.f32 0.0, %v1397
      %v1399 = vpop.f32.mrf.mxu0
      %v1400 = vadd.f32 0.0, %v1399
      %1401 = vdwg.mxu0
      %v1402 = vadd.f32 %v814, %v1333
      %v1403 = vadd.f32 %v816, %v1335
      %v1404 = vadd.f32 %v819, %v1338
      %v1405 = vadd.f32 %v821, %v1340
      %v1406 = vadd.f32 %v824, %v1343
      %v1407 = vadd.f32 %v826, %v1345
      %v1408 = vadd.f32 %v829, %v1348
      %v1409 = vadd.f32 %v831, %v1350
      %v1410 = vadd.f32 %v834, %v1353
      %v1411 = vadd.f32 %v836, %v1355
      %v1412 = vadd.f32 %v839, %v1358
      %v1413 = vadd.f32 %v841, %v1360
      %v1414 = vadd.f32 %v844, %v1363
      %v1415 = vadd.f32 %v846, %v1365
      %v1416 = vadd.f32 %v849, %v1368
      %v1417 = vadd.f32 %v851, %v1370
      %v1418 = vadd.f32 %v854, %v1373
      %v1419 = vadd.f32 %v856, %v1375
      %v1420 = vadd.f32 %v859, %v1378
      %v1421 = vadd.f32 %v861, %v1380
      %v1422 = vadd.f32 %v864, %v1383
      %v1423 = vadd.f32 %v866, %v1385
      %v1424 = vadd.f32 %v869, %v1388
      %v1425 = vadd.f32 %v871, %v1390
      %v1426 = vadd.f32 %v874, %v1393
      %v1427 = vadd.f32 %v876, %v1395
      %v1428 = vadd.f32 %v879, %v1398
      %v1429 = vadd.f32 %v881, %v1400
      %1430 = vst.msk [vmem:[#allocation2] sm:$0xff] %vm510, %v1402
      %1431 = vst.msk [vmem:[#allocation2 + $0x8] sm:$0xff] %vm510, %v1403
      %1432 = vst.msk [vmem:[#allocation2 + $0x10] sm:$0xff] %vm510, %v1404
      %1433 = vst.msk [vmem:[#allocation2 + $0x18] sm:$0xff] %vm510, %v1405
      %1434 = vst.msk [vmem:[#allocation2 + $0x20] sm:$0xff] %vm510, %v1406
      %1435 = vst.msk [vmem:[#allocation2 + $0x28] sm:$0xff] %vm510, %v1407
      %1436 = vst.msk [vmem:[#allocation2 + $0x30] sm:$0xff] %vm510, %v1408
      %1437 = vst.msk [vmem:[#allocation2 + $0x38] sm:$0xff] %vm510, %v1409
      %1438 = vst.msk [vmem:[#allocation2 + $0x40] sm:$0xff] %vm510, %v1410
      %1439 = vst.msk [vmem:[#allocation2 + $0x48] sm:$0xff] %vm510, %v1411
      %1440 = vst.msk [vmem:[#allocation2 + $0x50] sm:$0xff] %vm510, %v1412
      %1441 = vst.msk [vmem:[#allocation2 + $0x58] sm:$0xff] %vm510, %v1413
      %1442 = vst.msk [vmem:[#allocation2 + $0x60] sm:$0xff] %vm510, %v1414
      %1443 = vst.msk [vmem:[#allocation2 + $0x68] sm:$0xff] %vm510, %v1415
      %1444 = vst.msk [vmem:[#allocation2 + $0x70] sm:$0xff] %vm510, %v1416
      %1445 = vst.msk [vmem:[#allocation2 + $0x78] sm:$0xff] %vm510, %v1417
      %1446 = vst.msk [vmem:[#allocation2 + $0x80] sm:$0xff] %vm510, %v1418
      %1447 = vst.msk [vmem:[#allocation2 + $0x88] sm:$0xff] %vm510, %v1419
      %1448 = vst.msk [vmem:[#allocation2 + $0x90] sm:$0xff] %vm510, %v1420
      %1449 = vst.msk [vmem:[#allocation2 + $0x98] sm:$0xff] %vm510, %v1421
      %1450 = vst.msk [vmem:[#allocation2 + $0xa0] sm:$0xff] %vm510, %v1422
      %1451 = vst.msk [vmem:[#allocation2 + $0xa8] sm:$0xff] %vm510, %v1423
      %1452 = vst.msk [vmem:[#allocation2 + $0xb0] sm:$0xff] %vm510, %v1424
      %1453 = vst.msk [vmem:[#allocation2 + $0xb8] sm:$0xff] %vm510, %v1425
      %1454 = vst.msk [vmem:[#allocation2 + $0xc0] sm:$0xff] %vm510, %v1426
      %1455 = vst.msk [vmem:[#allocation2 + $0xc8] sm:$0xff] %vm510, %v1427
      %1456 = vst.msk [vmem:[#allocation2 + $0xd0] sm:$0xff] %vm510, %v1428
      %1457 = vst.msk [vmem:[#allocation2 + $0xd8] sm:$0xff] %vm510, %v1429
      %v1458 = vld [vmem:[%s2] sm:$0x1]
      %vm1459 = vcmask 519168
      %1460 = vst.msk [vmem:[%s170] sm:$0xf] %vm1459, 0
      %1461 = vst.msk [vmem:[%s170 + $0x4] sm:$0xf] %vm1459, 0
      %1462 = vst.msk [vmem:[%s170 + $0x8] sm:$0xf] %vm1459, 0
      %1463 = vst.msk [vmem:[%s170 + $0xc] sm:$0xf] %vm1459, 0
      %1464 = vst.msk [vmem:[%s170 + $0x10] sm:$0xf] %vm1459, 0
      %1465 = vst.msk [vmem:[%s170 + $0x14] sm:$0xf] %vm1459, 0
      %1466 = vst.msk [vmem:[%s170 + $0x18] sm:$0xf] %vm1459, 0
      %1467 = vst.msk [vmem:[%s170 + $0x1c] sm:$0xf] %vm1459, 0
      %1468 = vst.msk [vmem:[%s170 + $0x20] sm:$0xf] %vm1459, 0
      %1469 = vst.msk [vmem:[%s170 + $0x24] sm:$0xf] %vm1459, 0
      %1470 = vst.msk [vmem:[%s170 + $0x28] sm:$0xf] %vm1459, 0
      %1471 = vst.msk [vmem:[%s170 + $0x2c] sm:$0xf] %vm1459, 0
      %vm1472 = vcmask 516096
      %1473 = vst.msk [vmem:[%s170 + $0x30] sm:$0x1] %vm1472, 0
      %v1474 = vld [vmem:[#allocation2] ss:$2 sm:$0x7f]
      %s1475 = scalar_lea.vmem [#allocation2], 1
      %v1476 = vld [vmem:[%s1475] ss:$2 sm:$0x7f]
      %s1477 = scalar_lea.vmem [#allocation2], 16
      %v1478 = vld [vmem:[%s1477] ss:$2 sm:$0x7f]
      %s1479 = scalar_lea.vmem [#allocation2], 17
      %v1480 = vld [vmem:[%s1479] ss:$2 sm:$0x7f]
      %v1481 = vmax.f32 %v1474, %v1476
      %v1482 = vmax.f32 %v1478, %v1480
      %v1483 = vmax.f32 %v1481, %v1482
      %v1485 = vperm.slane %v1458, 0
      %v1487 = vadd.f32 %v1483, %v1485
      %v1488 = vmax.f32 %v1487, 0.0
      %v1489 = vpack.c.bf16 %v1488, %v1488
      %v1491 = vrot.slane %v1489, 7
      %v1492 = vrot.slane %v1491, 4
      %vm1495 = vcmask 519169
      %1496 = vst.msk [vmem:[%s170 + $0x4] sm:$0xe] %vm1495, %v1491
      %vm1497 = vcmask 516096
      %vm1498 = vsmask.f32 256
      %vm1499 = vmand %vm1497, %vm1498
      %v1500 = vld [vmem:[%s170 + $0x8] sm:$0x1]
      %v1501 = vsel %vm1499, %v1492, %v1500
      %1502 = vst [vmem:[%s170 + $0x8] sm:$0x1] %v1501
      %s1503 = scalar_lea.vmem [#allocation2], 32
      %v1504 = vld [vmem:[%s1503] ss:$2 sm:$0x7f]
      %s1505 = scalar_lea.vmem [#allocation2], 33
      %v1506 = vld [vmem:[%s1505] ss:$2 sm:$0x7f]
      %s1507 = scalar_lea.vmem [#allocation2], 48
      %v1508 = vld [vmem:[%s1507] ss:$2 sm:$0x7f]
      %s1509 = scalar_lea.vmem [#allocation2], 49
      %v1510 = vld [vmem:[%s1509] ss:$2 sm:$0x7f]
      %v1511 = vmax.f32 %v1504, %v1506
      %v1512 = vmax.f32 %v1508, %v1510
      %v1513 = vmax.f32 %v1511, %v1512
      %v1514 = vadd.f32 %v1513, %v1485
      %v1515 = vmax.f32 %v1514, 0.0
      %v1516 = vpack.c.bf16 %v1515, %v1515
      %v1518 = vshrl.u32 %v1516, 16
      %v1520 = vrot.slane %v1518, 6
      %v1521 = vshll.u32 %v1516, 16
      %v1523 = vrot.slane %v1521, 7
      %v1524 = vor.u32 %v1520, %v1523
      %v1525 = vrot.slane %v1524, 4
      %vm1528 = vcmask 519169
      %vm1529 = vsmask.f32 7942
      %vm1530 = vmand %vm1528, %vm1529
      %v1531 = vld [vmem:[%s170 + $0x8] sm:$0xe]
      %v1532 = vsel %vm1530, %v1524, %v1531
      %1533 = vst [vmem:[%s170 + $0x8] sm:$0xe] %v1532
      %1534 = vst.msk [vmem:[%s170 + $0xc] sm:$0x1] %vm1472, %v1525
      %s1535 = scalar_lea.vmem [#allocation2], 64
      %v1536 = vld [vmem:[%s1535] ss:$2 sm:$0x7f]
      %s1537 = scalar_lea.vmem [#allocation2], 65
      %v1538 = vld [vmem:[%s1537] ss:$2 sm:$0x7f]
      %s1539 = scalar_lea.vmem [#allocation2], 80
      %v1540 = vld [vmem:[%s1539] ss:$2 sm:$0x7f]
      %s1541 = scalar_lea.vmem [#allocation2], 81
      %v1542 = vld [vmem:[%s1541] ss:$2 sm:$0x7f]
      %v1543 = vmax.f32 %v1536, %v1538
      %v1544 = vmax.f32 %v1540, %v1542
      %v1545 = vmax.f32 %v1543, %v1544
      %v1546 = vadd.f32 %v1545, %v1485
      %v1547 = vmax.f32 %v1546, 0.0
      %v1548 = vpack.c.bf16 %v1547, %v1547
      %v1550 = vrot.slane %v1548, 6
      %v1551 = vrot.slane %v1550, 4
      %vm1554 = vcmask 519170
      %1555 = vst.msk [vmem:[%s170 + $0xc] sm:$0xc] %vm1554, %v1550
      %vm1556 = vcmask 517120
      %vm1557 = vsmask.f32 1280
      %vm1558 = vmand %vm1556, %vm1557
      %v1559 = vld [vmem:[%s170 + $0x10] sm:$0x3]
      %v1560 = vsel %vm1558, %v1551, %v1559
      %1561 = vst [vmem:[%s170 + $0x10] sm:$0x3] %v1560
      %s1562 = scalar_lea.vmem [#allocation2], 96
      %v1563 = vld [vmem:[%s1562] ss:$2 sm:$0x7f]
      %s1564 = scalar_lea.vmem [#allocation2], 97
      %v1565 = vld [vmem:[%s1564] ss:$2 sm:$0x7f]
      %s1566 = scalar_lea.vmem [#allocation2], 112
      %v1567 = vld [vmem:[%s1566] ss:$2 sm:$0x7f]
      %s1568 = scalar_lea.vmem [#allocation2], 113
      %v1569 = vld [vmem:[%s1568] ss:$2 sm:$0x7f]
      %v1570 = vmax.f32 %v1563, %v1565
      %v1571 = vmax.f32 %v1567, %v1569
      %v1572 = vmax.f32 %v1570, %v1571
      %v1573 = vadd.f32 %v1572, %v1485
      %v1574 = vmax.f32 %v1573, 0.0
      %v1575 = vpack.c.bf16 %v1574, %v1574
      %v1577 = vshrl.u32 %v1575, 16
      %v1579 = vrot.slane %v1577, 5
      %v1580 = vshll.u32 %v1575, 16
      %v1582 = vrot.slane %v1580, 6
      %v1583 = vor.u32 %v1579, %v1582
      %v1584 = vrot.slane %v1583, 4
      %vm1587 = vcmask 519170
      %vm1588 = vsmask.f32 7946
      %vm1589 = vmand %vm1587, %vm1588
      %v1590 = vld [vmem:[%s170 + $0x10] sm:$0xc]
      %v1591 = vsel %vm1589, %v1583, %v1590
      %1592 = vst [vmem:[%s170 + $0x10] sm:$0xc] %v1591
      %vm1593 = vcmask 517120
      %1594 = vst.msk [vmem:[%s170 + $0x14] sm:$0x3] %vm1593, %v1584
      %s1595 = scalar_lea.vmem [#allocation2], 128
      %v1596 = vld [vmem:[%s1595] ss:$2 sm:$0x7f]
      %s1597 = scalar_lea.vmem [#allocation2], 129
      %v1598 = vld [vmem:[%s1597] ss:$2 sm:$0x7f]
      %s1599 = scalar_lea.vmem [#allocation2], 144
      %v1600 = vld [vmem:[%s1599] ss:$2 sm:$0x7f]
      %s1601 = scalar_lea.vmem [#allocation2], 145
      %v1602 = vld [vmem:[%s1601] ss:$2 sm:$0x7f]
      %v1603 = vmax.f32 %v1596, %v1598
      %v1604 = vmax.f32 %v1600, %v1602
      %v1605 = vmax.f32 %v1603, %v1604
      %v1606 = vadd.f32 %v1605, %v1485
      %v1607 = vmax.f32 %v1606, 0.0
      %v1608 = vpack.c.bf16 %v1607, %v1607
      %v1610 = vrot.slane %v1608, 5
      %v1611 = vrot.slane %v1610, 4
      %vm1614 = vcmask 519171
      %1615 = vst.msk [vmem:[%s170 + $0x14] sm:$0x8] %vm1614, %v1610
      %vm1616 = vcmask 518144
      %vm1617 = vsmask.f32 2304
      %vm1618 = vmand %vm1616, %vm1617
      %v1619 = vld [vmem:[%s170 + $0x18] sm:$0x7]
      %v1620 = vsel %vm1618, %v1611, %v1619
      %1621 = vst [vmem:[%s170 + $0x18] sm:$0x7] %v1620
      %s1622 = scalar_lea.vmem [#allocation2], 160
      %v1623 = vld [vmem:[%s1622] ss:$2 sm:$0x7f]
      %s1624 = scalar_lea.vmem [#allocation2], 161
      %v1625 = vld [vmem:[%s1624] ss:$2 sm:$0x7f]
      %s1626 = scalar_lea.vmem [#allocation2], 176
      %v1627 = vld [vmem:[%s1626] ss:$2 sm:$0x7f]
      %s1628 = scalar_lea.vmem [#allocation2], 177
      %v1629 = vld [vmem:[%s1628] ss:$2 sm:$0x7f]
      %v1630 = vmax.f32 %v1623, %v1625
      %v1631 = vmax.f32 %v1627, %v1629
      %v1632 = vmax.f32 %v1630, %v1631
      %v1633 = vadd.f32 %v1632, %v1485
      %v1634 = vmax.f32 %v1633, 0.0
      %v1635 = vpack.c.bf16 %v1634, %v1634
      %v1637 = vshll.u32 %v1635, 16
      %v1639 = vrot.slane %v1637, 5
      %v1640 = vshrl.u32 %v1635, 16
      %v1642 = vrot.slane %v1640, 4
      %v1643 = vor.u32 %v1642, %v1639
      %v1644 = vrot.slane %v1643, 4
      %vm1647 = vcmask 519171
      %vm1648 = vsmask.f32 7950
      %vm1649 = vmand %vm1647, %vm1648
      %v1650 = vld [vmem:[%s170 + $0x18] sm:$0x8]
      %v1651 = vsel %vm1649, %v1639, %v1650
      %1652 = vst [vmem:[%s170 + $0x18] sm:$0x8] %v1651
      %vm1653 = vcmask 518144
      %1654 = vst.msk [vmem:[%s170 + $0x1c] sm:$0x7] %vm1653, %v1644
      %s1655 = scalar_lea.vmem [#allocation2], 192
      %v1656 = vld [vmem:[%s1655] ss:$2 sm:$0x7f]
      %s1657 = scalar_lea.vmem [#allocation2], 193
      %v1658 = vld [vmem:[%s1657] ss:$2 sm:$0x7f]
      %s1659 = scalar_lea.vmem [#allocation2], 208
      %v1660 = vld [vmem:[%s1659] ss:$2 sm:$0x7f]
      %s1661 = scalar_lea.vmem [#allocation2], 209
      %v1662 = vld [vmem:[%s1661] ss:$2 sm:$0x7f]
      %v1663 = vmax.f32 %v1656, %v1658
      %v1664 = vmax.f32 %v1660, %v1662
      %v1665 = vmax.f32 %v1663, %v1664
      %v1666 = vadd.f32 %v1665, %v1485
      %v1667 = vmax.f32 %v1666, 0.0
      %v1668 = vpack.c.bf16 %v1667, %v1667
      %vm1669 = vcmask 519168
      %vm1670 = vsmask.f32 3328
      %vm1671 = vmand %vm1669, %vm1670
      %v1672 = vld [vmem:[%s170 + $0x20] sm:$0xf]
      %v1673 = vsel %vm1671, %v1668, %v1672
      %1674 = vst [vmem:[%s170 + $0x20] sm:$0xf] %v1673
      %p1675 = scmp.lt.s32.totalorder %s14, 1
      %s1676 = scalar_select %p1675, %s14, 1
      %s1677 = smul.addr %s1676, 13
      %s1678 = smul.addr %s1677, 4
      %s1679 = scalar_lea.vmem %s3, %s1678
      // Predicated region
      $region33: #{lenet_complex_forward.5} parent=31 // pred_check
        %p1680 = pneg %p100
      $region34: #{lenet_complex_forward.5} parent=31 // pred_check_branch
        %1682 = sbr.rel (%p1680) target = $region36
      $region35: #{lenet_complex_forward.5} parent=31 // pred_region
        _
      $region36: #{lenet_complex_forward.5} parent=31 // pred_fallthru
        _
    $region32: #{lenet_complex_forward.5} parent=5 // pred_fallthru
      _
    %p1683 = scmp.le.s32.totalorder 2, %s9
    // Predicated region
    $region37: #{lenet_complex_forward.5} parent=5 // pred_check
      %p1684 = pneg %p1683
    $region38: #{lenet_complex_forward.5} parent=5 // pred_check_branch
      %1686 = sbr.rel (%p1684) target = $region40
    $region39: #{lenet_complex_forward.5} parent=5 // pred_region
      %s1687 = ssub.s32 %s9, 2
      // Predicated region
      $region41: #{lenet_complex_forward.5} parent=39 // pred_check
        %p1688 = pneg %p106
      $region42: #{lenet_complex_forward.5} parent=39 // pred_check_branch
        %1690 = sbr.rel (%p1688) target = $region44
      $region43: #{lenet_complex_forward.5} parent=39 // pred_region
        %p1691 = scmp.lt.s32.totalorder %s15, 1
        %s1692 = scalar_select %p1691, %s15, 1
        %s1693 = smul.addr %s1692, 13
        %s1694 = smul.addr %s1693, 4
        %s1695 = scalar_lea.vmem %s3, %s1694
      $region44: #{lenet_complex_forward.5} parent=39 // pred_fallthru
        _
    $region40: #{lenet_complex_forward.5} parent=5 // pred_fallthru
      _
  $region6: #{lenet_complex_forward.5} parent=0 // loop_footer
    %s13 = sadd.s32 1, %s9
  $region7: #{lenet_complex_forward.5} parent=0 // loop_footer_branch
    %8 = sbr.rel target = $region3
  $region8: #{lenet_complex_forward.5} parent=0 // loop_exit
    _

// kernel: lenet_complex_forward.7
$region0: #{lenet_complex_forward.7}
  #allocation0 [shape = 'u32[]', space=smem, size = 0x4, offset = 0x4, fixed_abs, tag = 'smem constant byte address 0x4 - core index']
  #allocation1 [shape = 'u32[72,128]{1,0:T(1,128)}', space=vmem, size = 0x9000, scoped, tag = 'internal scratch']
  %s0 = inlined_call_operand.vmem [shape: bf16[8,1152], index: 0, kind: input, shape index: {}]
  %s1 = inlined_call_operand.vmem [shape: bf16[1152,256], index: 1, kind: input, shape index: {}]
  %s2 = inlined_call_operand.vmem [shape: f32[1,256], index: 2, kind: input, shape index: {}]
  %s3 = inlined_call_operand.vmem [shape: bf16[256,128], index: 3, kind: input, shape index: {}]
  %s4 = inlined_call_operand.vmem [shape: f32[1,128], index: 4, kind: input, shape index: {}]
  %s5 = inlined_call_operand.vmem [shape: bf16[128,128], index: 5, kind: input, shape index: {}]
  %s6 = inlined_call_operand.vmem [shape: f32[1,128], index: 6, kind: input, shape index: {}]
  %s7 = inlined_call_operand.vmem [shape: f32[8,128], index: 7, kind: output, shape index: {}]
  %s8 = sld [smem:[#allocation0]]
  $region38: #{lenet_complex_forward.7} parent=0
    _
  %s10 = ssub.s32 1, %s8
  %s11 = scalar_select 0, %s10, %s8
  // Predicated region
  $region2: #{lenet_complex_forward.7} parent=0 // pred_check
    _
  $region3: #{lenet_complex_forward.7} parent=0 // pred_check_branch
    %13 = sbr.rel (0) target = $region5
  $region4: #{lenet_complex_forward.7} parent=0 // pred_region
    _
  $region5: #{lenet_complex_forward.7} parent=0 // pred_fallthru
    _
  // Predicated region
  $region6: #{lenet_complex_forward.7} parent=0 // pred_check
    _
  $region7: #{lenet_complex_forward.7} parent=0 // pred_check_branch
    %15 = sbr.rel (0) target = $region9
  $region8: #{lenet_complex_forward.7} parent=0 // pred_region
    _
  $region9: #{lenet_complex_forward.7} parent=0 // pred_fallthru
    _
  // Predicated region
  $region10: #{lenet_complex_forward.7} parent=0 // pred_check
    _
  $region11: #{lenet_complex_forward.7} parent=0 // pred_check_branch
    %17 = sbr.rel (0) target = $region13
  $region12: #{lenet_complex_forward.7} parent=0 // pred_region
    _
  $region13: #{lenet_complex_forward.7} parent=0 // pred_fallthru
    _
  // Predicated region
  $region14: #{lenet_complex_forward.7} parent=0 // pred_check
    _
  $region15: #{lenet_complex_forward.7} parent=0 // pred_check_branch
    %19 = sbr.rel (0) target = $region17
  $region16: #{lenet_complex_forward.7} parent=0 // pred_region
    _
  $region17: #{lenet_complex_forward.7} parent=0 // pred_fallthru
    _
  // Predicated region
  $region18: #{lenet_complex_forward.7} parent=0 // pred_check
    _
  $region19: #{lenet_complex_forward.7} parent=0 // pred_check_branch
    %21 = sbr.rel (0) target = $region21
  $region20: #{lenet_complex_forward.7} parent=0 // pred_region
    _
  $region21: #{lenet_complex_forward.7} parent=0 // pred_fallthru
    _
  // Predicated region
  $region22: #{lenet_complex_forward.7} parent=0 // pred_check
    _
  $region23: #{lenet_complex_forward.7} parent=0 // pred_check_branch
    %23 = sbr.rel (0) target = $region25
  $region24: #{lenet_complex_forward.7} parent=0 // pred_region
    _
  $region25: #{lenet_complex_forward.7} parent=0 // pred_fallthru
    _
  // Predicated region
  $region26: #{lenet_complex_forward.7} parent=0 // pred_check
    _
  $region27: #{lenet_complex_forward.7} parent=0 // pred_check_branch
    %25 = sbr.rel (0) target = $region29
  $region28: #{lenet_complex_forward.7} parent=0 // pred_region
    _
  $region29: #{lenet_complex_forward.7} parent=0 // pred_fallthru
    _
  %v26 = vld [vmem:[%s0] sm:$0xff]
  %v27 = vld [vmem:[%s0 + $0x8] sm:$0xff]
  %v28 = vld [vmem:[%s0 + $0x10] sm:$0xff]
  %v29 = vld [vmem:[%s0 + $0x18] sm:$0xff]
  %v30 = vld [vmem:[%s0 + $0x20] sm:$0xf]
  %v31 = vld [vmem:[%s1] sm:$0xff]
  %v32 = vld [vmem:[%s1 + $0x8] sm:$0xff]
  %v33 = vld [vmem:[%s1 + $0x10] sm:$0xff]
  %v34 = vld [vmem:[%s1 + $0x18] sm:$0xff]
  %v35 = vld [vmem:[%s1 + $0x20] sm:$0xff]
  %v36 = vld [vmem:[%s1 + $0x28] sm:$0xff]
  %v37 = vld [vmem:[%s1 + $0x30] sm:$0xff]
  %v38 = vld [vmem:[%s1 + $0x38] sm:$0xff]
  %v39 = vld [vmem:[%s1 + $0x40] sm:$0xff]
  %v40 = vld [vmem:[%s1 + $0x48] sm:$0xff]
  %v41 = vld [vmem:[%s1 + $0x50] sm:$0xff]
  %v42 = vld [vmem:[%s1 + $0x58] sm:$0xff]
  %v43 = vld [vmem:[%s1 + $0x60] sm:$0xff]
  %v44 = vld [vmem:[%s1 + $0x68] sm:$0xff]
  %v45 = vld [vmem:[%s1 + $0x70] sm:$0xff]
  %v46 = vld [vmem:[%s1 + $0x78] sm:$0xff]
  %v47 = vld [vmem:[%s1 + $0x80] sm:$0xff]
  %v48 = vld [vmem:[%s1 + $0x88] sm:$0xff]
  %v49 = vld [vmem:[%s1 + $0x90] sm:$0xff]
  %v50 = vld [vmem:[%s1 + $0x98] sm:$0xff]
  %v51 = vld [vmem:[%s1 + $0xa0] sm:$0xff]
  %v52 = vld [vmem:[%s1 + $0xa8] sm:$0xff]
  %v53 = vld [vmem:[%s1 + $0xb0] sm:$0xff]
  %v54 = vld [vmem:[%s1 + $0xb8] sm:$0xff]
  %v55 = vld [vmem:[%s1 + $0xc0] sm:$0xff]
  %v56 = vld [vmem:[%s1 + $0xc8] sm:$0xff]
  %v57 = vld [vmem:[%s1 + $0xd0] sm:$0xff]
  %v58 = vld [vmem:[%s1 + $0xd8] sm:$0xff]
  %v59 = vld [vmem:[%s1 + $0xe0] sm:$0xff]
  %v60 = vld [vmem:[%s1 + $0xe8] sm:$0xff]
  %v61 = vld [vmem:[%s1 + $0xf0] sm:$0xff]
  %v62 = vld [vmem:[%s1 + $0xf8] sm:$0xff]
  %v63 = vld [vmem:[%s1 + $0x100] sm:$0xff]
  %v64 = vld [vmem:[%s1 + $0x108] sm:$0xff]
  %v65 = vld [vmem:[%s1 + $0x110] sm:$0xff]
  %v66 = vld [vmem:[%s1 + $0x118] sm:$0xff]
  %v67 = vld [vmem:[%s1 + $0x120] sm:$0xff]
  %v68 = vld [vmem:[%s1 + $0x128] sm:$0xff]
  %v69 = vld [vmem:[%s1 + $0x130] sm:$0xff]
  %v70 = vld [vmem:[%s1 + $0x138] sm:$0xff]
  %v71 = vld [vmem:[%s1 + $0x140] sm:$0xff]
  %v72 = vld [vmem:[%s1 + $0x148] sm:$0xff]
  %v73 = vld [vmem:[%s1 + $0x150] sm:$0xff]
  %v74 = vld [vmem:[%s1 + $0x158] sm:$0xff]
  %v75 = vld [vmem:[%s1 + $0x160] sm:$0xff]
  %v76 = vld [vmem:[%s1 + $0x168] sm:$0xff]
  %v77 = vld [vmem:[%s1 + $0x170] sm:$0xff]
  %v78 = vld [vmem:[%s1 + $0x178] sm:$0xff]
  %v79 = vld [vmem:[%s1 + $0x180] sm:$0xff]
  %v80 = vld [vmem:[%s1 + $0x188] sm:$0xff]
  %v81 = vld [vmem:[%s1 + $0x190] sm:$0xff]
  %v82 = vld [vmem:[%s1 + $0x198] sm:$0xff]
  %v83 = vld [vmem:[%s1 + $0x1a0] sm:$0xff]
  %v84 = vld [vmem:[%s1 + $0x1a8] sm:$0xff]
  %v85 = vld [vmem:[%s1 + $0x1b0] sm:$0xff]
  %v86 = vld [vmem:[%s1 + $0x1b8] sm:$0xff]
  %v87 = vld [vmem:[%s1 + $0x1c0] sm:$0xff]
  %v88 = vld [vmem:[%s1 + $0x1c8] sm:$0xff]
  %v89 = vld [vmem:[%s1 + $0x1d0] sm:$0xff]
  %v90 = vld [vmem:[%s1 + $0x1d8] sm:$0xff]
  %v91 = vld [vmem:[%s1 + $0x1e0] sm:$0xff]
  %v92 = vld [vmem:[%s1 + $0x1e8] sm:$0xff]
  %v93 = vld [vmem:[%s1 + $0x1f0] sm:$0xff]
  %v94 = vld [vmem:[%s1 + $0x1f8] sm:$0xff]
  %v95 = vld [vmem:[%s1 + $0x200] sm:$0xff]
  %v96 = vld [vmem:[%s1 + $0x208] sm:$0xff]
  %v97 = vld [vmem:[%s1 + $0x210] sm:$0xff]
  %v98 = vld [vmem:[%s1 + $0x218] sm:$0xff]
  %v99 = vld [vmem:[%s1 + $0x220] sm:$0xff]
  %v100 = vld [vmem:[%s1 + $0x228] sm:$0xff]
  %v101 = vld [vmem:[%s1 + $0x230] sm:$0xff]
  %v102 = vld [vmem:[%s1 + $0x238] sm:$0xff]
  %v103 = vld [vmem:[%s1 + $0x240] sm:$0xff]
  %v104 = vld [vmem:[%s1 + $0x248] sm:$0xff]
  %v105 = vld [vmem:[%s1 + $0x250] sm:$0xff]
  %v106 = vld [vmem:[%s1 + $0x258] sm:$0xff]
  %v107 = vld [vmem:[%s1 + $0x260] sm:$0xff]
  %v108 = vld [vmem:[%s1 + $0x268] sm:$0xff]
  %v109 = vld [vmem:[%s1 + $0x270] sm:$0xff]
  %v110 = vld [vmem:[%s1 + $0x278] sm:$0xff]
  %v111 = vld [vmem:[%s1 + $0x280] sm:$0xff]
  %v112 = vld [vmem:[%s1 + $0x288] sm:$0xff]
  %v113 = vld [vmem:[%s1 + $0x290] sm:$0xff]
  %v114 = vld [vmem:[%s1 + $0x298] sm:$0xff]
  %v115 = vld [vmem:[%s1 + $0x2a0] sm:$0xff]
  %v116 = vld [vmem:[%s1 + $0x2a8] sm:$0xff]
  %v117 = vld [vmem:[%s1 + $0x2b0] sm:$0xff]
  %v118 = vld [vmem:[%s1 + $0x2b8] sm:$0xff]
  %v119 = vld [vmem:[%s1 + $0x2c0] sm:$0xff]
  %v120 = vld [vmem:[%s1 + $0x2c8] sm:$0xff]
  %v121 = vld [vmem:[%s1 + $0x2d0] sm:$0xff]
  %v122 = vld [vmem:[%s1 + $0x2d8] sm:$0xff]
  %v123 = vld [vmem:[%s1 + $0x2e0] sm:$0xff]
  %v124 = vld [vmem:[%s1 + $0x2e8] sm:$0xff]
  %v125 = vld [vmem:[%s1 + $0x2f0] sm:$0xff]
  %v126 = vld [vmem:[%s1 + $0x2f8] sm:$0xff]
  %v127 = vld [vmem:[%s1 + $0x300] sm:$0xff]
  %v128 = vld [vmem:[%s1 + $0x308] sm:$0xff]
  %v129 = vld [vmem:[%s1 + $0x310] sm:$0xff]
  %v130 = vld [vmem:[%s1 + $0x318] sm:$0xff]
  %v131 = vld [vmem:[%s1 + $0x320] sm:$0xff]
  %v132 = vld [vmem:[%s1 + $0x328] sm:$0xff]
  %v133 = vld [vmem:[%s1 + $0x330] sm:$0xff]
  %v134 = vld [vmem:[%s1 + $0x338] sm:$0xff]
  %v135 = vld [vmem:[%s1 + $0x340] sm:$0xff]
  %v136 = vld [vmem:[%s1 + $0x348] sm:$0xff]
  %v137 = vld [vmem:[%s1 + $0x350] sm:$0xff]
  %v138 = vld [vmem:[%s1 + $0x358] sm:$0xff]
  %v139 = vld [vmem:[%s1 + $0x360] sm:$0xff]
  %v140 = vld [vmem:[%s1 + $0x368] sm:$0xff]
  %v141 = vld [vmem:[%s1 + $0x370] sm:$0xff]
  %v142 = vld [vmem:[%s1 + $0x378] sm:$0xff]
  %v143 = vld [vmem:[%s1 + $0x380] sm:$0xff]
  %v144 = vld [vmem:[%s1 + $0x388] sm:$0xff]
  %v145 = vld [vmem:[%s1 + $0x390] sm:$0xff]
  %v146 = vld [vmem:[%s1 + $0x398] sm:$0xff]
  %v147 = vld [vmem:[%s1 + $0x3a0] sm:$0xff]
  %v148 = vld [vmem:[%s1 + $0x3a8] sm:$0xff]
  %v149 = vld [vmem:[%s1 + $0x3b0] sm:$0xff]
  %v150 = vld [vmem:[%s1 + $0x3b8] sm:$0xff]
  %v151 = vld [vmem:[%s1 + $0x3c0] sm:$0xff]
  %v152 = vld [vmem:[%s1 + $0x3c8] sm:$0xff]
  %v153 = vld [vmem:[%s1 + $0x3d0] sm:$0xff]
  %v154 = vld [vmem:[%s1 + $0x3d8] sm:$0xff]
  %v155 = vld [vmem:[%s1 + $0x3e0] sm:$0xff]
  %v156 = vld [vmem:[%s1 + $0x3e8] sm:$0xff]
  %v157 = vld [vmem:[%s1 + $0x3f0] sm:$0xff]
  %v158 = vld [vmem:[%s1 + $0x3f8] sm:$0xff]
  %v159 = vld [vmem:[%s1 + $0x400] sm:$0xff]
  %v160 = vld [vmem:[%s1 + $0x408] sm:$0xff]
  %v161 = vld [vmem:[%s1 + $0x410] sm:$0xff]
  %v162 = vld [vmem:[%s1 + $0x418] sm:$0xff]
  %v163 = vld [vmem:[%s1 + $0x420] sm:$0xff]
  %v164 = vld [vmem:[%s1 + $0x428] sm:$0xff]
  %v165 = vld [vmem:[%s1 + $0x430] sm:$0xff]
  %v166 = vld [vmem:[%s1 + $0x438] sm:$0xff]
  %v167 = vld [vmem:[%s1 + $0x440] sm:$0xff]
  %v168 = vld [vmem:[%s1 + $0x448] sm:$0xff]
  %v169 = vld [vmem:[%s1 + $0x450] sm:$0xff]
  %v170 = vld [vmem:[%s1 + $0x458] sm:$0xff]
  %v171 = vld [vmem:[%s1 + $0x460] sm:$0xff]
  %v172 = vld [vmem:[%s1 + $0x468] sm:$0xff]
  %v173 = vld [vmem:[%s1 + $0x470] sm:$0xff]
  %v174 = vld [vmem:[%s1 + $0x478] sm:$0xff]
  %v175 = vld [vmem:[%s2] sm:$0x3]
  %v177 = vperm.slane %v175, 0
  %v178 = vperm.slane %v175, 1
  %v186 = vunpack.c.l.b16 %v26
  %v187 = vunpack.c.h.b16 %v26
  %v188 = vunpack.c.l.b16 %v27
  %v189 = vunpack.c.h.b16 %v27
  %v190 = vunpack.c.l.b16 %v28
  %v191 = vunpack.c.h.b16 %v28
  %v192 = vunpack.c.l.b16 %v29
  %v193 = vunpack.c.h.b16 %v29
  %v194 = vunpack.c.l.b16 %v30
  %v195 = vpack.c.b16 %v186, %v186
  %v196 = vpack.c.b16 %v187, %v187
  %v197 = vpack.c.b16 %v188, %v188
  %v198 = vpack.c.b16 %v189, %v189
  %v199 = vpack.c.b16 %v190, %v190
  %v200 = vpack.c.b16 %v191, %v191
  %v201 = vpack.c.b16 %v192, %v192
  %v202 = vpack.c.b16 %v193, %v193
  %v203 = vpack.c.b16 %v194, %v194
  %v357 = vunpack.c.l.b16 %v31
  %v358 = vunpack.c.h.b16 %v31
  %v359 = vunpack.c.l.b16 %v32
  %v360 = vunpack.c.h.b16 %v32
  %v361 = vunpack.c.l.b16 %v33
  %v362 = vunpack.c.h.b16 %v33
  %v363 = vunpack.c.l.b16 %v34
  %v364 = vunpack.c.h.b16 %v34
  %v365 = vunpack.c.l.b16 %v35
  %v366 = vunpack.c.h.b16 %v35
  %v367 = vunpack.c.l.b16 %v36
  %v368 = vunpack.c.h.b16 %v36
  %v369 = vunpack.c.l.b16 %v37
  %v370 = vunpack.c.h.b16 %v37
  %v371 = vunpack.c.l.b16 %v38
  %v372 = vunpack.c.h.b16 %v38
  %v373 = vunpack.c.l.b16 %v39
  %v374 = vunpack.c.h.b16 %v39
  %v375 = vunpack.c.l.b16 %v40
  %v376 = vunpack.c.h.b16 %v40
  %v377 = vunpack.c.l.b16 %v41
  %v378 = vunpack.c.h.b16 %v41
  %v379 = vunpack.c.l.b16 %v42
  %v380 = vunpack.c.h.b16 %v42
  %v381 = vunpack.c.l.b16 %v43
  %v382 = vunpack.c.h.b16 %v43
  %v383 = vunpack.c.l.b16 %v44
  %v384 = vunpack.c.h.b16 %v44
  %v385 = vunpack.c.l.b16 %v45
  %v386 = vunpack.c.h.b16 %v45
  %v387 = vunpack.c.l.b16 %v46
  %v388 = vunpack.c.h.b16 %v46
  %v389 = vunpack.c.l.b16 %v47
  %v390 = vunpack.c.h.b16 %v47
  %v391 = vunpack.c.l.b16 %v48
  %v392 = vunpack.c.h.b16 %v48
  %v393 = vunpack.c.l.b16 %v49
  %v394 = vunpack.c.h.b16 %v49
  %v395 = vunpack.c.l.b16 %v50
  %v396 = vunpack.c.h.b16 %v50
  %v397 = vunpack.c.l.b16 %v51
  %v398 = vunpack.c.h.b16 %v51
  %v399 = vunpack.c.l.b16 %v52
  %v400 = vunpack.c.h.b16 %v52
  %v401 = vunpack.c.l.b16 %v53
  %v402 = vunpack.c.h.b16 %v53
  %v403 = vunpack.c.l.b16 %v54
  %v404 = vunpack.c.h.b16 %v54
  %v405 = vunpack.c.l.b16 %v55
  %v406 = vunpack.c.h.b16 %v55
  %v407 = vunpack.c.l.b16 %v56
  %v408 = vunpack.c.h.b16 %v56
  %v409 = vunpack.c.l.b16 %v57
  %v410 = vunpack.c.h.b16 %v57
  %v411 = vunpack.c.l.b16 %v58
  %v412 = vunpack.c.h.b16 %v58
  %v413 = vunpack.c.l.b16 %v59
  %v414 = vunpack.c.h.b16 %v59
  %v415 = vunpack.c.l.b16 %v60
  %v416 = vunpack.c.h.b16 %v60
  %v417 = vunpack.c.l.b16 %v61
  %v418 = vunpack.c.h.b16 %v61
  %v419 = vunpack.c.l.b16 %v62
  %v420 = vunpack.c.h.b16 %v62
  %v421 = vunpack.c.l.b16 %v63
  %v422 = vunpack.c.h.b16 %v63
  %v423 = vunpack.c.l.b16 %v64
  %v424 = vunpack.c.h.b16 %v64
  %v425 = vunpack.c.l.b16 %v65
  %v426 = vunpack.c.h.b16 %v65
  %v427 = vunpack.c.l.b16 %v66
  %v428 = vunpack.c.h.b16 %v66
  %v429 = vunpack.c.l.b16 %v67
  %v430 = vunpack.c.h.b16 %v67
  %v431 = vunpack.c.l.b16 %v68
  %v432 = vunpack.c.h.b16 %v68
  %v433 = vunpack.c.l.b16 %v69
  %v434 = vunpack.c.h.b16 %v69
  %v435 = vunpack.c.l.b16 %v70
  %v436 = vunpack.c.h.b16 %v70
  %v437 = vunpack.c.l.b16 %v71
  %v438 = vunpack.c.h.b16 %v71
  %v439 = vunpack.c.l.b16 %v72
  %v440 = vunpack.c.h.b16 %v72
  %v441 = vunpack.c.l.b16 %v73
  %v442 = vunpack.c.h.b16 %v73
  %v443 = vunpack.c.l.b16 %v74
  %v444 = vunpack.c.h.b16 %v74
  %v445 = vunpack.c.l.b16 %v75
  %v446 = vunpack.c.h.b16 %v75
  %v447 = vunpack.c.l.b16 %v76
  %v448 = vunpack.c.h.b16 %v76
  %v449 = vunpack.c.l.b16 %v77
  %v450 = vunpack.c.h.b16 %v77
  %v451 = vunpack.c.l.b16 %v78
  %v452 = vunpack.c.h.b16 %v78
  %v453 = vunpack.c.l.b16 %v79
  %v454 = vunpack.c.h.b16 %v79
  %v455 = vunpack.c.l.b16 %v80
  %v456 = vunpack.c.h.b16 %v80
  %v457 = vunpack.c.l.b16 %v81
  %v458 = vunpack.c.h.b16 %v81
  %v459 = vunpack.c.l.b16 %v82
  %v460 = vunpack.c.h.b16 %v82
  %v461 = vunpack.c.l.b16 %v83
  %v462 = vunpack.c.h.b16 %v83
  %v463 = vunpack.c.l.b16 %v84
  %v464 = vunpack.c.h.b16 %v84
  %v465 = vunpack.c.l.b16 %v85
  %v466 = vunpack.c.h.b16 %v85
  %v467 = vunpack.c.l.b16 %v86
  %v468 = vunpack.c.h.b16 %v86
  %v469 = vunpack.c.l.b16 %v87
  %v470 = vunpack.c.h.b16 %v87
  %v471 = vunpack.c.l.b16 %v88
  %v472 = vunpack.c.h.b16 %v88
  %v473 = vunpack.c.l.b16 %v89
  %v474 = vunpack.c.h.b16 %v89
  %v475 = vunpack.c.l.b16 %v90
  %v476 = vunpack.c.h.b16 %v90
  %v477 = vunpack.c.l.b16 %v91
  %v478 = vunpack.c.h.b16 %v91
  %v479 = vunpack.c.l.b16 %v92
  %v480 = vunpack.c.h.b16 %v92
  %v481 = vunpack.c.l.b16 %v93
  %v482 = vunpack.c.h.b16 %v93
  %v483 = vunpack.c.l.b16 %v94
  %v484 = vunpack.c.h.b16 %v94
  %v485 = vunpack.c.l.b16 %v95
  %v486 = vunpack.c.h.b16 %v95
  %v487 = vunpack.c.l.b16 %v96
  %v488 = vunpack.c.h.b16 %v96
  %v489 = vunpack.c.l.b16 %v97
  %v490 = vunpack.c.h.b16 %v97
  %v491 = vunpack.c.l.b16 %v98
  %v492 = vunpack.c.h.b16 %v98
  %v493 = vunpack.c.l.b16 %v99
  %v494 = vunpack.c.h.b16 %v99
  %v495 = vunpack.c.l.b16 %v100
  %v496 = vunpack.c.h.b16 %v100
  %v497 = vunpack.c.l.b16 %v101
  %v498 = vunpack.c.h.b16 %v101
  %v499 = vunpack.c.l.b16 %v102
  %v500 = vunpack.c.h.b16 %v102
  %v501 = vunpack.c.l.b16 %v103
  %v502 = vunpack.c.h.b16 %v103
  %v503 = vunpack.c.l.b16 %v104
  %v504 = vunpack.c.h.b16 %v104
  %v505 = vunpack.c.l.b16 %v105
  %v506 = vunpack.c.h.b16 %v105
  %v507 = vunpack.c.l.b16 %v106
  %v508 = vunpack.c.h.b16 %v106
  %v509 = vunpack.c.l.b16 %v107
  %v510 = vunpack.c.h.b16 %v107
  %v511 = vunpack.c.l.b16 %v108
  %v512 = vunpack.c.h.b16 %v108
  %v513 = vunpack.c.l.b16 %v109
  %v514 = vunpack.c.h.b16 %v109
  %v515 = vunpack.c.l.b16 %v110
  %v516 = vunpack.c.h.b16 %v110
  %v517 = vunpack.c.l.b16 %v111
  %v518 = vunpack.c.h.b16 %v111
  %v519 = vunpack.c.l.b16 %v112
  %v520 = vunpack.c.h.b16 %v112
  %v521 = vunpack.c.l.b16 %v113
  %v522 = vunpack.c.h.b16 %v113
  %v523 = vunpack.c.l.b16 %v114
  %v524 = vunpack.c.h.b16 %v114
  %v525 = vunpack.c.l.b16 %v115
  %v526 = vunpack.c.h.b16 %v115
  %v527 = vunpack.c.l.b16 %v116
  %v528 = vunpack.c.h.b16 %v116
  %v529 = vunpack.c.l.b16 %v117
  %v530 = vunpack.c.h.b16 %v117
  %v531 = vunpack.c.l.b16 %v118
  %v532 = vunpack.c.h.b16 %v118
  %v533 = vunpack.c.l.b16 %v119
  %v534 = vunpack.c.h.b16 %v119
  %v535 = vunpack.c.l.b16 %v120
  %v536 = vunpack.c.h.b16 %v120
  %v537 = vunpack.c.l.b16 %v121
  %v538 = vunpack.c.h.b16 %v121
  %v539 = vunpack.c.l.b16 %v122
  %v540 = vunpack.c.h.b16 %v122
  %v541 = vunpack.c.l.b16 %v123
  %v542 = vunpack.c.h.b16 %v123
  %v543 = vunpack.c.l.b16 %v124
  %v544 = vunpack.c.h.b16 %v124
  %v545 = vunpack.c.l.b16 %v125
  %v546 = vunpack.c.h.b16 %v125
  %v547 = vunpack.c.l.b16 %v126
  %v548 = vunpack.c.h.b16 %v126
  %v549 = vunpack.c.l.b16 %v127
  %v550 = vunpack.c.h.b16 %v127
  %v551 = vunpack.c.l.b16 %v128
  %v552 = vunpack.c.h.b16 %v128
  %v553 = vunpack.c.l.b16 %v129
  %v554 = vunpack.c.h.b16 %v129
  %v555 = vunpack.c.l.b16 %v130
  %v556 = vunpack.c.h.b16 %v130
  %v557 = vunpack.c.l.b16 %v131
  %v558 = vunpack.c.h.b16 %v131
  %v559 = vunpack.c.l.b16 %v132
  %v560 = vunpack.c.h.b16 %v132
  %v561 = vunpack.c.l.b16 %v133
  %v562 = vunpack.c.h.b16 %v133
  %v563 = vunpack.c.l.b16 %v134
  %v564 = vunpack.c.h.b16 %v134
  %v565 = vunpack.c.l.b16 %v135
  %v566 = vunpack.c.h.b16 %v135
  %v567 = vunpack.c.l.b16 %v136
  %v568 = vunpack.c.h.b16 %v136
  %v569 = vunpack.c.l.b16 %v137
  %v570 = vunpack.c.h.b16 %v137
  %v571 = vunpack.c.l.b16 %v138
  %v572 = vunpack.c.h.b16 %v138
  %v573 = vunpack.c.l.b16 %v139
  %v574 = vunpack.c.h.b16 %v139
  %v575 = vunpack.c.l.b16 %v140
  %v576 = vunpack.c.h.b16 %v140
  %v577 = vunpack.c.l.b16 %v141
  %v578 = vunpack.c.h.b16 %v141
  %v579 = vunpack.c.l.b16 %v142
  %v580 = vunpack.c.h.b16 %v142
  %v581 = vunpack.c.l.b16 %v143
  %v582 = vunpack.c.h.b16 %v143
  %v583 = vunpack.c.l.b16 %v144
  %v584 = vunpack.c.h.b16 %v144
  %v585 = vunpack.c.l.b16 %v145
  %v586 = vunpack.c.h.b16 %v145
  %v587 = vunpack.c.l.b16 %v146
  %v588 = vunpack.c.h.b16 %v146
  %v589 = vunpack.c.l.b16 %v147
  %v590 = vunpack.c.h.b16 %v147
  %v591 = vunpack.c.l.b16 %v148
  %v592 = vunpack.c.h.b16 %v148
  %v593 = vunpack.c.l.b16 %v149
  %v594 = vunpack.c.h.b16 %v149
  %v595 = vunpack.c.l.b16 %v150
  %v596 = vunpack.c.h.b16 %v150
  %v597 = vunpack.c.l.b16 %v151
  %v598 = vunpack.c.h.b16 %v151
  %v599 = vunpack.c.l.b16 %v152
  %v600 = vunpack.c.h.b16 %v152
  %v601 = vunpack.c.l.b16 %v153
  %v602 = vunpack.c.h.b16 %v153
  %v603 = vunpack.c.l.b16 %v154
  %v604 = vunpack.c.h.b16 %v154
  %v605 = vunpack.c.l.b16 %v155
  %v606 = vunpack.c.h.b16 %v155
  %v607 = vunpack.c.l.b16 %v156
  %v608 = vunpack.c.h.b16 %v156
  %v609 = vunpack.c.l.b16 %v157
  %v610 = vunpack.c.h.b16 %v157
  %v611 = vunpack.c.l.b16 %v158
  %v612 = vunpack.c.h.b16 %v158
  %v613 = vunpack.c.l.b16 %v159
  %v614 = vunpack.c.h.b16 %v159
  %v615 = vunpack.c.l.b16 %v160
  %v616 = vunpack.c.h.b16 %v160
  %v617 = vunpack.c.l.b16 %v161
  %v618 = vunpack.c.h.b16 %v161
  %v619 = vunpack.c.l.b16 %v162
  %v620 = vunpack.c.h.b16 %v162
  %v621 = vunpack.c.l.b16 %v163
  %v622 = vunpack.c.h.b16 %v163
  %v623 = vunpack.c.l.b16 %v164
  %v624 = vunpack.c.h.b16 %v164
  %v625 = vunpack.c.l.b16 %v165
  %v626 = vunpack.c.h.b16 %v165
  %v627 = vunpack.c.l.b16 %v166
  %v628 = vunpack.c.h.b16 %v166
  %v629 = vunpack.c.l.b16 %v167
  %v630 = vunpack.c.h.b16 %v167
  %v631 = vunpack.c.l.b16 %v168
  %v632 = vunpack.c.h.b16 %v168
  %v633 = vunpack.c.l.b16 %v169
  %v634 = vunpack.c.h.b16 %v169
  %v635 = vunpack.c.l.b16 %v170
  %v636 = vunpack.c.h.b16 %v170
  %v637 = vunpack.c.l.b16 %v171
  %v638 = vunpack.c.h.b16 %v171
  %v639 = vunpack.c.l.b16 %v172
  %v640 = vunpack.c.h.b16 %v172
  %v641 = vunpack.c.l.b16 %v173
  %v642 = vunpack.c.h.b16 %v173
  %v643 = vunpack.c.l.b16 %v174
  %v644 = vunpack.c.h.b16 %v174
  %v645 = vpack.c.b16 %v359, %v357
  %v646 = vpack.c.b16 %v360, %v358
  %v647 = vpack.c.b16 %v363, %v361
  %v648 = vpack.c.b16 %v364, %v362
  %v649 = vpack.c.b16 %v367, %v365
  %v650 = vpack.c.b16 %v368, %v366
  %v651 = vpack.c.b16 %v371, %v369
  %v652 = vpack.c.b16 %v372, %v370
  %v653 = vpack.c.b16 %v375, %v373
  %v654 = vpack.c.b16 %v376, %v374
  %v655 = vpack.c.b16 %v379, %v377
  %v656 = vpack.c.b16 %v380, %v378
  %v657 = vpack.c.b16 %v383, %v381
  %v658 = vpack.c.b16 %v384, %v382
  %v659 = vpack.c.b16 %v387, %v385
  %v660 = vpack.c.b16 %v388, %v386
  %v661 = vpack.c.b16 %v391, %v389
  %v662 = vpack.c.b16 %v392, %v390
  %v663 = vpack.c.b16 %v395, %v393
  %v664 = vpack.c.b16 %v396, %v394
  %v665 = vpack.c.b16 %v399, %v397
  %v666 = vpack.c.b16 %v400, %v398
  %v667 = vpack.c.b16 %v403, %v401
  %v668 = vpack.c.b16 %v404, %v402
  %v669 = vpack.c.b16 %v407, %v405
  %v670 = vpack.c.b16 %v408, %v406
  %v671 = vpack.c.b16 %v411, %v409
  %v672 = vpack.c.b16 %v412, %v410
  %v673 = vpack.c.b16 %v415, %v413
  %v674 = vpack.c.b16 %v416, %v414
  %v675 = vpack.c.b16 %v419, %v417
  %v676 = vpack.c.b16 %v420, %v418
  %v677 = vpack.c.b16 %v423, %v421
  %v678 = vpack.c.b16 %v424, %v422
  %v679 = vpack.c.b16 %v427, %v425
  %v680 = vpack.c.b16 %v428, %v426
  %v681 = vpack.c.b16 %v431, %v429
  %v682 = vpack.c.b16 %v432, %v430
  %v683 = vpack.c.b16 %v435, %v433
  %v684 = vpack.c.b16 %v436, %v434
  %v685 = vpack.c.b16 %v439, %v437
  %v686 = vpack.c.b16 %v440, %v438
  %v687 = vpack.c.b16 %v443, %v441
  %v688 = vpack.c.b16 %v444, %v442
  %v689 = vpack.c.b16 %v447, %v445
  %v690 = vpack.c.b16 %v448, %v446
  %v691 = vpack.c.b16 %v451, %v449
  %v692 = vpack.c.b16 %v452, %v450
  %v693 = vpack.c.b16 %v455, %v453
  %v694 = vpack.c.b16 %v456, %v454
  %v695 = vpack.c.b16 %v459, %v457
  %v696 = vpack.c.b16 %v460, %v458
  %v697 = vpack.c.b16 %v463, %v461
  %v698 = vpack.c.b16 %v464, %v462
  %v699 = vpack.c.b16 %v467, %v465
  %v700 = vpack.c.b16 %v468, %v466
  %v701 = vpack.c.b16 %v471, %v469
  %v702 = vpack.c.b16 %v472, %v470
  %v703 = vpack.c.b16 %v475, %v473
  %v704 = vpack.c.b16 %v476, %v474
  %v705 = vpack.c.b16 %v479, %v477
  %v706 = vpack.c.b16 %v480, %v478
  %v707 = vpack.c.b16 %v483, %v481
  %v708 = vpack.c.b16 %v484, %v482
  %v709 = vpack.c.b16 %v487, %v485
  %v710 = vpack.c.b16 %v488, %v486
  %v711 = vpack.c.b16 %v491, %v489
  %v712 = vpack.c.b16 %v492, %v490
  %v713 = vpack.c.b16 %v495, %v493
  %v714 = vpack.c.b16 %v496, %v494
  %v715 = vpack.c.b16 %v499, %v497
  %v716 = vpack.c.b16 %v500, %v498
  %v717 = vpack.c.b16 %v503, %v501
  %v718 = vpack.c.b16 %v504, %v502
  %v719 = vpack.c.b16 %v507, %v505
  %v720 = vpack.c.b16 %v508, %v506
  %v721 = vpack.c.b16 %v511, %v509
  %v722 = vpack.c.b16 %v512, %v510
  %v723 = vpack.c.b16 %v515, %v513
  %v724 = vpack.c.b16 %v516, %v514
  %v725 = vpack.c.b16 %v519, %v517
  %v726 = vpack.c.b16 %v520, %v518
  %v727 = vpack.c.b16 %v523, %v521
  %v728 = vpack.c.b16 %v524, %v522
  %v729 = vpack.c.b16 %v527, %v525
  %v730 = vpack.c.b16 %v528, %v526
  %v731 = vpack.c.b16 %v531, %v529
  %v732 = vpack.c.b16 %v532, %v530
  %v733 = vpack.c.b16 %v535, %v533
  %v734 = vpack.c.b16 %v536, %v534
  %v735 = vpack.c.b16 %v539, %v537
  %v736 = vpack.c.b16 %v540, %v538
  %v737 = vpack.c.b16 %v543, %v541
  %v738 = vpack.c.b16 %v544, %v542
  %v739 = vpack.c.b16 %v547, %v545
  %v740 = vpack.c.b16 %v548, %v546
  %v741 = vpack.c.b16 %v551, %v549
  %v742 = vpack.c.b16 %v552, %v550
  %v743 = vpack.c.b16 %v555, %v553
  %v744 = vpack.c.b16 %v556, %v554
  %v745 = vpack.c.b16 %v559, %v557
  %v746 = vpack.c.b16 %v560, %v558
  %v747 = vpack.c.b16 %v563, %v561
  %v748 = vpack.c.b16 %v564, %v562
  %v749 = vpack.c.b16 %v567, %v565
  %v750 = vpack.c.b16 %v568, %v566
  %v751 = vpack.c.b16 %v571, %v569
  %v752 = vpack.c.b16 %v572, %v570
  %v753 = vpack.c.b16 %v575, %v573
  %v754 = vpack.c.b16 %v576, %v574
  %v755 = vpack.c.b16 %v579, %v577
  %v756 = vpack.c.b16 %v580, %v578
  %v757 = vpack.c.b16 %v583, %v581
  %v758 = vpack.c.b16 %v584, %v582
  %v759 = vpack.c.b16 %v587, %v585
  %v760 = vpack.c.b16 %v588, %v586
  %v761 = vpack.c.b16 %v591, %v589
  %v762 = vpack.c.b16 %v592, %v590
  %v763 = vpack.c.b16 %v595, %v593
  %v764 = vpack.c.b16 %v596, %v594
  %v765 = vpack.c.b16 %v599, %v597
  %v766 = vpack.c.b16 %v600, %v598
  %v767 = vpack.c.b16 %v603, %v601
  %v768 = vpack.c.b16 %v604, %v602
  %v769 = vpack.c.b16 %v607, %v605
  %v770 = vpack.c.b16 %v608, %v606
  %v771 = vpack.c.b16 %v611, %v609
  %v772 = vpack.c.b16 %v612, %v610
  %v773 = vpack.c.b16 %v615, %v613
  %v774 = vpack.c.b16 %v616, %v614
  %v775 = vpack.c.b16 %v619, %v617
  %v776 = vpack.c.b16 %v620, %v618
  %v777 = vpack.c.b16 %v623, %v621
  %v778 = vpack.c.b16 %v624, %v622
  %v779 = vpack.c.b16 %v627, %v625
  %v780 = vpack.c.b16 %v628, %v626
  %v781 = vpack.c.b16 %v631, %v629
  %v782 = vpack.c.b16 %v632, %v630
  %v783 = vpack.c.b16 %v635, %v633
  %v784 = vpack.c.b16 %v636, %v634
  %v785 = vpack.c.b16 %v639, %v637
  %v786 = vpack.c.b16 %v640, %v638
  %v787 = vpack.c.b16 %v643, %v641
  %v788 = vpack.c.b16 %v644, %v642
  %933 = vmatpush.bf16.msra.mxu0 %v659
  %934 = vmatpush.bf16.msra.mxu0 %v657
  %935 = vmatpush.bf16.msra.mxu0 %v655
  %936 = vmatpush.bf16.msra.mxu0 %v653
  %937 = vmatpush.bf16.msra.mxu0 %v651
  %938 = vmatpush.bf16.msra.mxu0 %v649
  %939 = vmatpush.bf16.msra.mxu0 %v647
  %940 = vmatpush.bf16.msra.mxu0 %v645
  %941 = vmatmul.bf16.gmra.mxu0 %v195
  %v942 = vpop.f32.mrf.mxu0
  %v943 = vadd.f32 %v177, %v942
  %v944 = vpop.f32.mrf.mxu0
  %945 = vdwg.mxu0
  %946 = vmatpush.bf16.msra.mxu0 %v675
  %947 = vmatpush.bf16.msra.mxu0 %v673
  %948 = vmatpush.bf16.msra.mxu0 %v671
  %949 = vmatpush.bf16.msra.mxu0 %v669
  %950 = vmatpush.bf16.msra.mxu0 %v667
  %951 = vmatpush.bf16.msra.mxu0 %v665
  %952 = vmatpush.bf16.msra.mxu0 %v663
  %953 = vmatpush.bf16.msra.mxu0 %v661
  %954 = vmatmul.bf16.gmra.mxu0 %v196
  %v955 = vpop.f32.mrf.mxu0
  %v956 = vadd.f32 %v943, %v955
  %v957 = vpop.f32.mrf.mxu0
  %958 = vdwg.mxu0
  %959 = vmatpush.bf16.msra.mxu0 %v691
  %960 = vmatpush.bf16.msra.mxu0 %v689
  %961 = vmatpush.bf16.msra.mxu0 %v687
  %962 = vmatpush.bf16.msra.mxu0 %v685
  %963 = vmatpush.bf16.msra.mxu0 %v683
  %964 = vmatpush.bf16.msra.mxu0 %v681
  %965 = vmatpush.bf16.msra.mxu0 %v679
  %966 = vmatpush.bf16.msra.mxu0 %v677
  %967 = vmatmul.bf16.gmra.mxu0 %v197
  %v968 = vpop.f32.mrf.mxu0
  %v969 = vadd.f32 %v956, %v968
  %v970 = vpop.f32.mrf.mxu0
  %971 = vdwg.mxu0
  %972 = vmatpush.bf16.msra.mxu0 %v707
  %973 = vmatpush.bf16.msra.mxu0 %v705
  %974 = vmatpush.bf16.msra.mxu0 %v703
  %975 = vmatpush.bf16.msra.mxu0 %v701
  %976 = vmatpush.bf16.msra.mxu0 %v699
  %977 = vmatpush.bf16.msra.mxu0 %v697
  %978 = vmatpush.bf16.msra.mxu0 %v695
  %979 = vmatpush.bf16.msra.mxu0 %v693
  %980 = vmatmul.bf16.gmra.mxu0 %v198
  %v981 = vpop.f32.mrf.mxu0
  %v982 = vadd.f32 %v969, %v981
  %v983 = vpop.f32.mrf.mxu0
  %984 = vdwg.mxu0
  %985 = vmatpush.bf16.msra.mxu0 %v723
  %986 = vmatpush.bf16.msra.mxu0 %v721
  %987 = vmatpush.bf16.msra.mxu0 %v719
  %988 = vmatpush.bf16.msra.mxu0 %v717
  %989 = vmatpush.bf16.msra.mxu0 %v715
  %990 = vmatpush.bf16.msra.mxu0 %v713
  %991 = vmatpush.bf16.msra.mxu0 %v711
  %992 = vmatpush.bf16.msra.mxu0 %v709
  %993 = vmatmul.bf16.gmra.mxu0 %v199
  %v994 = vpop.f32.mrf.mxu0
  %v995 = vadd.f32 %v982, %v994
  %v996 = vpop.f32.mrf.mxu0
  %997 = vdwg.mxu0
  %998 = vmatpush.bf16.msra.mxu0 %v739
  %999 = vmatpush.bf16.msra.mxu0 %v737
  %1000 = vmatpush.bf16.msra.mxu0 %v735
  %1001 = vmatpush.bf16.msra.mxu0 %v733
  %1002 = vmatpush.bf16.msra.mxu0 %v731
  %1003 = vmatpush.bf16.msra.mxu0 %v729
  %1004 = vmatpush.bf16.msra.mxu0 %v727
  %1005 = vmatpush.bf16.msra.mxu0 %v725
  %1006 = vmatmul.bf16.gmra.mxu0 %v200
  %v1007 = vpop.f32.mrf.mxu0
  %v1008 = vadd.f32 %v995, %v1007
  %v1009 = vpop.f32.mrf.mxu0
  %1010 = vdwg.mxu0
  %1011 = vmatpush.bf16.msra.mxu0 %v755
  %1012 = vmatpush.bf16.msra.mxu0 %v753
  %1013 = vmatpush.bf16.msra.mxu0 %v751
  %1014 = vmatpush.bf16.msra.mxu0 %v749
  %1015 = vmatpush.bf16.msra.mxu0 %v747
  %1016 = vmatpush.bf16.msra.mxu0 %v745
  %1017 = vmatpush.bf16.msra.mxu0 %v743
  %1018 = vmatpush.bf16.msra.mxu0 %v741
  %1019 = vmatmul.bf16.gmra.mxu0 %v201
  %v1020 = vpop.f32.mrf.mxu0
  %v1021 = vadd.f32 %v1008, %v1020
  %v1022 = vpop.f32.mrf.mxu0
  %1023 = vdwg.mxu0
  %1024 = vmatpush.bf16.msra.mxu0 %v771
  %1025 = vmatpush.bf16.msra.mxu0 %v769
  %1026 = vmatpush.bf16.msra.mxu0 %v767
  %1027 = vmatpush.bf16.msra.mxu0 %v765
  %1028 = vmatpush.bf16.msra.mxu0 %v763
  %1029 = vmatpush.bf16.msra.mxu0 %v761
  %1030 = vmatpush.bf16.msra.mxu0 %v759
  %1031 = vmatpush.bf16.msra.mxu0 %v757
  %1032 = vmatmul.bf16.gmra.mxu0 %v202
  %v1033 = vpop.f32.mrf.mxu0
  %v1034 = vadd.f32 %v1021, %v1033
  %v1035 = vpop.f32.mrf.mxu0
  %1036 = vdwg.mxu0
  %1037 = vmatpush.bf16.msra.mxu0 %v787
  %1038 = vmatpush.bf16.msra.mxu0 %v785
  %1039 = vmatpush.bf16.msra.mxu0 %v783
  %1040 = vmatpush.bf16.msra.mxu0 %v781
  %1041 = vmatpush.bf16.msra.mxu0 %v779
  %1042 = vmatpush.bf16.msra.mxu0 %v777
  %1043 = vmatpush.bf16.msra.mxu0 %v775
  %1044 = vmatpush.bf16.msra.mxu0 %v773
  %1045 = vmatmul.bf16.gmra.mxu0 %v203
  %v1046 = vpop.f32.mrf.mxu0
  %v1047 = vadd.f32 %v1034, %v1046
  %v1048 = vpop.f32.mrf.mxu0
  %1049 = vdwg.mxu0
  %1050 = vmatpush.bf16.msra.mxu0 %v660
  %1051 = vmatpush.bf16.msra.mxu0 %v658
  %1052 = vmatpush.bf16.msra.mxu0 %v656
  %1053 = vmatpush.bf16.msra.mxu0 %v654
  %1054 = vmatpush.bf16.msra.mxu0 %v652
  %1055 = vmatpush.bf16.msra.mxu0 %v650
  %1056 = vmatpush.bf16.msra.mxu0 %v648
  %1057 = vmatpush.bf16.msra.mxu0 %v646
  %1058 = vmatmul.bf16.gmra.mxu0 %v195
  %v1059 = vpop.f32.mrf.mxu0
  %v1060 = vadd.f32 %v178, %v1059
  %v1061 = vpop.f32.mrf.mxu0
  %1062 = vdwg.mxu0
  %1063 = vmatpush.bf16.msra.mxu0 %v676
  %1064 = vmatpush.bf16.msra.mxu0 %v674
  %1065 = vmatpush.bf16.msra.mxu0 %v672
  %1066 = vmatpush.bf16.msra.mxu0 %v670
  %1067 = vmatpush.bf16.msra.mxu0 %v668
  %1068 = vmatpush.bf16.msra.mxu0 %v666
  %1069 = vmatpush.bf16.msra.mxu0 %v664
  %1070 = vmatpush.bf16.msra.mxu0 %v662
  %1071 = vmatmul.bf16.gmra.mxu0 %v196
  %v1072 = vpop.f32.mrf.mxu0
  %v1073 = vadd.f32 %v1060, %v1072
  %v1074 = vpop.f32.mrf.mxu0
  %1075 = vdwg.mxu0
  %1076 = vmatpush.bf16.msra.mxu0 %v692
  %1077 = vmatpush.bf16.msra.mxu0 %v690
  %1078 = vmatpush.bf16.msra.mxu0 %v688
  %1079 = vmatpush.bf16.msra.mxu0 %v686
  %1080 = vmatpush.bf16.msra.mxu0 %v684
  %1081 = vmatpush.bf16.msra.mxu0 %v682
  %1082 = vmatpush.bf16.msra.mxu0 %v680
  %1083 = vmatpush.bf16.msra.mxu0 %v678
  %1084 = vmatmul.bf16.gmra.mxu0 %v197
  %v1085 = vpop.f32.mrf.mxu0
  %v1086 = vadd.f32 %v1073, %v1085
  %v1087 = vpop.f32.mrf.mxu0
  %1088 = vdwg.mxu0
  %1089 = vmatpush.bf16.msra.mxu0 %v708
  %1090 = vmatpush.bf16.msra.mxu0 %v706
  %1091 = vmatpush.bf16.msra.mxu0 %v704
  %1092 = vmatpush.bf16.msra.mxu0 %v702
  %1093 = vmatpush.bf16.msra.mxu0 %v700
  %1094 = vmatpush.bf16.msra.mxu0 %v698
  %1095 = vmatpush.bf16.msra.mxu0 %v696
  %1096 = vmatpush.bf16.msra.mxu0 %v694
  %1097 = vmatmul.bf16.gmra.mxu0 %v198
  %v1098 = vpop.f32.mrf.mxu0
  %v1099 = vadd.f32 %v1086, %v1098
  %v1100 = vpop.f32.mrf.mxu0
  %1101 = vdwg.mxu0
  %1102 = vmatpush.bf16.msra.mxu0 %v724
  %1103 = vmatpush.bf16.msra.mxu0 %v722
  %1104 = vmatpush.bf16.msra.mxu0 %v720
  %1105 = vmatpush.bf16.msra.mxu0 %v718
  %1106 = vmatpush.bf16.msra.mxu0 %v716
  %1107 = vmatpush.bf16.msra.mxu0 %v714
  %1108 = vmatpush.bf16.msra.mxu0 %v712
  %1109 = vmatpush.bf16.msra.mxu0 %v710
  %1110 = vmatmul.bf16.gmra.mxu0 %v199
  %v1111 = vpop.f32.mrf.mxu0
  %v1112 = vadd.f32 %v1099, %v1111
  %v1113 = vpop.f32.mrf.mxu0
  %1114 = vdwg.mxu0
  %1115 = vmatpush.bf16.msra.mxu0 %v740
  %1116 = vmatpush.bf16.msra.mxu0 %v738
  %1117 = vmatpush.bf16.msra.mxu0 %v736
  %1118 = vmatpush.bf16.msra.mxu0 %v734
  %1119 = vmatpush.bf16.msra.mxu0 %v732
  %1120 = vmatpush.bf16.msra.mxu0 %v730
  %1121 = vmatpush.bf16.msra.mxu0 %v728
  %1122 = vmatpush.bf16.msra.mxu0 %v726
  %1123 = vmatmul.bf16.gmra.mxu0 %v200
  %v1124 = vpop.f32.mrf.mxu0
  %v1125 = vadd.f32 %v1112, %v1124
  %v1126 = vpop.f32.mrf.mxu0
  %1127 = vdwg.mxu0
  %1128 = vmatpush.bf16.msra.mxu0 %v756
  %1129 = vmatpush.bf16.msra.mxu0 %v754
  %1130 = vmatpush.bf16.msra.mxu0 %v752
  %1131 = vmatpush.bf16.msra.mxu0 %v750
  %1132 = vmatpush.bf16.msra.mxu0 %v748
  %1133 = vmatpush.bf16.msra.mxu0 %v746
  %1134 = vmatpush.bf16.msra.mxu0 %v744
  %1135 = vmatpush.bf16.msra.mxu0 %v742
  %1136 = vmatmul.bf16.gmra.mxu0 %v201
  %v1137 = vpop.f32.mrf.mxu0
  %v1138 = vadd.f32 %v1125, %v1137
  %v1139 = vpop.f32.mrf.mxu0
  %1140 = vdwg.mxu0
  %1141 = vmatpush.bf16.msra.mxu0 %v772
  %1142 = vmatpush.bf16.msra.mxu0 %v770
  %1143 = vmatpush.bf16.msra.mxu0 %v768
  %1144 = vmatpush.bf16.msra.mxu0 %v766
  %1145 = vmatpush.bf16.msra.mxu0 %v764
  %1146 = vmatpush.bf16.msra.mxu0 %v762
  %1147 = vmatpush.bf16.msra.mxu0 %v760
  %1148 = vmatpush.bf16.msra.mxu0 %v758
  %1149 = vmatmul.bf16.gmra.mxu0 %v202
  %v1150 = vpop.f32.mrf.mxu0
  %v1151 = vadd.f32 %v1138, %v1150
  %v1152 = vpop.f32.mrf.mxu0
  %1153 = vdwg.mxu0
  %1154 = vmatpush.bf16.msra.mxu0 %v788
  %1155 = vmatpush.bf16.msra.mxu0 %v786
  %1156 = vmatpush.bf16.msra.mxu0 %v784
  %1157 = vmatpush.bf16.msra.mxu0 %v782
  %1158 = vmatpush.bf16.msra.mxu0 %v780
  %1159 = vmatpush.bf16.msra.mxu0 %v778
  %1160 = vmatpush.bf16.msra.mxu0 %v776
  %1161 = vmatpush.bf16.msra.mxu0 %v774
  %1162 = vmatmul.bf16.gmra.mxu0 %v203
  %v1163 = vpop.f32.mrf.mxu0
  %v1164 = vadd.f32 %v1151, %v1163
  %v1165 = vpop.f32.mrf.mxu0
  %1166 = vdwg.mxu0
  %v1167 = vmax.f32 %v1047, 0.0
  %v1168 = vmax.f32 %v1164, 0.0
  %v1169 = vpack.c.bf16 %v1167, %v1167
  %v1170 = vpack.c.bf16 %v1168, %v1168
  %v1171 = vld [vmem:[%s3] sm:$0xf]
  %v1172 = vld [vmem:[%s3 + $0x4] sm:$0xf]
  %v1173 = vld [vmem:[%s3 + $0x8] sm:$0xf]
  %v1174 = vld [vmem:[%s3 + $0xc] sm:$0xf]
  %v1175 = vld [vmem:[%s3 + $0x10] sm:$0xf]
  %v1176 = vld [vmem:[%s3 + $0x14] sm:$0xf]
  %v1177 = vld [vmem:[%s3 + $0x18] sm:$0xf]
  %v1178 = vld [vmem:[%s3 + $0x1c] sm:$0xf]
  %v1179 = vld [vmem:[%s3 + $0x20] sm:$0xf]
  %v1180 = vld [vmem:[%s3 + $0x24] sm:$0xf]
  %v1181 = vld [vmem:[%s3 + $0x28] sm:$0xf]
  %v1182 = vld [vmem:[%s3 + $0x2c] sm:$0xf]
  %v1183 = vld [vmem:[%s3 + $0x30] sm:$0xf]
  %v1184 = vld [vmem:[%s3 + $0x34] sm:$0xf]
  %v1185 = vld [vmem:[%s3 + $0x38] sm:$0xf]
  %v1186 = vld [vmem:[%s3 + $0x3c] sm:$0xf]
  %v1187 = vld [vmem:[%s3 + $0x40] sm:$0xf]
  %v1188 = vld [vmem:[%s3 + $0x44] sm:$0xf]
  %v1189 = vld [vmem:[%s3 + $0x48] sm:$0xf]
  %v1190 = vld [vmem:[%s3 + $0x4c] sm:$0xf]
  %v1191 = vld [vmem:[%s3 + $0x50] sm:$0xf]
  %v1192 = vld [vmem:[%s3 + $0x54] sm:$0xf]
  %v1193 = vld [vmem:[%s3 + $0x58] sm:$0xf]
  %v1194 = vld [vmem:[%s3 + $0x5c] sm:$0xf]
  %v1195 = vld [vmem:[%s3 + $0x60] sm:$0xf]
  %v1196 = vld [vmem:[%s3 + $0x64] sm:$0xf]
  %v1197 = vld [vmem:[%s3 + $0x68] sm:$0xf]
  %v1198 = vld [vmem:[%s3 + $0x6c] sm:$0xf]
  %v1199 = vld [vmem:[%s3 + $0x70] sm:$0xf]
  %v1200 = vld [vmem:[%s3 + $0x74] sm:$0xf]
  %v1201 = vld [vmem:[%s3 + $0x78] sm:$0xf]
  %v1202 = vld [vmem:[%s3 + $0x7c] sm:$0xf]
  %v1203 = vld [vmem:[%s4] sm:$0x1]
  %v1205 = vperm.slane %v1203, 0
  %v1239 = vunpack.c.l.b16 %v1171
  %v1240 = vunpack.c.l.b16 %v1172
  %v1241 = vunpack.c.l.b16 %v1173
  %v1242 = vunpack.c.l.b16 %v1174
  %v1243 = vunpack.c.l.b16 %v1175
  %v1244 = vunpack.c.l.b16 %v1176
  %v1245 = vunpack.c.l.b16 %v1177
  %v1246 = vunpack.c.l.b16 %v1178
  %v1247 = vunpack.c.l.b16 %v1179
  %v1248 = vunpack.c.l.b16 %v1180
  %v1249 = vunpack.c.l.b16 %v1181
  %v1250 = vunpack.c.l.b16 %v1182
  %v1251 = vunpack.c.l.b16 %v1183
  %v1252 = vunpack.c.l.b16 %v1184
  %v1253 = vunpack.c.l.b16 %v1185
  %v1254 = vunpack.c.l.b16 %v1186
  %v1255 = vunpack.c.l.b16 %v1187
  %v1256 = vunpack.c.l.b16 %v1188
  %v1257 = vunpack.c.l.b16 %v1189
  %v1258 = vunpack.c.l.b16 %v1190
  %v1259 = vunpack.c.l.b16 %v1191
  %v1260 = vunpack.c.l.b16 %v1192
  %v1261 = vunpack.c.l.b16 %v1193
  %v1262 = vunpack.c.l.b16 %v1194
  %v1263 = vunpack.c.l.b16 %v1195
  %v1264 = vunpack.c.l.b16 %v1196
  %v1265 = vunpack.c.l.b16 %v1197
  %v1266 = vunpack.c.l.b16 %v1198
  %v1267 = vunpack.c.l.b16 %v1199
  %v1268 = vunpack.c.l.b16 %v1200
  %v1269 = vunpack.c.l.b16 %v1201
  %v1270 = vunpack.c.l.b16 %v1202
  %v1271 = vpack.c.b16 %v1240, %v1239
  %v1272 = vpack.c.b16 %v1242, %v1241
  %v1273 = vpack.c.b16 %v1244, %v1243
  %v1274 = vpack.c.b16 %v1246, %v1245
  %v1275 = vpack.c.b16 %v1248, %v1247
  %v1276 = vpack.c.b16 %v1250, %v1249
  %v1277 = vpack.c.b16 %v1252, %v1251
  %v1278 = vpack.c.b16 %v1254, %v1253
  %v1279 = vpack.c.b16 %v1256, %v1255
  %v1280 = vpack.c.b16 %v1258, %v1257
  %v1281 = vpack.c.b16 %v1260, %v1259
  %v1282 = vpack.c.b16 %v1262, %v1261
  %v1283 = vpack.c.b16 %v1264, %v1263
  %v1284 = vpack.c.b16 %v1266, %v1265
  %v1285 = vpack.c.b16 %v1268, %v1267
  %v1286 = vpack.c.b16 %v1270, %v1269
  %1303 = vmatpush.bf16.msra.mxu0 %v1278
  %1304 = vmatpush.bf16.msra.mxu0 %v1277
  %1305 = vmatpush.bf16.msra.mxu0 %v1276
  %1306 = vmatpush.bf16.msra.mxu0 %v1275
  %1307 = vmatpush.bf16.msra.mxu0 %v1274
  %1308 = vmatpush.bf16.msra.mxu0 %v1273
  %1309 = vmatpush.bf16.msra.mxu0 %v1272
  %1310 = vmatpush.bf16.msra.mxu0 %v1271
  %1311 = vmatmul.bf16.gmra.mxu0 %v1169
  %v1312 = vpop.f32.mrf.mxu0
  %v1313 = vadd.f32 %v1205, %v1312
  %v1314 = vpop.f32.mrf.mxu0
  %1315 = vdwg.mxu0
  %1316 = vmatpush.bf16.msra.mxu0 %v1286
  %1317 = vmatpush.bf16.msra.mxu0 %v1285
  %1318 = vmatpush.bf16.msra.mxu0 %v1284
  %1319 = vmatpush.bf16.msra.mxu0 %v1283
  %1320 = vmatpush.bf16.msra.mxu0 %v1282
  %1321 = vmatpush.bf16.msra.mxu0 %v1281
  %1322 = vmatpush.bf16.msra.mxu0 %v1280
  %1323 = vmatpush.bf16.msra.mxu0 %v1279
  %1324 = vmatmul.bf16.gmra.mxu0 %v1170
  %v1325 = vpop.f32.mrf.mxu0
  %v1326 = vadd.f32 %v1313, %v1325
  %v1327 = vpop.f32.mrf.mxu0
  %1328 = vdwg.mxu0
  %v1329 = vmax.f32 %v1326, 0.0
  %v1330 = vpack.c.bf16 %v1329, %v1329
  %v1331 = vld [vmem:[%s5] sm:$0xf]
  %v1332 = vld [vmem:[%s5 + $0x4] sm:$0xf]
  %v1333 = vld [vmem:[%s5 + $0x8] sm:$0xf]
  %v1334 = vld [vmem:[%s5 + $0xc] sm:$0xf]
  %v1335 = vld [vmem:[%s5 + $0x10] sm:$0xf]
  %v1336 = vld [vmem:[%s5 + $0x14] sm:$0xf]
  %v1337 = vld [vmem:[%s5 + $0x18] sm:$0xf]
  %v1338 = vld [vmem:[%s5 + $0x1c] sm:$0xf]
  %v1339 = vld [vmem:[%s5 + $0x20] sm:$0xf]
  %v1340 = vld [vmem:[%s5 + $0x24] sm:$0xf]
  %v1341 = vld [vmem:[%s5 + $0x28] sm:$0xf]
  %v1342 = vld [vmem:[%s5 + $0x2c] sm:$0xf]
  %v1343 = vld [vmem:[%s5 + $0x30] sm:$0xf]
  %v1344 = vld [vmem:[%s5 + $0x34] sm:$0xf]
  %v1345 = vld [vmem:[%s5 + $0x38] sm:$0xf]
  %v1346 = vld [vmem:[%s5 + $0x3c] sm:$0xf]
  %v1347 = vld [vmem:[%s6] sm:$0x1]
  %v1349 = vperm.slane %v1347, 0
  %v1367 = vunpack.c.l.b16 %v1331
  %v1368 = vunpack.c.l.b16 %v1332
  %v1369 = vunpack.c.l.b16 %v1333
  %v1370 = vunpack.c.l.b16 %v1334
  %v1371 = vunpack.c.l.b16 %v1335
  %v1372 = vunpack.c.l.b16 %v1336
  %v1373 = vunpack.c.l.b16 %v1337
  %v1374 = vunpack.c.l.b16 %v1338
  %v1375 = vunpack.c.l.b16 %v1339
  %v1376 = vunpack.c.l.b16 %v1340
  %v1377 = vunpack.c.l.b16 %v1341
  %v1378 = vunpack.c.l.b16 %v1342
  %v1379 = vunpack.c.l.b16 %v1343
  %v1380 = vunpack.c.l.b16 %v1344
  %v1381 = vunpack.c.l.b16 %v1345
  %v1382 = vunpack.c.l.b16 %v1346
  %v1383 = vpack.c.b16 %v1368, %v1367
  %v1384 = vpack.c.b16 %v1370, %v1369
  %v1385 = vpack.c.b16 %v1372, %v1371
  %v1386 = vpack.c.b16 %v1374, %v1373
  %v1387 = vpack.c.b16 %v1376, %v1375
  %v1388 = vpack.c.b16 %v1378, %v1377
  %v1389 = vpack.c.b16 %v1380, %v1379
  %v1390 = vpack.c.b16 %v1382, %v1381
  %1399 = vmatpush.bf16.msra.mxu0 %v1390
  %1400 = vmatpush.bf16.msra.mxu0 %v1389
  %1401 = vmatpush.bf16.msra.mxu0 %v1388
  %1402 = vmatpush.bf16.msra.mxu0 %v1387
  %1403 = vmatpush.bf16.msra.mxu0 %v1386
  %1404 = vmatpush.bf16.msra.mxu0 %v1385
  %1405 = vmatpush.bf16.msra.mxu0 %v1384
  %1406 = vmatpush.bf16.msra.mxu0 %v1383
  %1407 = vmatmul.bf16.gmra.mxu0 %v1330
  %v1408 = vpop.f32.mrf.mxu0
  %v1409 = vadd.f32 %v1349, %v1408
  %v1410 = vpop.f32.mrf.mxu0
  %1411 = vdwg.mxu0
  %1412 = vst [vmem:[%s7] sm:$0xff] %v1409
  // Predicated region
  $region30: #{lenet_complex_forward.7} parent=0 // pred_check
    _
  $region31: #{lenet_complex_forward.7} parent=0 // pred_check_branch
    %1414 = sbr.rel (0) target = $region33
  $region32: #{lenet_complex_forward.7} parent=0 // pred_region
    _
  $region33: #{lenet_complex_forward.7} parent=0 // pred_fallthru
    _
  // Predicated region
  $region34: #{lenet_complex_forward.7} parent=0 // pred_check
    _
  $region35: #{lenet_complex_forward.7} parent=0 // pred_check_branch
    %1416 = sbr.rel (0) target = $region37
  $region36: #{lenet_complex_forward.7} parent=0 // pred_region
    _
  $region37: #{lenet_complex_forward.7} parent=0 // pred_fallthru
    _

</llo_original>
